<compile_context>
chip_gen: v6e
topology: v6e:2x2x1
jax: 0.10.0
libtpu: 0.0.40
codegen_flags: <defaults>
</compile_context>

<pallas_src>
import functools
import numpy as np
import jax
import jax.numpy as jnp
from jax.experimental import pallas as pl
from jax.experimental.pallas import tpu as pltpu

# ----------------------- stand-in for cfg.model.* -----------------------
SPEED_FACTOR = 10.0          # cfg.model.speed_factor
BETA_INIT = 0.1              # cfg.model.beta_init
W = 64                       # cfg.model.net_width
W_GEO = 32                   # cfg.model.feature_width
SDF_D, SDF_SKIPS, SDF_FR = 4, (2,), 6                       # cfg.model.sdf.*
RAD_D, RAD_SKIPS, RAD_FR_POS, RAD_FR_VIEW = 2, (), -1, 4    # cfg.model.radiance.*
SEM_D, SEM_SKIPS, SEM_FR = 2, (), 6                         # cfg.model.semantic.*
INV_SQRT2 = float(1.0 / np.sqrt(2.0))
LN_BETA_INIT = float(np.log(BETA_INIT) / SPEED_FACTOR)

N_FX, N_FV = SDF_FR, RAD_FR_VIEW      # 6 position freqs, 4 view freqs
FREQS_X = np.array([2.0 ** i for i in range(N_FX)], np.float32)
FREQS_V = np.array([2.0 ** i for i in range(N_FV)], np.float32)


def embed_dim(multires, input_dim=3):
    return input_dim if multires < 0 else input_dim * (1 + 2 * multires)


SDF_IN = embed_dim(SDF_FR)                                             # 39
RAD_IN0 = embed_dim(RAD_FR_POS) + embed_dim(RAD_FR_VIEW) + 3 + W_GEO   # 65
SEM_IN0 = embed_dim(SEM_FR) + W_GEO                                    # 71
SKIP_H = W - SDF_IN                                                    # 25
SDF_OUT = 1 + W_GEO                                                    # 33


# ----------------------- parameter layout (torch ordering) -----------------------
def _layer_dims():
    defs = []
    for l in range(SDF_D + 1):          # SDFNet.surface_fc_layers
        if l == SDF_D:
            out = 1 + W_GEO if W_GEO > 0 else 1
        elif (l + 1) in SDF_SKIPS:
            out = W - SDF_IN
        else:
            out = W
        in_d = SDF_IN if l == 0 else W
        defs.append(("sdf", l, in_d, out))
    for l in range(RAD_D + 1):          # RadianceNet.layers
        out = 3 if l == RAD_D else W
        in_d = RAD_IN0 if l == 0 else (RAD_IN0 + W if l in RAD_SKIPS else W)
        defs.append(("rad", l, in_d, out))
    for l in range(SEM_D + 1):          # SemanticNet.layers
        out = 3 if l == SEM_D else W
        in_d = SEM_IN0 if l == 0 else (SEM_IN0 + W if l in SEM_SKIPS else W)
        defs.append(("sem", l, in_d, out))
    return defs


PARAM_DEFS = []
for _net, _l, _in, _out in _layer_dims():
    PARAM_DEFS.append((f"{_net}_w{_l}", (_in, _out)))   # weights stored (in, out)
    PARAM_DEFS.append((f"{_net}_b{_l}", (1, _out)))     # biases stored (1, out)


def init_params(key):
    params = {}
    for name, shape in PARAM_DEFS:
        key, sub = jax.random.split(key)
        if "_w" in name:
            fan_in = shape[0]
            params[name] = (jax.random.normal(sub, shape, jnp.float32)
                            / np.sqrt(fan_in)).astype(jnp.float32)
        else:
            params[name] = jnp.zeros(shape, jnp.float32)
    return params


# ----------------------- shared math (pure-JAX reference) -----------------------
def _sigmoid(z):
    return 1.0 / (1.0 + jnp.exp(-z))


def _embed(x, multires):
    if multires < 0:
        return x
    outs = [x]
    for i in range(multires):
        f = float(2.0 ** i)
        outs.append(jnp.sin(x * f))
        outs.append(jnp.cos(x * f))
    return jnp.concatenate(outs, axis=-1)


def _embed_with_jac(x, multires):
    n = x.shape[0]
    eye = jnp.eye(3, dtype=x.dtype)
    outs = [x]
    jacs = [jnp.broadcast_to(eye[:, None, :], (3, n, 3))]
    for i in range(multires):
        f = float(2.0 ** i)
        s = jnp.sin(x * f)
        c = jnp.cos(x * f)
        outs += [s, c]
        jacs.append(eye[:, None, :] * (f * c)[None, :, :])
        jacs.append(eye[:, None, :] * (-f * s)[None, :, :])
    return jnp.concatenate(outs, -1), jnp.concatenate(jacs, -1)


def _linear(h, w, b):
    return jnp.dot(h, w, preferred_element_type=jnp.float32) + b


def _linear_jac(jh, w):
    k, n, c = jh.shape
    out = jnp.dot(jh.reshape(k * n, c), w, preferred_element_type=jnp.float32)
    return out.reshape(k, n, w.shape[1])


def _softplus100(z):
    bz = 100.0 * z
    soft = jnp.log1p(jnp.exp(jnp.minimum(bz, 20.0))) / 100.0
    return jnp.where(bz > 20.0, z, soft)


def _dsoftplus100(z):
    bz = 100.0 * z
    e = jnp.exp(jnp.minimum(bz, 20.0))
    return jnp.where(bz > 20.0, 1.0, e / (1.0 + e))


def _sdf_forward(x, p):
    emb, jac = _embed_with_jac(x, SDF_FR)
    h, jh = emb, jac
    for i in range(SDF_D):
        if i in SDF_SKIPS:
            h = jnp.concatenate([h, emb], -1) * INV_SQRT2
            jh = jnp.concatenate([jh, jac], -1) * INV_SQRT2
        w, b = p[f"sdf_w{i}"], p[f"sdf_b{i}"]
        pre = _linear(h, w, b)
        jpre = _linear_jac(jh, w)
        h = _softplus100(pre)
        jh = jpre * _dsoftplus100(pre)[None]
    w, b = p[f"sdf_w{SDF_D}"], p[f"sdf_b{SDF_D}"]
    out = _linear(h, w, b)
    jout = _linear_jac(jh, w)
    sdf = -out[:, :1]
    geo = out[:, 1:]
    nabla = -jnp.concatenate(
        [jout[0, :, 0:1], jout[1, :, 0:1], jout[2, :, 0:1]], axis=-1)
    return sdf, nabla, geo


def _radiance_forward(x, v, nabla, geo, p):
    inp = jnp.concatenate([_embed(x, RAD_FR_POS), _embed(v, RAD_FR_VIEW), nabla, geo], -1)
    h = inp
    for i in range(RAD_D + 1):
        if i in RAD_SKIPS:
            h = jnp.concatenate([h, inp], -1)
        h = _linear(h, p[f"rad_w{i}"], p[f"rad_b{i}"])
        h = jnp.maximum(h, 0.0) if i != RAD_D else _sigmoid(h)
    return h


def _semantic_forward(x, geo, p):
    inp = jnp.concatenate([_embed(x, SEM_FR), geo], -1)
    h = inp
    for i in range(SEM_D + 1):
        if i in SEM_SKIPS:
            h = jnp.concatenate([h, inp], -1)
        h = _linear(h, p[f"sem_w{i}"], p[f"sem_b{i}"])
        h = jnp.maximum(h, 0.0) if i != SEM_D else _sigmoid(h)
    return h


def _mlp_math(x, v, p):
    sdf, nabla, geo = _sdf_forward(x, p)
    rad = _radiance_forward(x, v, nabla, geo, p)
    sem = _semantic_forward(x, geo, p)
    return rad, sem, sdf, nabla


# ----------------------- kernel-side constants & weight prep -----------------------
# grouped x-embedding order: [x0,x1,x2 | sin coord-major | cos coord-major],
# mapped back to the torch Embedder's interleaved order.
def _emb_perm(n_freq):
    p = list(range(3))
    for k in range(3):
        for i in range(n_freq):
            p.append(3 + 6 * i + k)         # sin(f_i x_k)
    for k in range(3):
        for i in range(n_freq):
            p.append(3 + 6 * i + 3 + k)     # cos(f_i x_k)
    return np.array(p, np.int64)


PERM_X = _emb_perm(N_FX)   # length 39

KWEIGHT_NAMES = (
    "sdf_w0", "sdf_w1", "sdf_w2h", "sdf_w2e", "sdf_w3", "sdf_w4",
    "rad_w0_xv", "rad_w0_trig", "rad_w0_prim", "rad_w0_nab", "rad_w1", "rad_w2",
    "sem_w0_xv", "sem_w0_trig", "sem_w0_prim", "sem_w1", "sem_w2",
)

# packed bias row layout (per-point-group widths; folded width = width * FOLD)
BIAS_LAYOUT = (
    ("sdf_b0", W), ("sdf_b1", SKIP_H), ("sdf_b2", W), ("sdf_b3", W), ("sdf_b4", SDF_OUT),
    ("rad_b0", W), ("rad_b1", W), ("rad_b2", 3),
    ("sem_b0", W), ("sem_b1", W), ("sem_b2", 3),
)
BIAS_OFFSETS = {}
_off = 0
for _n, _w in BIAS_LAYOUT:
    BIAS_OFFSETS[_n] = (_off, _w)
    _off += _w
BIAS_TOTAL = _off


def _emb_rows(g, F):
    """Folded-emb column indices of group g, in grouped order [x, sin, cos]."""
    rows = [3 * g + k for k in range(3)]
    rows += [3 * F + 18 * g + j for j in range(18)]
    rows += [21 * F + 18 * g + j for j in range(18)]
    return np.array(rows, np.int64)


def _fold_emb_weight(w_grouped, F):
    """(39, out) grouped-order weight -> (39F, out*F) block weight for folded emb."""
    out = w_grouped.shape[1]
    wf = np.zeros((39 * F, out * F), np.float32)
    for g in range(F):
        wf[_emb_rows(g, F), out * g:out * (g + 1)] = w_grouped
    return wf


def _kron(wm, F):
    """Block-diagonal repetition of a weight (per-point-group blocks)."""
    return np.kron(np.eye(F, dtype=np.float32), np.asarray(wm, np.float32))


def prepare_kernel_params(params, fold):
    """Pre-permute / block-diagonalize the torch-layout weights for the kernel.

    Called ONCE (hoisted out of the per-launch path)."""
    F = fold
    p = {k: np.asarray(v, np.float32) for k, v in params.items()}
    kp = {}

    # --- SDF net ---
    kp["sdf_w0"] = _fold_emb_weight(p["sdf_w0"][PERM_X], F)
    kp["sdf_w1"] = _kron(p["sdf_w1"], F)
    kp["sdf_w2h"] = _kron(p["sdf_w2"][:SKIP_H], F)
    kp["sdf_w2e"] = _fold_emb_weight(p["sdf_w2"][SKIP_H:][PERM_X], F)
    kp["sdf_w3"] = _kron(p["sdf_w3"], F)
    kp["sdf_w4"] = _kron(p["sdf_w4"], F)

    # --- radiance (torch input = [x(3), v(3), v_trig(24), nabla(3), geo(32)]) ---
    rw0 = p["rad_w0"]
    w_xv = np.zeros((6 * F, W * F), np.float32)
    w_tr = np.zeros((60 * F, W * F), np.float32)
    w_pr = np.zeros((SDF_OUT * F, W * F), np.float32)
    for g in range(F):
        cs = slice(W * g, W * (g + 1))
        w_xv[3 * g:3 * g + 3, cs] = rw0[0:3]                      # raw x
        w_xv[3 * F + 3 * g:3 * F + 3 * g + 3, cs] = rw0[3:6]      # raw view dir
        for k in range(3):
            for i in range(N_FV):
                w_tr[36 * F + 12 * g + 4 * k + i, cs] = rw0[6 + 6 * i + k]   # sin(fv_i v_k)
                w_tr[48 * F + 12 * g + 4 * k + i, cs] = rw0[9 + 6 * i + k]   # cos(fv_i v_k)
        w_pr[SDF_OUT * g + 1:SDF_OUT * g + SDF_OUT, cs] = rw0[33:65]         # geo rows
    kp["rad_w0_xv"] = w_xv
    kp["rad_w0_trig"] = w_tr
    kp["rad_w0_prim"] = w_pr
    kp["rad_w0_nab"] = _kron(rw0[30:33], F)
    kp["rad_w1"] = _kron(p["rad_w1"], F)
    kp["rad_w2"] = _kron(p["rad_w2"], F)

    # --- semantic (torch input = [x(3), x_trig(36), geo(32)]) ---
    sw0 = p["sem_w0"]
    w_xv = np.zeros((6 * F, W * F), np.float32)
    w_tr = np.zeros((60 * F, W * F), np.float32)
    w_pr = np.zeros((SDF_OUT * F, W * F), np.float32)
    for g in range(F):
        cs = slice(W * g, W * (g + 1))
        w_xv[3 * g:3 * g + 3, cs] = sw0[0:3]                      # raw x (view rows stay 0)
        for k in range(3):
            for i in range(N_FX):
                w_tr[18 * g + 6 * k + i, cs] = sw0[3 + 6 * i + k]            # sin(f_i x_k)
                w_tr[18 * F + 18 * g + 6 * k + i, cs] = sw0[6 + 6 * i + k]   # cos(f_i x_k)
        w_pr[SDF_OUT * g + 1:SDF_OUT * g + SDF_OUT, cs] = sw0[SDF_IN:]       # geo rows
    kp["sem_w0_xv"] = w_xv
    kp["sem_w0_trig"] = w_tr
    kp["sem_w0_prim"] = w_pr
    kp["sem_w1"] = _kron(p["sem_w1"], F)
    kp["sem_w2"] = _kron(p["sem_w2"], F)

    # --- packed folded bias row (single input stream) ---
    bias = np.zeros((1, BIAS_TOTAL * F), np.float32)
    for name, (off, wid) in BIAS_OFFSETS.items():
        bias[:, off * F:(off + wid) * F] = np.tile(p[name], (1, F))
    kp["bias"] = bias

    # --- trig / embedding constants ---
    # phase matrix: folded xv (R, 6F) = [x groups | v groups]  ->  (R, 60F) phases
    # trig column layout: [sin_x (18F) | cos_x (18F) | sin_v (12F) | cos_v (12F)],
    # cos obtained from a single sin via +pi/2 phase bias.
    fm = np.zeros((6 * F, 60 * F), np.float32)
    pb = np.zeros((1, 60 * F), np.float32)
    for g in range(F):
        for k in range(3):
            for i in range(N_FX):
                fm[3 * g + k, 18 * g + 6 * k + i] = FREQS_X[i]
                fm[3 * g + k, 18 * F + 18 * g + 6 * k + i] = FREQS_X[i]
            for i in range(N_FV):
                fm[3 * F + 3 * g + k, 36 * F + 12 * g + 4 * k + i] = FREQS_V[i]
                fm[3 * F + 3 * g + k, 48 * F + 12 * g + 4 * k + i] = FREQS_V[i]
    pb[:, 18 * F:36 * F] = np.pi / 2.0
    pb[:, 48 * F:60 * F] = np.pi / 2.0
    kp["fmat"] = fm
    kp["pbias"] = pb
    # frequency row for the x-embedding derivative (per group, coord-major)
    kp["frep"] = np.tile(np.tile(FREQS_X, 3)[None, :], (1, F))          # (1, 18F)
    # coordinate-ownership mask of the folded x-embedding columns -> (3, 1, 39F)
    coord = np.zeros((39 * F,), np.int32)
    for g in range(F):
        for k in range(3):
            coord[3 * g + k] = k
            for i in range(N_FX):
                coord[3 * F + 18 * g + 6 * k + i] = k
                coord[21 * F + 18 * g + 6 * k + i] = k
    kp["jmask"] = (np.arange(3)[:, None] == coord[None, :]).astype(np.float32)[:, None, :]

    return {k: jnp.asarray(v) for k, v in kp.items()}


def _default_fold():
    """4 on v6e/v7x (256-wide MXU), 2 on older 128-wide-MXU chips."""
    try:
        kind = jax.devices()[0].device_kind.lower()
    except Exception:
        return 4
    for tag in ("v2", "v3", "v4", "v5"):
        if tag in kind:
            return 2
    return 4


# ----------------------- Pallas kernel -----------------------
def _mlp_kernel(xv_ref, fmat_ref, pbias_ref, frep_ref, jmask_ref, bias_ref, *refs,
                fold, tile_rows):
    F = fold
    R = tile_rows
    n_w = len(KWEIGHT_NAMES)
    w = {name: r[...] for name, r in zip(KWEIGHT_NAMES, refs[:n_w])}
    out_ref = refs[n_w]
    scr_a = refs[n_w + 1]          # ping-pong VMEM scratch (4R, 64F)
    scr_b = refs[n_w + 2]

    def dot(a, b):
        return jnp.dot(a, b, preferred_element_type=jnp.float32)

    def bias(name):
        off, wid = BIAS_OFFSETS[name]
        return bias_ref[:, off * F:(off + wid) * F]

    xv = xv_ref[...]                                   # (R, 6F) = [x groups | v groups]
    xg = xv[:, 0:3 * F]

    # one phase matmul + ONE sin gives the whole [sin_x|cos_x|sin_v|cos_v] slab
    trig = jnp.sin(dot(xv, fmat_ref[...]) + pbias_ref[...])     # (R, 60F)
    sx = trig[:, 0:18 * F]
    cx = trig[:, 18 * F:36 * F]
    frep = frep_ref[...]                                        # (1, 18F)

    # folded positional embedding + its 3 tangent streams (block-diag Jacobian)
    emb = jnp.concatenate([xg, sx, cx], axis=-1)                # (R, 39F)
    demb = jnp.concatenate([jnp.ones_like(xg), cx * frep, sx * (-frep)], axis=-1)
    jemb = demb[None, :, :] * jmask_ref[...]                    # (3, R, 39F)
    embjac = jnp.concatenate([emb[None], jemb], axis=0).reshape(4 * R, 39 * F)

    def act_store(o, b, width, dst):
        """softplus(beta=100) on primal rows + derivative scaling on tangent rows
        (shared exp), written straight into the ping-pong scratch (no concat)."""
        pre = o[0:R] + b
        bz = 100.0 * pre
        big = bz > 20.0
        e = jnp.exp(jnp.minimum(bz, 20.0))
        dst[0:R, 0:width] = jnp.where(big, pre, jnp.log1p(e) * 0.01)
        d = jnp.where(big, 1.0, e / (1.0 + e))
        tang = o[R:4 * R].reshape(3, R, width) * d[None]
        dst[R:4 * R, 0:width] = tang.reshape(3 * R, width)

    WH = W * F          # 64F
    WS = SKIP_H * F     # 25F

    # --- SDF net: one fused (4R, K) matmul per layer against block-diag weights ---
    act_store(dot(embjac, w["sdf_w0"]), bias("sdf_b0"), WH, scr_a)            # layer 0
    act_store(dot(scr_a[:, 0:WH], w["sdf_w1"]), bias("sdf_b1"), WS, scr_b)    # layer 1
    act_store((dot(scr_b[:, 0:WS], w["sdf_w2h"]) + dot(embjac, w["sdf_w2e"]))
              * INV_SQRT2, bias("sdf_b2"), WH, scr_a)                         # layer 2 (skip)
    act_store(dot(scr_a[:, 0:WH], w["sdf_w3"]), bias("sdf_b3"), WH, scr_b)    # layer 3
    o = dot(scr_b[:, 0:WH], w["sdf_w4"])                                      # layer 4 (linear)
    prim = o[0:R] + bias("sdf_b4")                              # (R, 33F): [sdf_raw|geo] / group
    jx, jy, jz = o[R:2 * R], o[2 * R:3 * R], o[3 * R:4 * R]

    sdf_cols, nab_cols = [], []
    for g in range(F):
        c = SDF_OUT * g
        sdf_cols.append(-prim[:, c:c + 1])
        nab_cols += [-jx[:, c:c + 1], -jy[:, c:c + 1], -jz[:, c:c + 1]]
    sdf_f = jnp.concatenate(sdf_cols, axis=-1)                  # (R, F)
    nab_f = jnp.concatenate(nab_cols, axis=-1)                  # (R, 3F)

    def relu(z):
        return jnp.maximum(z, 0.0)

    def sigmoid(z):
        return 1.0 / (1.0 + jnp.exp(-z))

    # --- radiance net (layer-0 input assembled via partial dots on folded slabs;
    #     geo taken directly from `prim` through a masked block weight) ---
    h = relu(dot(xv, w["rad_w0_xv"]) + dot(trig, w["rad_w0_trig"])
             + dot(prim, w["rad_w0_prim"]) + dot(nab_f, w["rad_w0_nab"]) + bias("rad_b0"))
    h = relu(dot(h, w["rad_w1"]) + bias("rad_b1"))
    rad_f = sigmoid(dot(h, w["rad_w2"]) + bias("rad_b2"))       # (R, 3F)

    # --- semantic net ---
    h = relu(dot(xv, w["sem_w0_xv"]) + dot(trig, w["sem_w0_trig"])
             + dot(prim, w["sem_w0_prim"]) + bias("sem_b0"))
    h = relu(dot(h, w["sem_w1"]) + bias("sem_b1"))
    sem_f = sigmoid(dot(h, w["sem_w2"]) + bias("sem_b2"))       # (R, 3F)

    # lane-packed folded output: [rad(3F) | sem(3F) | sdf(F) | nabla(3F)]
    out_ref[...] = jnp.concatenate([rad_f, sem_f, sdf_f, nab_f], axis=-1)


def _mlp_forward_impl(x, view_dirs, kp, fold, tile_points=1024):
    """MLP.forward(x, view_dirs) -> (radiances, semantics, sdf, nablas)."""
    F = fold
    N = x.shape[0]

    # Tile / fold geometry.  tile_points=1024 keeps v7x (64 MiB VMEM) comfortable;
    # v5e/v6e (128 MiB, single TC) also run this fine with many grid steps for big N.
    rows_target = max(8, tile_points // F)
    np1 = -(-N // F) * F                      # pad points to a multiple of the fold
    rows = np1 // F
    R = min(rows_target, -(-rows // 8) * 8)   # tile rows, multiple of 8
    rows_pad = -(-rows // R) * R
    n_pad = rows_pad * F

    xf = jnp.pad(x.astype(jnp.float32), ((0, n_pad - N), (0, 0))).reshape(rows_pad, 3 * F)
    vf = jnp.pad(view_dirs.astype(jnp.float32),
                 ((0, n_pad - N), (0, 0))).reshape(rows_pad, 3 * F)
    xvf = jnp.concatenate([xf, vf], axis=-1)                       # (rows_pad, 6F)

    aux_arrays = [kp["fmat"], kp["pbias"], kp["frep"], kp["jmask"], kp["bias"]]
    w_arrays = [kp[n] for n in KWEIGHT_NAMES]

    in_specs = [pl.BlockSpec((R, 6 * F), lambda i: (i, 0))]
    for a in aux_arrays + w_arrays:
        if a.ndim == 3:
            in_specs.append(pl.BlockSpec(a.shape, lambda i: (0, 0, 0)))
        else:
            in_specs.append(pl.BlockSpec(a.shape, lambda i: (0, 0)))

    out_w = 10 * F
    kernel = functools.partial(_mlp_kernel, fold=F, tile_rows=R)
    fn = pl.pallas_call(
        kernel,
        grid=(rows_pad // R,),
        in_specs=in_specs,
        out_specs=pl.BlockSpec((R, out_w), lambda i: (i, 0)),
        out_shape=jax.ShapeDtypeStruct((rows_pad, out_w), jnp.float32),
        scratch_shapes=[pltpu.VMEM((4 * R, W * F), jnp.float32),
                        pltpu.VMEM((4 * R, W * F), jnp.float32)],
        compiler_params=pltpu.CompilerParams(
            dimension_semantics=("parallel",),
            vmem_limit_bytes=32 * 1024 * 1024),
    )
    packed = fn(xvf, *aux_arrays, *w_arrays)        # (rows_pad, 10F)

    rad = packed[:, 0:3 * F].reshape(n_pad, 3)[:N]
    sem = packed[:, 3 * F:6 * F].reshape(n_pad, 3)[:N]
    sdf = packed[:, 6 * F:7 * F].reshape(n_pad)[:N]
    nab = packed[:, 7 * F:10 * F].reshape(n_pad, 3)[:N]
    return rad, sem, sdf, nab


def mlp_forward(x, view_dirs, params, fold=None):
    """Convenience one-shot path (prepares weights per call)."""
    f = _default_fold() if fold is None else fold
    return _mlp_forward_impl(x, view_dirs, prepare_kernel_params(params, f), f)


def forward_ab():
    # MLP.forward_ab (pure scalar math, no kernel needed)
    beta = float(np.exp(LN_BETA_INIT * SPEED_FACTOR))
    return 1.0 / beta, beta


# ----------------------- main -----------------------
if __name__ == "__main__":
    key = jax.random.PRNGKey(0)
    kparam, kx, kv = jax.random.split(key, 3)
    params = init_params(kparam)

    N = 200   # non-multiple of the fold*8 granularity -> exercises padding
    x = jax.random.normal(kx, (N, 3), jnp.float32) * 0.5
    view_dirs = jax.random.normal(kv, (N, 3), jnp.float32)
    view_dirs = view_dirs / jnp.linalg.norm(view_dirs, axis=-1, keepdims=True)

    fold = _default_fold()
    kparams = prepare_kernel_params(params, fold)               # hoisted: prep once
    forward = jax.jit(functools.partial(_mlp_forward_impl, fold=fold))

    rad, sem, sdf, nab = forward(x, view_dirs, kparams)
    jax.block_until_ready((rad, sem, sdf, nab))

    # pure-JAX reference (original formulation) for a correctness check
    rad_r, sem_r, sdf_r, nab_r = _mlp_math(x, view_dirs, params)
    np.testing.assert_allclose(np.asarray(rad), np.asarray(rad_r), rtol=2e-4, atol=2e-4)
    np.testing.assert_allclose(np.asarray(sem), np.asarray(sem_r), rtol=2e-4, atol=2e-4)
    np.testing.assert_allclose(np.asarray(sdf), np.asarray(sdf_r[:, 0]), rtol=2e-4, atol=2e-4)
    np.testing.assert_allclose(np.asarray(nab), np.asarray(nab_r), rtol=2e-4, atol=2e-4)

    assert rad.shape == (N, 3) and sem.shape == (N, 3)
    assert sdf.shape == (N,) and nab.shape == (N, 3)

    a, b = forward_ab()
    assert abs(a * b - 1.0) < 1e-6

    print("KERNEL_OK")
</pallas_src>

<mosaic_0001>
module attributes {stable_mosaic.version = 11 : i64} {
  func.func @_mlp_kernel(%arg0: i32, %arg1: memref<56x24xf32, #tpu.memory_space<vmem>>, %arg2: memref<24x240xf32, #tpu.memory_space<vmem>>, %arg3: memref<1x240xf32, #tpu.memory_space<vmem>>, %arg4: memref<1x72xf32, #tpu.memory_space<vmem>>, %arg5: memref<3x1x156xf32, #tpu.memory_space<vmem>>, %arg6: memref<1x2048xf32, #tpu.memory_space<vmem>>, %arg7: memref<156x256xf32, #tpu.memory_space<vmem>>, %arg8: memref<256x100xf32, #tpu.memory_space<vmem>>, %arg9: memref<100x256xf32, #tpu.memory_space<vmem>>, %arg10: memref<156x256xf32, #tpu.memory_space<vmem>>, %arg11: memref<256x256xf32, #tpu.memory_space<vmem>>, %arg12: memref<256x132xf32, #tpu.memory_space<vmem>>, %arg13: memref<24x256xf32, #tpu.memory_space<vmem>>, %arg14: memref<240x256xf32, #tpu.memory_space<vmem>>, %arg15: memref<132x256xf32, #tpu.memory_space<vmem>>, %arg16: memref<12x256xf32, #tpu.memory_space<vmem>>, %arg17: memref<256x256xf32, #tpu.memory_space<vmem>>, %arg18: memref<256x12xf32, #tpu.memory_space<vmem>>, %arg19: memref<24x256xf32, #tpu.memory_space<vmem>>, %arg20: memref<240x256xf32, #tpu.memory_space<vmem>>, %arg21: memref<132x256xf32, #tpu.memory_space<vmem>>, %arg22: memref<256x256xf32, #tpu.memory_space<vmem>>, %arg23: memref<256x12xf32, #tpu.memory_space<vmem>>, %arg24: memref<56x40xf32, #tpu.memory_space<vmem>>, %arg25: memref<224x256xf32, #tpu.memory_space<vmem>>, %arg26: memref<224x256xf32, #tpu.memory_space<vmem>>) attributes {dimension_semantics = [#tpu.dimension_semantics<parallel>], iteration_bounds = array<i64: 1>, scalar_prefetch = 0 : i64, scratch_operands = 2 : i64, tpu.core_type = #tpu.core_type<tc>, window_params = [{transform_indices = @transform_0, window_bounds = array<i64: 56, 24>}, {pipeline_mode = #tpu.pipeline_mode<synchronous>, transform_indices = @transform_1, window_bounds = array<i64: 24, 240>}, {pipeline_mode = #tpu.pipeline_mode<synchronous>, transform_indices = @transform_2, window_bounds = array<i64: 1, 240>}, {pipeline_mode = #tpu.pipeline_mode<synchronous>, transform_indices = @transform_3, window_bounds = array<i64: 1, 72>}, {pipeline_mode = #tpu.pipeline_mode<synchronous>, transform_indices = @transform_4, window_bounds = array<i64: 3, 1, 156>}, {pipeline_mode = #tpu.pipeline_mode<synchronous>, transform_indices = @transform_5, window_bounds = array<i64: 1, 2048>}, {pipeline_mode = #tpu.pipeline_mode<synchronous>, transform_indices = @transform_6, window_bounds = array<i64: 156, 256>}, {pipeline_mode = #tpu.pipeline_mode<synchronous>, transform_indices = @transform_7, window_bounds = array<i64: 256, 100>}, {pipeline_mode = #tpu.pipeline_mode<synchronous>, transform_indices = @transform_8, window_bounds = array<i64: 100, 256>}, {pipeline_mode = #tpu.pipeline_mode<synchronous>, transform_indices = @transform_9, window_bounds = array<i64: 156, 256>}, {pipeline_mode = #tpu.pipeline_mode<synchronous>, transform_indices = @transform_10, window_bounds = array<i64: 256, 256>}, {pipeline_mode = #tpu.pipeline_mode<synchronous>, transform_indices = @transform_11, window_bounds = array<i64: 256, 132>}, {pipeline_mode = #tpu.pipeline_mode<synchronous>, transform_indices = @transform_12, window_bounds = array<i64: 24, 256>}, {pipeline_mode = #tpu.pipeline_mode<synchronous>, transform_indices = @transform_13, window_bounds = array<i64: 240, 256>}, {pipeline_mode = #tpu.pipeline_mode<synchronous>, transform_indices = @transform_14, window_bounds = array<i64: 132, 256>}, {pipeline_mode = #tpu.pipeline_mode<synchronous>, transform_indices = @transform_15, window_bounds = array<i64: 12, 256>}, {pipeline_mode = #tpu.pipeline_mode<synchronous>, transform_indices = @transform_16, window_bounds = array<i64: 256, 256>}, {pipeline_mode = #tpu.pipeline_mode<synchronous>, transform_indices = @transform_17, window_bounds = array<i64: 256, 12>}, {pipeline_mode = #tpu.pipeline_mode<synchronous>, transform_indices = @transform_18, window_bounds = array<i64: 24, 256>}, {pipeline_mode = #tpu.pipeline_mode<synchronous>, transform_indices = @transform_19, window_bounds = array<i64: 240, 256>}, {pipeline_mode = #tpu.pipeline_mode<synchronous>, transform_indices = @transform_20, window_bounds = array<i64: 132, 256>}, {pipeline_mode = #tpu.pipeline_mode<synchronous>, transform_indices = @transform_21, window_bounds = array<i64: 256, 256>}, {pipeline_mode = #tpu.pipeline_mode<synchronous>, transform_indices = @transform_22, window_bounds = array<i64: 256, 12>}, {transform_indices = @transform_23, window_bounds = array<i64: 56, 40>}]} {
    %c0 = arith.constant 0 : index
    %c0_0 = arith.constant 0 : index
    %0 = vector.load %arg7[%c0, %c0_0] : memref<156x256xf32, #tpu.memory_space<vmem>>, vector<156x256xf32>
    %c0_1 = arith.constant 0 : index
    %c0_2 = arith.constant 0 : index
    %1 = vector.load %arg8[%c0_1, %c0_2] : memref<256x100xf32, #tpu.memory_space<vmem>>, vector<256x100xf32>
    %c0_3 = arith.constant 0 : index
    %c0_4 = arith.constant 0 : index
    %2 = vector.load %arg9[%c0_3, %c0_4] : memref<100x256xf32, #tpu.memory_space<vmem>>, vector<100x256xf32>
    %c0_5 = arith.constant 0 : index
    %c0_6 = arith.constant 0 : index
    %3 = vector.load %arg10[%c0_5, %c0_6] : memref<156x256xf32, #tpu.memory_space<vmem>>, vector<156x256xf32>
    %c0_7 = arith.constant 0 : index
    %c0_8 = arith.constant 0 : index
    %4 = vector.load %arg11[%c0_7, %c0_8] : memref<256x256xf32, #tpu.memory_space<vmem>>, vector<256x256xf32>
    %c0_9 = arith.constant 0 : index
    %c0_10 = arith.constant 0 : index
    %5 = vector.load %arg12[%c0_9, %c0_10] : memref<256x132xf32, #tpu.memory_space<vmem>>, vector<256x132xf32>
    %c0_11 = arith.constant 0 : index
    %c0_12 = arith.constant 0 : index
    %6 = vector.load %arg13[%c0_11, %c0_12] : memref<24x256xf32, #tpu.memory_space<vmem>>, vector<24x256xf32>
    %c0_13 = arith.constant 0 : index
    %c0_14 = arith.constant 0 : index
    %7 = vector.load %arg14[%c0_13, %c0_14] : memref<240x256xf32, #tpu.memory_space<vmem>>, vector<240x256xf32>
    %c0_15 = arith.constant 0 : index
    %c0_16 = arith.constant 0 : index
    %8 = vector.load %arg15[%c0_15, %c0_16] : memref<132x256xf32, #tpu.memory_space<vmem>>, vector<132x256xf32>
    %c0_17 = arith.constant 0 : index
    %c0_18 = arith.constant 0 : index
    %9 = vector.load %arg16[%c0_17, %c0_18] : memref<12x256xf32, #tpu.memory_space<vmem>>, vector<12x256xf32>
    %c0_19 = arith.constant 0 : index
    %c0_20 = arith.constant 0 : index
    %10 = vector.load %arg17[%c0_19, %c0_20] : memref<256x256xf32, #tpu.memory_space<vmem>>, vector<256x256xf32>
    %c0_21 = arith.constant 0 : index
    %c0_22 = arith.constant 0 : index
    %11 = vector.load %arg18[%c0_21, %c0_22] : memref<256x12xf32, #tpu.memory_space<vmem>>, vector<256x12xf32>
    %c0_23 = arith.constant 0 : index
    %c0_24 = arith.constant 0 : index
    %12 = vector.load %arg19[%c0_23, %c0_24] : memref<24x256xf32, #tpu.memory_space<vmem>>, vector<24x256xf32>
    %c0_25 = arith.constant 0 : index
    %c0_26 = arith.constant 0 : index
    %13 = vector.load %arg20[%c0_25, %c0_26] : memref<240x256xf32, #tpu.memory_space<vmem>>, vector<240x256xf32>
    %c0_27 = arith.constant 0 : index
    %c0_28 = arith.constant 0 : index
    %14 = vector.load %arg21[%c0_27, %c0_28] : memref<132x256xf32, #tpu.memory_space<vmem>>, vector<132x256xf32>
    %c0_29 = arith.constant 0 : index
    %c0_30 = arith.constant 0 : index
    %15 = vector.load %arg22[%c0_29, %c0_30] : memref<256x256xf32, #tpu.memory_space<vmem>>, vector<256x256xf32>
    %c0_31 = arith.constant 0 : index
    %c0_32 = arith.constant 0 : index
    %16 = vector.load %arg23[%c0_31, %c0_32] : memref<256x12xf32, #tpu.memory_space<vmem>>, vector<256x12xf32>
    %c0_33 = arith.constant 0 : index
    %c0_34 = arith.constant 0 : index
    %17 = vector.load %arg1[%c0_33, %c0_34] : memref<56x24xf32, #tpu.memory_space<vmem>>, vector<56x24xf32>
    %18 = vector.extract_strided_slice %17 {offsets = [0, 0], sizes = [56, 12], strides = [1, 1]} : vector<56x24xf32> to vector<56x12xf32>
    %c0_35 = arith.constant 0 : index
    %c0_36 = arith.constant 0 : index
    %19 = vector.load %arg2[%c0_35, %c0_36] : memref<24x240xf32, #tpu.memory_space<vmem>>, vector<24x240xf32>
    %cst = arith.constant dense<0.000000e+00> : vector<56x240xf32>
    %20 = tpu.matmul %17, %19, %cst {dimension_numbers = #tpu.dot_dimension_numbers<[1], [0], [0], [1], [0, 0, 1, 1], [], []>} : vector<56x24xf32>, vector<24x240xf32>, vector<56x240xf32> -> vector<56x240xf32>
    %c0_37 = arith.constant 0 : index
    %c0_38 = arith.constant 0 : index
    %21 = vector.load %arg3[%c0_37, %c0_38] : memref<1x240xf32, #tpu.memory_space<vmem>>, vector<1x240xf32>
    %22 = vector.broadcast %21 : vector<1x240xf32> to vector<56x240xf32>
    %23 = arith.addf %20, %22 : vector<56x240xf32>
    %24 = math.sin %23 : vector<56x240xf32>
    %25 = vector.extract_strided_slice %24 {offsets = [0, 0], sizes = [56, 72], strides = [1, 1]} : vector<56x240xf32> to vector<56x72xf32>
    %26 = vector.extract_strided_slice %24 {offsets = [0, 72], sizes = [56, 72], strides = [1, 1]} : vector<56x240xf32> to vector<56x72xf32>
    %c0_39 = arith.constant 0 : index
    %c0_40 = arith.constant 0 : index
    %27 = vector.load %arg4[%c0_39, %c0_40] : memref<1x72xf32, #tpu.memory_space<vmem>>, vector<1x72xf32>
    %28 = tpu.concatenate %18, %25, %26 in 1 : vector<56x12xf32>, vector<56x72xf32>, vector<56x72xf32> -> vector<56x156xf32>
    %cst_41 = arith.constant 1.000000e+00 : f32
    %29 = vector.broadcast %cst_41 : f32 to vector<56x12xf32>
    %30 = vector.broadcast %27 : vector<1x72xf32> to vector<56x72xf32>
    %31 = arith.mulf %26, %30 : vector<56x72xf32>
    %cst_42 = arith.constant 0.000000e+00 : f32
    %32 = vector.broadcast %cst_42 : f32 to vector<1x72xf32>
    %33 = arith.subf %32, %27 : vector<1x72xf32>
    %34 = vector.broadcast %33 : vector<1x72xf32> to vector<56x72xf32>
    %35 = arith.mulf %25, %34 : vector<56x72xf32>
    %36 = tpu.concatenate %29, %31, %35 in 1 : vector<56x12xf32>, vector<56x72xf32>, vector<56x72xf32> -> vector<56x156xf32>
    %37 = vector.shape_cast %36 : vector<56x156xf32> to vector<1x56x156xf32>
    %c0_43 = arith.constant 0 : index
    %c0_44 = arith.constant 0 : index
    %c0_45 = arith.constant 0 : index
    %38 = vector.load %arg5[%c0_43, %c0_44, %c0_45] : memref<3x1x156xf32, #tpu.memory_space<vmem>>, vector<3x1x156xf32>
    %39 = vector.broadcast %37 : vector<1x56x156xf32> to vector<3x56x156xf32>
    %40 = vector.broadcast %38 : vector<3x1x156xf32> to vector<3x56x156xf32>
    %41 = arith.mulf %39, %40 : vector<3x56x156xf32>
    %42 = vector.shape_cast %28 : vector<56x156xf32> to vector<1x56x156xf32>
    %43 = tpu.concatenate %42, %41 in 0 : vector<1x56x156xf32>, vector<3x56x156xf32> -> vector<4x56x156xf32>
    %44 = vector.shape_cast %43 : vector<4x56x156xf32> to vector<224x156xf32>
    %cst_46 = arith.constant dense<0.000000e+00> : vector<224x256xf32>
    %45 = tpu.matmul %44, %0, %cst_46 {dimension_numbers = #tpu.dot_dimension_numbers<[1], [0], [0], [1], [0, 0, 1, 1], [], []>} : vector<224x156xf32>, vector<156x256xf32>, vector<224x256xf32> -> vector<224x256xf32>
    %c0_47 = arith.constant 0 : index
    %c0_48 = arith.constant 0 : index
    %46 = vector.load %arg6[%c0_47, %c0_48] : memref<1x2048xf32, #tpu.memory_space<vmem>>, vector<1x256xf32>
    %47 = vector.extract_strided_slice %45 {offsets = [0, 0], sizes = [56, 256], strides = [1, 1]} : vector<224x256xf32> to vector<56x256xf32>
    %48 = vector.broadcast %46 : vector<1x256xf32> to vector<56x256xf32>
    %49 = arith.addf %47, %48 : vector<56x256xf32>
    %cst_49 = arith.constant 1.000000e+02 : f32
    %50 = vector.broadcast %cst_49 : f32 to vector<56x256xf32>
    %51 = arith.mulf %50, %49 : vector<56x256xf32>
    %cst_50 = arith.constant 2.000000e+01 : f32
    %52 = vector.broadcast %cst_50 : f32 to vector<56x256xf32>
    %53 = arith.cmpf ogt, %51, %52 : vector<56x256xf32>
    %cst_51 = arith.constant 2.000000e+01 : f32
    %54 = vector.broadcast %cst_51 : f32 to vector<56x256xf32>
    %55 = arith.minimumf %51, %54 : vector<56x256xf32>
    %56 = math.exp %55 : vector<56x256xf32>
    %57 = math.log1p %56 : vector<56x256xf32>
    %cst_52 = arith.constant 0.00999999977 : f32
    %58 = vector.broadcast %cst_52 : f32 to vector<56x256xf32>
    %59 = arith.mulf %57, %58 : vector<56x256xf32>
    %60 = arith.select %53, %49, %59 : vector<56x256xi1>, vector<56x256xf32>
    %c0_53 = arith.constant 0 : index
    %c0_54 = arith.constant 0 : index
    %61 = vector.load %arg25[%c0_53, %c0_54] : memref<224x256xf32, #tpu.memory_space<vmem>>, vector<56x256xf32>
    tpu.vector_store %arg25[%c0_53, %c0_54], %60 {strides = array<i32>} : memref<224x256xf32, #tpu.memory_space<vmem>>, vector<56x256xf32>,
    %cst_55 = arith.constant 1.000000e+00 : f32
    %62 = vector.broadcast %cst_55 : f32 to vector<56x256xf32>
    %63 = arith.addf %62, %56 : vector<56x256xf32>
    %64 = arith.divf %56, %63 : vector<56x256xf32>
    %cst_56 = arith.constant 1.000000e+00 : f32
    %65 = vector.broadcast %cst_56 : f32 to vector<56x256xf32>
    %66 = arith.select %53, %65, %64 : vector<56x256xi1>, vector<56x256xf32>
    %67 = vector.extract_strided_slice %45 {offsets = [56, 0], sizes = [168, 256], strides = [1, 1]} : vector<224x256xf32> to vector<168x256xf32>
    %68 = vector.shape_cast %67 : vector<168x256xf32> to vector<3x56x256xf32>
    %69 = vector.shape_cast %66 : vector<56x256xf32> to vector<1x56x256xf32>
    %70 = vector.broadcast %69 : vector<1x56x256xf32> to vector<3x56x256xf32>
    %71 = arith.mulf %68, %70 : vector<3x56x256xf32>
    %72 = vector.shape_cast %71 : vector<3x56x256xf32> to vector<168x256xf32>
    %c56 = arith.constant 56 : index
    %c0_57 = arith.constant 0 : index
    %73 = vector.load %arg25[%c56, %c0_57] : memref<224x256xf32, #tpu.memory_space<vmem>>, vector<168x256xf32>
    tpu.vector_store %arg25[%c56, %c0_57], %72 {strides = array<i32>} : memref<224x256xf32, #tpu.memory_space<vmem>>, vector<168x256xf32>,
    %c0_58 = arith.constant 0 : index
    %c0_59 = arith.constant 0 : index
    %74 = vector.load %arg25[%c0_58, %c0_59] : memref<224x256xf32, #tpu.memory_space<vmem>>, vector<224x256xf32>
    %cst_60 = arith.constant dense<0.000000e+00> : vector<224x100xf32>
    %75 = tpu.matmul %74, %1, %cst_60 {dimension_numbers = #tpu.dot_dimension_numbers<[1], [0], [0], [1], [0, 0, 1, 1], [], []>} : vector<224x256xf32>, vector<256x100xf32>, vector<224x100xf32> -> vector<224x100xf32>
    %c0_61 = arith.constant 0 : index
    %c256 = arith.constant 256 : index
    %76 = vector.load %arg6[%c0_61, %c256] : memref<1x2048xf32, #tpu.memory_space<vmem>>, vector<1x100xf32>
    %77 = vector.extract_strided_slice %75 {offsets = [0, 0], sizes = [56, 100], strides = [1, 1]} : vector<224x100xf32> to vector<56x100xf32>
    %78 = vector.broadcast %76 : vector<1x100xf32> to vector<56x100xf32>
    %79 = arith.addf %77, %78 : vector<56x100xf32>
    %cst_62 = arith.constant 1.000000e+02 : f32
    %80 = vector.broadcast %cst_62 : f32 to vector<56x100xf32>
    %81 = arith.mulf %80, %79 : vector<56x100xf32>
    %cst_63 = arith.constant 2.000000e+01 : f32
    %82 = vector.broadcast %cst_63 : f32 to vector<56x100xf32>
    %83 = arith.cmpf ogt, %81, %82 : vector<56x100xf32>
    %cst_64 = arith.constant 2.000000e+01 : f32
    %84 = vector.broadcast %cst_64 : f32 to vector<56x100xf32>
    %85 = arith.minimumf %81, %84 : vector<56x100xf32>
    %86 = math.exp %85 : vector<56x100xf32>
    %87 = math.log1p %86 : vector<56x100xf32>
    %cst_65 = arith.constant 0.00999999977 : f32
    %88 = vector.broadcast %cst_65 : f32 to vector<56x100xf32>
    %89 = arith.mulf %87, %88 : vector<56x100xf32>
    %90 = arith.select %83, %79, %89 : vector<56x100xi1>, vector<56x100xf32>
    %c0_66 = arith.constant 0 : index
    %c0_67 = arith.constant 0 : index
    %91 = vector.load %arg26[%c0_66, %c0_67] : memref<224x256xf32, #tpu.memory_space<vmem>>, vector<56x100xf32>
    tpu.vector_store %arg26[%c0_66, %c0_67], %90 {strides = array<i32>} : memref<224x256xf32, #tpu.memory_space<vmem>>, vector<56x100xf32>,
    %cst_68 = arith.constant 1.000000e+00 : f32
    %92 = vector.broadcast %cst_68 : f32 to vector<56x100xf32>
    %93 = arith.addf %92, %86 : vector<56x100xf32>
    %94 = arith.divf %86, %93 : vector<56x100xf32>
    %cst_69 = arith.constant 1.000000e+00 : f32
    %95 = vector.broadcast %cst_69 : f32 to vector<56x100xf32>
    %96 = arith.select %83, %95, %94 : vector<56x100xi1>, vector<56x100xf32>
    %97 = vector.extract_strided_slice %75 {offsets = [56, 0], sizes = [168, 100], strides = [1, 1]} : vector<224x100xf32> to vector<168x100xf32>
    %98 = vector.shape_cast %97 : vector<168x100xf32> to vector<3x56x100xf32>
    %99 = vector.shape_cast %96 : vector<56x100xf32> to vector<1x56x100xf32>
    %100 = vector.broadcast %99 : vector<1x56x100xf32> to vector<3x56x100xf32>
    %101 = arith.mulf %98, %100 : vector<3x56x100xf32>
    %102 = vector.shape_cast %101 : vector<3x56x100xf32> to vector<168x100xf32>
    %c56_70 = arith.constant 56 : index
    %c0_71 = arith.constant 0 : index
    %103 = vector.load %arg26[%c56_70, %c0_71] : memref<224x256xf32, #tpu.memory_space<vmem>>, vector<168x100xf32>
    tpu.vector_store %arg26[%c56_70, %c0_71], %102 {strides = array<i32>} : memref<224x256xf32, #tpu.memory_space<vmem>>, vector<168x100xf32>,
    %c0_72 = arith.constant 0 : index
    %c0_73 = arith.constant 0 : index
    %104 = vector.load %arg26[%c0_72, %c0_73] : memref<224x256xf32, #tpu.memory_space<vmem>>, vector<224x100xf32>
    %cst_74 = arith.constant dense<0.000000e+00> : vector<224x256xf32>
    %105 = tpu.matmul %104, %2, %cst_74 {dimension_numbers = #tpu.dot_dimension_numbers<[1], [0], [0], [1], [0, 0, 1, 1], [], []>} : vector<224x100xf32>, vector<100x256xf32>, vector<224x256xf32> -> vector<224x256xf32>
    %cst_75 = arith.constant dense<0.000000e+00> : vector<224x256xf32>
    %106 = tpu.matmul %44, %3, %cst_75 {dimension_numbers = #tpu.dot_dimension_numbers<[1], [0], [0], [1], [0, 0, 1, 1], [], []>} : vector<224x156xf32>, vector<156x256xf32>, vector<224x256xf32> -> vector<224x256xf32>
    %107 = arith.addf %105, %106 : vector<224x256xf32>
    %cst_76 = arith.constant 0.707106769 : f32
    %108 = vector.broadcast %cst_76 : f32 to vector<224x256xf32>
    %109 = arith.mulf %107, %108 : vector<224x256xf32>
    %c0_77 = arith.constant 0 : index
    %c356 = arith.constant 356 : index
    %110 = vector.load %arg6[%c0_77, %c356] : memref<1x2048xf32, #tpu.memory_space<vmem>>, vector<1x256xf32>
    %111 = vector.extract_strided_slice %109 {offsets = [0, 0], sizes = [56, 256], strides = [1, 1]} : vector<224x256xf32> to vector<56x256xf32>
    %112 = vector.broadcast %110 : vector<1x256xf32> to vector<56x256xf32>
    %113 = arith.addf %111, %112 : vector<56x256xf32>
    %cst_78 = arith.constant 1.000000e+02 : f32
    %114 = vector.broadcast %cst_78 : f32 to vector<56x256xf32>
    %115 = arith.mulf %114, %113 : vector<56x256xf32>
    %cst_79 = arith.constant 2.000000e+01 : f32
    %116 = vector.broadcast %cst_79 : f32 to vector<56x256xf32>
    %117 = arith.cmpf ogt, %115, %116 : vector<56x256xf32>
    %cst_80 = arith.constant 2.000000e+01 : f32
    %118 = vector.broadcast %cst_80 : f32 to vector<56x256xf32>
    %119 = arith.minimumf %115, %118 : vector<56x256xf32>
    %120 = math.exp %119 : vector<56x256xf32>
    %121 = math.log1p %120 : vector<56x256xf32>
    %cst_81 = arith.constant 0.00999999977 : f32
    %122 = vector.broadcast %cst_81 : f32 to vector<56x256xf32>
    %123 = arith.mulf %121, %122 : vector<56x256xf32>
    %124 = arith.select %117, %113, %123 : vector<56x256xi1>, vector<56x256xf32>
    %c0_82 = arith.constant 0 : index
    %c0_83 = arith.constant 0 : index
    %125 = vector.load %arg25[%c0_82, %c0_83] : memref<224x256xf32, #tpu.memory_space<vmem>>, vector<56x256xf32>
    tpu.vector_store %arg25[%c0_82, %c0_83], %124 {strides = array<i32>} : memref<224x256xf32, #tpu.memory_space<vmem>>, vector<56x256xf32>,
    %cst_84 = arith.constant 1.000000e+00 : f32
    %126 = vector.broadcast %cst_84 : f32 to vector<56x256xf32>
    %127 = arith.addf %126, %120 : vector<56x256xf32>
    %128 = arith.divf %120, %127 : vector<56x256xf32>
    %cst_85 = arith.constant 1.000000e+00 : f32
    %129 = vector.broadcast %cst_85 : f32 to vector<56x256xf32>
    %130 = arith.select %117, %129, %128 : vector<56x256xi1>, vector<56x256xf32>
    %131 = vector.extract_strided_slice %109 {offsets = [56, 0], sizes = [168, 256], strides = [1, 1]} : vector<224x256xf32> to vector<168x256xf32>
    %132 = vector.shape_cast %131 : vector<168x256xf32> to vector<3x56x256xf32>
    %133 = vector.shape_cast %130 : vector<56x256xf32> to vector<1x56x256xf32>
    %134 = vector.broadcast %133 : vector<1x56x256xf32> to vector<3x56x256xf32>
    %135 = arith.mulf %132, %134 : vector<3x56x256xf32>
    %136 = vector.shape_cast %135 : vector<3x56x256xf32> to vector<168x256xf32>
    %c56_86 = arith.constant 56 : index
    %c0_87 = arith.constant 0 : index
    %137 = vector.load %arg25[%c56_86, %c0_87] : memref<224x256xf32, #tpu.memory_space<vmem>>, vector<168x256xf32>
    tpu.vector_store %arg25[%c56_86, %c0_87], %136 {strides = array<i32>} : memref<224x256xf32, #tpu.memory_space<vmem>>, vector<168x256xf32>,
    %c0_88 = arith.constant 0 : index
    %c0_89 = arith.constant 0 : index
    %138 = vector.load %arg25[%c0_88, %c0_89] : memref<224x256xf32, #tpu.memory_space<vmem>>, vector<224x256xf32>
    %cst_90 = arith.constant dense<0.000000e+00> : vector<224x256xf32>
    %139 = tpu.matmul %138, %4, %cst_90 {dimension_numbers = #tpu.dot_dimension_numbers<[1], [0], [0], [1], [0, 0, 1, 1], [], []>} : vector<224x256xf32>, vector<256x256xf32>, vector<224x256xf32> -> vector<224x256xf32>
    %c0_91 = arith.constant 0 : index
    %c612 = arith.constant 612 : index
    %140 = vector.load %arg6[%c0_91, %c612] : memref<1x2048xf32, #tpu.memory_space<vmem>>, vector<1x256xf32>
    %141 = vector.extract_strided_slice %139 {offsets = [0, 0], sizes = [56, 256], strides = [1, 1]} : vector<224x256xf32> to vector<56x256xf32>
    %142 = vector.broadcast %140 : vector<1x256xf32> to vector<56x256xf32>
    %143 = arith.addf %141, %142 : vector<56x256xf32>
    %cst_92 = arith.constant 1.000000e+02 : f32
    %144 = vector.broadcast %cst_92 : f32 to vector<56x256xf32>
    %145 = arith.mulf %144, %143 : vector<56x256xf32>
    %cst_93 = arith.constant 2.000000e+01 : f32
    %146 = vector.broadcast %cst_93 : f32 to vector<56x256xf32>
    %147 = arith.cmpf ogt, %145, %146 : vector<56x256xf32>
    %cst_94 = arith.constant 2.000000e+01 : f32
    %148 = vector.broadcast %cst_94 : f32 to vector<56x256xf32>
    %149 = arith.minimumf %145, %148 : vector<56x256xf32>
    %150 = math.exp %149 : vector<56x256xf32>
    %151 = math.log1p %150 : vector<56x256xf32>
    %cst_95 = arith.constant 0.00999999977 : f32
    %152 = vector.broadcast %cst_95 : f32 to vector<56x256xf32>
    %153 = arith.mulf %151, %152 : vector<56x256xf32>
    %154 = arith.select %147, %143, %153 : vector<56x256xi1>, vector<56x256xf32>
    %c0_96 = arith.constant 0 : index
    %c0_97 = arith.constant 0 : index
    %155 = vector.load %arg26[%c0_96, %c0_97] : memref<224x256xf32, #tpu.memory_space<vmem>>, vector<56x256xf32>
    tpu.vector_store %arg26[%c0_96, %c0_97], %154 {strides = array<i32>} : memref<224x256xf32, #tpu.memory_space<vmem>>, vector<56x256xf32>,
    %cst_98 = arith.constant 1.000000e+00 : f32
    %156 = vector.broadcast %cst_98 : f32 to vector<56x256xf32>
    %157 = arith.addf %156, %150 : vector<56x256xf32>
    %158 = arith.divf %150, %157 : vector<56x256xf32>
    %cst_99 = arith.constant 1.000000e+00 : f32
    %159 = vector.broadcast %cst_99 : f32 to vector<56x256xf32>
    %160 = arith.select %147, %159, %158 : vector<56x256xi1>, vector<56x256xf32>
    %161 = vector.extract_strided_slice %139 {offsets = [56, 0], sizes = [168, 256], strides = [1, 1]} : vector<224x256xf32> to vector<168x256xf32>
    %162 = vector.shape_cast %161 : vector<168x256xf32> to vector<3x56x256xf32>
    %163 = vector.shape_cast %160 : vector<56x256xf32> to vector<1x56x256xf32>
    %164 = vector.broadcast %163 : vector<1x56x256xf32> to vector<3x56x256xf32>
    %165 = arith.mulf %162, %164 : vector<3x56x256xf32>
    %166 = vector.shape_cast %165 : vector<3x56x256xf32> to vector<168x256xf32>
    %c56_100 = arith.constant 56 : index
    %c0_101 = arith.constant 0 : index
    %167 = vector.load %arg26[%c56_100, %c0_101] : memref<224x256xf32, #tpu.memory_space<vmem>>, vector<168x256xf32>
    tpu.vector_store %arg26[%c56_100, %c0_101], %166 {strides = array<i32>} : memref<224x256xf32, #tpu.memory_space<vmem>>, vector<168x256xf32>,
    %c0_102 = arith.constant 0 : index
    %c0_103 = arith.constant 0 : index
    %168 = vector.load %arg26[%c0_102, %c0_103] : memref<224x256xf32, #tpu.memory_space<vmem>>, vector<224x256xf32>
    %cst_104 = arith.constant dense<0.000000e+00> : vector<224x132xf32>
    %169 = tpu.matmul %168, %5, %cst_104 {dimension_numbers = #tpu.dot_dimension_numbers<[1], [0], [0], [1], [0, 0, 1, 1], [], []>} : vector<224x256xf32>, vector<256x132xf32>, vector<224x132xf32> -> vector<224x132xf32>
    %170 = vector.extract_strided_slice %169 {offsets = [0, 0], sizes = [56, 132], strides = [1, 1]} : vector<224x132xf32> to vector<56x132xf32>
    %c0_105 = arith.constant 0 : index
    %c868 = arith.constant 868 : index
    %171 = vector.load %arg6[%c0_105, %c868] : memref<1x2048xf32, #tpu.memory_space<vmem>>, vector<1x132xf32>
    %172 = vector.broadcast %171 : vector<1x132xf32> to vector<56x132xf32>
    %173 = arith.addf %170, %172 : vector<56x132xf32>
    %174 = vector.extract_strided_slice %169 {offsets = [56, 0], sizes = [56, 132], strides = [1, 1]} : vector<224x132xf32> to vector<56x132xf32>
    %175 = vector.extract_strided_slice %169 {offsets = [112, 0], sizes = [56, 132], strides = [1, 1]} : vector<224x132xf32> to vector<56x132xf32>
    %176 = vector.extract_strided_slice %169 {offsets = [168, 0], sizes = [56, 132], strides = [1, 1]} : vector<224x132xf32> to vector<56x132xf32>
    %177 = vector.extract_strided_slice %173 {offsets = [0, 0], sizes = [56, 1], strides = [1, 1]} : vector<56x132xf32> to vector<56x1xf32>
    %cst_106 = arith.constant 0.000000e+00 : f32
    %178 = vector.broadcast %cst_106 : f32 to vector<56x1xf32>
    %179 = arith.subf %178, %177 : vector<56x1xf32>
    %180 = vector.extract_strided_slice %174 {offsets = [0, 0], sizes = [56, 1], strides = [1, 1]} : vector<56x132xf32> to vector<56x1xf32>
    %cst_107 = arith.constant 0.000000e+00 : f32
    %181 = vector.broadcast %cst_107 : f32 to vector<56x1xf32>
    %182 = arith.subf %181, %180 : vector<56x1xf32>
    %183 = vector.extract_strided_slice %175 {offsets = [0, 0], sizes = [56, 1], strides = [1, 1]} : vector<56x132xf32> to vector<56x1xf32>
    %cst_108 = arith.constant 0.000000e+00 : f32
    %184 = vector.broadcast %cst_108 : f32 to vector<56x1xf32>
    %185 = arith.subf %184, %183 : vector<56x1xf32>
    %186 = vector.extract_strided_slice %176 {offsets = [0, 0], sizes = [56, 1], strides = [1, 1]} : vector<56x132xf32> to vector<56x1xf32>
    %cst_109 = arith.constant 0.000000e+00 : f32
    %187 = vector.broadcast %cst_109 : f32 to vector<56x1xf32>
    %188 = arith.subf %187, %186 : vector<56x1xf32>
    %189 = vector.extract_strided_slice %173 {offsets = [0, 33], sizes = [56, 1], strides = [1, 1]} : vector<56x132xf32> to vector<56x1xf32>
    %cst_110 = arith.constant 0.000000e+00 : f32
    %190 = vector.broadcast %cst_110 : f32 to vector<56x1xf32>
    %191 = arith.subf %190, %189 : vector<56x1xf32>
    %192 = vector.extract_strided_slice %174 {offsets = [0, 33], sizes = [56, 1], strides = [1, 1]} : vector<56x132xf32> to vector<56x1xf32>
    %cst_111 = arith.constant 0.000000e+00 : f32
    %193 = vector.broadcast %cst_111 : f32 to vector<56x1xf32>
    %194 = arith.subf %193, %192 : vector<56x1xf32>
    %195 = vector.extract_strided_slice %175 {offsets = [0, 33], sizes = [56, 1], strides = [1, 1]} : vector<56x132xf32> to vector<56x1xf32>
    %cst_112 = arith.constant 0.000000e+00 : f32
    %196 = vector.broadcast %cst_112 : f32 to vector<56x1xf32>
    %197 = arith.subf %196, %195 : vector<56x1xf32>
    %198 = vector.extract_strided_slice %176 {offsets = [0, 33], sizes = [56, 1], strides = [1, 1]} : vector<56x132xf32> to vector<56x1xf32>
    %cst_113 = arith.constant 0.000000e+00 : f32
    %199 = vector.broadcast %cst_113 : f32 to vector<56x1xf32>
    %200 = arith.subf %199, %198 : vector<56x1xf32>
    %201 = vector.extract_strided_slice %173 {offsets = [0, 66], sizes = [56, 1], strides = [1, 1]} : vector<56x132xf32> to vector<56x1xf32>
    %cst_114 = arith.constant 0.000000e+00 : f32
    %202 = vector.broadcast %cst_114 : f32 to vector<56x1xf32>
    %203 = arith.subf %202, %201 : vector<56x1xf32>
    %204 = vector.extract_strided_slice %174 {offsets = [0, 66], sizes = [56, 1], strides = [1, 1]} : vector<56x132xf32> to vector<56x1xf32>
    %cst_115 = arith.constant 0.000000e+00 : f32
    %205 = vector.broadcast %cst_115 : f32 to vector<56x1xf32>
    %206 = arith.subf %205, %204 : vector<56x1xf32>
    %207 = vector.extract_strided_slice %175 {offsets = [0, 66], sizes = [56, 1], strides = [1, 1]} : vector<56x132xf32> to vector<56x1xf32>
    %cst_116 = arith.constant 0.000000e+00 : f32
    %208 = vector.broadcast %cst_116 : f32 to vector<56x1xf32>
    %209 = arith.subf %208, %207 : vector<56x1xf32>
    %210 = vector.extract_strided_slice %176 {offsets = [0, 66], sizes = [56, 1], strides = [1, 1]} : vector<56x132xf32> to vector<56x1xf32>
    %cst_117 = arith.constant 0.000000e+00 : f32
    %211 = vector.broadcast %cst_117 : f32 to vector<56x1xf32>
    %212 = arith.subf %211, %210 : vector<56x1xf32>
    %213 = vector.extract_strided_slice %173 {offsets = [0, 99], sizes = [56, 1], strides = [1, 1]} : vector<56x132xf32> to vector<56x1xf32>
    %cst_118 = arith.constant 0.000000e+00 : f32
    %214 = vector.broadcast %cst_118 : f32 to vector<56x1xf32>
    %215 = arith.subf %214, %213 : vector<56x1xf32>
    %216 = vector.extract_strided_slice %174 {offsets = [0, 99], sizes = [56, 1], strides = [1, 1]} : vector<56x132xf32> to vector<56x1xf32>
    %cst_119 = arith.constant 0.000000e+00 : f32
    %217 = vector.broadcast %cst_119 : f32 to vector<56x1xf32>
    %218 = arith.subf %217, %216 : vector<56x1xf32>
    %219 = vector.extract_strided_slice %175 {offsets = [0, 99], sizes = [56, 1], strides = [1, 1]} : vector<56x132xf32> to vector<56x1xf32>
    %cst_120 = arith.constant 0.000000e+00 : f32
    %220 = vector.broadcast %cst_120 : f32 to vector<56x1xf32>
    %221 = arith.subf %220, %219 : vector<56x1xf32>
    %222 = vector.extract_strided_slice %176 {offsets = [0, 99], sizes = [56, 1], strides = [1, 1]} : vector<56x132xf32> to vector<56x1xf32>
    %cst_121 = arith.constant 0.000000e+00 : f32
    %223 = vector.broadcast %cst_121 : f32 to vector<56x1xf32>
    %224 = arith.subf %223, %222 : vector<56x1xf32>
    %225 = tpu.concatenate %179, %191, %203, %215 in 1 : vector<56x1xf32>, vector<56x1xf32>, vector<56x1xf32>, vector<56x1xf32> -> vector<56x4xf32>
    %226 = tpu.concatenate %182, %185, %188, %194, %197, %200, %206, %209, %212, %218, %221, %224 in 1 : vector<56x1xf32>, vector<56x1xf32>, vector<56x1xf32>, vector<56x1xf32>, vector<56x1xf32>, vector<56x1xf32>, vector<56x1xf32>, vector<56x1xf32>, vector<56x1xf32>, vector<56x1xf32>, vector<56x1xf32>, vector<56x1xf32> -> vector<56x12xf32>
    %cst_122 = arith.constant dense<0.000000e+00> : vector<56x256xf32>
    %227 = tpu.matmul %17, %6, %cst_122 {dimension_numbers = #tpu.dot_dimension_numbers<[1], [0], [0], [1], [0, 0, 1, 1], [], []>} : vector<56x24xf32>, vector<24x256xf32>, vector<56x256xf32> -> vector<56x256xf32>
    %cst_123 = arith.constant dense<0.000000e+00> : vector<56x256xf32>
    %228 = tpu.matmul %24, %7, %cst_123 {dimension_numbers = #tpu.dot_dimension_numbers<[1], [0], [0], [1], [0, 0, 1, 1], [], []>} : vector<56x240xf32>, vector<240x256xf32>, vector<56x256xf32> -> vector<56x256xf32>
    %229 = arith.addf %227, %228 : vector<56x256xf32>
    %cst_124 = arith.constant dense<0.000000e+00> : vector<56x256xf32>
    %230 = tpu.matmul %173, %8, %cst_124 {dimension_numbers = #tpu.dot_dimension_numbers<[1], [0], [0], [1], [0, 0, 1, 1], [], []>} : vector<56x132xf32>, vector<132x256xf32>, vector<56x256xf32> -> vector<56x256xf32>
    %231 = arith.addf %229, %230 : vector<56x256xf32>
    %cst_125 = arith.constant dense<0.000000e+00> : vector<56x256xf32>
    %232 = tpu.matmul %226, %9, %cst_125 {dimension_numbers = #tpu.dot_dimension_numbers<[1], [0], [0], [1], [0, 0, 1, 1], [], []>} : vector<56x12xf32>, vector<12x256xf32>, vector<56x256xf32> -> vector<56x256xf32>
    %233 = arith.addf %231, %232 : vector<56x256xf32>
    %c0_126 = arith.constant 0 : index
    %c1000 = arith.constant 1000 : index
    %234 = vector.load %arg6[%c0_126, %c1000] : memref<1x2048xf32, #tpu.memory_space<vmem>>, vector<1x256xf32>
    %235 = vector.broadcast %234 : vector<1x256xf32> to vector<56x256xf32>
    %236 = arith.addf %233, %235 : vector<56x256xf32>
    %cst_127 = arith.constant 0.000000e+00 : f32
    %237 = vector.broadcast %cst_127 : f32 to vector<56x256xf32>
    %238 = arith.maximumf %236, %237 : vector<56x256xf32>
    %cst_128 = arith.constant dense<0.000000e+00> : vector<56x256xf32>
    %239 = tpu.matmul %238, %10, %cst_128 {dimension_numbers = #tpu.dot_dimension_numbers<[1], [0], [0], [1], [0, 0, 1, 1], [], []>} : vector<56x256xf32>, vector<256x256xf32>, vector<56x256xf32> -> vector<56x256xf32>
    %c0_129 = arith.constant 0 : index
    %c1256 = arith.constant 1256 : index
    %240 = vector.load %arg6[%c0_129, %c1256] : memref<1x2048xf32, #tpu.memory_space<vmem>>, vector<1x256xf32>
    %241 = vector.broadcast %240 : vector<1x256xf32> to vector<56x256xf32>
    %242 = arith.addf %239, %241 : vector<56x256xf32>
    %cst_130 = arith.constant 0.000000e+00 : f32
    %243 = vector.broadcast %cst_130 : f32 to vector<56x256xf32>
    %244 = arith.maximumf %242, %243 : vector<56x256xf32>
    %cst_131 = arith.constant dense<0.000000e+00> : vector<56x12xf32>
    %245 = tpu.matmul %244, %11, %cst_131 {dimension_numbers = #tpu.dot_dimension_numbers<[1], [0], [0], [1], [0, 0, 1, 1], [], []>} : vector<56x256xf32>, vector<256x12xf32>, vector<56x12xf32> -> vector<56x12xf32>
    %c0_132 = arith.constant 0 : index
    %c1512 = arith.constant 1512 : index
    %246 = vector.load %arg6[%c0_132, %c1512] : memref<1x2048xf32, #tpu.memory_space<vmem>>, vector<1x12xf32>
    %247 = vector.broadcast %246 : vector<1x12xf32> to vector<56x12xf32>
    %248 = arith.addf %245, %247 : vector<56x12xf32>
    %cst_133 = arith.constant 0.000000e+00 : f32
    %249 = vector.broadcast %cst_133 : f32 to vector<56x12xf32>
    %250 = arith.subf %249, %248 : vector<56x12xf32>
    %251 = math.exp %250 : vector<56x12xf32>
    %cst_134 = arith.constant 1.000000e+00 : f32
    %252 = vector.broadcast %cst_134 : f32 to vector<56x12xf32>
    %253 = arith.addf %252, %251 : vector<56x12xf32>
    %cst_135 = arith.constant 1.000000e+00 : f32
    %254 = vector.broadcast %cst_135 : f32 to vector<56x12xf32>
    %255 = arith.divf %254, %253 : vector<56x12xf32>
    %cst_136 = arith.constant dense<0.000000e+00> : vector<56x256xf32>
    %256 = tpu.matmul %17, %12, %cst_136 {dimension_numbers = #tpu.dot_dimension_numbers<[1], [0], [0], [1], [0, 0, 1, 1], [], []>} : vector<56x24xf32>, vector<24x256xf32>, vector<56x256xf32> -> vector<56x256xf32>
    %cst_137 = arith.constant dense<0.000000e+00> : vector<56x256xf32>
    %257 = tpu.matmul %24, %13, %cst_137 {dimension_numbers = #tpu.dot_dimension_numbers<[1], [0], [0], [1], [0, 0, 1, 1], [], []>} : vector<56x240xf32>, vector<240x256xf32>, vector<56x256xf32> -> vector<56x256xf32>
    %258 = arith.addf %256, %257 : vector<56x256xf32>
    %cst_138 = arith.constant dense<0.000000e+00> : vector<56x256xf32>
    %259 = tpu.matmul %173, %14, %cst_138 {dimension_numbers = #tpu.dot_dimension_numbers<[1], [0], [0], [1], [0, 0, 1, 1], [], []>} : vector<56x132xf32>, vector<132x256xf32>, vector<56x256xf32> -> vector<56x256xf32>
    %260 = arith.addf %258, %259 : vector<56x256xf32>
    %c0_139 = arith.constant 0 : index
    %c1524 = arith.constant 1524 : index
    %261 = vector.load %arg6[%c0_139, %c1524] : memref<1x2048xf32, #tpu.memory_space<vmem>>, vector<1x256xf32>
    %262 = vector.broadcast %261 : vector<1x256xf32> to vector<56x256xf32>
    %263 = arith.addf %260, %262 : vector<56x256xf32>
    %cst_140 = arith.constant 0.000000e+00 : f32
    %264 = vector.broadcast %cst_140 : f32 to vector<56x256xf32>
    %265 = arith.maximumf %263, %264 : vector<56x256xf32>
    %cst_141 = arith.constant dense<0.000000e+00> : vector<56x256xf32>
    %266 = tpu.matmul %265, %15, %cst_141 {dimension_numbers = #tpu.dot_dimension_numbers<[1], [0], [0], [1], [0, 0, 1, 1], [], []>} : vector<56x256xf32>, vector<256x256xf32>, vector<56x256xf32> -> vector<56x256xf32>
    %c0_142 = arith.constant 0 : index
    %c1780 = arith.constant 1780 : index
    %267 = vector.load %arg6[%c0_142, %c1780] : memref<1x2048xf32, #tpu.memory_space<vmem>>, vector<1x256xf32>
    %268 = vector.broadcast %267 : vector<1x256xf32> to vector<56x256xf32>
    %269 = arith.addf %266, %268 : vector<56x256xf32>
    %cst_143 = arith.constant 0.000000e+00 : f32
    %270 = vector.broadcast %cst_143 : f32 to vector<56x256xf32>
    %271 = arith.maximumf %269, %270 : vector<56x256xf32>
    %cst_144 = arith.constant dense<0.000000e+00> : vector<56x12xf32>
    %272 = tpu.matmul %271, %16, %cst_144 {dimension_numbers = #tpu.dot_dimension_numbers<[1], [0], [0], [1], [0, 0, 1, 1], [], []>} : vector<56x256xf32>, vector<256x12xf32>, vector<56x12xf32> -> vector<56x12xf32>
    %c0_145 = arith.constant 0 : index
    %c2036 = arith.constant 2036 : index
    %273 = vector.load %arg6[%c0_145, %c2036] : memref<1x2048xf32, #tpu.memory_space<vmem>>, vector<1x12xf32>
    %274 = vector.broadcast %273 : vector<1x12xf32> to vector<56x12xf32>
    %275 = arith.addf %272, %274 : vector<56x12xf32>
    %cst_146 = arith.constant 0.000000e+00 : f32
    %276 = vector.broadcast %cst_146 : f32 to vector<56x12xf32>
    %277 = arith.subf %276, %275 : vector<56x12xf32>
    %278 = math.exp %277 : vector<56x12xf32>
    %cst_147 = arith.constant 1.000000e+00 : f32
    %279 = vector.broadcast %cst_147 : f32 to vector<56x12xf32>
    %280 = arith.addf %279, %278 : vector<56x12xf32>
    %cst_148 = arith.constant 1.000000e+00 : f32
    %281 = vector.broadcast %cst_148 : f32 to vector<56x12xf32>
    %282 = arith.divf %281, %280 : vector<56x12xf32>
    %283 = tpu.concatenate %255, %282, %225, %226 in 1 : vector<56x12xf32>, vector<56x12xf32>, vector<56x4xf32>, vector<56x12xf32> -> vector<56x40xf32>
    %c0_149 = arith.constant 0 : index
    %c0_150 = arith.constant 0 : index
    %284 = vector.load %arg24[%c0_149, %c0_150] : memref<56x40xf32, #tpu.memory_space<vmem>>, vector<56x40xf32>
    tpu.vector_store %arg24[%c0_149, %c0_150], %283 {strides = array<i32>} : memref<56x40xf32, #tpu.memory_space<vmem>>, vector<56x40xf32>,
    return
  }
  func.func @transform_0(%arg0: i32) -> (i32, i32) {
    %c0_i32 = arith.constant 0 : i32
    %c0_i32_0 = arith.constant 0 : i32
    return %arg0, %c0_i32 : i32, i32
  }
  func.func @transform_1(%arg0: i32) -> (i32, i32) {
    %c0_i32 = arith.constant 0 : i32
    %c0_i32_0 = arith.constant 0 : i32
    %c0_i32_1 = arith.constant 0 : i32
    return %c0_i32, %c0_i32_0 : i32, i32
  }
  func.func @transform_2(%arg0: i32) -> (i32, i32) {
    %c0_i32 = arith.constant 0 : i32
    %c0_i32_0 = arith.constant 0 : i32
    %c0_i32_1 = arith.constant 0 : i32
    return %c0_i32, %c0_i32_0 : i32, i32
  }
  func.func @transform_3(%arg0: i32) -> (i32, i32) {
    %c0_i32 = arith.constant 0 : i32
    %c0_i32_0 = arith.constant 0 : i32
    %c0_i32_1 = arith.constant 0 : i32
    return %c0_i32, %c0_i32_0 : i32, i32
  }
  func.func @transform_4(%arg0: i32) -> (i32, i32, i32) {
    %c0_i32 = arith.constant 0 : i32
    %c0_i32_0 = arith.constant 0 : i32
    %c0_i32_1 = arith.constant 0 : i32
    %c0_i32_2 = arith.constant 0 : i32
    return %c0_i32, %c0_i32_0, %c0_i32_1 : i32, i32, i32
  }
  func.func @transform_5(%arg0: i32) -> (i32, i32) {
    %c0_i32 = arith.constant 0 : i32
    %c0_i32_0 = arith.constant 0 : i32
    %c0_i32_1 = arith.constant 0 : i32
    return %c0_i32, %c0_i32_0 : i32, i32
  }
  func.func @transform_6(%arg0: i32) -> (i32, i32) {
    %c0_i32 = arith.constant 0 : i32
    %c0_i32_0 = arith.constant 0 : i32
    %c0_i32_1 = arith.constant 0 : i32
    return %c0_i32, %c0_i32_0 : i32, i32
  }
  func.func @transform_7(%arg0: i32) -> (i32, i32) {
    %c0_i32 = arith.constant 0 : i32
    %c0_i32_0 = arith.constant 0 : i32
    %c0_i32_1 = arith.constant 0 : i32
    return %c0_i32, %c0_i32_0 : i32, i32
  }
  func.func @transform_8(%arg0: i32) -> (i32, i32) {
    %c0_i32 = arith.constant 0 : i32
    %c0_i32_0 = arith.constant 0 : i32
    %c0_i32_1 = arith.constant 0 : i32
    return %c0_i32, %c0_i32_0 : i32, i32
  }
  func.func @transform_9(%arg0: i32) -> (i32, i32) {
    %c0_i32 = arith.constant 0 : i32
    %c0_i32_0 = arith.constant 0 : i32
    %c0_i32_1 = arith.constant 0 : i32
    return %c0_i32, %c0_i32_0 : i32, i32
  }
  func.func @transform_10(%arg0: i32) -> (i32, i32) {
    %c0_i32 = arith.constant 0 : i32
    %c0_i32_0 = arith.constant 0 : i32
    %c0_i32_1 = arith.constant 0 : i32
    return %c0_i32, %c0_i32_0 : i32, i32
  }
  func.func @transform_11(%arg0: i32) -> (i32, i32) {
    %c0_i32 = arith.constant 0 : i32
    %c0_i32_0 = arith.constant 0 : i32
    %c0_i32_1 = arith.constant 0 : i32
    return %c0_i32, %c0_i32_0 : i32, i32
  }
  func.func @transform_12(%arg0: i32) -> (i32, i32) {
    %c0_i32 = arith.constant 0 : i32
    %c0_i32_0 = arith.constant 0 : i32
    %c0_i32_1 = arith.constant 0 : i32
    return %c0_i32, %c0_i32_0 : i32, i32
  }
  func.func @transform_13(%arg0: i32) -> (i32, i32) {
    %c0_i32 = arith.constant 0 : i32
    %c0_i32_0 = arith.constant 0 : i32
    %c0_i32_1 = arith.constant 0 : i32
    return %c0_i32, %c0_i32_0 : i32, i32
  }
  func.func @transform_14(%arg0: i32) -> (i32, i32) {
    %c0_i32 = arith.constant 0 : i32
    %c0_i32_0 = arith.constant 0 : i32
    %c0_i32_1 = arith.constant 0 : i32
    return %c0_i32, %c0_i32_0 : i32, i32
  }
  func.func @transform_15(%arg0: i32) -> (i32, i32) {
    %c0_i32 = arith.constant 0 : i32
    %c0_i32_0 = arith.constant 0 : i32
    %c0_i32_1 = arith.constant 0 : i32
    return %c0_i32, %c0_i32_0 : i32, i32
  }
  func.func @transform_16(%arg0: i32) -> (i32, i32) {
    %c0_i32 = arith.constant 0 : i32
    %c0_i32_0 = arith.constant 0 : i32
    %c0_i32_1 = arith.constant 0 : i32
    return %c0_i32, %c0_i32_0 : i32, i32
  }
  func.func @transform_17(%arg0: i32) -> (i32, i32) {
    %c0_i32 = arith.constant 0 : i32
    %c0_i32_0 = arith.constant 0 : i32
    %c0_i32_1 = arith.constant 0 : i32
    return %c0_i32, %c0_i32_0 : i32, i32
  }
  func.func @transform_18(%arg0: i32) -> (i32, i32) {
    %c0_i32 = arith.constant 0 : i32
    %c0_i32_0 = arith.constant 0 : i32
    %c0_i32_1 = arith.constant 0 : i32
    return %c0_i32, %c0_i32_0 : i32, i32
  }
  func.func @transform_19(%arg0: i32) -> (i32, i32) {
    %c0_i32 = arith.constant 0 : i32
    %c0_i32_0 = arith.constant 0 : i32
    %c0_i32_1 = arith.constant 0 : i32
    return %c0_i32, %c0_i32_0 : i32, i32
  }
  func.func @transform_20(%arg0: i32) -> (i32, i32) {
    %c0_i32 = arith.constant 0 : i32
    %c0_i32_0 = arith.constant 0 : i32
    %c0_i32_1 = arith.constant 0 : i32
    return %c0_i32, %c0_i32_0 : i32, i32
  }
  func.func @transform_21(%arg0: i32) -> (i32, i32) {
    %c0_i32 = arith.constant 0 : i32
    %c0_i32_0 = arith.constant 0 : i32
    %c0_i32_1 = arith.constant 0 : i32
    return %c0_i32, %c0_i32_0 : i32, i32
  }
  func.func @transform_22(%arg0: i32) -> (i32, i32) {
    %c0_i32 = arith.constant 0 : i32
    %c0_i32_0 = arith.constant 0 : i32
    %c0_i32_1 = arith.constant 0 : i32
    return %c0_i32, %c0_i32_0 : i32, i32
  }
  func.func @transform_23(%arg0: i32) -> (i32, i32) {
    %c0_i32 = arith.constant 0 : i32
    %c0_i32_0 = arith.constant 0 : i32
    return %arg0, %c0_i32 : i32, i32
  }
}

</mosaic_0001>

<llo_original>
// kernel: _mlp_forward_impl.1
$region0: #{_mlp_forward_impl.1}
  #allocation0 [shape = 'u32[]', space=smem, size = 0x4, offset = 0x4, fixed_abs, tag = 'smem constant byte address 0x4 - core index']
  #allocation1 [shape = 'u32[144,128]{1,0:T(1,128)}', space=vmem, size = 0x12000, scoped, tag = 'internal scratch']
  #allocation2 [shape = 'f32[224,256]{1,0:T(8,128)}', space=vmem, size = 0x38000, scoped, tag = 'scratch operand']
  #allocation3 [shape = 'f32[224,256]{1,0:T(8,128)}', space=vmem, size = 0x38000, scoped, tag = 'scratch operand']
  %s0 = inlined_call_operand.vmem [shape: f32[56,24], index: 0, kind: input, shape index: {}]
  %s1 = inlined_call_operand.vmem [shape: f32[24,240], index: 1, kind: input, shape index: {}]
  %s2 = inlined_call_operand.hbm [shape: f32[1,240], index: 2, kind: input, shape index: {}]
  %s3 = inlined_call_operand.vmem [shape: f32[1,72], index: 3, kind: input, shape index: {}]
  %s4 = inlined_call_operand.vmem [shape: f32[3,1,156], index: 4, kind: input, shape index: {}]
  %s5 = inlined_call_operand.hbm [shape: f32[1,2048], index: 5, kind: input, shape index: {}]
  %s6 = inlined_call_operand.vmem [shape: f32[156,256], index: 6, kind: input, shape index: {}]
  %s7 = inlined_call_operand.vmem [shape: f32[256,100], index: 7, kind: input, shape index: {}]
  %s8 = inlined_call_operand.hbm [shape: f32[100,256], index: 8, kind: input, shape index: {}]
  %s9 = inlined_call_operand.vmem [shape: f32[156,256], index: 9, kind: input, shape index: {}]
  %s10 = inlined_call_operand.vmem [shape: f32[256,256], index: 10, kind: input, shape index: {}]
  %s11 = inlined_call_operand.vmem [shape: f32[256,132], index: 11, kind: input, shape index: {}]
  %s12 = inlined_call_operand.vmem [shape: f32[24,256], index: 12, kind: input, shape index: {}]
  %s13 = inlined_call_operand.vmem [shape: f32[240,256], index: 13, kind: input, shape index: {}]
  %s14 = inlined_call_operand.vmem [shape: f32[132,256], index: 14, kind: input, shape index: {}]
  %s15 = inlined_call_operand.hbm [shape: f32[12,256], index: 15, kind: input, shape index: {}]
  %s16 = inlined_call_operand.vmem [shape: f32[256,256], index: 16, kind: input, shape index: {}]
  %s17 = inlined_call_operand.vmem [shape: f32[256,12], index: 17, kind: input, shape index: {}]
  %s18 = inlined_call_operand.hbm [shape: f32[24,256], index: 18, kind: input, shape index: {}]
  %s19 = inlined_call_operand.vmem [shape: f32[240,256], index: 19, kind: input, shape index: {}]
  %s20 = inlined_call_operand.hbm [shape: f32[132,256], index: 20, kind: input, shape index: {}]
  %s21 = inlined_call_operand.vmem [shape: f32[256,256], index: 21, kind: input, shape index: {}]
  %s22 = inlined_call_operand.vmem [shape: f32[256,12], index: 22, kind: input, shape index: {}]
  %s23 = inlined_call_operand.vmem [shape: f32[56,40], index: 23, kind: output, shape index: {}]
  %s24 = sld [smem:[#allocation0]]
  $region126: #{_mlp_forward_impl.1} parent=0
    _
  %s26 = ssub.s32 1, %s24
  %s27 = scalar_select 0, %s26, %s24
  $region1: #{_mlp_forward_impl.1} parent=0
    #allocation4 [shape = 'u8[1024]{0}', space=vmem, size = 0x400, scoped, tag = 'input window, operand 2, single buffered']
    #allocation5 [shape = 's32[1]{0}', space=sflag, size = 0x4, scoped, tag = 'scoped memory for _mlp_forward_impl.1']
    #allocation6 [shape = 'u8[8192]{0}', space=vmem, size = 0x2000, scoped, tag = 'input window, operand 5, single buffered']
    #allocation7 [shape = 's32[1]{0}', space=sflag, size = 0x4, scoped, tag = 'scoped memory for _mlp_forward_impl.1']
    #allocation8 [shape = 'u8[106496]{0}', space=vmem, size = 0x1a000, scoped, tag = 'input window, operand 8, single buffered']
    #allocation9 [shape = 'u8[16384]{0}', space=vmem, size = 0x4000, scoped, tag = 'input window, operand 15, single buffered']
    #allocation10 [shape = 's32[1]{0}', space=sflag, size = 0x4, scoped, tag = 'scoped memory for _mlp_forward_impl.1']
    #allocation11 [shape = 'u8[24576]{0}', space=vmem, size = 0x6000, scoped, tag = 'input window, operand 18, single buffered']
    #allocation12 [shape = 'u8[139264]{0}', space=vmem, size = 0x22000, scoped, tag = 'input window, operand 20, single buffered']
    #allocation13 [shape = 's32[1]{0}', space=sflag, size = 0x4, scoped, tag = 'scoped memory for _mlp_forward_impl.1']
    %28 = vsyncpa [#allocation5], 0
    %29 = vsyncpa [#allocation7], 0
    %30 = vsyncpa [#allocation10], 0
    %31 = vsyncpa [#allocation13], 0
    // Predicated region
    $region2: #{_mlp_forward_impl.1} parent=1 // pred_check
      _
    $region3: #{_mlp_forward_impl.1} parent=1 // pred_check_branch
      %33 = sbr.rel (0) target = $region5
    $region4: #{_mlp_forward_impl.1} parent=1 // pred_region
      _
    $region5: #{_mlp_forward_impl.1} parent=1 // pred_fallthru
      _
    // Predicated region
    $region6: #{_mlp_forward_impl.1} parent=1 // pred_check
      _
    $region7: #{_mlp_forward_impl.1} parent=1 // pred_check_branch
      %35 = sbr.rel (0) target = $region9
    $region8: #{_mlp_forward_impl.1} parent=1 // pred_region
      _
    $region9: #{_mlp_forward_impl.1} parent=1 // pred_fallthru
      _
    // Predicated region
    $region10: #{_mlp_forward_impl.1} parent=1 // pred_check
      _
    $region11: #{_mlp_forward_impl.1} parent=1 // pred_check_branch
      %37 = sbr.rel (0) target = $region13
    $region12: #{_mlp_forward_impl.1} parent=1 // pred_region
      %s39 = ssub.s32 32, 32
      %40 = vsyncadd [#allocation5], %s39
      %s42 = sshll.u32 [#allocation4], 4
      %s43 = int_to_ptr.vmem [resolvable:$true] %s42
      %45 = dma.hbm_to_vmem [thread:$0]  %s2, 32, %s43, [#allocation5]
    $region13: #{_mlp_forward_impl.1} parent=1 // pred_fallthru
      _
    // Predicated region
    $region14: #{_mlp_forward_impl.1} parent=1 // pred_check
      _
    $region15: #{_mlp_forward_impl.1} parent=1 // pred_check_branch
      %47 = sbr.rel (0) target = $region17
    $region16: #{_mlp_forward_impl.1} parent=1 // pred_region
      _
    $region17: #{_mlp_forward_impl.1} parent=1 // pred_fallthru
      _
    // Predicated region
    $region18: #{_mlp_forward_impl.1} parent=1 // pred_check
      _
    $region19: #{_mlp_forward_impl.1} parent=1 // pred_check_branch
      %49 = sbr.rel (0) target = $region21
    $region20: #{_mlp_forward_impl.1} parent=1 // pred_region
      _
    $region21: #{_mlp_forward_impl.1} parent=1 // pred_fallthru
      _
    // Predicated region
    $region22: #{_mlp_forward_impl.1} parent=1 // pred_check
      _
    $region23: #{_mlp_forward_impl.1} parent=1 // pred_check_branch
      %51 = sbr.rel (0) target = $region25
    $region24: #{_mlp_forward_impl.1} parent=1 // pred_region
      %s53 = ssub.s32 256, 256
      %54 = vsyncadd [#allocation7], %s53
      %s56 = sshll.u32 [#allocation6], 4
      %s57 = int_to_ptr.vmem [resolvable:$true] %s56
      %59 = dma.hbm_to_vmem [thread:$0]  %s5, 256, %s57, [#allocation7]
    $region25: #{_mlp_forward_impl.1} parent=1 // pred_fallthru
      _
    // Predicated region
    $region26: #{_mlp_forward_impl.1} parent=1 // pred_check
      _
    $region27: #{_mlp_forward_impl.1} parent=1 // pred_check_branch
      %61 = sbr.rel (0) target = $region29
    $region28: #{_mlp_forward_impl.1} parent=1 // pred_region
      _
    $region29: #{_mlp_forward_impl.1} parent=1 // pred_fallthru
      _
    // Predicated region
    $region30: #{_mlp_forward_impl.1} parent=1 // pred_check
      _
    $region31: #{_mlp_forward_impl.1} parent=1 // pred_check_branch
      %63 = sbr.rel (0) target = $region33
    $region32: #{_mlp_forward_impl.1} parent=1 // pred_region
      _
    $region33: #{_mlp_forward_impl.1} parent=1 // pred_fallthru
      _
    // Predicated region
    $region34: #{_mlp_forward_impl.1} parent=1 // pred_check
      _
    $region35: #{_mlp_forward_impl.1} parent=1 // pred_check_branch
      %65 = sbr.rel (0) target = $region37
    $region36: #{_mlp_forward_impl.1} parent=1 // pred_region
      %s67 = ssub.s32 3328, 3328
      %68 = vsyncadd [#allocation7], %s67
      %s69 = sshll.u32 [#allocation8], 4
      %s70 = int_to_ptr.vmem [resolvable:$true] %s69
      %75 = dma.hbm_to_vmem [thread:$0]  %s8, 3328, %s70, [#allocation7], 256, 256, 16
    $region37: #{_mlp_forward_impl.1} parent=1 // pred_fallthru
      _
    // Predicated region
    $region38: #{_mlp_forward_impl.1} parent=1 // pred_check
      _
    $region39: #{_mlp_forward_impl.1} parent=1 // pred_check_branch
      %77 = sbr.rel (0) target = $region41
    $region40: #{_mlp_forward_impl.1} parent=1 // pred_region
      _
    $region41: #{_mlp_forward_impl.1} parent=1 // pred_fallthru
      _
    // Predicated region
    $region42: #{_mlp_forward_impl.1} parent=1 // pred_check
      _
    $region43: #{_mlp_forward_impl.1} parent=1 // pred_check_branch
      %79 = sbr.rel (0) target = $region45
    $region44: #{_mlp_forward_impl.1} parent=1 // pred_region
      _
    $region45: #{_mlp_forward_impl.1} parent=1 // pred_fallthru
      _
    // Predicated region
    $region46: #{_mlp_forward_impl.1} parent=1 // pred_check
      _
    $region47: #{_mlp_forward_impl.1} parent=1 // pred_check_branch
      %81 = sbr.rel (0) target = $region49
    $region48: #{_mlp_forward_impl.1} parent=1 // pred_region
      _
    $region49: #{_mlp_forward_impl.1} parent=1 // pred_fallthru
      _
    // Predicated region
    $region50: #{_mlp_forward_impl.1} parent=1 // pred_check
      _
    $region51: #{_mlp_forward_impl.1} parent=1 // pred_check_branch
      %83 = sbr.rel (0) target = $region53
    $region52: #{_mlp_forward_impl.1} parent=1 // pred_region
      _
    $region53: #{_mlp_forward_impl.1} parent=1 // pred_fallthru
      _
    // Predicated region
    $region54: #{_mlp_forward_impl.1} parent=1 // pred_check
      _
    $region55: #{_mlp_forward_impl.1} parent=1 // pred_check_branch
      %85 = sbr.rel (0) target = $region57
    $region56: #{_mlp_forward_impl.1} parent=1 // pred_region
      _
    $region57: #{_mlp_forward_impl.1} parent=1 // pred_fallthru
      _
    // Predicated region
    $region58: #{_mlp_forward_impl.1} parent=1 // pred_check
      _
    $region59: #{_mlp_forward_impl.1} parent=1 // pred_check_branch
      %87 = sbr.rel (0) target = $region61
    $region60: #{_mlp_forward_impl.1} parent=1 // pred_region
      _
    $region61: #{_mlp_forward_impl.1} parent=1 // pred_fallthru
      _
    // Predicated region
    $region62: #{_mlp_forward_impl.1} parent=1 // pred_check
      _
    $region63: #{_mlp_forward_impl.1} parent=1 // pred_check_branch
      %89 = sbr.rel (0) target = $region65
    $region64: #{_mlp_forward_impl.1} parent=1 // pred_region
      %s91 = ssub.s32 512, 512
      %92 = vsyncadd [#allocation10], %s91
      %s93 = sshll.u32 [#allocation9], 4
      %s94 = int_to_ptr.vmem [resolvable:$true] %s93
      %99 = dma.hbm_to_vmem [thread:$0]  %s15, 512, %s94, [#allocation10], 256, 256, 16
    $region65: #{_mlp_forward_impl.1} parent=1 // pred_fallthru
      _
    // Predicated region
    $region66: #{_mlp_forward_impl.1} parent=1 // pred_check
      _
    $region67: #{_mlp_forward_impl.1} parent=1 // pred_check_branch
      %101 = sbr.rel (0) target = $region69
    $region68: #{_mlp_forward_impl.1} parent=1 // pred_region
      _
    $region69: #{_mlp_forward_impl.1} parent=1 // pred_fallthru
      _
    // Predicated region
    $region70: #{_mlp_forward_impl.1} parent=1 // pred_check
      _
    $region71: #{_mlp_forward_impl.1} parent=1 // pred_check_branch
      %103 = sbr.rel (0) target = $region73
    $region72: #{_mlp_forward_impl.1} parent=1 // pred_region
      _
    $region73: #{_mlp_forward_impl.1} parent=1 // pred_fallthru
      _
    // Predicated region
    $region74: #{_mlp_forward_impl.1} parent=1 // pred_check
      _
    $region75: #{_mlp_forward_impl.1} parent=1 // pred_check_branch
      %105 = sbr.rel (0) target = $region77
    $region76: #{_mlp_forward_impl.1} parent=1 // pred_region
      %s107 = ssub.s32 768, 768
      %108 = vsyncadd [#allocation10], %s107
      %s109 = sshll.u32 [#allocation11], 4
      %s110 = int_to_ptr.vmem [resolvable:$true] %s109
      %115 = dma.hbm_to_vmem [thread:$0]  %s18, 768, %s110, [#allocation10], 256, 256, 16
    $region77: #{_mlp_forward_impl.1} parent=1 // pred_fallthru
      _
    // Predicated region
    $region78: #{_mlp_forward_impl.1} parent=1 // pred_check
      _
    $region79: #{_mlp_forward_impl.1} parent=1 // pred_check_branch
      %117 = sbr.rel (0) target = $region81
    $region80: #{_mlp_forward_impl.1} parent=1 // pred_region
      _
    $region81: #{_mlp_forward_impl.1} parent=1 // pred_fallthru
      _
    // Predicated region
    $region82: #{_mlp_forward_impl.1} parent=1 // pred_check
      _
    $region83: #{_mlp_forward_impl.1} parent=1 // pred_check_branch
      %119 = sbr.rel (0) target = $region85
    $region84: #{_mlp_forward_impl.1} parent=1 // pred_region
      %s121 = ssub.s32 4352, 4352
      %122 = vsyncadd [#allocation13], %s121
      %s123 = sshll.u32 [#allocation12], 4
      %s124 = int_to_ptr.vmem [resolvable:$true] %s123
      %129 = dma.hbm_to_vmem [thread:$0]  %s20, 4352, %s124, [#allocation13], 256, 256, 16
    $region85: #{_mlp_forward_impl.1} parent=1 // pred_fallthru
      _
    // Predicated region
    $region86: #{_mlp_forward_impl.1} parent=1 // pred_check
      _
    $region87: #{_mlp_forward_impl.1} parent=1 // pred_check_branch
      %131 = sbr.rel (0) target = $region89
    $region88: #{_mlp_forward_impl.1} parent=1 // pred_region
      _
    $region89: #{_mlp_forward_impl.1} parent=1 // pred_fallthru
      _
    // Predicated region
    $region90: #{_mlp_forward_impl.1} parent=1 // pred_check
      _
    $region91: #{_mlp_forward_impl.1} parent=1 // pred_check_branch
      %133 = sbr.rel (0) target = $region93
    $region92: #{_mlp_forward_impl.1} parent=1 // pred_region
      _
    $region93: #{_mlp_forward_impl.1} parent=1 // pred_fallthru
      _
    // Predicated region
    $region94: #{_mlp_forward_impl.1} parent=1 // pred_check
      _
    $region95: #{_mlp_forward_impl.1} parent=1 // pred_check_branch
      %135 = sbr.rel (0) target = $region97
    $region96: #{_mlp_forward_impl.1} parent=1 // pred_region
      %136 = dma.done [#allocation5], 32
    $region97: #{_mlp_forward_impl.1} parent=1 // pred_fallthru
      _
    // Predicated region
    $region98: #{_mlp_forward_impl.1} parent=1 // pred_check
      _
    $region99: #{_mlp_forward_impl.1} parent=1 // pred_check_branch
      %138 = sbr.rel (0) target = $region101
    $region100: #{_mlp_forward_impl.1} parent=1 // pred_region
      %139 = dma.done [#allocation7], 256
    $region101: #{_mlp_forward_impl.1} parent=1 // pred_fallthru
      _
    // Predicated region
    $region102: #{_mlp_forward_impl.1} parent=1 // pred_check
      _
    $region103: #{_mlp_forward_impl.1} parent=1 // pred_check_branch
      %141 = sbr.rel (0) target = $region105
    $region104: #{_mlp_forward_impl.1} parent=1 // pred_region
      %142 = dma.done [#allocation7], 3328
    $region105: #{_mlp_forward_impl.1} parent=1 // pred_fallthru
      _
    // Predicated region
    $region106: #{_mlp_forward_impl.1} parent=1 // pred_check
      _
    $region107: #{_mlp_forward_impl.1} parent=1 // pred_check_branch
      %144 = sbr.rel (0) target = $region109
    $region108: #{_mlp_forward_impl.1} parent=1 // pred_region
      %145 = dma.done [#allocation10], 512
    $region109: #{_mlp_forward_impl.1} parent=1 // pred_fallthru
      _
    // Predicated region
    $region110: #{_mlp_forward_impl.1} parent=1 // pred_check
      _
    $region111: #{_mlp_forward_impl.1} parent=1 // pred_check_branch
      %147 = sbr.rel (0) target = $region113
    $region112: #{_mlp_forward_impl.1} parent=1 // pred_region
      %148 = dma.done [#allocation10], 768
    $region113: #{_mlp_forward_impl.1} parent=1 // pred_fallthru
      _
    // Predicated region
    $region114: #{_mlp_forward_impl.1} parent=1 // pred_check
      _
    $region115: #{_mlp_forward_impl.1} parent=1 // pred_check_branch
      %150 = sbr.rel (0) target = $region117
    $region116: #{_mlp_forward_impl.1} parent=1 // pred_region
      %151 = dma.done [#allocation13], 4352
    $region117: #{_mlp_forward_impl.1} parent=1 // pred_fallthru
      _
    %v152 = vld [vmem:[%s6] sm:$0xff]
    %v153 = vld [vmem:[%s6 + $0x8] sm:$0xff]
    %v154 = vld [vmem:[%s6 + $0x10] sm:$0xff]
    %v155 = vld [vmem:[%s6 + $0x18] sm:$0xff]
    %v156 = vld [vmem:[%s6 + $0x20] sm:$0xff]
    %v157 = vld [vmem:[%s6 + $0x28] sm:$0xff]
    %v158 = vld [vmem:[%s6 + $0x30] sm:$0xff]
    %v159 = vld [vmem:[%s6 + $0x38] sm:$0xff]
    %v160 = vld [vmem:[%s6 + $0x40] sm:$0xff]
    %v161 = vld [vmem:[%s6 + $0x48] sm:$0xff]
    %v162 = vld [vmem:[%s6 + $0x50] sm:$0xff]
    %v163 = vld [vmem:[%s6 + $0x58] sm:$0xff]
    %v164 = vld [vmem:[%s6 + $0x60] sm:$0xff]
    %v165 = vld [vmem:[%s6 + $0x68] sm:$0xff]
    %v166 = vld [vmem:[%s6 + $0x70] sm:$0xff]
    %v167 = vld [vmem:[%s6 + $0x78] sm:$0xff]
    %v168 = vld [vmem:[%s6 + $0x80] sm:$0xff]
    %v169 = vld [vmem:[%s6 + $0x88] sm:$0xff]
    %v170 = vld [vmem:[%s6 + $0x90] sm:$0xff]
    %v171 = vld [vmem:[%s6 + $0x98] sm:$0xff]
    %v172 = vld [vmem:[%s6 + $0xa0] sm:$0xff]
    %v173 = vld [vmem:[%s6 + $0xa8] sm:$0xff]
    %v174 = vld [vmem:[%s6 + $0xb0] sm:$0xff]
    %v175 = vld [vmem:[%s6 + $0xb8] sm:$0xff]
    %v176 = vld [vmem:[%s6 + $0xc0] sm:$0xff]
    %v177 = vld [vmem:[%s6 + $0xc8] sm:$0xff]
    %v178 = vld [vmem:[%s6 + $0xd0] sm:$0xff]
    %v179 = vld [vmem:[%s6 + $0xd8] sm:$0xff]
    %v180 = vld [vmem:[%s6 + $0xe0] sm:$0xff]
    %v181 = vld [vmem:[%s6 + $0xe8] sm:$0xff]
    %v182 = vld [vmem:[%s6 + $0xf0] sm:$0xff]
    %v183 = vld [vmem:[%s6 + $0xf8] sm:$0xff]
    %v184 = vld [vmem:[%s6 + $0x100] sm:$0xff]
    %v185 = vld [vmem:[%s6 + $0x108] sm:$0xff]
    %v186 = vld [vmem:[%s6 + $0x110] sm:$0xff]
    %v187 = vld [vmem:[%s6 + $0x118] sm:$0xff]
    %v188 = vld [vmem:[%s6 + $0x120] sm:$0xff]
    %v189 = vld [vmem:[%s6 + $0x128] sm:$0xff]
    %v190 = vld [vmem:[%s6 + $0x130] sm:$0xf]
    %v191 = vld [vmem:[%s6 + $0x138] sm:$0xf]
    %v192 = vld [vmem:[%s7] sm:$0xff]
    %v193 = vld [vmem:[%s7 + $0x8] sm:$0xff]
    %v194 = vld [vmem:[%s7 + $0x10] sm:$0xff]
    %v195 = vld [vmem:[%s7 + $0x18] sm:$0xff]
    %v196 = vld [vmem:[%s7 + $0x20] sm:$0xff]
    %v197 = vld [vmem:[%s7 + $0x28] sm:$0xff]
    %v198 = vld [vmem:[%s7 + $0x30] sm:$0xff]
    %v199 = vld [vmem:[%s7 + $0x38] sm:$0xff]
    %v200 = vld [vmem:[%s7 + $0x40] sm:$0xff]
    %v201 = vld [vmem:[%s7 + $0x48] sm:$0xff]
    %v202 = vld [vmem:[%s7 + $0x50] sm:$0xff]
    %v203 = vld [vmem:[%s7 + $0x58] sm:$0xff]
    %v204 = vld [vmem:[%s7 + $0x60] sm:$0xff]
    %v205 = vld [vmem:[%s7 + $0x68] sm:$0xff]
    %v206 = vld [vmem:[%s7 + $0x70] sm:$0xff]
    %v207 = vld [vmem:[%s7 + $0x78] sm:$0xff]
    %v208 = vld [vmem:[%s7 + $0x80] sm:$0xff]
    %v209 = vld [vmem:[%s7 + $0x88] sm:$0xff]
    %v210 = vld [vmem:[%s7 + $0x90] sm:$0xff]
    %v211 = vld [vmem:[%s7 + $0x98] sm:$0xff]
    %v212 = vld [vmem:[%s7 + $0xa0] sm:$0xff]
    %v213 = vld [vmem:[%s7 + $0xa8] sm:$0xff]
    %v214 = vld [vmem:[%s7 + $0xb0] sm:$0xff]
    %v215 = vld [vmem:[%s7 + $0xb8] sm:$0xff]
    %v216 = vld [vmem:[%s7 + $0xc0] sm:$0xff]
    %v217 = vld [vmem:[%s7 + $0xc8] sm:$0xff]
    %v218 = vld [vmem:[%s7 + $0xd0] sm:$0xff]
    %v219 = vld [vmem:[%s7 + $0xd8] sm:$0xff]
    %v220 = vld [vmem:[%s7 + $0xe0] sm:$0xff]
    %v221 = vld [vmem:[%s7 + $0xe8] sm:$0xff]
    %v222 = vld [vmem:[%s7 + $0xf0] sm:$0xff]
    %v223 = vld [vmem:[%s7 + $0xf8] sm:$0xff]
    %v224 = vld [vmem:[#allocation8] sm:$0xff]
    %v225 = vld [vmem:[#allocation8 + $0x8] sm:$0xff]
    %v226 = vld [vmem:[#allocation8 + $0x10] sm:$0xff]
    %v227 = vld [vmem:[#allocation8 + $0x18] sm:$0xff]
    %v228 = vld [vmem:[#allocation8 + $0x20] sm:$0xff]
    %v229 = vld [vmem:[#allocation8 + $0x28] sm:$0xff]
    %v230 = vld [vmem:[#allocation8 + $0x30] sm:$0xff]
    %v231 = vld [vmem:[#allocation8 + $0x38] sm:$0xff]
    %v232 = vld [vmem:[#allocation8 + $0x40] sm:$0xff]
    %v233 = vld [vmem:[#allocation8 + $0x48] sm:$0xff]
    %v234 = vld [vmem:[#allocation8 + $0x50] sm:$0xff]
    %v235 = vld [vmem:[#allocation8 + $0x58] sm:$0xff]
    %v236 = vld [vmem:[#allocation8 + $0x60] sm:$0xff]
    %v237 = vld [vmem:[#allocation8 + $0x68] sm:$0xff]
    %v238 = vld [vmem:[#allocation8 + $0x70] sm:$0xff]
    %v239 = vld [vmem:[#allocation8 + $0x78] sm:$0xff]
    %v240 = vld [vmem:[#allocation8 + $0x80] sm:$0xff]
    %v241 = vld [vmem:[#allocation8 + $0x88] sm:$0xff]
    %v242 = vld [vmem:[#allocation8 + $0x90] sm:$0xff]
    %v243 = vld [vmem:[#allocation8 + $0x98] sm:$0xff]
    %v244 = vld [vmem:[#allocation8 + $0xa0] sm:$0xff]
    %v245 = vld [vmem:[#allocation8 + $0xa8] sm:$0xff]
    %v246 = vld [vmem:[#allocation8 + $0xb0] sm:$0xff]
    %v247 = vld [vmem:[#allocation8 + $0xb8] sm:$0xff]
    %v248 = vld [vmem:[#allocation8 + $0xc0] sm:$0xf]
    %v249 = vld [vmem:[#allocation8 + $0xc8] sm:$0xf]
    %v250 = vld [vmem:[%s9] sm:$0xff]
    %v251 = vld [vmem:[%s9 + $0x8] sm:$0xff]
    %v252 = vld [vmem:[%s9 + $0x10] sm:$0xff]
    %v253 = vld [vmem:[%s9 + $0x18] sm:$0xff]
    %v254 = vld [vmem:[%s9 + $0x20] sm:$0xff]
    %v255 = vld [vmem:[%s9 + $0x28] sm:$0xff]
    %v256 = vld [vmem:[%s9 + $0x30] sm:$0xff]
    %v257 = vld [vmem:[%s9 + $0x38] sm:$0xff]
    %v258 = vld [vmem:[%s9 + $0x40] sm:$0xff]
    %v259 = vld [vmem:[%s9 + $0x48] sm:$0xff]
    %v260 = vld [vmem:[%s9 + $0x50] sm:$0xff]
    %v261 = vld [vmem:[%s9 + $0x58] sm:$0xff]
    %v262 = vld [vmem:[%s9 + $0x60] sm:$0xff]
    %v263 = vld [vmem:[%s9 + $0x68] sm:$0xff]
    %v264 = vld [vmem:[%s9 + $0x70] sm:$0xff]
    %v265 = vld [vmem:[%s9 + $0x78] sm:$0xff]
    %v266 = vld [vmem:[%s9 + $0x80] sm:$0xff]
    %v267 = vld [vmem:[%s9 + $0x88] sm:$0xff]
    %v268 = vld [vmem:[%s9 + $0x90] sm:$0xff]
    %v269 = vld [vmem:[%s9 + $0x98] sm:$0xff]
    %v270 = vld [vmem:[%s9 + $0xa0] sm:$0xff]
    %v271 = vld [vmem:[%s9 + $0xa8] sm:$0xff]
    %v272 = vld [vmem:[%s9 + $0xb0] sm:$0xff]
    %v273 = vld [vmem:[%s9 + $0xb8] sm:$0xff]
    %v274 = vld [vmem:[%s9 + $0xc0] sm:$0xff]
    %v275 = vld [vmem:[%s9 + $0xc8] sm:$0xff]
    %v276 = vld [vmem:[%s9 + $0xd0] sm:$0xff]
    %v277 = vld [vmem:[%s9 + $0xd8] sm:$0xff]
    %v278 = vld [vmem:[%s9 + $0xe0] sm:$0xff]
    %v279 = vld [vmem:[%s9 + $0xe8] sm:$0xff]
    %v280 = vld [vmem:[%s9 + $0xf0] sm:$0xff]
    %v281 = vld [vmem:[%s9 + $0xf8] sm:$0xff]
    %v282 = vld [vmem:[%s9 + $0x100] sm:$0xff]
    %v283 = vld [vmem:[%s9 + $0x108] sm:$0xff]
    %v284 = vld [vmem:[%s9 + $0x110] sm:$0xff]
    %v285 = vld [vmem:[%s9 + $0x118] sm:$0xff]
    %v286 = vld [vmem:[%s9 + $0x120] sm:$0xff]
    %v287 = vld [vmem:[%s9 + $0x128] sm:$0xff]
    %v288 = vld [vmem:[%s9 + $0x130] sm:$0xf]
    %v289 = vld [vmem:[%s9 + $0x138] sm:$0xf]
    %v290 = vld [vmem:[%s10] sm:$0xff]
    %v291 = vld [vmem:[%s10 + $0x8] sm:$0xff]
    %v292 = vld [vmem:[%s10 + $0x10] sm:$0xff]
    %v293 = vld [vmem:[%s10 + $0x18] sm:$0xff]
    %v294 = vld [vmem:[%s10 + $0x20] sm:$0xff]
    %v295 = vld [vmem:[%s10 + $0x28] sm:$0xff]
    %v296 = vld [vmem:[%s10 + $0x30] sm:$0xff]
    %v297 = vld [vmem:[%s10 + $0x38] sm:$0xff]
    %v298 = vld [vmem:[%s10 + $0x40] sm:$0xff]
    %v299 = vld [vmem:[%s10 + $0x48] sm:$0xff]
    %v300 = vld [vmem:[%s10 + $0x50] sm:$0xff]
    %v301 = vld [vmem:[%s10 + $0x58] sm:$0xff]
    %v302 = vld [vmem:[%s10 + $0x60] sm:$0xff]
    %v303 = vld [vmem:[%s10 + $0x68] sm:$0xff]
    %v304 = vld [vmem:[%s10 + $0x70] sm:$0xff]
    %v305 = vld [vmem:[%s10 + $0x78] sm:$0xff]
    %v306 = vld [vmem:[%s10 + $0x80] sm:$0xff]
    %v307 = vld [vmem:[%s10 + $0x88] sm:$0xff]
    %v308 = vld [vmem:[%s10 + $0x90] sm:$0xff]
    %v309 = vld [vmem:[%s10 + $0x98] sm:$0xff]
    %v310 = vld [vmem:[%s10 + $0xa0] sm:$0xff]
    %v311 = vld [vmem:[%s10 + $0xa8] sm:$0xff]
    %v312 = vld [vmem:[%s10 + $0xb0] sm:$0xff]
    %v313 = vld [vmem:[%s10 + $0xb8] sm:$0xff]
    %v314 = vld [vmem:[%s10 + $0xc0] sm:$0xff]
    %v315 = vld [vmem:[%s10 + $0xc8] sm:$0xff]
    %v316 = vld [vmem:[%s10 + $0xd0] sm:$0xff]
    %v317 = vld [vmem:[%s10 + $0xd8] sm:$0xff]
    %v318 = vld [vmem:[%s10 + $0xe0] sm:$0xff]
    %v319 = vld [vmem:[%s10 + $0xe8] sm:$0xff]
    %v320 = vld [vmem:[%s10 + $0xf0] sm:$0xff]
    %v321 = vld [vmem:[%s10 + $0xf8] sm:$0xff]
    %v322 = vld [vmem:[%s10 + $0x100] sm:$0xff]
    %v323 = vld [vmem:[%s10 + $0x108] sm:$0xff]
    %v324 = vld [vmem:[%s10 + $0x110] sm:$0xff]
    %v325 = vld [vmem:[%s10 + $0x118] sm:$0xff]
    %v326 = vld [vmem:[%s10 + $0x120] sm:$0xff]
    %v327 = vld [vmem:[%s10 + $0x128] sm:$0xff]
    %v328 = vld [vmem:[%s10 + $0x130] sm:$0xff]
    %v329 = vld [vmem:[%s10 + $0x138] sm:$0xff]
    %v330 = vld [vmem:[%s10 + $0x140] sm:$0xff]
    %v331 = vld [vmem:[%s10 + $0x148] sm:$0xff]
    %v332 = vld [vmem:[%s10 + $0x150] sm:$0xff]
    %v333 = vld [vmem:[%s10 + $0x158] sm:$0xff]
    %v334 = vld [vmem:[%s10 + $0x160] sm:$0xff]
    %v335 = vld [vmem:[%s10 + $0x168] sm:$0xff]
    %v336 = vld [vmem:[%s10 + $0x170] sm:$0xff]
    %v337 = vld [vmem:[%s10 + $0x178] sm:$0xff]
    %v338 = vld [vmem:[%s10 + $0x180] sm:$0xff]
    %v339 = vld [vmem:[%s10 + $0x188] sm:$0xff]
    %v340 = vld [vmem:[%s10 + $0x190] sm:$0xff]
    %v341 = vld [vmem:[%s10 + $0x198] sm:$0xff]
    %v342 = vld [vmem:[%s10 + $0x1a0] sm:$0xff]
    %v343 = vld [vmem:[%s10 + $0x1a8] sm:$0xff]
    %v344 = vld [vmem:[%s10 + $0x1b0] sm:$0xff]
    %v345 = vld [vmem:[%s10 + $0x1b8] sm:$0xff]
    %v346 = vld [vmem:[%s10 + $0x1c0] sm:$0xff]
    %v347 = vld [vmem:[%s10 + $0x1c8] sm:$0xff]
    %v348 = vld [vmem:[%s10 + $0x1d0] sm:$0xff]
    %v349 = vld [vmem:[%s10 + $0x1d8] sm:$0xff]
    %v350 = vld [vmem:[%s10 + $0x1e0] sm:$0xff]
    %v351 = vld [vmem:[%s10 + $0x1e8] sm:$0xff]
    %v352 = vld [vmem:[%s10 + $0x1f0] sm:$0xff]
    %v353 = vld [vmem:[%s10 + $0x1f8] sm:$0xff]
    %v354 = vld [vmem:[%s11] sm:$0xff]
    %v355 = vld [vmem:[%s11 + $0x8] sm:$0xff]
    %v356 = vld [vmem:[%s11 + $0x10] sm:$0xff]
    %v357 = vld [vmem:[%s11 + $0x18] sm:$0xff]
    %v358 = vld [vmem:[%s11 + $0x20] sm:$0xff]
    %v359 = vld [vmem:[%s11 + $0x28] sm:$0xff]
    %v360 = vld [vmem:[%s11 + $0x30] sm:$0xff]
    %v361 = vld [vmem:[%s11 + $0x38] sm:$0xff]
    %v362 = vld [vmem:[%s11 + $0x40] sm:$0xff]
    %v363 = vld [vmem:[%s11 + $0x48] sm:$0xff]
    %v364 = vld [vmem:[%s11 + $0x50] sm:$0xff]
    %v365 = vld [vmem:[%s11 + $0x58] sm:$0xff]
    %v366 = vld [vmem:[%s11 + $0x60] sm:$0xff]
    %v367 = vld [vmem:[%s11 + $0x68] sm:$0xff]
    %v368 = vld [vmem:[%s11 + $0x70] sm:$0xff]
    %v369 = vld [vmem:[%s11 + $0x78] sm:$0xff]
    %v370 = vld [vmem:[%s11 + $0x80] sm:$0xff]
    %v371 = vld [vmem:[%s11 + $0x88] sm:$0xff]
    %v372 = vld [vmem:[%s11 + $0x90] sm:$0xff]
    %v373 = vld [vmem:[%s11 + $0x98] sm:$0xff]
    %v374 = vld [vmem:[%s11 + $0xa0] sm:$0xff]
    %v375 = vld [vmem:[%s11 + $0xa8] sm:$0xff]
    %v376 = vld [vmem:[%s11 + $0xb0] sm:$0xff]
    %v377 = vld [vmem:[%s11 + $0xb8] sm:$0xff]
    %v378 = vld [vmem:[%s11 + $0xc0] sm:$0xff]
    %v379 = vld [vmem:[%s11 + $0xc8] sm:$0xff]
    %v380 = vld [vmem:[%s11 + $0xd0] sm:$0xff]
    %v381 = vld [vmem:[%s11 + $0xd8] sm:$0xff]
    %v382 = vld [vmem:[%s11 + $0xe0] sm:$0xff]
    %v383 = vld [vmem:[%s11 + $0xe8] sm:$0xff]
    %v384 = vld [vmem:[%s11 + $0xf0] sm:$0xff]
    %v385 = vld [vmem:[%s11 + $0xf8] sm:$0xff]
    %v386 = vld [vmem:[%s11 + $0x100] sm:$0xff]
    %v387 = vld [vmem:[%s11 + $0x108] sm:$0xff]
    %v388 = vld [vmem:[%s11 + $0x110] sm:$0xff]
    %v389 = vld [vmem:[%s11 + $0x118] sm:$0xff]
    %v390 = vld [vmem:[%s11 + $0x120] sm:$0xff]
    %v391 = vld [vmem:[%s11 + $0x128] sm:$0xff]
    %v392 = vld [vmem:[%s11 + $0x130] sm:$0xff]
    %v393 = vld [vmem:[%s11 + $0x138] sm:$0xff]
    %v394 = vld [vmem:[%s11 + $0x140] sm:$0xff]
    %v395 = vld [vmem:[%s11 + $0x148] sm:$0xff]
    %v396 = vld [vmem:[%s11 + $0x150] sm:$0xff]
    %v397 = vld [vmem:[%s11 + $0x158] sm:$0xff]
    %v398 = vld [vmem:[%s11 + $0x160] sm:$0xff]
    %v399 = vld [vmem:[%s11 + $0x168] sm:$0xff]
    %v400 = vld [vmem:[%s11 + $0x170] sm:$0xff]
    %v401 = vld [vmem:[%s11 + $0x178] sm:$0xff]
    %v402 = vld [vmem:[%s11 + $0x180] sm:$0xff]
    %v403 = vld [vmem:[%s11 + $0x188] sm:$0xff]
    %v404 = vld [vmem:[%s11 + $0x190] sm:$0xff]
    %v405 = vld [vmem:[%s11 + $0x198] sm:$0xff]
    %v406 = vld [vmem:[%s11 + $0x1a0] sm:$0xff]
    %v407 = vld [vmem:[%s11 + $0x1a8] sm:$0xff]
    %v408 = vld [vmem:[%s11 + $0x1b0] sm:$0xff]
    %v409 = vld [vmem:[%s11 + $0x1b8] sm:$0xff]
    %v410 = vld [vmem:[%s11 + $0x1c0] sm:$0xff]
    %v411 = vld [vmem:[%s11 + $0x1c8] sm:$0xff]
    %v412 = vld [vmem:[%s11 + $0x1d0] sm:$0xff]
    %v413 = vld [vmem:[%s11 + $0x1d8] sm:$0xff]
    %v414 = vld [vmem:[%s11 + $0x1e0] sm:$0xff]
    %v415 = vld [vmem:[%s11 + $0x1e8] sm:$0xff]
    %v416 = vld [vmem:[%s11 + $0x1f0] sm:$0xff]
    %v417 = vld [vmem:[%s11 + $0x1f8] sm:$0xff]
    %v418 = vld [vmem:[%s12] sm:$0xff]
    %v419 = vld [vmem:[%s12 + $0x8] sm:$0xff]
    %v420 = vld [vmem:[%s12 + $0x10] sm:$0xff]
    %v421 = vld [vmem:[%s12 + $0x18] sm:$0xff]
    %v422 = vld [vmem:[%s12 + $0x20] sm:$0xff]
    %v423 = vld [vmem:[%s12 + $0x28] sm:$0xff]
    %v424 = vld [vmem:[%s13] sm:$0xff]
    %v425 = vld [vmem:[%s13 + $0x8] sm:$0xff]
    %v426 = vld [vmem:[%s13 + $0x10] sm:$0xff]
    %v427 = vld [vmem:[%s13 + $0x18] sm:$0xff]
    %v428 = vld [vmem:[%s13 + $0x20] sm:$0xff]
    %v429 = vld [vmem:[%s13 + $0x28] sm:$0xff]
    %v430 = vld [vmem:[%s13 + $0x30] sm:$0xff]
    %v431 = vld [vmem:[%s13 + $0x38] sm:$0xff]
    %v432 = vld [vmem:[%s13 + $0x40] sm:$0xff]
    %v433 = vld [vmem:[%s13 + $0x48] sm:$0xff]
    %v434 = vld [vmem:[%s13 + $0x50] sm:$0xff]
    %v435 = vld [vmem:[%s13 + $0x58] sm:$0xff]
    %v436 = vld [vmem:[%s13 + $0x60] sm:$0xff]
    %v437 = vld [vmem:[%s13 + $0x68] sm:$0xff]
    %v438 = vld [vmem:[%s13 + $0x70] sm:$0xff]
    %v439 = vld [vmem:[%s13 + $0x78] sm:$0xff]
    %v440 = vld [vmem:[%s13 + $0x80] sm:$0xff]
    %v441 = vld [vmem:[%s13 + $0x88] sm:$0xff]
    %v442 = vld [vmem:[%s13 + $0x90] sm:$0xff]
    %v443 = vld [vmem:[%s13 + $0x98] sm:$0xff]
    %v444 = vld [vmem:[%s13 + $0xa0] sm:$0xff]
    %v445 = vld [vmem:[%s13 + $0xa8] sm:$0xff]
    %v446 = vld [vmem:[%s13 + $0xb0] sm:$0xff]
    %v447 = vld [vmem:[%s13 + $0xb8] sm:$0xff]
    %v448 = vld [vmem:[%s13 + $0xc0] sm:$0xff]
    %v449 = vld [vmem:[%s13 + $0xc8] sm:$0xff]
    %v450 = vld [vmem:[%s13 + $0xd0] sm:$0xff]
    %v451 = vld [vmem:[%s13 + $0xd8] sm:$0xff]
    %v452 = vld [vmem:[%s13 + $0xe0] sm:$0xff]
    %v453 = vld [vmem:[%s13 + $0xe8] sm:$0xff]
    %v454 = vld [vmem:[%s13 + $0xf0] sm:$0xff]
    %v455 = vld [vmem:[%s13 + $0xf8] sm:$0xff]
    %v456 = vld [vmem:[%s13 + $0x100] sm:$0xff]
    %v457 = vld [vmem:[%s13 + $0x108] sm:$0xff]
    %v458 = vld [vmem:[%s13 + $0x110] sm:$0xff]
    %v459 = vld [vmem:[%s13 + $0x118] sm:$0xff]
    %v460 = vld [vmem:[%s13 + $0x120] sm:$0xff]
    %v461 = vld [vmem:[%s13 + $0x128] sm:$0xff]
    %v462 = vld [vmem:[%s13 + $0x130] sm:$0xff]
    %v463 = vld [vmem:[%s13 + $0x138] sm:$0xff]
    %v464 = vld [vmem:[%s13 + $0x140] sm:$0xff]
    %v465 = vld [vmem:[%s13 + $0x148] sm:$0xff]
    %v466 = vld [vmem:[%s13 + $0x150] sm:$0xff]
    %v467 = vld [vmem:[%s13 + $0x158] sm:$0xff]
    %v468 = vld [vmem:[%s13 + $0x160] sm:$0xff]
    %v469 = vld [vmem:[%s13 + $0x168] sm:$0xff]
    %v470 = vld [vmem:[%s13 + $0x170] sm:$0xff]
    %v471 = vld [vmem:[%s13 + $0x178] sm:$0xff]
    %v472 = vld [vmem:[%s13 + $0x180] sm:$0xff]
    %v473 = vld [vmem:[%s13 + $0x188] sm:$0xff]
    %v474 = vld [vmem:[%s13 + $0x190] sm:$0xff]
    %v475 = vld [vmem:[%s13 + $0x198] sm:$0xff]
    %v476 = vld [vmem:[%s13 + $0x1a0] sm:$0xff]
    %v477 = vld [vmem:[%s13 + $0x1a8] sm:$0xff]
    %v478 = vld [vmem:[%s13 + $0x1b0] sm:$0xff]
    %v479 = vld [vmem:[%s13 + $0x1b8] sm:$0xff]
    %v480 = vld [vmem:[%s13 + $0x1c0] sm:$0xff]
    %v481 = vld [vmem:[%s13 + $0x1c8] sm:$0xff]
    %v482 = vld [vmem:[%s13 + $0x1d0] sm:$0xff]
    %v483 = vld [vmem:[%s13 + $0x1d8] sm:$0xff]
    %v484 = vld [vmem:[%s14] sm:$0xff]
    %v485 = vld [vmem:[%s14 + $0x8] sm:$0xff]
    %v486 = vld [vmem:[%s14 + $0x10] sm:$0xff]
    %v487 = vld [vmem:[%s14 + $0x18] sm:$0xff]
    %v488 = vld [vmem:[%s14 + $0x20] sm:$0xff]
    %v489 = vld [vmem:[%s14 + $0x28] sm:$0xff]
    %v490 = vld [vmem:[%s14 + $0x30] sm:$0xff]
    %v491 = vld [vmem:[%s14 + $0x38] sm:$0xff]
    %v492 = vld [vmem:[%s14 + $0x40] sm:$0xff]
    %v493 = vld [vmem:[%s14 + $0x48] sm:$0xff]
    %v494 = vld [vmem:[%s14 + $0x50] sm:$0xff]
    %v495 = vld [vmem:[%s14 + $0x58] sm:$0xff]
    %v496 = vld [vmem:[%s14 + $0x60] sm:$0xff]
    %v497 = vld [vmem:[%s14 + $0x68] sm:$0xff]
    %v498 = vld [vmem:[%s14 + $0x70] sm:$0xff]
    %v499 = vld [vmem:[%s14 + $0x78] sm:$0xff]
    %v500 = vld [vmem:[%s14 + $0x80] sm:$0xff]
    %v501 = vld [vmem:[%s14 + $0x88] sm:$0xff]
    %v502 = vld [vmem:[%s14 + $0x90] sm:$0xff]
    %v503 = vld [vmem:[%s14 + $0x98] sm:$0xff]
    %v504 = vld [vmem:[%s14 + $0xa0] sm:$0xff]
    %v505 = vld [vmem:[%s14 + $0xa8] sm:$0xff]
    %v506 = vld [vmem:[%s14 + $0xb0] sm:$0xff]
    %v507 = vld [vmem:[%s14 + $0xb8] sm:$0xff]
    %v508 = vld [vmem:[%s14 + $0xc0] sm:$0xff]
    %v509 = vld [vmem:[%s14 + $0xc8] sm:$0xff]
    %v510 = vld [vmem:[%s14 + $0xd0] sm:$0xff]
    %v511 = vld [vmem:[%s14 + $0xd8] sm:$0xff]
    %v512 = vld [vmem:[%s14 + $0xe0] sm:$0xff]
    %v513 = vld [vmem:[%s14 + $0xe8] sm:$0xff]
    %v514 = vld [vmem:[%s14 + $0xf0] sm:$0xff]
    %v515 = vld [vmem:[%s14 + $0xf8] sm:$0xff]
    %v516 = vld [vmem:[%s14 + $0x100] sm:$0xf]
    %v517 = vld [vmem:[%s14 + $0x108] sm:$0xf]
    %v518 = vld [vmem:[#allocation9] sm:$0xff]
    %v519 = vld [vmem:[#allocation9 + $0x8] sm:$0xff]
    %v520 = vld [vmem:[#allocation9 + $0x10] sm:$0xf]
    %v521 = vld [vmem:[#allocation9 + $0x18] sm:$0xf]
    %v522 = vld [vmem:[%s16] sm:$0xff]
    %v523 = vld [vmem:[%s16 + $0x8] sm:$0xff]
    %v524 = vld [vmem:[%s16 + $0x10] sm:$0xff]
    %v525 = vld [vmem:[%s16 + $0x18] sm:$0xff]
    %v526 = vld [vmem:[%s16 + $0x20] sm:$0xff]
    %v527 = vld [vmem:[%s16 + $0x28] sm:$0xff]
    %v528 = vld [vmem:[%s16 + $0x30] sm:$0xff]
    %v529 = vld [vmem:[%s16 + $0x38] sm:$0xff]
    %v530 = vld [vmem:[%s16 + $0x40] sm:$0xff]
    %v531 = vld [vmem:[%s16 + $0x48] sm:$0xff]
    %v532 = vld [vmem:[%s16 + $0x50] sm:$0xff]
    %v533 = vld [vmem:[%s16 + $0x58] sm:$0xff]
    %v534 = vld [vmem:[%s16 + $0x60] sm:$0xff]
    %v535 = vld [vmem:[%s16 + $0x68] sm:$0xff]
    %v536 = vld [vmem:[%s16 + $0x70] sm:$0xff]
    %v537 = vld [vmem:[%s16 + $0x78] sm:$0xff]
    %v538 = vld [vmem:[%s16 + $0x80] sm:$0xff]
    %v539 = vld [vmem:[%s16 + $0x88] sm:$0xff]
    %v540 = vld [vmem:[%s16 + $0x90] sm:$0xff]
    %v541 = vld [vmem:[%s16 + $0x98] sm:$0xff]
    %v542 = vld [vmem:[%s16 + $0xa0] sm:$0xff]
    %v543 = vld [vmem:[%s16 + $0xa8] sm:$0xff]
    %v544 = vld [vmem:[%s16 + $0xb0] sm:$0xff]
    %v545 = vld [vmem:[%s16 + $0xb8] sm:$0xff]
    %v546 = vld [vmem:[%s16 + $0xc0] sm:$0xff]
    %v547 = vld [vmem:[%s16 + $0xc8] sm:$0xff]
    %v548 = vld [vmem:[%s16 + $0xd0] sm:$0xff]
    %v549 = vld [vmem:[%s16 + $0xd8] sm:$0xff]
    %v550 = vld [vmem:[%s16 + $0xe0] sm:$0xff]
    %v551 = vld [vmem:[%s16 + $0xe8] sm:$0xff]
    %v552 = vld [vmem:[%s16 + $0xf0] sm:$0xff]
    %v553 = vld [vmem:[%s16 + $0xf8] sm:$0xff]
    %v554 = vld [vmem:[%s16 + $0x100] sm:$0xff]
    %v555 = vld [vmem:[%s16 + $0x108] sm:$0xff]
    %v556 = vld [vmem:[%s16 + $0x110] sm:$0xff]
    %v557 = vld [vmem:[%s16 + $0x118] sm:$0xff]
    %v558 = vld [vmem:[%s16 + $0x120] sm:$0xff]
    %v559 = vld [vmem:[%s16 + $0x128] sm:$0xff]
    %v560 = vld [vmem:[%s16 + $0x130] sm:$0xff]
    %v561 = vld [vmem:[%s16 + $0x138] sm:$0xff]
    %v562 = vld [vmem:[%s16 + $0x140] sm:$0xff]
    %v563 = vld [vmem:[%s16 + $0x148] sm:$0xff]
    %v564 = vld [vmem:[%s16 + $0x150] sm:$0xff]
    %v565 = vld [vmem:[%s16 + $0x158] sm:$0xff]
    %v566 = vld [vmem:[%s16 + $0x160] sm:$0xff]
    %v567 = vld [vmem:[%s16 + $0x168] sm:$0xff]
    %v568 = vld [vmem:[%s16 + $0x170] sm:$0xff]
    %v569 = vld [vmem:[%s16 + $0x178] sm:$0xff]
    %v570 = vld [vmem:[%s16 + $0x180] sm:$0xff]
    %v571 = vld [vmem:[%s16 + $0x188] sm:$0xff]
    %v572 = vld [vmem:[%s16 + $0x190] sm:$0xff]
    %v573 = vld [vmem:[%s16 + $0x198] sm:$0xff]
    %v574 = vld [vmem:[%s16 + $0x1a0] sm:$0xff]
    %v575 = vld [vmem:[%s16 + $0x1a8] sm:$0xff]
    %v576 = vld [vmem:[%s16 + $0x1b0] sm:$0xff]
    %v577 = vld [vmem:[%s16 + $0x1b8] sm:$0xff]
    %v578 = vld [vmem:[%s16 + $0x1c0] sm:$0xff]
    %v579 = vld [vmem:[%s16 + $0x1c8] sm:$0xff]
    %v580 = vld [vmem:[%s16 + $0x1d0] sm:$0xff]
    %v581 = vld [vmem:[%s16 + $0x1d8] sm:$0xff]
    %v582 = vld [vmem:[%s16 + $0x1e0] sm:$0xff]
    %v583 = vld [vmem:[%s16 + $0x1e8] sm:$0xff]
    %v584 = vld [vmem:[%s16 + $0x1f0] sm:$0xff]
    %v585 = vld [vmem:[%s16 + $0x1f8] sm:$0xff]
    %v586 = vld [vmem:[%s17] sm:$0xff]
    %v587 = vld [vmem:[%s17 + $0x8] sm:$0xff]
    %v588 = vld [vmem:[%s17 + $0x10] sm:$0xff]
    %v589 = vld [vmem:[%s17 + $0x18] sm:$0xff]
    %v590 = vld [vmem:[%s17 + $0x20] sm:$0xff]
    %v591 = vld [vmem:[%s17 + $0x28] sm:$0xff]
    %v592 = vld [vmem:[%s17 + $0x30] sm:$0xff]
    %v593 = vld [vmem:[%s17 + $0x38] sm:$0xff]
    %v594 = vld [vmem:[%s17 + $0x40] sm:$0xff]
    %v595 = vld [vmem:[%s17 + $0x48] sm:$0xff]
    %v596 = vld [vmem:[%s17 + $0x50] sm:$0xff]
    %v597 = vld [vmem:[%s17 + $0x58] sm:$0xff]
    %v598 = vld [vmem:[%s17 + $0x60] sm:$0xff]
    %v599 = vld [vmem:[%s17 + $0x68] sm:$0xff]
    %v600 = vld [vmem:[%s17 + $0x70] sm:$0xff]
    %v601 = vld [vmem:[%s17 + $0x78] sm:$0xff]
    %v602 = vld [vmem:[%s17 + $0x80] sm:$0xff]
    %v603 = vld [vmem:[%s17 + $0x88] sm:$0xff]
    %v604 = vld [vmem:[%s17 + $0x90] sm:$0xff]
    %v605 = vld [vmem:[%s17 + $0x98] sm:$0xff]
    %v606 = vld [vmem:[%s17 + $0xa0] sm:$0xff]
    %v607 = vld [vmem:[%s17 + $0xa8] sm:$0xff]
    %v608 = vld [vmem:[%s17 + $0xb0] sm:$0xff]
    %v609 = vld [vmem:[%s17 + $0xb8] sm:$0xff]
    %v610 = vld [vmem:[%s17 + $0xc0] sm:$0xff]
    %v611 = vld [vmem:[%s17 + $0xc8] sm:$0xff]
    %v612 = vld [vmem:[%s17 + $0xd0] sm:$0xff]
    %v613 = vld [vmem:[%s17 + $0xd8] sm:$0xff]
    %v614 = vld [vmem:[%s17 + $0xe0] sm:$0xff]
    %v615 = vld [vmem:[%s17 + $0xe8] sm:$0xff]
    %v616 = vld [vmem:[%s17 + $0xf0] sm:$0xff]
    %v617 = vld [vmem:[%s17 + $0xf8] sm:$0xff]
    %v618 = vld [vmem:[#allocation11] sm:$0xff]
    %v619 = vld [vmem:[#allocation11 + $0x8] sm:$0xff]
    %v620 = vld [vmem:[#allocation11 + $0x10] sm:$0xff]
    %v621 = vld [vmem:[#allocation11 + $0x18] sm:$0xff]
    %v622 = vld [vmem:[#allocation11 + $0x20] sm:$0xff]
    %v623 = vld [vmem:[#allocation11 + $0x28] sm:$0xff]
    %v624 = vld [vmem:[%s19] sm:$0xff]
    %v625 = vld [vmem:[%s19 + $0x8] sm:$0xff]
    %v626 = vld [vmem:[%s19 + $0x10] sm:$0xff]
    %v627 = vld [vmem:[%s19 + $0x18] sm:$0xff]
    %v628 = vld [vmem:[%s19 + $0x20] sm:$0xff]
    %v629 = vld [vmem:[%s19 + $0x28] sm:$0xff]
    %v630 = vld [vmem:[%s19 + $0x30] sm:$0xff]
    %v631 = vld [vmem:[%s19 + $0x38] sm:$0xff]
    %v632 = vld [vmem:[%s19 + $0x40] sm:$0xff]
    %v633 = vld [vmem:[%s19 + $0x48] sm:$0xff]
    %v634 = vld [vmem:[%s19 + $0x50] sm:$0xff]
    %v635 = vld [vmem:[%s19 + $0x58] sm:$0xff]
    %v636 = vld [vmem:[%s19 + $0x60] sm:$0xff]
    %v637 = vld [vmem:[%s19 + $0x68] sm:$0xff]
    %v638 = vld [vmem:[%s19 + $0x70] sm:$0xff]
    %v639 = vld [vmem:[%s19 + $0x78] sm:$0xff]
    %v640 = vld [vmem:[%s19 + $0x80] sm:$0xff]
    %v641 = vld [vmem:[%s19 + $0x88] sm:$0xff]
    %v642 = vld [vmem:[%s19 + $0x90] sm:$0xff]
    %v643 = vld [vmem:[%s19 + $0x98] sm:$0xff]
    %v644 = vld [vmem:[%s19 + $0xa0] sm:$0xff]
    %v645 = vld [vmem:[%s19 + $0xa8] sm:$0xff]
    %v646 = vld [vmem:[%s19 + $0xb0] sm:$0xff]
    %v647 = vld [vmem:[%s19 + $0xb8] sm:$0xff]
    %v648 = vld [vmem:[%s19 + $0xc0] sm:$0xff]
    %v649 = vld [vmem:[%s19 + $0xc8] sm:$0xff]
    %v650 = vld [vmem:[%s19 + $0xd0] sm:$0xff]
    %v651 = vld [vmem:[%s19 + $0xd8] sm:$0xff]
    %v652 = vld [vmem:[%s19 + $0xe0] sm:$0xff]
    %v653 = vld [vmem:[%s19 + $0xe8] sm:$0xff]
    %v654 = vld [vmem:[%s19 + $0xf0] sm:$0xff]
    %v655 = vld [vmem:[%s19 + $0xf8] sm:$0xff]
    %v656 = vld [vmem:[%s19 + $0x100] sm:$0xff]
    %v657 = vld [vmem:[%s19 + $0x108] sm:$0xff]
    %v658 = vld [vmem:[%s19 + $0x110] sm:$0xff]
    %v659 = vld [vmem:[%s19 + $0x118] sm:$0xff]
    %v660 = vld [vmem:[%s19 + $0x120] sm:$0xff]
    %v661 = vld [vmem:[%s19 + $0x128] sm:$0xff]
    %v662 = vld [vmem:[%s19 + $0x130] sm:$0xff]
    %v663 = vld [vmem:[%s19 + $0x138] sm:$0xff]
    %v664 = vld [vmem:[%s19 + $0x140] sm:$0xff]
    %v665 = vld [vmem:[%s19 + $0x148] sm:$0xff]
    %v666 = vld [vmem:[%s19 + $0x150] sm:$0xff]
    %v667 = vld [vmem:[%s19 + $0x158] sm:$0xff]
    %v668 = vld [vmem:[%s19 + $0x160] sm:$0xff]
    %v669 = vld [vmem:[%s19 + $0x168] sm:$0xff]
    %v670 = vld [vmem:[%s19 + $0x170] sm:$0xff]
    %v671 = vld [vmem:[%s19 + $0x178] sm:$0xff]
    %v672 = vld [vmem:[%s19 + $0x180] sm:$0xff]
    %v673 = vld [vmem:[%s19 + $0x188] sm:$0xff]
    %v674 = vld [vmem:[%s19 + $0x190] sm:$0xff]
    %v675 = vld [vmem:[%s19 + $0x198] sm:$0xff]
    %v676 = vld [vmem:[%s19 + $0x1a0] sm:$0xff]
    %v677 = vld [vmem:[%s19 + $0x1a8] sm:$0xff]
    %v678 = vld [vmem:[%s19 + $0x1b0] sm:$0xff]
    %v679 = vld [vmem:[%s19 + $0x1b8] sm:$0xff]
    %v680 = vld [vmem:[%s19 + $0x1c0] sm:$0xff]
    %v681 = vld [vmem:[%s19 + $0x1c8] sm:$0xff]
    %v682 = vld [vmem:[%s19 + $0x1d0] sm:$0xff]
    %v683 = vld [vmem:[%s19 + $0x1d8] sm:$0xff]
    %v684 = vld [vmem:[#allocation12] sm:$0xff]
    %v685 = vld [vmem:[#allocation12 + $0x8] sm:$0xff]
    %v686 = vld [vmem:[#allocation12 + $0x10] sm:$0xff]
    %v687 = vld [vmem:[#allocation12 + $0x18] sm:$0xff]
    %v688 = vld [vmem:[#allocation12 + $0x20] sm:$0xff]
    %v689 = vld [vmem:[#allocation12 + $0x28] sm:$0xff]
    %v690 = vld [vmem:[#allocation12 + $0x30] sm:$0xff]
    %v691 = vld [vmem:[#allocation12 + $0x38] sm:$0xff]
    %v692 = vld [vmem:[#allocation12 + $0x40] sm:$0xff]
    %v693 = vld [vmem:[#allocation12 + $0x48] sm:$0xff]
    %v694 = vld [vmem:[#allocation12 + $0x50] sm:$0xff]
    %v695 = vld [vmem:[#allocation12 + $0x58] sm:$0xff]
    %v696 = vld [vmem:[#allocation12 + $0x60] sm:$0xff]
    %v697 = vld [vmem:[#allocation12 + $0x68] sm:$0xff]
    %v698 = vld [vmem:[#allocation12 + $0x70] sm:$0xff]
    %v699 = vld [vmem:[#allocation12 + $0x78] sm:$0xff]
    %v700 = vld [vmem:[#allocation12 + $0x80] sm:$0xff]
    %v701 = vld [vmem:[#allocation12 + $0x88] sm:$0xff]
    %v702 = vld [vmem:[#allocation12 + $0x90] sm:$0xff]
    %v703 = vld [vmem:[#allocation12 + $0x98] sm:$0xff]
    %v704 = vld [vmem:[#allocation12 + $0xa0] sm:$0xff]
    %v705 = vld [vmem:[#allocation12 + $0xa8] sm:$0xff]
    %v706 = vld [vmem:[#allocation12 + $0xb0] sm:$0xff]
    %v707 = vld [vmem:[#allocation12 + $0xb8] sm:$0xff]
    %v708 = vld [vmem:[#allocation12 + $0xc0] sm:$0xff]
    %v709 = vld [vmem:[#allocation12 + $0xc8] sm:$0xff]
    %v710 = vld [vmem:[#allocation12 + $0xd0] sm:$0xff]
    %v711 = vld [vmem:[#allocation12 + $0xd8] sm:$0xff]
    %v712 = vld [vmem:[#allocation12 + $0xe0] sm:$0xff]
    %v713 = vld [vmem:[#allocation12 + $0xe8] sm:$0xff]
    %v714 = vld [vmem:[#allocation12 + $0xf0] sm:$0xff]
    %v715 = vld [vmem:[#allocation12 + $0xf8] sm:$0xff]
    %v716 = vld [vmem:[#allocation12 + $0x100] sm:$0xf]
    %v717 = vld [vmem:[#allocation12 + $0x108] sm:$0xf]
    %v718 = vld [vmem:[%s21] sm:$0xff]
    %v719 = vld [vmem:[%s21 + $0x8] sm:$0xff]
    %v720 = vld [vmem:[%s21 + $0x10] sm:$0xff]
    %v721 = vld [vmem:[%s21 + $0x18] sm:$0xff]
    %v722 = vld [vmem:[%s21 + $0x20] sm:$0xff]
    %v723 = vld [vmem:[%s21 + $0x28] sm:$0xff]
    %v724 = vld [vmem:[%s21 + $0x30] sm:$0xff]
    %v725 = vld [vmem:[%s21 + $0x38] sm:$0xff]
    %v726 = vld [vmem:[%s21 + $0x40] sm:$0xff]
    %v727 = vld [vmem:[%s21 + $0x48] sm:$0xff]
    %v728 = vld [vmem:[%s21 + $0x50] sm:$0xff]
    %v729 = vld [vmem:[%s21 + $0x58] sm:$0xff]
    %v730 = vld [vmem:[%s21 + $0x60] sm:$0xff]
    %v731 = vld [vmem:[%s21 + $0x68] sm:$0xff]
    %v732 = vld [vmem:[%s21 + $0x70] sm:$0xff]
    %v733 = vld [vmem:[%s21 + $0x78] sm:$0xff]
    %v734 = vld [vmem:[%s21 + $0x80] sm:$0xff]
    %v735 = vld [vmem:[%s21 + $0x88] sm:$0xff]
    %v736 = vld [vmem:[%s21 + $0x90] sm:$0xff]
    %v737 = vld [vmem:[%s21 + $0x98] sm:$0xff]
    %v738 = vld [vmem:[%s21 + $0xa0] sm:$0xff]
    %v739 = vld [vmem:[%s21 + $0xa8] sm:$0xff]
    %v740 = vld [vmem:[%s21 + $0xb0] sm:$0xff]
    %v741 = vld [vmem:[%s21 + $0xb8] sm:$0xff]
    %v742 = vld [vmem:[%s21 + $0xc0] sm:$0xff]
    %v743 = vld [vmem:[%s21 + $0xc8] sm:$0xff]
    %v744 = vld [vmem:[%s21 + $0xd0] sm:$0xff]
    %v745 = vld [vmem:[%s21 + $0xd8] sm:$0xff]
    %v746 = vld [vmem:[%s21 + $0xe0] sm:$0xff]
    %v747 = vld [vmem:[%s21 + $0xe8] sm:$0xff]
    %v748 = vld [vmem:[%s21 + $0xf0] sm:$0xff]
    %v749 = vld [vmem:[%s21 + $0xf8] sm:$0xff]
    %v750 = vld [vmem:[%s21 + $0x100] sm:$0xff]
    %v751 = vld [vmem:[%s21 + $0x108] sm:$0xff]
    %v752 = vld [vmem:[%s21 + $0x110] sm:$0xff]
    %v753 = vld [vmem:[%s21 + $0x118] sm:$0xff]
    %v754 = vld [vmem:[%s21 + $0x120] sm:$0xff]
    %v755 = vld [vmem:[%s21 + $0x128] sm:$0xff]
    %v756 = vld [vmem:[%s21 + $0x130] sm:$0xff]
    %v757 = vld [vmem:[%s21 + $0x138] sm:$0xff]
    %v758 = vld [vmem:[%s21 + $0x140] sm:$0xff]
    %v759 = vld [vmem:[%s21 + $0x148] sm:$0xff]
    %v760 = vld [vmem:[%s21 + $0x150] sm:$0xff]
    %v761 = vld [vmem:[%s21 + $0x158] sm:$0xff]
    %v762 = vld [vmem:[%s21 + $0x160] sm:$0xff]
    %v763 = vld [vmem:[%s21 + $0x168] sm:$0xff]
    %v764 = vld [vmem:[%s21 + $0x170] sm:$0xff]
    %v765 = vld [vmem:[%s21 + $0x178] sm:$0xff]
    %v766 = vld [vmem:[%s21 + $0x180] sm:$0xff]
    %v767 = vld [vmem:[%s21 + $0x188] sm:$0xff]
    %v768 = vld [vmem:[%s21 + $0x190] sm:$0xff]
    %v769 = vld [vmem:[%s21 + $0x198] sm:$0xff]
    %v770 = vld [vmem:[%s21 + $0x1a0] sm:$0xff]
    %v771 = vld [vmem:[%s21 + $0x1a8] sm:$0xff]
    %v772 = vld [vmem:[%s21 + $0x1b0] sm:$0xff]
    %v773 = vld [vmem:[%s21 + $0x1b8] sm:$0xff]
    %v774 = vld [vmem:[%s21 + $0x1c0] sm:$0xff]
    %v775 = vld [vmem:[%s21 + $0x1c8] sm:$0xff]
    %v776 = vld [vmem:[%s21 + $0x1d0] sm:$0xff]
    %v777 = vld [vmem:[%s21 + $0x1d8] sm:$0xff]
    %v778 = vld [vmem:[%s21 + $0x1e0] sm:$0xff]
    %v779 = vld [vmem:[%s21 + $0x1e8] sm:$0xff]
    %v780 = vld [vmem:[%s21 + $0x1f0] sm:$0xff]
    %v781 = vld [vmem:[%s21 + $0x1f8] sm:$0xff]
    %v782 = vld [vmem:[%s22] sm:$0xff]
    %v783 = vld [vmem:[%s22 + $0x8] sm:$0xff]
    %v784 = vld [vmem:[%s22 + $0x10] sm:$0xff]
    %v785 = vld [vmem:[%s22 + $0x18] sm:$0xff]
    %v786 = vld [vmem:[%s22 + $0x20] sm:$0xff]
    %v787 = vld [vmem:[%s22 + $0x28] sm:$0xff]
    %v788 = vld [vmem:[%s22 + $0x30] sm:$0xff]
    %v789 = vld [vmem:[%s22 + $0x38] sm:$0xff]
    %v790 = vld [vmem:[%s22 + $0x40] sm:$0xff]
    %v791 = vld [vmem:[%s22 + $0x48] sm:$0xff]
    %v792 = vld [vmem:[%s22 + $0x50] sm:$0xff]
    %v793 = vld [vmem:[%s22 + $0x58] sm:$0xff]
    %v794 = vld [vmem:[%s22 + $0x60] sm:$0xff]
    %v795 = vld [vmem:[%s22 + $0x68] sm:$0xff]
    %v796 = vld [vmem:[%s22 + $0x70] sm:$0xff]
    %v797 = vld [vmem:[%s22 + $0x78] sm:$0xff]
    %v798 = vld [vmem:[%s22 + $0x80] sm:$0xff]
    %v799 = vld [vmem:[%s22 + $0x88] sm:$0xff]
    %v800 = vld [vmem:[%s22 + $0x90] sm:$0xff]
    %v801 = vld [vmem:[%s22 + $0x98] sm:$0xff]
    %v802 = vld [vmem:[%s22 + $0xa0] sm:$0xff]
    %v803 = vld [vmem:[%s22 + $0xa8] sm:$0xff]
    %v804 = vld [vmem:[%s22 + $0xb0] sm:$0xff]
    %v805 = vld [vmem:[%s22 + $0xb8] sm:$0xff]
    %v806 = vld [vmem:[%s22 + $0xc0] sm:$0xff]
    %v807 = vld [vmem:[%s22 + $0xc8] sm:$0xff]
    %v808 = vld [vmem:[%s22 + $0xd0] sm:$0xff]
    %v809 = vld [vmem:[%s22 + $0xd8] sm:$0xff]
    %v810 = vld [vmem:[%s22 + $0xe0] sm:$0xff]
    %v811 = vld [vmem:[%s22 + $0xe8] sm:$0xff]
    %v812 = vld [vmem:[%s22 + $0xf0] sm:$0xff]
    %v813 = vld [vmem:[%s22 + $0xf8] sm:$0xff]
    %v814 = vld [vmem:[%s0] sm:$0xff]
    %v815 = vld [vmem:[%s0 + $0x8] sm:$0xff]
    %v816 = vld [vmem:[%s0 + $0x10] sm:$0xff]
    %v817 = vld [vmem:[%s0 + $0x18] sm:$0xff]
    %v818 = vld [vmem:[%s0 + $0x20] sm:$0xff]
    %v819 = vld [vmem:[%s0 + $0x28] sm:$0xff]
    %v820 = vld [vmem:[%s0 + $0x30] sm:$0xff]
    %v821 = vld [vmem:[%s1] sm:$0xff]
    %v822 = vld [vmem:[%s1 + $0x8] sm:$0xff]
    %v823 = vld [vmem:[%s1 + $0x10] sm:$0xff]
    %v824 = vld [vmem:[%s1 + $0x18] sm:$0xff]
    %v825 = vld [vmem:[%s1 + $0x20] sm:$0xff]
    %v826 = vld [vmem:[%s1 + $0x28] sm:$0xff]
    %v827 = vld [vmem:[#allocation4] sm:$0x3]
    %v829 = vlaneseq
    %v830 = vshrl.u32 %v829, 7
    %v831 = vsub.s32 0, %v830
    %v832 = vrot.slane %v827, %v831
    %v833 = vlaneseq
    %v834 = vshrl.u32 %v833, 7
    %v835 = vsub.s32 1, %v834
    %v836 = vrot.slane %v827, %v835
    %vm839 = vcmask 195584
    %v841 = vsel %vm839, %v814, 0
    %v844 = vsel %vm839, %v815, 0
    %v847 = vsel %vm839, %v816, 0
    %v850 = vsel %vm839, %v817, 0
    %v853 = vsel %vm839, %v818, 0
    %v856 = vsel %vm839, %v819, 0
    %v859 = vsel %vm839, %v820, 0
    %861 = vmatprep.subr.mxu0 0.0
    %862 = vmatpush1.msra.mxu0 0.0
    %863 = vmatprep.subr.mxu0 0.0
    %864 = vmatpush1.msra.mxu0 0.0
    %865 = vmatprep.subr.mxu0 0.0
    %866 = vmatpush1.msra.mxu0 0.0
    %867 = vmatprep.subr.mxu0 0.0
    %868 = vmatpush1.msra.mxu0 0.0
    %869 = vmatprep.subr.mxu0 0.0
    %870 = vmatpush1.msra.mxu0 0.0
    %871 = vmatprep.subr.mxu0 0.0
    %872 = vmatpush1.msra.mxu0 0.0
    %873 = vmatprep.subr.mxu0 0.0
    %874 = vmatpush1.msra.mxu0 0.0
    %875 = vmatprep.subr.mxu0 0.0
    %876 = vmatpush1.msra.mxu0 0.0
    %877 = vmatprep.subr.mxu0 0.0
    %878 = vmatpush1.msra.mxu0 0.0
    %879 = vmatprep.subr.mxu0 0.0
    %880 = vmatpush1.msra.mxu0 0.0
    %881 = vmatprep.subr.mxu0 0.0
    %882 = vmatpush1.msra.mxu0 0.0
    %883 = vmatprep.subr.mxu0 0.0
    %884 = vmatpush1.msra.mxu0 0.0
    %885 = vmatprep.subr.mxu0 0.0
    %886 = vmatpush1.msra.mxu0 0.0
    %887 = vmatprep.subr.mxu0 %v826
    %888 = vmatpush1.msra.mxu0 %v825
    %889 = vmatprep.subr.mxu0 %v824
    %890 = vmatpush1.msra.mxu0 %v823
    %891 = vmatprep.subr.mxu0 %v822
    %892 = vmatpush1.msra.mxu0 %v821
    %893 = vmatprep.subr.mxu0 0.0
    %894 = vmatpush2.msra.mxu0 0.0
    %895 = vmatprep.subr.mxu0 0.0
    %896 = vmatpush2.msra.mxu0 0.0
    %897 = vmatprep.subr.mxu0 0.0
    %898 = vmatpush2.msra.mxu0 0.0
    %899 = vmatprep.subr.mxu0 0.0
    %900 = vmatpush2.msra.mxu0 0.0
    %901 = vmatprep.subr.mxu0 0.0
    %902 = vmatpush2.msra.mxu0 0.0
    %903 = vmatprep.subr.mxu0 0.0
    %904 = vmatpush2.msra.mxu0 0.0
    %905 = vmatprep.subr.mxu0 0.0
    %906 = vmatpush2.msra.mxu0 0.0
    %907 = vmatprep.subr.mxu0 0.0
    %908 = vmatpush2.msra.mxu0 0.0
    %909 = vmatprep.subr.mxu0 0.0
    %910 = vmatpush2.msra.mxu0 0.0
    %911 = vmatprep.subr.mxu0 0.0
    %912 = vmatpush2.msra.mxu0 0.0
    %913 = vmatprep.subr.mxu0 0.0
    %914 = vmatpush2.msra.mxu0 0.0
    %915 = vmatprep.subr.mxu0 0.0
    %916 = vmatpush2.msra.mxu0 0.0
    %917 = vmatprep.subr.mxu0 0.0
    %918 = vmatpush2.msra.mxu0 0.0
    %919 = vmatprep.subr.mxu0 0.0
    %920 = vmatpush2.msra.mxu0 0.0
    %921 = vmatprep.subr.mxu0 0.0
    %922 = vmatpush2.msra.mxu0 0.0
    %923 = vmatprep.subr.mxu0 0.0
    %924 = vmatpush2.msra.mxu0 0.0
    %925 = vmatprep.mubr.f32.mxu0 0.0
    %926 = vmatmul.mubr.f32.gmra.mxu0 %v841
    %v927 = vpop.f32.mrf.mxu0
    %v928 = vadd.f32 %v832, %v927
    %v929 = vpop.f32.mrf.mxu0
    %v930 = vadd.f32 %v836, %v929
    %931 = vmatprep.mubr.f32.mxu0 0.0
    %932 = vmatmul.mubr.f32.gmra.mxu0 %v844
    %v933 = vpop.f32.mrf.mxu0
    %v934 = vadd.f32 %v832, %v933
    %v935 = vpop.f32.mrf.mxu0
    %v936 = vadd.f32 %v836, %v935
    %937 = vmatprep.mubr.f32.mxu0 0.0
    %938 = vmatmul.mubr.f32.gmra.mxu0 %v847
    %v939 = vpop.f32.mrf.mxu0
    %v940 = vadd.f32 %v832, %v939
    %v941 = vpop.f32.mrf.mxu0
    %v942 = vadd.f32 %v836, %v941
    %943 = vmatprep.mubr.f32.mxu0 0.0
    %944 = vmatmul.mubr.f32.gmra.mxu0 %v850
    %v945 = vpop.f32.mrf.mxu0
    %v946 = vadd.f32 %v832, %v945
    %v947 = vpop.f32.mrf.mxu0
    %v948 = vadd.f32 %v836, %v947
    %949 = vmatprep.mubr.f32.mxu0 0.0
    %950 = vmatmul.mubr.f32.gmra.mxu0 %v853
    %v951 = vpop.f32.mrf.mxu0
    %v952 = vadd.f32 %v832, %v951
    %v953 = vpop.f32.mrf.mxu0
    %v954 = vadd.f32 %v836, %v953
    %955 = vmatprep.mubr.f32.mxu0 0.0
    %956 = vmatmul.mubr.f32.gmra.mxu0 %v856
    %v957 = vpop.f32.mrf.mxu0
    %v958 = vadd.f32 %v832, %v957
    %v959 = vpop.f32.mrf.mxu0
    %v960 = vadd.f32 %v836, %v959
    %961 = vmatprep.mubr.f32.mxu0 0.0
    %962 = vmatmul.mubr.f32.gmra.mxu0 %v859
    %v963 = vpop.f32.mrf.mxu0
    %v964 = vadd.f32 %v832, %v963
    %v965 = vpop.f32.mrf.mxu0
    %v966 = vadd.f32 %v836, %v965
    %967 = vdwg.mxu0
    %v968 = vand.u32 2147483647, %v928
    %vm969 = vcmp.le.f32.partialorder %v968, 0.7853982
    %vm970 = vcmp.lt.s32.totalorder %v928, 0
    %v971 = vand.u32 %v928, 2139095040
    %v972 = vshrl.u32 %v971, 23
    %v973 = vsub.s32 %v972, 127
    %v974 = vand.u32 2147483647, %v928
    %v975 = vand.u32 %v974, 8388607
    %v976 = vor.u32 %v975, 8388608
    %v977 = vsub.s32 0, %v976
    %v978 = vadd.s32 %v973, 1
    %vm979 = vcmp.gt.s32.totalorder %v978, 0
    %v980 = vsel %vm979, %v978, 0
    %v981 = vshrl.u32 %v980, 5
    %v982 = vand.u32 %v980, 31
    %v983 = vsub.s32 32, %v982
    %v984 = vshrl.u32 683565275, %v983
    %v985 = vshll.u32 683565275, %v982
    %v986 = vshrl.u32 2475754826, %v983
    %v987 = vor.u32 %v985, %v986
    %v988 = vshll.u32 2475754826, %v982
    %v989 = vshrl.u32 2131351028, %v983
    %v990 = vor.u32 %v988, %v989
    %v991 = vshll.u32 2131351028, %v982
    %v992 = vshrl.u32 2102212464, %v983
    %v993 = vor.u32 %v991, %v992
    %v994 = vshll.u32 2102212464, %v982
    %v995 = vshrl.u32 920167782, %v983
    %v996 = vor.u32 %v994, %v995
    %v997 = vshll.u32 920167782, %v982
    %v998 = vshrl.u32 1326507024, %v983
    %v999 = vor.u32 %v997, %v998
    %vm1000 = vcmp.lt.s32.totalorder %v981, 1
    %vm1001 = vcmp.lt.s32.totalorder %v981, 2
    %vm1002 = vcmp.lt.s32.totalorder %v981, 3
    %vm1003 = vcmp.lt.s32.totalorder %v981, 4
    %v1004 = vsel %vm1000, %v984, %v987
    %v1005 = vsel %vm1003, %v993, 2102212464
    %v1006 = vsel %vm1002, %v990, %v1005
    %v1007 = vsel %vm1001, %v1004, %v1006
    %v1008 = vsel %vm1000, %v987, %v990
    %v1009 = vsel %vm1003, %v996, 920167782
    %v1010 = vsel %vm1002, %v993, %v1009
    %v1011 = vsel %vm1001, %v1008, %v1010
    %v1012 = vsel %vm1000, %v990, %v993
    %v1013 = vsel %vm1003, %v999, 1326507024
    %v1014 = vsel %vm1002, %v996, %v1013
    %v1015 = vsel %vm1001, %v1012, %v1014
    %v1016 = vshll.u32 %v976, 8
    %v1017 = vmul.u32.u64.compose %v1016, %v1015
    %v1018 = vextract.low.u32 %v1017
    %v1019 = vextract.high.u32 %v1017
    %v1020 = vmul.u32.u64.compose %v1016, %v1011
    %v1021 = vextract.low.u32 %v1020
    %v1022 = vextract.high.u32 %v1020
    %v1023 = vmul.u32 %v1016, %v1007
    %v1024 = vadd.s32 %v1019, %v1021
    %vm1025 = vc.u32 %v1019, %v1021
    %v1026 = vadd.s32 %v1022, 1
    %v1027 = vsel %vm1025, %v1026, %v1022
    %v1028 = vadd.s32 %v1023, %v1027
    %v1029 = vadd.s32 %v1028, 536870912
    %v1030 = vshrl.u32 %v1029, 30
    %v1031 = vshll.u32 %v1030, 30
    %v1032 = vsub.s32 %v1028, %v1031
    %vm1033 = vcmp.lt.s32.totalorder %v1032, 0
    %v1034 = vsub.s32 0, %v1032
    %v1035 = vsel %vm1033, %v1034, %v1032
    %v1036 = vclz %v1035
    %v1037 = vsub.s32 %v1036, 2
    %vm1038 = vcmp.gt.s32.totalorder 0, %v1037
    %v1039 = vsel %vm1038, 0, %v1037
    %v1040 = vsub.s32 32, %v1039
    %v1041 = vshll.u32 %v1032, %v1039
    %v1042 = vshrl.u32 %v1024, %v1040
    %v1043 = vor.u32 %v1041, %v1042
    %v1044 = vsub.s32 4294967266, %v1039
    %v1045 = vadd.s32 %v1044, 127
    %v1046 = vshll.u32 %v1045, 23
    %v1047 = vor.u32 4788187, %v1046
    %v1048 = vand.u32 2147483647, %v1047
    %v1050 = vcvt.s32.f32 %v1043
    %v1051 = vmul.f32 %v1050, %v1048
    %v1052 = vxor.u32 %v1051, 2147483648
    %v1053 = vsel %vm970, %v1052, %v1051
    %v1054 = vsub.s32 4, %v1030
    %v1055 = vsel %vm970, %v1054, %v1030
    %v1056 = vsel %vm969, %v928, %v1053
    %v1057 = vsel %vm969, 0, %v1055
    %v1058 = vcosq.f32.pop %v1056
    %v1059 = vsinq.f32.pop %v1056
    %vm1060 = vweird.f32 %v928
    %v1061 = vadd.s32 %v1057, 3
    %v1062 = vand.u32 %v1061, 3
    %vm1063 = vcmp.lt.s32.totalorder %v1062, 2
    %vm1064 = vcmp.eq.s32.totalorder %v1062, 0
    %v1065 = vxor.u32 %v1059, 2147483648
    %v1066 = vsel %vm1064, %v1058, %v1065
    %vm1067 = vcmp.eq.s32.totalorder %v1062, 2
    %v1068 = vxor.u32 %v1058, 2147483648
    %v1069 = vsel %vm1067, %v1068, %v1059
    %v1070 = vsel %vm1063, %v1066, %v1069
    %v1071 = vsel %vm1060, nan, %v1070
    %v1072 = vand.u32 2147483647, %v930
    %vm1073 = vcmp.le.f32.partialorder %v1072, 0.7853982
    %vm1074 = vcmp.lt.s32.totalorder %v930, 0
    %v1075 = vand.u32 %v930, 2139095040
    %v1076 = vshrl.u32 %v1075, 23
    %v1077 = vsub.s32 %v1076, 127
    %v1078 = vand.u32 2147483647, %v930
    %v1079 = vand.u32 %v1078, 8388607
    %v1080 = vor.u32 %v1079, 8388608
    %v1081 = vsub.s32 0, %v1080
    %v1082 = vadd.s32 %v1077, 1
    %vm1083 = vcmp.gt.s32.totalorder %v1082, 0
    %v1084 = vsel %vm1083, %v1082, 0
    %v1085 = vshrl.u32 %v1084, 5
    %v1086 = vand.u32 %v1084, 31
    %v1087 = vsub.s32 32, %v1086
    %v1088 = vshrl.u32 683565275, %v1087
    %v1089 = vshll.u32 683565275, %v1086
    %v1090 = vshrl.u32 2475754826, %v1087
    %v1091 = vor.u32 %v1089, %v1090
    %v1092 = vshll.u32 2475754826, %v1086
    %v1093 = vshrl.u32 2131351028, %v1087
    %v1094 = vor.u32 %v1092, %v1093
    %v1095 = vshll.u32 2131351028, %v1086
    %v1096 = vshrl.u32 2102212464, %v1087
    %v1097 = vor.u32 %v1095, %v1096
    %v1098 = vshll.u32 2102212464, %v1086
    %v1099 = vshrl.u32 920167782, %v1087
    %v1100 = vor.u32 %v1098, %v1099
    %v1101 = vshll.u32 920167782, %v1086
    %v1102 = vshrl.u32 1326507024, %v1087
    %v1103 = vor.u32 %v1101, %v1102
    %vm1104 = vcmp.lt.s32.totalorder %v1085, 1
    %vm1105 = vcmp.lt.s32.totalorder %v1085, 2
    %vm1106 = vcmp.lt.s32.totalorder %v1085, 3
    %vm1107 = vcmp.lt.s32.totalorder %v1085, 4
    %v1108 = vsel %vm1104, %v1088, %v1091
    %v1109 = vsel %vm1107, %v1097, 2102212464
    %v1110 = vsel %vm1106, %v1094, %v1109
    %v1111 = vsel %vm1105, %v1108, %v1110
    %v1112 = vsel %vm1104, %v1091, %v1094
    %v1113 = vsel %vm1107, %v1100, 920167782
    %v1114 = vsel %vm1106, %v1097, %v1113
    %v1115 = vsel %vm1105, %v1112, %v1114
    %v1116 = vsel %vm1104, %v1094, %v1097
    %v1117 = vsel %vm1107, %v1103, 1326507024
    %v1118 = vsel %vm1106, %v1100, %v1117
    %v1119 = vsel %vm1105, %v1116, %v1118
    %v1120 = vshll.u32 %v1080, 8
    %v1121 = vmul.u32.u64.compose %v1120, %v1119
    %v1122 = vextract.low.u32 %v1121
    %v1123 = vextract.high.u32 %v1121
    %v1124 = vmul.u32.u64.compose %v1120, %v1115
    %v1125 = vextract.low.u32 %v1124
    %v1126 = vextract.high.u32 %v1124
    %v1127 = vmul.u32 %v1120, %v1111
    %v1128 = vadd.s32 %v1123, %v1125
    %vm1129 = vc.u32 %v1123, %v1125
    %v1130 = vadd.s32 %v1126, 1
    %v1131 = vsel %vm1129, %v1130, %v1126
    %v1132 = vadd.s32 %v1127, %v1131
    %v1133 = vadd.s32 %v1132, 536870912
    %v1134 = vshrl.u32 %v1133, 30
    %v1135 = vshll.u32 %v1134, 30
    %v1136 = vsub.s32 %v1132, %v1135
    %vm1137 = vcmp.lt.s32.totalorder %v1136, 0
    %v1138 = vsub.s32 0, %v1136
    %v1139 = vsel %vm1137, %v1138, %v1136
    %v1140 = vclz %v1139
    %v1141 = vsub.s32 %v1140, 2
    %vm1142 = vcmp.gt.s32.totalorder 0, %v1141
    %v1143 = vsel %vm1142, 0, %v1141
    %v1144 = vsub.s32 32, %v1143
    %v1145 = vshll.u32 %v1136, %v1143
    %v1146 = vshrl.u32 %v1128, %v1144
    %v1147 = vor.u32 %v1145, %v1146
    %v1148 = vsub.s32 4294967266, %v1143
    %v1149 = vadd.s32 %v1148, 127
    %v1150 = vshll.u32 %v1149, 23
    %v1151 = vor.u32 4788187, %v1150
    %v1152 = vand.u32 2147483647, %v1151
    %v1154 = vcvt.s32.f32 %v1147
    %v1155 = vmul.f32 %v1154, %v1152
    %v1156 = vxor.u32 %v1155, 2147483648
    %v1157 = vsel %vm1074, %v1156, %v1155
    %v1158 = vsub.s32 4, %v1134
    %v1159 = vsel %vm1074, %v1158, %v1134
    %v1160 = vsel %vm1073, %v930, %v1157
    %v1161 = vsel %vm1073, 0, %v1159
    %v1162 = vcosq.f32.pop %v1160
    %v1163 = vsinq.f32.pop %v1160
    %vm1164 = vweird.f32 %v930
    %v1165 = vadd.s32 %v1161, 3
    %v1166 = vand.u32 %v1165, 3
    %vm1167 = vcmp.lt.s32.totalorder %v1166, 2
    %vm1168 = vcmp.eq.s32.totalorder %v1166, 0
    %v1169 = vxor.u32 %v1163, 2147483648
    %v1170 = vsel %vm1168, %v1162, %v1169
    %vm1171 = vcmp.eq.s32.totalorder %v1166, 2
    %v1172 = vxor.u32 %v1162, 2147483648
    %v1173 = vsel %vm1171, %v1172, %v1163
    %v1174 = vsel %vm1167, %v1170, %v1173
    %v1175 = vsel %vm1164, nan, %v1174
    %v1176 = vand.u32 2147483647, %v934
    %vm1177 = vcmp.le.f32.partialorder %v1176, 0.7853982
    %vm1178 = vcmp.lt.s32.totalorder %v934, 0
    %v1179 = vand.u32 %v934, 2139095040
    %v1180 = vshrl.u32 %v1179, 23
    %v1181 = vsub.s32 %v1180, 127
    %v1182 = vand.u32 2147483647, %v934
    %v1183 = vand.u32 %v1182, 8388607
    %v1184 = vor.u32 %v1183, 8388608
    %v1185 = vsub.s32 0, %v1184
    %v1186 = vadd.s32 %v1181, 1
    %vm1187 = vcmp.gt.s32.totalorder %v1186, 0
    %v1188 = vsel %vm1187, %v1186, 0
    %v1189 = vshrl.u32 %v1188, 5
    %v1190 = vand.u32 %v1188, 31
    %v1191 = vsub.s32 32, %v1190
    %v1192 = vshrl.u32 683565275, %v1191
    %v1193 = vshll.u32 683565275, %v1190
    %v1194 = vshrl.u32 2475754826, %v1191
    %v1195 = vor.u32 %v1193, %v1194
    %v1196 = vshll.u32 2475754826, %v1190
    %v1197 = vshrl.u32 2131351028, %v1191
    %v1198 = vor.u32 %v1196, %v1197
    %v1199 = vshll.u32 2131351028, %v1190
    %v1200 = vshrl.u32 2102212464, %v1191
    %v1201 = vor.u32 %v1199, %v1200
    %v1202 = vshll.u32 2102212464, %v1190
    %v1203 = vshrl.u32 920167782, %v1191
    %v1204 = vor.u32 %v1202, %v1203
    %v1205 = vshll.u32 920167782, %v1190
    %v1206 = vshrl.u32 1326507024, %v1191
    %v1207 = vor.u32 %v1205, %v1206
    %vm1208 = vcmp.lt.s32.totalorder %v1189, 1
    %vm1209 = vcmp.lt.s32.totalorder %v1189, 2
    %vm1210 = vcmp.lt.s32.totalorder %v1189, 3
    %vm1211 = vcmp.lt.s32.totalorder %v1189, 4
    %v1212 = vsel %vm1208, %v1192, %v1195
    %v1213 = vsel %vm1211, %v1201, 2102212464
    %v1214 = vsel %vm1210, %v1198, %v1213
    %v1215 = vsel %vm1209, %v1212, %v1214
    %v1216 = vsel %vm1208, %v1195, %v1198
    %v1217 = vsel %vm1211, %v1204, 920167782
    %v1218 = vsel %vm1210, %v1201, %v1217
    %v1219 = vsel %vm1209, %v1216, %v1218
    %v1220 = vsel %vm1208, %v1198, %v1201
    %v1221 = vsel %vm1211, %v1207, 1326507024
    %v1222 = vsel %vm1210, %v1204, %v1221
    %v1223 = vsel %vm1209, %v1220, %v1222
    %v1224 = vshll.u32 %v1184, 8
    %v1225 = vmul.u32.u64.compose %v1224, %v1223
    %v1226 = vextract.low.u32 %v1225
    %v1227 = vextract.high.u32 %v1225
    %v1228 = vmul.u32.u64.compose %v1224, %v1219
    %v1229 = vextract.low.u32 %v1228
    %v1230 = vextract.high.u32 %v1228
    %v1231 = vmul.u32 %v1224, %v1215
    %v1232 = vadd.s32 %v1227, %v1229
    %vm1233 = vc.u32 %v1227, %v1229
    %v1234 = vadd.s32 %v1230, 1
    %v1235 = vsel %vm1233, %v1234, %v1230
    %v1236 = vadd.s32 %v1231, %v1235
    %v1237 = vadd.s32 %v1236, 536870912
    %v1238 = vshrl.u32 %v1237, 30
    %v1239 = vshll.u32 %v1238, 30
    %v1240 = vsub.s32 %v1236, %v1239
    %vm1241 = vcmp.lt.s32.totalorder %v1240, 0
    %v1242 = vsub.s32 0, %v1240
    %v1243 = vsel %vm1241, %v1242, %v1240
    %v1244 = vclz %v1243
    %v1245 = vsub.s32 %v1244, 2
    %vm1246 = vcmp.gt.s32.totalorder 0, %v1245
    %v1247 = vsel %vm1246, 0, %v1245
    %v1248 = vsub.s32 32, %v1247
    %v1249 = vshll.u32 %v1240, %v1247
    %v1250 = vshrl.u32 %v1232, %v1248
    %v1251 = vor.u32 %v1249, %v1250
    %v1252 = vsub.s32 4294967266, %v1247
    %v1253 = vadd.s32 %v1252, 127
    %v1254 = vshll.u32 %v1253, 23
    %v1255 = vor.u32 4788187, %v1254
    %v1256 = vand.u32 2147483647, %v1255
    %v1258 = vcvt.s32.f32 %v1251
    %v1259 = vmul.f32 %v1258, %v1256
    %v1260 = vxor.u32 %v1259, 2147483648
    %v1261 = vsel %vm1178, %v1260, %v1259
    %v1262 = vsub.s32 4, %v1238
    %v1263 = vsel %vm1178, %v1262, %v1238
    %v1264 = vsel %vm1177, %v934, %v1261
    %v1265 = vsel %vm1177, 0, %v1263
    %v1266 = vcosq.f32.pop %v1264
    %v1267 = vsinq.f32.pop %v1264
    %vm1268 = vweird.f32 %v934
    %v1269 = vadd.s32 %v1265, 3
    %v1270 = vand.u32 %v1269, 3
    %vm1271 = vcmp.lt.s32.totalorder %v1270, 2
    %vm1272 = vcmp.eq.s32.totalorder %v1270, 0
    %v1273 = vxor.u32 %v1267, 2147483648
    %v1274 = vsel %vm1272, %v1266, %v1273
    %vm1275 = vcmp.eq.s32.totalorder %v1270, 2
    %v1276 = vxor.u32 %v1266, 2147483648
    %v1277 = vsel %vm1275, %v1276, %v1267
    %v1278 = vsel %vm1271, %v1274, %v1277
    %v1279 = vsel %vm1268, nan, %v1278
    %v1280 = vand.u32 2147483647, %v936
    %vm1281 = vcmp.le.f32.partialorder %v1280, 0.7853982
    %vm1282 = vcmp.lt.s32.totalorder %v936, 0
    %v1283 = vand.u32 %v936, 2139095040
    %v1284 = vshrl.u32 %v1283, 23
    %v1285 = vsub.s32 %v1284, 127
    %v1286 = vand.u32 2147483647, %v936
    %v1287 = vand.u32 %v1286, 8388607
    %v1288 = vor.u32 %v1287, 8388608
    %v1289 = vsub.s32 0, %v1288
    %v1290 = vadd.s32 %v1285, 1
    %vm1291 = vcmp.gt.s32.totalorder %v1290, 0
    %v1292 = vsel %vm1291, %v1290, 0
    %v1293 = vshrl.u32 %v1292, 5
    %v1294 = vand.u32 %v1292, 31
    %v1295 = vsub.s32 32, %v1294
    %v1296 = vshrl.u32 683565275, %v1295
    %v1297 = vshll.u32 683565275, %v1294
    %v1298 = vshrl.u32 2475754826, %v1295
    %v1299 = vor.u32 %v1297, %v1298
    %v1300 = vshll.u32 2475754826, %v1294
    %v1301 = vshrl.u32 2131351028, %v1295
    %v1302 = vor.u32 %v1300, %v1301
    %v1303 = vshll.u32 2131351028, %v1294
    %v1304 = vshrl.u32 2102212464, %v1295
    %v1305 = vor.u32 %v1303, %v1304
    %v1306 = vshll.u32 2102212464, %v1294
    %v1307 = vshrl.u32 920167782, %v1295
    %v1308 = vor.u32 %v1306, %v1307
    %v1309 = vshll.u32 920167782, %v1294
    %v1310 = vshrl.u32 1326507024, %v1295
    %v1311 = vor.u32 %v1309, %v1310
    %vm1312 = vcmp.lt.s32.totalorder %v1293, 1
    %vm1313 = vcmp.lt.s32.totalorder %v1293, 2
    %vm1314 = vcmp.lt.s32.totalorder %v1293, 3
    %vm1315 = vcmp.lt.s32.totalorder %v1293, 4
    %v1316 = vsel %vm1312, %v1296, %v1299
    %v1317 = vsel %vm1315, %v1305, 2102212464
    %v1318 = vsel %vm1314, %v1302, %v1317
    %v1319 = vsel %vm1313, %v1316, %v1318
    %v1320 = vsel %vm1312, %v1299, %v1302
    %v1321 = vsel %vm1315, %v1308, 920167782
    %v1322 = vsel %vm1314, %v1305, %v1321
    %v1323 = vsel %vm1313, %v1320, %v1322
    %v1324 = vsel %vm1312, %v1302, %v1305
    %v1325 = vsel %vm1315, %v1311, 1326507024
    %v1326 = vsel %vm1314, %v1308, %v1325
    %v1327 = vsel %vm1313, %v1324, %v1326
    %v1328 = vshll.u32 %v1288, 8
    %v1329 = vmul.u32.u64.compose %v1328, %v1327
    %v1330 = vextract.low.u32 %v1329
    %v1331 = vextract.high.u32 %v1329
    %v1332 = vmul.u32.u64.compose %v1328, %v1323
    %v1333 = vextract.low.u32 %v1332
    %v1334 = vextract.high.u32 %v1332
    %v1335 = vmul.u32 %v1328, %v1319
    %v1336 = vadd.s32 %v1331, %v1333
    %vm1337 = vc.u32 %v1331, %v1333
    %v1338 = vadd.s32 %v1334, 1
    %v1339 = vsel %vm1337, %v1338, %v1334
    %v1340 = vadd.s32 %v1335, %v1339
    %v1341 = vadd.s32 %v1340, 536870912
    %v1342 = vshrl.u32 %v1341, 30
    %v1343 = vshll.u32 %v1342, 30
    %v1344 = vsub.s32 %v1340, %v1343
    %vm1345 = vcmp.lt.s32.totalorder %v1344, 0
    %v1346 = vsub.s32 0, %v1344
    %v1347 = vsel %vm1345, %v1346, %v1344
    %v1348 = vclz %v1347
    %v1349 = vsub.s32 %v1348, 2
    %vm1350 = vcmp.gt.s32.totalorder 0, %v1349
    %v1351 = vsel %vm1350, 0, %v1349
    %v1352 = vsub.s32 32, %v1351
    %v1353 = vshll.u32 %v1344, %v1351
    %v1354 = vshrl.u32 %v1336, %v1352
    %v1355 = vor.u32 %v1353, %v1354
    %v1356 = vsub.s32 4294967266, %v1351
    %v1357 = vadd.s32 %v1356, 127
    %v1358 = vshll.u32 %v1357, 23
    %v1359 = vor.u32 4788187, %v1358
    %v1360 = vand.u32 2147483647, %v1359
    %v1362 = vcvt.s32.f32 %v1355
    %v1363 = vmul.f32 %v1362, %v1360
    %v1364 = vxor.u32 %v1363, 2147483648
    %v1365 = vsel %vm1282, %v1364, %v1363
    %v1366 = vsub.s32 4, %v1342
    %v1367 = vsel %vm1282, %v1366, %v1342
    %v1368 = vsel %vm1281, %v936, %v1365
    %v1369 = vsel %vm1281, 0, %v1367
    %v1370 = vcosq.f32.pop %v1368
    %v1371 = vsinq.f32.pop %v1368
    %vm1372 = vweird.f32 %v936
    %v1373 = vadd.s32 %v1369, 3
    %v1374 = vand.u32 %v1373, 3
    %vm1375 = vcmp.lt.s32.totalorder %v1374, 2
    %vm1376 = vcmp.eq.s32.totalorder %v1374, 0
    %v1377 = vxor.u32 %v1371, 2147483648
    %v1378 = vsel %vm1376, %v1370, %v1377
    %vm1379 = vcmp.eq.s32.totalorder %v1374, 2
    %v1380 = vxor.u32 %v1370, 2147483648
    %v1381 = vsel %vm1379, %v1380, %v1371
    %v1382 = vsel %vm1375, %v1378, %v1381
    %v1383 = vsel %vm1372, nan, %v1382
    %v1384 = vand.u32 2147483647, %v940
    %vm1385 = vcmp.le.f32.partialorder %v1384, 0.7853982
    %vm1386 = vcmp.lt.s32.totalorder %v940, 0
    %v1387 = vand.u32 %v940, 2139095040
    %v1388 = vshrl.u32 %v1387, 23
    %v1389 = vsub.s32 %v1388, 127
    %v1390 = vand.u32 2147483647, %v940
    %v1391 = vand.u32 %v1390, 8388607
    %v1392 = vor.u32 %v1391, 8388608
    %v1393 = vsub.s32 0, %v1392
    %v1394 = vadd.s32 %v1389, 1
    %vm1395 = vcmp.gt.s32.totalorder %v1394, 0
    %v1396 = vsel %vm1395, %v1394, 0
    %v1397 = vshrl.u32 %v1396, 5
    %v1398 = vand.u32 %v1396, 31
    %v1399 = vsub.s32 32, %v1398
    %v1400 = vshrl.u32 683565275, %v1399
    %v1401 = vshll.u32 683565275, %v1398
    %v1402 = vshrl.u32 2475754826, %v1399
    %v1403 = vor.u32 %v1401, %v1402
    %v1404 = vshll.u32 2475754826, %v1398
    %v1405 = vshrl.u32 2131351028, %v1399
    %v1406 = vor.u32 %v1404, %v1405
    %v1407 = vshll.u32 2131351028, %v1398
    %v1408 = vshrl.u32 2102212464, %v1399
    %v1409 = vor.u32 %v1407, %v1408
    %v1410 = vshll.u32 2102212464, %v1398
    %v1411 = vshrl.u32 920167782, %v1399
    %v1412 = vor.u32 %v1410, %v1411
    %v1413 = vshll.u32 920167782, %v1398
    %v1414 = vshrl.u32 1326507024, %v1399
    %v1415 = vor.u32 %v1413, %v1414
    %vm1416 = vcmp.lt.s32.totalorder %v1397, 1
    %vm1417 = vcmp.lt.s32.totalorder %v1397, 2
    %vm1418 = vcmp.lt.s32.totalorder %v1397, 3
    %vm1419 = vcmp.lt.s32.totalorder %v1397, 4
    %v1420 = vsel %vm1416, %v1400, %v1403
    %v1421 = vsel %vm1419, %v1409, 2102212464
    %v1422 = vsel %vm1418, %v1406, %v1421
    %v1423 = vsel %vm1417, %v1420, %v1422
    %v1424 = vsel %vm1416, %v1403, %v1406
    %v1425 = vsel %vm1419, %v1412, 920167782
    %v1426 = vsel %vm1418, %v1409, %v1425
    %v1427 = vsel %vm1417, %v1424, %v1426
    %v1428 = vsel %vm1416, %v1406, %v1409
    %v1429 = vsel %vm1419, %v1415, 1326507024
    %v1430 = vsel %vm1418, %v1412, %v1429
    %v1431 = vsel %vm1417, %v1428, %v1430
    %v1432 = vshll.u32 %v1392, 8
    %v1433 = vmul.u32.u64.compose %v1432, %v1431
    %v1434 = vextract.low.u32 %v1433
    %v1435 = vextract.high.u32 %v1433
    %v1436 = vmul.u32.u64.compose %v1432, %v1427
    %v1437 = vextract.low.u32 %v1436
    %v1438 = vextract.high.u32 %v1436
    %v1439 = vmul.u32 %v1432, %v1423
    %v1440 = vadd.s32 %v1435, %v1437
    %vm1441 = vc.u32 %v1435, %v1437
    %v1442 = vadd.s32 %v1438, 1
    %v1443 = vsel %vm1441, %v1442, %v1438
    %v1444 = vadd.s32 %v1439, %v1443
    %v1445 = vadd.s32 %v1444, 536870912
    %v1446 = vshrl.u32 %v1445, 30
    %v1447 = vshll.u32 %v1446, 30
    %v1448 = vsub.s32 %v1444, %v1447
    %vm1449 = vcmp.lt.s32.totalorder %v1448, 0
    %v1450 = vsub.s32 0, %v1448
    %v1451 = vsel %vm1449, %v1450, %v1448
    %v1452 = vclz %v1451
    %v1453 = vsub.s32 %v1452, 2
    %vm1454 = vcmp.gt.s32.totalorder 0, %v1453
    %v1455 = vsel %vm1454, 0, %v1453
    %v1456 = vsub.s32 32, %v1455
    %v1457 = vshll.u32 %v1448, %v1455
    %v1458 = vshrl.u32 %v1440, %v1456
    %v1459 = vor.u32 %v1457, %v1458
    %v1460 = vsub.s32 4294967266, %v1455
    %v1461 = vadd.s32 %v1460, 127
    %v1462 = vshll.u32 %v1461, 23
    %v1463 = vor.u32 4788187, %v1462
    %v1464 = vand.u32 2147483647, %v1463
    %v1466 = vcvt.s32.f32 %v1459
    %v1467 = vmul.f32 %v1466, %v1464
    %v1468 = vxor.u32 %v1467, 2147483648
    %v1469 = vsel %vm1386, %v1468, %v1467
    %v1470 = vsub.s32 4, %v1446
    %v1471 = vsel %vm1386, %v1470, %v1446
    %v1472 = vsel %vm1385, %v940, %v1469
    %v1473 = vsel %vm1385, 0, %v1471
    %v1474 = vcosq.f32.pop %v1472
    %v1475 = vsinq.f32.pop %v1472
    %vm1476 = vweird.f32 %v940
    %v1477 = vadd.s32 %v1473, 3
    %v1478 = vand.u32 %v1477, 3
    %vm1479 = vcmp.lt.s32.totalorder %v1478, 2
    %vm1480 = vcmp.eq.s32.totalorder %v1478, 0
    %v1481 = vxor.u32 %v1475, 2147483648
    %v1482 = vsel %vm1480, %v1474, %v1481
    %vm1483 = vcmp.eq.s32.totalorder %v1478, 2
    %v1484 = vxor.u32 %v1474, 2147483648
    %v1485 = vsel %vm1483, %v1484, %v1475
    %v1486 = vsel %vm1479, %v1482, %v1485
    %v1487 = vsel %vm1476, nan, %v1486
    %v1488 = vand.u32 2147483647, %v942
    %vm1489 = vcmp.le.f32.partialorder %v1488, 0.7853982
    %vm1490 = vcmp.lt.s32.totalorder %v942, 0
    %v1491 = vand.u32 %v942, 2139095040
    %v1492 = vshrl.u32 %v1491, 23
    %v1493 = vsub.s32 %v1492, 127
    %v1494 = vand.u32 2147483647, %v942
    %v1495 = vand.u32 %v1494, 8388607
    %v1496 = vor.u32 %v1495, 8388608
    %v1497 = vsub.s32 0, %v1496
    %v1498 = vadd.s32 %v1493, 1
    %vm1499 = vcmp.gt.s32.totalorder %v1498, 0
    %v1500 = vsel %vm1499, %v1498, 0
    %v1501 = vshrl.u32 %v1500, 5
    %v1502 = vand.u32 %v1500, 31
    %v1503 = vsub.s32 32, %v1502
    %v1504 = vshrl.u32 683565275, %v1503
    %v1505 = vshll.u32 683565275, %v1502
    %v1506 = vshrl.u32 2475754826, %v1503
    %v1507 = vor.u32 %v1505, %v1506
    %v1508 = vshll.u32 2475754826, %v1502
    %v1509 = vshrl.u32 2131351028, %v1503
    %v1510 = vor.u32 %v1508, %v1509
    %v1511 = vshll.u32 2131351028, %v1502
    %v1512 = vshrl.u32 2102212464, %v1503
    %v1513 = vor.u32 %v1511, %v1512
    %v1514 = vshll.u32 2102212464, %v1502
    %v1515 = vshrl.u32 920167782, %v1503
    %v1516 = vor.u32 %v1514, %v1515
    %v1517 = vshll.u32 920167782, %v1502
    %v1518 = vshrl.u32 1326507024, %v1503
    %v1519 = vor.u32 %v1517, %v1518
    %vm1520 = vcmp.lt.s32.totalorder %v1501, 1
    %vm1521 = vcmp.lt.s32.totalorder %v1501, 2
    %vm1522 = vcmp.lt.s32.totalorder %v1501, 3
    %vm1523 = vcmp.lt.s32.totalorder %v1501, 4
    %v1524 = vsel %vm1520, %v1504, %v1507
    %v1525 = vsel %vm1523, %v1513, 2102212464
    %v1526 = vsel %vm1522, %v1510, %v1525
    %v1527 = vsel %vm1521, %v1524, %v1526
    %v1528 = vsel %vm1520, %v1507, %v1510
    %v1529 = vsel %vm1523, %v1516, 920167782
    %v1530 = vsel %vm1522, %v1513, %v1529
    %v1531 = vsel %vm1521, %v1528, %v1530
    %v1532 = vsel %vm1520, %v1510, %v1513
    %v1533 = vsel %vm1523, %v1519, 1326507024
    %v1534 = vsel %vm1522, %v1516, %v1533
    %v1535 = vsel %vm1521, %v1532, %v1534
    %v1536 = vshll.u32 %v1496, 8
    %v1537 = vmul.u32.u64.compose %v1536, %v1535
    %v1538 = vextract.low.u32 %v1537
    %v1539 = vextract.high.u32 %v1537
    %v1540 = vmul.u32.u64.compose %v1536, %v1531
    %v1541 = vextract.low.u32 %v1540
    %v1542 = vextract.high.u32 %v1540
    %v1543 = vmul.u32 %v1536, %v1527
    %v1544 = vadd.s32 %v1539, %v1541
    %vm1545 = vc.u32 %v1539, %v1541
    %v1546 = vadd.s32 %v1542, 1
    %v1547 = vsel %vm1545, %v1546, %v1542
    %v1548 = vadd.s32 %v1543, %v1547
    %v1549 = vadd.s32 %v1548, 536870912
    %v1550 = vshrl.u32 %v1549, 30
    %v1551 = vshll.u32 %v1550, 30
    %v1552 = vsub.s32 %v1548, %v1551
    %vm1553 = vcmp.lt.s32.totalorder %v1552, 0
    %v1554 = vsub.s32 0, %v1552
    %v1555 = vsel %vm1553, %v1554, %v1552
    %v1556 = vclz %v1555
    %v1557 = vsub.s32 %v1556, 2
    %vm1558 = vcmp.gt.s32.totalorder 0, %v1557
    %v1559 = vsel %vm1558, 0, %v1557
    %v1560 = vsub.s32 32, %v1559
    %v1561 = vshll.u32 %v1552, %v1559
    %v1562 = vshrl.u32 %v1544, %v1560
    %v1563 = vor.u32 %v1561, %v1562
    %v1564 = vsub.s32 4294967266, %v1559
    %v1565 = vadd.s32 %v1564, 127
    %v1566 = vshll.u32 %v1565, 23
    %v1567 = vor.u32 4788187, %v1566
    %v1568 = vand.u32 2147483647, %v1567
    %v1570 = vcvt.s32.f32 %v1563
    %v1571 = vmul.f32 %v1570, %v1568
    %v1572 = vxor.u32 %v1571, 2147483648
    %v1573 = vsel %vm1490, %v1572, %v1571
    %v1574 = vsub.s32 4, %v1550
    %v1575 = vsel %vm1490, %v1574, %v1550
    %v1576 = vsel %vm1489, %v942, %v1573
    %v1577 = vsel %vm1489, 0, %v1575
    %v1578 = vcosq.f32.pop %v1576
    %v1579 = vsinq.f32.pop %v1576
    %vm1580 = vweird.f32 %v942
    %v1581 = vadd.s32 %v1577, 3
    %v1582 = vand.u32 %v1581, 3
    %vm1583 = vcmp.lt.s32.totalorder %v1582, 2
    %vm1584 = vcmp.eq.s32.totalorder %v1582, 0
    %v1585 = vxor.u32 %v1579, 2147483648
    %v1586 = vsel %vm1584, %v1578, %v1585
    %vm1587 = vcmp.eq.s32.totalorder %v1582, 2
    %v1588 = vxor.u32 %v1578, 2147483648
    %v1589 = vsel %vm1587, %v1588, %v1579
    %v1590 = vsel %vm1583, %v1586, %v1589
    %v1591 = vsel %vm1580, nan, %v1590
    %v1592 = vand.u32 2147483647, %v946
    %vm1593 = vcmp.le.f32.partialorder %v1592, 0.7853982
    %vm1594 = vcmp.lt.s32.totalorder %v946, 0
    %v1595 = vand.u32 %v946, 2139095040
    %v1596 = vshrl.u32 %v1595, 23
    %v1597 = vsub.s32 %v1596, 127
    %v1598 = vand.u32 2147483647, %v946
    %v1599 = vand.u32 %v1598, 8388607
    %v1600 = vor.u32 %v1599, 8388608
    %v1601 = vsub.s32 0, %v1600
    %v1602 = vadd.s32 %v1597, 1
    %vm1603 = vcmp.gt.s32.totalorder %v1602, 0
    %v1604 = vsel %vm1603, %v1602, 0
    %v1605 = vshrl.u32 %v1604, 5
    %v1606 = vand.u32 %v1604, 31
    %v1607 = vsub.s32 32, %v1606
    %v1608 = vshrl.u32 683565275, %v1607
    %v1609 = vshll.u32 683565275, %v1606
    %v1610 = vshrl.u32 2475754826, %v1607
    %v1611 = vor.u32 %v1609, %v1610
    %v1612 = vshll.u32 2475754826, %v1606
    %v1613 = vshrl.u32 2131351028, %v1607
    %v1614 = vor.u32 %v1612, %v1613
    %v1615 = vshll.u32 2131351028, %v1606
    %v1616 = vshrl.u32 2102212464, %v1607
    %v1617 = vor.u32 %v1615, %v1616
    %v1618 = vshll.u32 2102212464, %v1606
    %v1619 = vshrl.u32 920167782, %v1607
    %v1620 = vor.u32 %v1618, %v1619
    %v1621 = vshll.u32 920167782, %v1606
    %v1622 = vshrl.u32 1326507024, %v1607
    %v1623 = vor.u32 %v1621, %v1622
    %vm1624 = vcmp.lt.s32.totalorder %v1605, 1
    %vm1625 = vcmp.lt.s32.totalorder %v1605, 2
    %vm1626 = vcmp.lt.s32.totalorder %v1605, 3
    %vm1627 = vcmp.lt.s32.totalorder %v1605, 4
    %v1628 = vsel %vm1624, %v1608, %v1611
    %v1629 = vsel %vm1627, %v1617, 2102212464
    %v1630 = vsel %vm1626, %v1614, %v1629
    %v1631 = vsel %vm1625, %v1628, %v1630
    %v1632 = vsel %vm1624, %v1611, %v1614
    %v1633 = vsel %vm1627, %v1620, 920167782
    %v1634 = vsel %vm1626, %v1617, %v1633
    %v1635 = vsel %vm1625, %v1632, %v1634
    %v1636 = vsel %vm1624, %v1614, %v1617
    %v1637 = vsel %vm1627, %v1623, 1326507024
    %v1638 = vsel %vm1626, %v1620, %v1637
    %v1639 = vsel %vm1625, %v1636, %v1638
    %v1640 = vshll.u32 %v1600, 8
    %v1641 = vmul.u32.u64.compose %v1640, %v1639
    %v1642 = vextract.low.u32 %v1641
    %v1643 = vextract.high.u32 %v1641
    %v1644 = vmul.u32.u64.compose %v1640, %v1635
    %v1645 = vextract.low.u32 %v1644
    %v1646 = vextract.high.u32 %v1644
    %v1647 = vmul.u32 %v1640, %v1631
    %v1648 = vadd.s32 %v1643, %v1645
    %vm1649 = vc.u32 %v1643, %v1645
    %v1650 = vadd.s32 %v1646, 1
    %v1651 = vsel %vm1649, %v1650, %v1646
    %v1652 = vadd.s32 %v1647, %v1651
    %v1653 = vadd.s32 %v1652, 536870912
    %v1654 = vshrl.u32 %v1653, 30
    %v1655 = vshll.u32 %v1654, 30
    %v1656 = vsub.s32 %v1652, %v1655
    %vm1657 = vcmp.lt.s32.totalorder %v1656, 0
    %v1658 = vsub.s32 0, %v1656
    %v1659 = vsel %vm1657, %v1658, %v1656
    %v1660 = vclz %v1659
    %v1661 = vsub.s32 %v1660, 2
    %vm1662 = vcmp.gt.s32.totalorder 0, %v1661
    %v1663 = vsel %vm1662, 0, %v1661
    %v1664 = vsub.s32 32, %v1663
    %v1665 = vshll.u32 %v1656, %v1663
    %v1666 = vshrl.u32 %v1648, %v1664
    %v1667 = vor.u32 %v1665, %v1666
    %v1668 = vsub.s32 4294967266, %v1663
    %v1669 = vadd.s32 %v1668, 127
    %v1670 = vshll.u32 %v1669, 23
    %v1671 = vor.u32 4788187, %v1670
    %v1672 = vand.u32 2147483647, %v1671
    %v1674 = vcvt.s32.f32 %v1667
    %v1675 = vmul.f32 %v1674, %v1672
    %v1676 = vxor.u32 %v1675, 2147483648
    %v1677 = vsel %vm1594, %v1676, %v1675
    %v1678 = vsub.s32 4, %v1654
    %v1679 = vsel %vm1594, %v1678, %v1654
    %v1680 = vsel %vm1593, %v946, %v1677
    %v1681 = vsel %vm1593, 0, %v1679
    %v1682 = vcosq.f32.pop %v1680
    %v1683 = vsinq.f32.pop %v1680
    %vm1684 = vweird.f32 %v946
    %v1685 = vadd.s32 %v1681, 3
    %v1686 = vand.u32 %v1685, 3
    %vm1687 = vcmp.lt.s32.totalorder %v1686, 2
    %vm1688 = vcmp.eq.s32.totalorder %v1686, 0
    %v1689 = vxor.u32 %v1683, 2147483648
    %v1690 = vsel %vm1688, %v1682, %v1689
    %vm1691 = vcmp.eq.s32.totalorder %v1686, 2
    %v1692 = vxor.u32 %v1682, 2147483648
    %v1693 = vsel %vm1691, %v1692, %v1683
    %v1694 = vsel %vm1687, %v1690, %v1693
    %v1695 = vsel %vm1684, nan, %v1694
    %v1696 = vand.u32 2147483647, %v948
    %vm1697 = vcmp.le.f32.partialorder %v1696, 0.7853982
    %vm1698 = vcmp.lt.s32.totalorder %v948, 0
    %v1699 = vand.u32 %v948, 2139095040
    %v1700 = vshrl.u32 %v1699, 23
    %v1701 = vsub.s32 %v1700, 127
    %v1702 = vand.u32 2147483647, %v948
    %v1703 = vand.u32 %v1702, 8388607
    %v1704 = vor.u32 %v1703, 8388608
    %v1705 = vsub.s32 0, %v1704
    %v1706 = vadd.s32 %v1701, 1
    %vm1707 = vcmp.gt.s32.totalorder %v1706, 0
    %v1708 = vsel %vm1707, %v1706, 0
    %v1709 = vshrl.u32 %v1708, 5
    %v1710 = vand.u32 %v1708, 31
    %v1711 = vsub.s32 32, %v1710
    %v1712 = vshrl.u32 683565275, %v1711
    %v1713 = vshll.u32 683565275, %v1710
    %v1714 = vshrl.u32 2475754826, %v1711
    %v1715 = vor.u32 %v1713, %v1714
    %v1716 = vshll.u32 2475754826, %v1710
    %v1717 = vshrl.u32 2131351028, %v1711
    %v1718 = vor.u32 %v1716, %v1717
    %v1719 = vshll.u32 2131351028, %v1710
    %v1720 = vshrl.u32 2102212464, %v1711
    %v1721 = vor.u32 %v1719, %v1720
    %v1722 = vshll.u32 2102212464, %v1710
    %v1723 = vshrl.u32 920167782, %v1711
    %v1724 = vor.u32 %v1722, %v1723
    %v1725 = vshll.u32 920167782, %v1710
    %v1726 = vshrl.u32 1326507024, %v1711
    %v1727 = vor.u32 %v1725, %v1726
    %vm1728 = vcmp.lt.s32.totalorder %v1709, 1
    %vm1729 = vcmp.lt.s32.totalorder %v1709, 2
    %vm1730 = vcmp.lt.s32.totalorder %v1709, 3
    %vm1731 = vcmp.lt.s32.totalorder %v1709, 4
    %v1732 = vsel %vm1728, %v1712, %v1715
    %v1733 = vsel %vm1731, %v1721, 2102212464
    %v1734 = vsel %vm1730, %v1718, %v1733
    %v1735 = vsel %vm1729, %v1732, %v1734
    %v1736 = vsel %vm1728, %v1715, %v1718
    %v1737 = vsel %vm1731, %v1724, 920167782
    %v1738 = vsel %vm1730, %v1721, %v1737
    %v1739 = vsel %vm1729, %v1736, %v1738
    %v1740 = vsel %vm1728, %v1718, %v1721
    %v1741 = vsel %vm1731, %v1727, 1326507024
    %v1742 = vsel %vm1730, %v1724, %v1741
    %v1743 = vsel %vm1729, %v1740, %v1742
    %v1744 = vshll.u32 %v1704, 8
    %v1745 = vmul.u32.u64.compose %v1744, %v1743
    %v1746 = vextract.low.u32 %v1745
    %v1747 = vextract.high.u32 %v1745
    %v1748 = vmul.u32.u64.compose %v1744, %v1739
    %v1749 = vextract.low.u32 %v1748
    %v1750 = vextract.high.u32 %v1748
    %v1751 = vmul.u32 %v1744, %v1735
    %v1752 = vadd.s32 %v1747, %v1749
    %vm1753 = vc.u32 %v1747, %v1749
    %v1754 = vadd.s32 %v1750, 1
    %v1755 = vsel %vm1753, %v1754, %v1750
    %v1756 = vadd.s32 %v1751, %v1755
    %v1757 = vadd.s32 %v1756, 536870912
    %v1758 = vshrl.u32 %v1757, 30
    %v1759 = vshll.u32 %v1758, 30
    %v1760 = vsub.s32 %v1756, %v1759
    %vm1761 = vcmp.lt.s32.totalorder %v1760, 0
    %v1762 = vsub.s32 0, %v1760
    %v1763 = vsel %vm1761, %v1762, %v1760
    %v1764 = vclz %v1763
    %v1765 = vsub.s32 %v1764, 2
    %vm1766 = vcmp.gt.s32.totalorder 0, %v1765
    %v1767 = vsel %vm1766, 0, %v1765
    %v1768 = vsub.s32 32, %v1767
    %v1769 = vshll.u32 %v1760, %v1767
    %v1770 = vshrl.u32 %v1752, %v1768
    %v1771 = vor.u32 %v1769, %v1770
    %v1772 = vsub.s32 4294967266, %v1767
    %v1773 = vadd.s32 %v1772, 127
    %v1774 = vshll.u32 %v1773, 23
    %v1775 = vor.u32 4788187, %v1774
    %v1776 = vand.u32 2147483647, %v1775
    %v1778 = vcvt.s32.f32 %v1771
    %v1779 = vmul.f32 %v1778, %v1776
    %v1780 = vxor.u32 %v1779, 2147483648
    %v1781 = vsel %vm1698, %v1780, %v1779
    %v1782 = vsub.s32 4, %v1758
    %v1783 = vsel %vm1698, %v1782, %v1758
    %v1784 = vsel %vm1697, %v948, %v1781
    %v1785 = vsel %vm1697, 0, %v1783
    %v1786 = vcosq.f32.pop %v1784
    %v1787 = vsinq.f32.pop %v1784
    %vm1788 = vweird.f32 %v948
    %v1789 = vadd.s32 %v1785, 3
    %v1790 = vand.u32 %v1789, 3
    %vm1791 = vcmp.lt.s32.totalorder %v1790, 2
    %vm1792 = vcmp.eq.s32.totalorder %v1790, 0
    %v1793 = vxor.u32 %v1787, 2147483648
    %v1794 = vsel %vm1792, %v1786, %v1793
    %vm1795 = vcmp.eq.s32.totalorder %v1790, 2
    %v1796 = vxor.u32 %v1786, 2147483648
    %v1797 = vsel %vm1795, %v1796, %v1787
    %v1798 = vsel %vm1791, %v1794, %v1797
    %v1799 = vsel %vm1788, nan, %v1798
    %v1800 = vand.u32 2147483647, %v952
    %vm1801 = vcmp.le.f32.partialorder %v1800, 0.7853982
    %vm1802 = vcmp.lt.s32.totalorder %v952, 0
    %v1803 = vand.u32 %v952, 2139095040
    %v1804 = vshrl.u32 %v1803, 23
    %v1805 = vsub.s32 %v1804, 127
    %v1806 = vand.u32 2147483647, %v952
    %v1807 = vand.u32 %v1806, 8388607
    %v1808 = vor.u32 %v1807, 8388608
    %v1809 = vsub.s32 0, %v1808
    %v1810 = vadd.s32 %v1805, 1
    %vm1811 = vcmp.gt.s32.totalorder %v1810, 0
    %v1812 = vsel %vm1811, %v1810, 0
    %v1813 = vshrl.u32 %v1812, 5
    %v1814 = vand.u32 %v1812, 31
    %v1815 = vsub.s32 32, %v1814
    %v1816 = vshrl.u32 683565275, %v1815
    %v1817 = vshll.u32 683565275, %v1814
    %v1818 = vshrl.u32 2475754826, %v1815
    %v1819 = vor.u32 %v1817, %v1818
    %v1820 = vshll.u32 2475754826, %v1814
    %v1821 = vshrl.u32 2131351028, %v1815
    %v1822 = vor.u32 %v1820, %v1821
    %v1823 = vshll.u32 2131351028, %v1814
    %v1824 = vshrl.u32 2102212464, %v1815
    %v1825 = vor.u32 %v1823, %v1824
    %v1826 = vshll.u32 2102212464, %v1814
    %v1827 = vshrl.u32 920167782, %v1815
    %v1828 = vor.u32 %v1826, %v1827
    %v1829 = vshll.u32 920167782, %v1814
    %v1830 = vshrl.u32 1326507024, %v1815
    %v1831 = vor.u32 %v1829, %v1830
    %vm1832 = vcmp.lt.s32.totalorder %v1813, 1
    %vm1833 = vcmp.lt.s32.totalorder %v1813, 2
    %vm1834 = vcmp.lt.s32.totalorder %v1813, 3
    %vm1835 = vcmp.lt.s32.totalorder %v1813, 4
    %v1836 = vsel %vm1832, %v1816, %v1819
    %v1837 = vsel %vm1835, %v1825, 2102212464
    %v1838 = vsel %vm1834, %v1822, %v1837
    %v1839 = vsel %vm1833, %v1836, %v1838
    %v1840 = vsel %vm1832, %v1819, %v1822
    %v1841 = vsel %vm1835, %v1828, 920167782
    %v1842 = vsel %vm1834, %v1825, %v1841
    %v1843 = vsel %vm1833, %v1840, %v1842
    %v1844 = vsel %vm1832, %v1822, %v1825
    %v1845 = vsel %vm1835, %v1831, 1326507024
    %v1846 = vsel %vm1834, %v1828, %v1845
    %v1847 = vsel %vm1833, %v1844, %v1846
    %v1848 = vshll.u32 %v1808, 8
    %v1849 = vmul.u32.u64.compose %v1848, %v1847
    %v1850 = vextract.low.u32 %v1849
    %v1851 = vextract.high.u32 %v1849
    %v1852 = vmul.u32.u64.compose %v1848, %v1843
    %v1853 = vextract.low.u32 %v1852
    %v1854 = vextract.high.u32 %v1852
    %v1855 = vmul.u32 %v1848, %v1839
    %v1856 = vadd.s32 %v1851, %v1853
    %vm1857 = vc.u32 %v1851, %v1853
    %v1858 = vadd.s32 %v1854, 1
    %v1859 = vsel %vm1857, %v1858, %v1854
    %v1860 = vadd.s32 %v1855, %v1859
    %v1861 = vadd.s32 %v1860, 536870912
    %v1862 = vshrl.u32 %v1861, 30
    %v1863 = vshll.u32 %v1862, 30
    %v1864 = vsub.s32 %v1860, %v1863
    %vm1865 = vcmp.lt.s32.totalorder %v1864, 0
    %v1866 = vsub.s32 0, %v1864
    %v1867 = vsel %vm1865, %v1866, %v1864
    %v1868 = vclz %v1867
    %v1869 = vsub.s32 %v1868, 2
    %vm1870 = vcmp.gt.s32.totalorder 0, %v1869
    %v1871 = vsel %vm1870, 0, %v1869
    %v1872 = vsub.s32 32, %v1871
    %v1873 = vshll.u32 %v1864, %v1871
    %v1874 = vshrl.u32 %v1856, %v1872
    %v1875 = vor.u32 %v1873, %v1874
    %v1876 = vsub.s32 4294967266, %v1871
    %v1877 = vadd.s32 %v1876, 127
    %v1878 = vshll.u32 %v1877, 23
    %v1879 = vor.u32 4788187, %v1878
    %v1880 = vand.u32 2147483647, %v1879
    %v1882 = vcvt.s32.f32 %v1875
    %v1883 = vmul.f32 %v1882, %v1880
    %v1884 = vxor.u32 %v1883, 2147483648
    %v1885 = vsel %vm1802, %v1884, %v1883
    %v1886 = vsub.s32 4, %v1862
    %v1887 = vsel %vm1802, %v1886, %v1862
    %v1888 = vsel %vm1801, %v952, %v1885
    %v1889 = vsel %vm1801, 0, %v1887
    %v1890 = vcosq.f32.pop %v1888
    %v1891 = vsinq.f32.pop %v1888
    %vm1892 = vweird.f32 %v952
    %v1893 = vadd.s32 %v1889, 3
    %v1894 = vand.u32 %v1893, 3
    %vm1895 = vcmp.lt.s32.totalorder %v1894, 2
    %vm1896 = vcmp.eq.s32.totalorder %v1894, 0
    %v1897 = vxor.u32 %v1891, 2147483648
    %v1898 = vsel %vm1896, %v1890, %v1897
    %vm1899 = vcmp.eq.s32.totalorder %v1894, 2
    %v1900 = vxor.u32 %v1890, 2147483648
    %v1901 = vsel %vm1899, %v1900, %v1891
    %v1902 = vsel %vm1895, %v1898, %v1901
    %v1903 = vsel %vm1892, nan, %v1902
    %v1904 = vand.u32 2147483647, %v954
    %vm1905 = vcmp.le.f32.partialorder %v1904, 0.7853982
    %vm1906 = vcmp.lt.s32.totalorder %v954, 0
    %v1907 = vand.u32 %v954, 2139095040
    %v1908 = vshrl.u32 %v1907, 23
    %v1909 = vsub.s32 %v1908, 127
    %v1910 = vand.u32 2147483647, %v954
    %v1911 = vand.u32 %v1910, 8388607
    %v1912 = vor.u32 %v1911, 8388608
    %v1913 = vsub.s32 0, %v1912
    %v1914 = vadd.s32 %v1909, 1
    %vm1915 = vcmp.gt.s32.totalorder %v1914, 0
    %v1916 = vsel %vm1915, %v1914, 0
    %v1917 = vshrl.u32 %v1916, 5
    %v1918 = vand.u32 %v1916, 31
    %v1919 = vsub.s32 32, %v1918
    %v1920 = vshrl.u32 683565275, %v1919
    %v1921 = vshll.u32 683565275, %v1918
    %v1922 = vshrl.u32 2475754826, %v1919
    %v1923 = vor.u32 %v1921, %v1922
    %v1924 = vshll.u32 2475754826, %v1918
    %v1925 = vshrl.u32 2131351028, %v1919
    %v1926 = vor.u32 %v1924, %v1925
    %v1927 = vshll.u32 2131351028, %v1918
    %v1928 = vshrl.u32 2102212464, %v1919
    %v1929 = vor.u32 %v1927, %v1928
    %v1930 = vshll.u32 2102212464, %v1918
    %v1931 = vshrl.u32 920167782, %v1919
    %v1932 = vor.u32 %v1930, %v1931
    %v1933 = vshll.u32 920167782, %v1918
    %v1934 = vshrl.u32 1326507024, %v1919
    %v1935 = vor.u32 %v1933, %v1934
    %vm1936 = vcmp.lt.s32.totalorder %v1917, 1
    %vm1937 = vcmp.lt.s32.totalorder %v1917, 2
    %vm1938 = vcmp.lt.s32.totalorder %v1917, 3
    %vm1939 = vcmp.lt.s32.totalorder %v1917, 4
    %v1940 = vsel %vm1936, %v1920, %v1923
    %v1941 = vsel %vm1939, %v1929, 2102212464
    %v1942 = vsel %vm1938, %v1926, %v1941
    %v1943 = vsel %vm1937, %v1940, %v1942
    %v1944 = vsel %vm1936, %v1923, %v1926
    %v1945 = vsel %vm1939, %v1932, 920167782
    %v1946 = vsel %vm1938, %v1929, %v1945
    %v1947 = vsel %vm1937, %v1944, %v1946
    %v1948 = vsel %vm1936, %v1926, %v1929
    %v1949 = vsel %vm1939, %v1935, 1326507024
    %v1950 = vsel %vm1938, %v1932, %v1949
    %v1951 = vsel %vm1937, %v1948, %v1950
    %v1952 = vshll.u32 %v1912, 8
    %v1953 = vmul.u32.u64.compose %v1952, %v1951
    %v1954 = vextract.low.u32 %v1953
    %v1955 = vextract.high.u32 %v1953
    %v1956 = vmul.u32.u64.compose %v1952, %v1947
    %v1957 = vextract.low.u32 %v1956
    %v1958 = vextract.high.u32 %v1956
    %v1959 = vmul.u32 %v1952, %v1943
    %v1960 = vadd.s32 %v1955, %v1957
    %vm1961 = vc.u32 %v1955, %v1957
    %v1962 = vadd.s32 %v1958, 1
    %v1963 = vsel %vm1961, %v1962, %v1958
    %v1964 = vadd.s32 %v1959, %v1963
    %v1965 = vadd.s32 %v1964, 536870912
    %v1966 = vshrl.u32 %v1965, 30
    %v1967 = vshll.u32 %v1966, 30
    %v1968 = vsub.s32 %v1964, %v1967
    %vm1969 = vcmp.lt.s32.totalorder %v1968, 0
    %v1970 = vsub.s32 0, %v1968
    %v1971 = vsel %vm1969, %v1970, %v1968
    %v1972 = vclz %v1971
    %v1973 = vsub.s32 %v1972, 2
    %vm1974 = vcmp.gt.s32.totalorder 0, %v1973
    %v1975 = vsel %vm1974, 0, %v1973
    %v1976 = vsub.s32 32, %v1975
    %v1977 = vshll.u32 %v1968, %v1975
    %v1978 = vshrl.u32 %v1960, %v1976
    %v1979 = vor.u32 %v1977, %v1978
    %v1980 = vsub.s32 4294967266, %v1975
    %v1981 = vadd.s32 %v1980, 127
    %v1982 = vshll.u32 %v1981, 23
    %v1983 = vor.u32 4788187, %v1982
    %v1984 = vand.u32 2147483647, %v1983
    %v1986 = vcvt.s32.f32 %v1979
    %v1987 = vmul.f32 %v1986, %v1984
    %v1988 = vxor.u32 %v1987, 2147483648
    %v1989 = vsel %vm1906, %v1988, %v1987
    %v1990 = vsub.s32 4, %v1966
    %v1991 = vsel %vm1906, %v1990, %v1966
    %v1992 = vsel %vm1905, %v954, %v1989
    %v1993 = vsel %vm1905, 0, %v1991
    %v1994 = vcosq.f32.pop %v1992
    %v1995 = vsinq.f32.pop %v1992
    %vm1996 = vweird.f32 %v954
    %v1997 = vadd.s32 %v1993, 3
    %v1998 = vand.u32 %v1997, 3
    %vm1999 = vcmp.lt.s32.totalorder %v1998, 2
    %vm2000 = vcmp.eq.s32.totalorder %v1998, 0
    %v2001 = vxor.u32 %v1995, 2147483648
    %v2002 = vsel %vm2000, %v1994, %v2001
    %vm2003 = vcmp.eq.s32.totalorder %v1998, 2
    %v2004 = vxor.u32 %v1994, 2147483648
    %v2005 = vsel %vm2003, %v2004, %v1995
    %v2006 = vsel %vm1999, %v2002, %v2005
    %v2007 = vsel %vm1996, nan, %v2006
    %v2008 = vand.u32 2147483647, %v958
    %vm2009 = vcmp.le.f32.partialorder %v2008, 0.7853982
    %vm2010 = vcmp.lt.s32.totalorder %v958, 0
    %v2011 = vand.u32 %v958, 2139095040
    %v2012 = vshrl.u32 %v2011, 23
    %v2013 = vsub.s32 %v2012, 127
    %v2014 = vand.u32 2147483647, %v958
    %v2015 = vand.u32 %v2014, 8388607
    %v2016 = vor.u32 %v2015, 8388608
    %v2017 = vsub.s32 0, %v2016
    %v2018 = vadd.s32 %v2013, 1
    %vm2019 = vcmp.gt.s32.totalorder %v2018, 0
    %v2020 = vsel %vm2019, %v2018, 0
    %v2021 = vshrl.u32 %v2020, 5
    %v2022 = vand.u32 %v2020, 31
    %v2023 = vsub.s32 32, %v2022
    %v2024 = vshrl.u32 683565275, %v2023
    %v2025 = vshll.u32 683565275, %v2022
    %v2026 = vshrl.u32 2475754826, %v2023
    %v2027 = vor.u32 %v2025, %v2026
    %v2028 = vshll.u32 2475754826, %v2022
    %v2029 = vshrl.u32 2131351028, %v2023
    %v2030 = vor.u32 %v2028, %v2029
    %v2031 = vshll.u32 2131351028, %v2022
    %v2032 = vshrl.u32 2102212464, %v2023
    %v2033 = vor.u32 %v2031, %v2032
    %v2034 = vshll.u32 2102212464, %v2022
    %v2035 = vshrl.u32 920167782, %v2023
    %v2036 = vor.u32 %v2034, %v2035
    %v2037 = vshll.u32 920167782, %v2022
    %v2038 = vshrl.u32 1326507024, %v2023
    %v2039 = vor.u32 %v2037, %v2038
    %vm2040 = vcmp.lt.s32.totalorder %v2021, 1
    %vm2041 = vcmp.lt.s32.totalorder %v2021, 2
    %vm2042 = vcmp.lt.s32.totalorder %v2021, 3
    %vm2043 = vcmp.lt.s32.totalorder %v2021, 4
    %v2044 = vsel %vm2040, %v2024, %v2027
    %v2045 = vsel %vm2043, %v2033, 2102212464
    %v2046 = vsel %vm2042, %v2030, %v2045
    %v2047 = vsel %vm2041, %v2044, %v2046
    %v2048 = vsel %vm2040, %v2027, %v2030
    %v2049 = vsel %vm2043, %v2036, 920167782
    %v2050 = vsel %vm2042, %v2033, %v2049
    %v2051 = vsel %vm2041, %v2048, %v2050
    %v2052 = vsel %vm2040, %v2030, %v2033
    %v2053 = vsel %vm2043, %v2039, 1326507024
    %v2054 = vsel %vm2042, %v2036, %v2053
    %v2055 = vsel %vm2041, %v2052, %v2054
    %v2056 = vshll.u32 %v2016, 8
    %v2057 = vmul.u32.u64.compose %v2056, %v2055
    %v2058 = vextract.low.u32 %v2057
    %v2059 = vextract.high.u32 %v2057
    %v2060 = vmul.u32.u64.compose %v2056, %v2051
    %v2061 = vextract.low.u32 %v2060
    %v2062 = vextract.high.u32 %v2060
    %v2063 = vmul.u32 %v2056, %v2047
    %v2064 = vadd.s32 %v2059, %v2061
    %vm2065 = vc.u32 %v2059, %v2061
    %v2066 = vadd.s32 %v2062, 1
    %v2067 = vsel %vm2065, %v2066, %v2062
    %v2068 = vadd.s32 %v2063, %v2067
    %v2069 = vadd.s32 %v2068, 536870912
    %v2070 = vshrl.u32 %v2069, 30
    %v2071 = vshll.u32 %v2070, 30
    %v2072 = vsub.s32 %v2068, %v2071
    %vm2073 = vcmp.lt.s32.totalorder %v2072, 0
    %v2074 = vsub.s32 0, %v2072
    %v2075 = vsel %vm2073, %v2074, %v2072
    %v2076 = vclz %v2075
    %v2077 = vsub.s32 %v2076, 2
    %vm2078 = vcmp.gt.s32.totalorder 0, %v2077
    %v2079 = vsel %vm2078, 0, %v2077
    %v2080 = vsub.s32 32, %v2079
    %v2081 = vshll.u32 %v2072, %v2079
    %v2082 = vshrl.u32 %v2064, %v2080
    %v2083 = vor.u32 %v2081, %v2082
    %v2084 = vsub.s32 4294967266, %v2079
    %v2085 = vadd.s32 %v2084, 127
    %v2086 = vshll.u32 %v2085, 23
    %v2087 = vor.u32 4788187, %v2086
    %v2088 = vand.u32 2147483647, %v2087
    %v2090 = vcvt.s32.f32 %v2083
    %v2091 = vmul.f32 %v2090, %v2088
    %v2092 = vxor.u32 %v2091, 2147483648
    %v2093 = vsel %vm2010, %v2092, %v2091
    %v2094 = vsub.s32 4, %v2070
    %v2095 = vsel %vm2010, %v2094, %v2070
    %v2096 = vsel %vm2009, %v958, %v2093
    %v2097 = vsel %vm2009, 0, %v2095
    %v2098 = vcosq.f32.pop %v2096
    %v2099 = vsinq.f32.pop %v2096
    %vm2100 = vweird.f32 %v958
    %v2101 = vadd.s32 %v2097, 3
    %v2102 = vand.u32 %v2101, 3
    %vm2103 = vcmp.lt.s32.totalorder %v2102, 2
    %vm2104 = vcmp.eq.s32.totalorder %v2102, 0
    %v2105 = vxor.u32 %v2099, 2147483648
    %v2106 = vsel %vm2104, %v2098, %v2105
    %vm2107 = vcmp.eq.s32.totalorder %v2102, 2
    %v2108 = vxor.u32 %v2098, 2147483648
    %v2109 = vsel %vm2107, %v2108, %v2099
    %v2110 = vsel %vm2103, %v2106, %v2109
    %v2111 = vsel %vm2100, nan, %v2110
    %v2112 = vand.u32 2147483647, %v960
    %vm2113 = vcmp.le.f32.partialorder %v2112, 0.7853982
    %vm2114 = vcmp.lt.s32.totalorder %v960, 0
    %v2115 = vand.u32 %v960, 2139095040
    %v2116 = vshrl.u32 %v2115, 23
    %v2117 = vsub.s32 %v2116, 127
    %v2118 = vand.u32 2147483647, %v960
    %v2119 = vand.u32 %v2118, 8388607
    %v2120 = vor.u32 %v2119, 8388608
    %v2121 = vsub.s32 0, %v2120
    %v2122 = vadd.s32 %v2117, 1
    %vm2123 = vcmp.gt.s32.totalorder %v2122, 0
    %v2124 = vsel %vm2123, %v2122, 0
    %v2125 = vshrl.u32 %v2124, 5
    %v2126 = vand.u32 %v2124, 31
    %v2127 = vsub.s32 32, %v2126
    %v2128 = vshrl.u32 683565275, %v2127
    %v2129 = vshll.u32 683565275, %v2126
    %v2130 = vshrl.u32 2475754826, %v2127
    %v2131 = vor.u32 %v2129, %v2130
    %v2132 = vshll.u32 2475754826, %v2126
    %v2133 = vshrl.u32 2131351028, %v2127
    %v2134 = vor.u32 %v2132, %v2133
    %v2135 = vshll.u32 2131351028, %v2126
    %v2136 = vshrl.u32 2102212464, %v2127
    %v2137 = vor.u32 %v2135, %v2136
    %v2138 = vshll.u32 2102212464, %v2126
    %v2139 = vshrl.u32 920167782, %v2127
    %v2140 = vor.u32 %v2138, %v2139
    %v2141 = vshll.u32 920167782, %v2126
    %v2142 = vshrl.u32 1326507024, %v2127
    %v2143 = vor.u32 %v2141, %v2142
    %vm2144 = vcmp.lt.s32.totalorder %v2125, 1
    %vm2145 = vcmp.lt.s32.totalorder %v2125, 2
    %vm2146 = vcmp.lt.s32.totalorder %v2125, 3
    %vm2147 = vcmp.lt.s32.totalorder %v2125, 4
    %v2148 = vsel %vm2144, %v2128, %v2131
    %v2149 = vsel %vm2147, %v2137, 2102212464
    %v2150 = vsel %vm2146, %v2134, %v2149
    %v2151 = vsel %vm2145, %v2148, %v2150
    %v2152 = vsel %vm2144, %v2131, %v2134
    %v2153 = vsel %vm2147, %v2140, 920167782
    %v2154 = vsel %vm2146, %v2137, %v2153
    %v2155 = vsel %vm2145, %v2152, %v2154
    %v2156 = vsel %vm2144, %v2134, %v2137
    %v2157 = vsel %vm2147, %v2143, 1326507024
    %v2158 = vsel %vm2146, %v2140, %v2157
    %v2159 = vsel %vm2145, %v2156, %v2158
    %v2160 = vshll.u32 %v2120, 8
    %v2161 = vmul.u32.u64.compose %v2160, %v2159
    %v2162 = vextract.low.u32 %v2161
    %v2163 = vextract.high.u32 %v2161
    %v2164 = vmul.u32.u64.compose %v2160, %v2155
    %v2165 = vextract.low.u32 %v2164
    %v2166 = vextract.high.u32 %v2164
    %v2167 = vmul.u32 %v2160, %v2151
    %v2168 = vadd.s32 %v2163, %v2165
    %vm2169 = vc.u32 %v2163, %v2165
    %v2170 = vadd.s32 %v2166, 1
    %v2171 = vsel %vm2169, %v2170, %v2166
    %v2172 = vadd.s32 %v2167, %v2171
    %v2173 = vadd.s32 %v2172, 536870912
    %v2174 = vshrl.u32 %v2173, 30
    %v2175 = vshll.u32 %v2174, 30
    %v2176 = vsub.s32 %v2172, %v2175
    %vm2177 = vcmp.lt.s32.totalorder %v2176, 0
    %v2178 = vsub.s32 0, %v2176
    %v2179 = vsel %vm2177, %v2178, %v2176
    %v2180 = vclz %v2179
    %v2181 = vsub.s32 %v2180, 2
    %vm2182 = vcmp.gt.s32.totalorder 0, %v2181
    %v2183 = vsel %vm2182, 0, %v2181
    %v2184 = vsub.s32 32, %v2183
    %v2185 = vshll.u32 %v2176, %v2183
    %v2186 = vshrl.u32 %v2168, %v2184
    %v2187 = vor.u32 %v2185, %v2186
    %v2188 = vsub.s32 4294967266, %v2183
    %v2189 = vadd.s32 %v2188, 127
    %v2190 = vshll.u32 %v2189, 23
    %v2191 = vor.u32 4788187, %v2190
    %v2192 = vand.u32 2147483647, %v2191
    %v2194 = vcvt.s32.f32 %v2187
    %v2195 = vmul.f32 %v2194, %v2192
    %v2196 = vxor.u32 %v2195, 2147483648
    %v2197 = vsel %vm2114, %v2196, %v2195
    %v2198 = vsub.s32 4, %v2174
    %v2199 = vsel %vm2114, %v2198, %v2174
    %v2200 = vsel %vm2113, %v960, %v2197
    %v2201 = vsel %vm2113, 0, %v2199
    %v2202 = vcosq.f32.pop %v2200
    %v2203 = vsinq.f32.pop %v2200
    %vm2204 = vweird.f32 %v960
    %v2205 = vadd.s32 %v2201, 3
    %v2206 = vand.u32 %v2205, 3
    %vm2207 = vcmp.lt.s32.totalorder %v2206, 2
    %vm2208 = vcmp.eq.s32.totalorder %v2206, 0
    %v2209 = vxor.u32 %v2203, 2147483648
    %v2210 = vsel %vm2208, %v2202, %v2209
    %vm2211 = vcmp.eq.s32.totalorder %v2206, 2
    %v2212 = vxor.u32 %v2202, 2147483648
    %v2213 = vsel %vm2211, %v2212, %v2203
    %v2214 = vsel %vm2207, %v2210, %v2213
    %v2215 = vsel %vm2204, nan, %v2214
    %v2216 = vand.u32 2147483647, %v964
    %vm2217 = vcmp.le.f32.partialorder %v2216, 0.7853982
    %vm2218 = vcmp.lt.s32.totalorder %v964, 0
    %v2219 = vand.u32 %v964, 2139095040
    %v2220 = vshrl.u32 %v2219, 23
    %v2221 = vsub.s32 %v2220, 127
    %v2222 = vand.u32 2147483647, %v964
    %v2223 = vand.u32 %v2222, 8388607
    %v2224 = vor.u32 %v2223, 8388608
    %v2225 = vsub.s32 0, %v2224
    %v2226 = vadd.s32 %v2221, 1
    %vm2227 = vcmp.gt.s32.totalorder %v2226, 0
    %v2228 = vsel %vm2227, %v2226, 0
    %v2229 = vshrl.u32 %v2228, 5
    %v2230 = vand.u32 %v2228, 31
    %v2231 = vsub.s32 32, %v2230
    %v2232 = vshrl.u32 683565275, %v2231
    %v2233 = vshll.u32 683565275, %v2230
    %v2234 = vshrl.u32 2475754826, %v2231
    %v2235 = vor.u32 %v2233, %v2234
    %v2236 = vshll.u32 2475754826, %v2230
    %v2237 = vshrl.u32 2131351028, %v2231
    %v2238 = vor.u32 %v2236, %v2237
    %v2239 = vshll.u32 2131351028, %v2230
    %v2240 = vshrl.u32 2102212464, %v2231
    %v2241 = vor.u32 %v2239, %v2240
    %v2242 = vshll.u32 2102212464, %v2230
    %v2243 = vshrl.u32 920167782, %v2231
    %v2244 = vor.u32 %v2242, %v2243
    %v2245 = vshll.u32 920167782, %v2230
    %v2246 = vshrl.u32 1326507024, %v2231
    %v2247 = vor.u32 %v2245, %v2246
    %vm2248 = vcmp.lt.s32.totalorder %v2229, 1
    %vm2249 = vcmp.lt.s32.totalorder %v2229, 2
    %vm2250 = vcmp.lt.s32.totalorder %v2229, 3
    %vm2251 = vcmp.lt.s32.totalorder %v2229, 4
    %v2252 = vsel %vm2248, %v2232, %v2235
    %v2253 = vsel %vm2251, %v2241, 2102212464
    %v2254 = vsel %vm2250, %v2238, %v2253
    %v2255 = vsel %vm2249, %v2252, %v2254
    %v2256 = vsel %vm2248, %v2235, %v2238
    %v2257 = vsel %vm2251, %v2244, 920167782
    %v2258 = vsel %vm2250, %v2241, %v2257
    %v2259 = vsel %vm2249, %v2256, %v2258
    %v2260 = vsel %vm2248, %v2238, %v2241
    %v2261 = vsel %vm2251, %v2247, 1326507024
    %v2262 = vsel %vm2250, %v2244, %v2261
    %v2263 = vsel %vm2249, %v2260, %v2262
    %v2264 = vshll.u32 %v2224, 8
    %v2265 = vmul.u32.u64.compose %v2264, %v2263
    %v2266 = vextract.low.u32 %v2265
    %v2267 = vextract.high.u32 %v2265
    %v2268 = vmul.u32.u64.compose %v2264, %v2259
    %v2269 = vextract.low.u32 %v2268
    %v2270 = vextract.high.u32 %v2268
    %v2271 = vmul.u32 %v2264, %v2255
    %v2272 = vadd.s32 %v2267, %v2269
    %vm2273 = vc.u32 %v2267, %v2269
    %v2274 = vadd.s32 %v2270, 1
    %v2275 = vsel %vm2273, %v2274, %v2270
    %v2276 = vadd.s32 %v2271, %v2275
    %v2277 = vadd.s32 %v2276, 536870912
    %v2278 = vshrl.u32 %v2277, 30
    %v2279 = vshll.u32 %v2278, 30
    %v2280 = vsub.s32 %v2276, %v2279
    %vm2281 = vcmp.lt.s32.totalorder %v2280, 0
    %v2282 = vsub.s32 0, %v2280
    %v2283 = vsel %vm2281, %v2282, %v2280
    %v2284 = vclz %v2283
    %v2285 = vsub.s32 %v2284, 2
    %vm2286 = vcmp.gt.s32.totalorder 0, %v2285
    %v2287 = vsel %vm2286, 0, %v2285
    %v2288 = vsub.s32 32, %v2287
    %v2289 = vshll.u32 %v2280, %v2287
    %v2290 = vshrl.u32 %v2272, %v2288
    %v2291 = vor.u32 %v2289, %v2290
    %v2292 = vsub.s32 4294967266, %v2287
    %v2293 = vadd.s32 %v2292, 127
    %v2294 = vshll.u32 %v2293, 23
    %v2295 = vor.u32 4788187, %v2294
    %v2296 = vand.u32 2147483647, %v2295
    %v2298 = vcvt.s32.f32 %v2291
    %v2299 = vmul.f32 %v2298, %v2296
    %v2300 = vxor.u32 %v2299, 2147483648
    %v2301 = vsel %vm2218, %v2300, %v2299
    %v2302 = vsub.s32 4, %v2278
    %v2303 = vsel %vm2218, %v2302, %v2278
    %v2304 = vsel %vm2217, %v964, %v2301
    %v2305 = vsel %vm2217, 0, %v2303
    %v2306 = vcosq.f32.pop %v2304
    %v2307 = vsinq.f32.pop %v2304
    %vm2308 = vweird.f32 %v964
    %v2309 = vadd.s32 %v2305, 3
    %v2310 = vand.u32 %v2309, 3
    %vm2311 = vcmp.lt.s32.totalorder %v2310, 2
    %vm2312 = vcmp.eq.s32.totalorder %v2310, 0
    %v2313 = vxor.u32 %v2307, 2147483648
    %v2314 = vsel %vm2312, %v2306, %v2313
    %vm2315 = vcmp.eq.s32.totalorder %v2310, 2
    %v2316 = vxor.u32 %v2306, 2147483648
    %v2317 = vsel %vm2315, %v2316, %v2307
    %v2318 = vsel %vm2311, %v2314, %v2317
    %v2319 = vsel %vm2308, nan, %v2318
    %v2320 = vand.u32 2147483647, %v966
    %vm2321 = vcmp.le.f32.partialorder %v2320, 0.7853982
    %vm2322 = vcmp.lt.s32.totalorder %v966, 0
    %v2323 = vand.u32 %v966, 2139095040
    %v2324 = vshrl.u32 %v2323, 23
    %v2325 = vsub.s32 %v2324, 127
    %v2326 = vand.u32 2147483647, %v966
    %v2327 = vand.u32 %v2326, 8388607
    %v2328 = vor.u32 %v2327, 8388608
    %v2329 = vsub.s32 0, %v2328
    %v2330 = vadd.s32 %v2325, 1
    %vm2331 = vcmp.gt.s32.totalorder %v2330, 0
    %v2332 = vsel %vm2331, %v2330, 0
    %v2333 = vshrl.u32 %v2332, 5
    %v2334 = vand.u32 %v2332, 31
    %v2335 = vsub.s32 32, %v2334
    %v2336 = vshrl.u32 683565275, %v2335
    %v2337 = vshll.u32 683565275, %v2334
    %v2338 = vshrl.u32 2475754826, %v2335
    %v2339 = vor.u32 %v2337, %v2338
    %v2340 = vshll.u32 2475754826, %v2334
    %v2341 = vshrl.u32 2131351028, %v2335
    %v2342 = vor.u32 %v2340, %v2341
    %v2343 = vshll.u32 2131351028, %v2334
    %v2344 = vshrl.u32 2102212464, %v2335
    %v2345 = vor.u32 %v2343, %v2344
    %v2346 = vshll.u32 2102212464, %v2334
    %v2347 = vshrl.u32 920167782, %v2335
    %v2348 = vor.u32 %v2346, %v2347
    %v2349 = vshll.u32 920167782, %v2334
    %v2350 = vshrl.u32 1326507024, %v2335
    %v2351 = vor.u32 %v2349, %v2350
    %vm2352 = vcmp.lt.s32.totalorder %v2333, 1
    %vm2353 = vcmp.lt.s32.totalorder %v2333, 2
    %vm2354 = vcmp.lt.s32.totalorder %v2333, 3
    %vm2355 = vcmp.lt.s32.totalorder %v2333, 4
    %v2356 = vsel %vm2352, %v2336, %v2339
    %v2357 = vsel %vm2355, %v2345, 2102212464
    %v2358 = vsel %vm2354, %v2342, %v2357
    %v2359 = vsel %vm2353, %v2356, %v2358
    %v2360 = vsel %vm2352, %v2339, %v2342
    %v2361 = vsel %vm2355, %v2348, 920167782
    %v2362 = vsel %vm2354, %v2345, %v2361
    %v2363 = vsel %vm2353, %v2360, %v2362
    %v2364 = vsel %vm2352, %v2342, %v2345
    %v2365 = vsel %vm2355, %v2351, 1326507024
    %v2366 = vsel %vm2354, %v2348, %v2365
    %v2367 = vsel %vm2353, %v2364, %v2366
    %v2368 = vshll.u32 %v2328, 8
    %v2369 = vmul.u32.u64.compose %v2368, %v2367
    %v2370 = vextract.low.u32 %v2369
    %v2371 = vextract.high.u32 %v2369
    %v2372 = vmul.u32.u64.compose %v2368, %v2363
    %v2373 = vextract.low.u32 %v2372
    %v2374 = vextract.high.u32 %v2372
    %v2375 = vmul.u32 %v2368, %v2359
    %v2376 = vadd.s32 %v2371, %v2373
    %vm2377 = vc.u32 %v2371, %v2373
    %v2378 = vadd.s32 %v2374, 1
    %v2379 = vsel %vm2377, %v2378, %v2374
    %v2380 = vadd.s32 %v2375, %v2379
    %v2381 = vadd.s32 %v2380, 536870912
    %v2382 = vshrl.u32 %v2381, 30
    %v2383 = vshll.u32 %v2382, 30
    %v2384 = vsub.s32 %v2380, %v2383
    %vm2385 = vcmp.lt.s32.totalorder %v2384, 0
    %v2386 = vsub.s32 0, %v2384
    %v2387 = vsel %vm2385, %v2386, %v2384
    %v2388 = vclz %v2387
    %v2389 = vsub.s32 %v2388, 2
    %vm2390 = vcmp.gt.s32.totalorder 0, %v2389
    %v2391 = vsel %vm2390, 0, %v2389
    %v2392 = vsub.s32 32, %v2391
    %v2393 = vshll.u32 %v2384, %v2391
    %v2394 = vshrl.u32 %v2376, %v2392
    %v2395 = vor.u32 %v2393, %v2394
    %v2396 = vsub.s32 4294967266, %v2391
    %v2397 = vadd.s32 %v2396, 127
    %v2398 = vshll.u32 %v2397, 23
    %v2399 = vor.u32 4788187, %v2398
    %v2400 = vand.u32 2147483647, %v2399
    %v2402 = vcvt.s32.f32 %v2395
    %v2403 = vmul.f32 %v2402, %v2400
    %v2404 = vxor.u32 %v2403, 2147483648
    %v2405 = vsel %vm2322, %v2404, %v2403
    %v2406 = vsub.s32 4, %v2382
    %v2407 = vsel %vm2322, %v2406, %v2382
    %v2408 = vsel %vm2321, %v966, %v2405
    %v2409 = vsel %vm2321, 0, %v2407
    %v2410 = vcosq.f32.pop %v2408
    %v2411 = vsinq.f32.pop %v2408
    %vm2412 = vweird.f32 %v966
    %v2413 = vadd.s32 %v2409, 3
    %v2414 = vand.u32 %v2413, 3
    %vm2415 = vcmp.lt.s32.totalorder %v2414, 2
    %vm2416 = vcmp.eq.s32.totalorder %v2414, 0
    %v2417 = vxor.u32 %v2411, 2147483648
    %v2418 = vsel %vm2416, %v2410, %v2417
    %vm2419 = vcmp.eq.s32.totalorder %v2414, 2
    %v2420 = vxor.u32 %v2410, 2147483648
    %v2421 = vsel %vm2419, %v2420, %v2411
    %v2422 = vsel %vm2415, %v2418, %v2421
    %v2423 = vsel %vm2412, nan, %v2422
    %v2424 = vld [vmem:[%s3] sm:$0x1]
    %2432 = vrot.lane.b32.xlu0 %v1071, 12
    %v2433 = vpop.permute.xlu0 %2432
    %2434 = vrot.lane.b32.xlu0 %v1279, 12
    %v2435 = vpop.permute.xlu0 %2434
    %2436 = vrot.lane.b32.xlu0 %v1487, 12
    %v2437 = vpop.permute.xlu0 %2436
    %2438 = vrot.lane.b32.xlu0 %v1695, 12
    %v2439 = vpop.permute.xlu0 %2438
    %2440 = vrot.lane.b32.xlu0 %v1903, 12
    %v2441 = vpop.permute.xlu0 %2440
    %2442 = vrot.lane.b32.xlu0 %v2111, 12
    %v2443 = vpop.permute.xlu0 %2442
    %2444 = vrot.lane.b32.xlu0 %v2319, 12
    %v2445 = vpop.permute.xlu0 %2444
    %2460 = vrot.lane.b32.xlu0 %v1175, 12
    %v2461 = vpop.permute.xlu0 %2460
    %2462 = vrot.lane.b32.xlu0 %v1383, 12
    %v2463 = vpop.permute.xlu0 %2462
    %2464 = vrot.lane.b32.xlu0 %v1591, 12
    %v2465 = vpop.permute.xlu0 %2464
    %2466 = vrot.lane.b32.xlu0 %v1799, 12
    %v2467 = vpop.permute.xlu0 %2466
    %2468 = vrot.lane.b32.xlu0 %v2007, 12
    %v2469 = vpop.permute.xlu0 %2468
    %2470 = vrot.lane.b32.xlu0 %v2215, 12
    %v2471 = vpop.permute.xlu0 %2470
    %2472 = vrot.lane.b32.xlu0 %v2423, 12
    %v2473 = vpop.permute.xlu0 %2472
    %vm2474 = vcmask 97280
    %v2475 = vsel %vm2474, %v2433, %v2461
    %v2476 = vsel %vm2474, %v2435, %v2463
    %v2477 = vsel %vm2474, %v2437, %v2465
    %v2478 = vsel %vm2474, %v2439, %v2467
    %v2479 = vsel %vm2474, %v2441, %v2469
    %v2480 = vsel %vm2474, %v2443, %v2471
    %v2481 = vsel %vm2474, %v2445, %v2473
    %v2482 = vsel %vm2474, %v814, %v2433
    %v2483 = vsel %vm2474, %v815, %v2435
    %v2484 = vsel %vm2474, %v816, %v2437
    %v2485 = vsel %vm2474, %v817, %v2439
    %v2486 = vsel %vm2474, %v818, %v2441
    %v2487 = vsel %vm2474, %v819, %v2443
    %v2488 = vsel %vm2474, %v820, %v2445
    %vm2489 = vcmask 687104
    %v2490 = vsel %vm2489, %v2482, %v2433
    %v2491 = vsel %vm2489, %v2483, %v2435
    %v2492 = vsel %vm2489, %v2484, %v2437
    %v2493 = vsel %vm2489, %v2485, %v2439
    %v2494 = vsel %vm2489, %v2486, %v2441
    %v2495 = vsel %vm2489, %v2487, %v2443
    %v2496 = vsel %vm2489, %v2488, %v2445
    %v2498 = vlaneseq
    %v2499 = vshrl.u32 %v2498, 7
    %v2500 = vsub.s32 0, %v2499
    %v2501 = vrot.slane %v2424, %v2500
    %2502 = vrot.lane.b32.xlu0 %v2501, 72
    %v2503 = vpop.permute.xlu0 %2502
    %v2505 = vmul.f32 %v1071, %v2503
    %v2506 = vmul.f32 %v1175, %v2503
    %v2507 = vmul.f32 %v1279, %v2503
    %v2508 = vmul.f32 %v1383, %v2503
    %v2509 = vmul.f32 %v1487, %v2503
    %v2510 = vmul.f32 %v1591, %v2503
    %v2511 = vmul.f32 %v1695, %v2503
    %v2512 = vmul.f32 %v1799, %v2503
    %v2513 = vmul.f32 %v1903, %v2503
    %v2514 = vmul.f32 %v2007, %v2503
    %v2515 = vmul.f32 %v2111, %v2503
    %v2516 = vmul.f32 %v2215, %v2503
    %v2517 = vmul.f32 %v2319, %v2503
    %v2518 = vmul.f32 %v2423, %v2503
    %v2519 = vsub.f32 0.0, %v2424
    %v2521 = vlaneseq
    %v2522 = vshrl.u32 %v2521, 7
    %v2523 = vsub.s32 0, %v2522
    %v2524 = vrot.slane %v2519, %v2523
    %v2526 = vmul.f32 %v1071, %v2524
    %v2527 = vmul.f32 %v1279, %v2524
    %v2528 = vmul.f32 %v1487, %v2524
    %v2529 = vmul.f32 %v1695, %v2524
    %v2530 = vmul.f32 %v1903, %v2524
    %v2531 = vmul.f32 %v2111, %v2524
    %v2532 = vmul.f32 %v2319, %v2524
    %2547 = vrot.lane.b32.xlu0 %v2505, 68
    %v2548 = vpop.permute.xlu0 %2547
    %2549 = vrot.lane.b32.xlu0 %v2506, 68
    %v2550 = vpop.permute.xlu0 %2549
    %2551 = vrot.lane.b32.xlu0 %v2507, 68
    %v2552 = vpop.permute.xlu0 %2551
    %2553 = vrot.lane.b32.xlu0 %v2508, 68
    %v2554 = vpop.permute.xlu0 %2553
    %2555 = vrot.lane.b32.xlu0 %v2509, 68
    %v2556 = vpop.permute.xlu0 %2555
    %2557 = vrot.lane.b32.xlu0 %v2510, 68
    %v2558 = vpop.permute.xlu0 %2557
    %2559 = vrot.lane.b32.xlu0 %v2511, 68
    %v2560 = vpop.permute.xlu0 %2559
    %2561 = vrot.lane.b32.xlu0 %v2512, 68
    %v2562 = vpop.permute.xlu0 %2561
    %2563 = vrot.lane.b32.xlu0 %v2513, 68
    %v2564 = vpop.permute.xlu0 %2563
    %2565 = vrot.lane.b32.xlu0 %v2514, 68
    %v2566 = vpop.permute.xlu0 %2565
    %2567 = vrot.lane.b32.xlu0 %v2515, 68
    %v2568 = vpop.permute.xlu0 %2567
    %2569 = vrot.lane.b32.xlu0 %v2516, 68
    %v2570 = vpop.permute.xlu0 %2569
    %2571 = vrot.lane.b32.xlu0 %v2517, 68
    %v2572 = vpop.permute.xlu0 %2571
    %2573 = vrot.lane.b32.xlu0 %v2518, 68
    %v2574 = vpop.permute.xlu0 %2573
    %vm2575 = vcmask 556032
    %v2576 = vsel %vm2575, %v2548, %v2550
    %v2577 = vsel %vm2575, %v2552, %v2554
    %v2578 = vsel %vm2575, %v2556, %v2558
    %v2579 = vsel %vm2575, %v2560, %v2562
    %v2580 = vsel %vm2575, %v2564, %v2566
    %v2581 = vsel %vm2575, %v2568, %v2570
    %v2582 = vsel %vm2575, %v2572, %v2574
    %2597 = vrot.lane.b32.xlu0 %v2526, 84
    %v2598 = vpop.permute.xlu0 %2597
    %2599 = vrot.lane.b32.xlu0 %v2527, 84
    %v2600 = vpop.permute.xlu0 %2599
    %2601 = vrot.lane.b32.xlu0 %v2528, 84
    %v2602 = vpop.permute.xlu0 %2601
    %2603 = vrot.lane.b32.xlu0 %v2529, 84
    %v2604 = vpop.permute.xlu0 %2603
    %2605 = vrot.lane.b32.xlu0 %v2530, 84
    %v2606 = vpop.permute.xlu0 %2605
    %2607 = vrot.lane.b32.xlu0 %v2531, 84
    %v2608 = vpop.permute.xlu0 %2607
    %2609 = vrot.lane.b32.xlu0 %v2532, 84
    %v2610 = vpop.permute.xlu0 %2609
    %v2618 = vsel %vm2474, 1.0, %v2576
    %v2619 = vsel %vm2474, 1.0, %v2577
    %v2620 = vsel %vm2474, 1.0, %v2578
    %v2621 = vsel %vm2474, 1.0, %v2579
    %v2622 = vsel %vm2474, 1.0, %v2580
    %v2623 = vsel %vm2474, 1.0, %v2581
    %v2624 = vsel %vm2474, 1.0, %v2582
    %v2625 = vsel %vm2489, %v2618, %v2598
    %v2626 = vsel %vm2489, %v2619, %v2600
    %v2627 = vsel %vm2489, %v2620, %v2602
    %v2628 = vsel %vm2489, %v2621, %v2604
    %v2629 = vsel %vm2489, %v2622, %v2606
    %v2630 = vsel %vm2489, %v2623, %v2608
    %v2631 = vsel %vm2489, %v2624, %v2610
    %v2632 = vld [vmem:[%s4] sm:$0x3]
    %v2633 = vld [vmem:[%s4 + $0x2] sm:$0x3]
    %v2634 = vld [vmem:[%s4 + $0x4] sm:$0x3]
    %v2638 = vlaneseq
    %v2639 = vshrl.u32 %v2638, 7
    %v2640 = vsub.s32 0, %v2639
    %v2641 = vrot.slane %v2632, %v2640
    %v2642 = vlaneseq
    %v2643 = vshrl.u32 %v2642, 7
    %v2644 = vsub.s32 1, %v2643
    %v2645 = vrot.slane %v2632, %v2644
    %v2646 = vlaneseq
    %v2647 = vshrl.u32 %v2646, 7
    %v2648 = vsub.s32 0, %v2647
    %v2649 = vrot.slane %v2633, %v2648
    %v2650 = vlaneseq
    %v2651 = vshrl.u32 %v2650, 7
    %v2652 = vsub.s32 1, %v2651
    %v2653 = vrot.slane %v2633, %v2652
    %v2654 = vlaneseq
    %v2655 = vshrl.u32 %v2654, 7
    %v2656 = vsub.s32 0, %v2655
    %v2657 = vrot.slane %v2634, %v2656
    %v2658 = vlaneseq
    %v2659 = vshrl.u32 %v2658, 7
    %v2660 = vsub.s32 1, %v2659
    %v2661 = vrot.slane %v2634, %v2660
    %v2668 = vmul.f32 %v2625, %v2641
    %v2669 = vmul.f32 %v2598, %v2645
    %v2670 = vmul.f32 %v2626, %v2641
    %v2671 = vmul.f32 %v2600, %v2645
    %v2672 = vmul.f32 %v2627, %v2641
    %v2673 = vmul.f32 %v2602, %v2645
    %v2674 = vmul.f32 %v2628, %v2641
    %v2675 = vmul.f32 %v2604, %v2645
    %v2676 = vmul.f32 %v2629, %v2641
    %v2677 = vmul.f32 %v2606, %v2645
    %v2678 = vmul.f32 %v2630, %v2641
    %v2679 = vmul.f32 %v2608, %v2645
    %v2680 = vmul.f32 %v2631, %v2641
    %v2681 = vmul.f32 %v2610, %v2645
    %v2682 = vmul.f32 %v2625, %v2649
    %v2683 = vmul.f32 %v2598, %v2653
    %v2684 = vmul.f32 %v2626, %v2649
    %v2685 = vmul.f32 %v2600, %v2653
    %v2686 = vmul.f32 %v2627, %v2649
    %v2687 = vmul.f32 %v2602, %v2653
    %v2688 = vmul.f32 %v2628, %v2649
    %v2689 = vmul.f32 %v2604, %v2653
    %v2690 = vmul.f32 %v2629, %v2649
    %v2691 = vmul.f32 %v2606, %v2653
    %v2692 = vmul.f32 %v2630, %v2649
    %v2693 = vmul.f32 %v2608, %v2653
    %v2694 = vmul.f32 %v2631, %v2649
    %v2695 = vmul.f32 %v2610, %v2653
    %v2696 = vmul.f32 %v2625, %v2657
    %v2697 = vmul.f32 %v2598, %v2661
    %v2698 = vmul.f32 %v2626, %v2657
    %v2699 = vmul.f32 %v2600, %v2661
    %v2700 = vmul.f32 %v2627, %v2657
    %v2701 = vmul.f32 %v2602, %v2661
    %v2702 = vmul.f32 %v2628, %v2657
    %v2703 = vmul.f32 %v2604, %v2661
    %v2704 = vmul.f32 %v2629, %v2657
    %v2705 = vmul.f32 %v2606, %v2661
    %v2706 = vmul.f32 %v2630, %v2657
    %v2707 = vmul.f32 %v2608, %v2661
    %v2708 = vmul.f32 %v2631, %v2657
    %v2709 = vmul.f32 %v2610, %v2661
    %vm2710 = vcmask 228352
    %v2711 = vsel %vm2710, %v2475, 0
    %v2713 = vsel %vm2710, %v2476, 0
    %v2715 = vsel %vm2710, %v2477, 0
    %v2717 = vsel %vm2710, %v2478, 0
    %v2719 = vsel %vm2710, %v2479, 0
    %v2721 = vsel %vm2710, %v2480, 0
    %v2723 = vsel %vm2710, %v2481, 0
    %v2726 = vsel %vm2710, %v2669, 0
    %v2729 = vsel %vm2710, %v2671, 0
    %v2732 = vsel %vm2710, %v2673, 0
    %v2735 = vsel %vm2710, %v2675, 0
    %v2738 = vsel %vm2710, %v2677, 0
    %v2741 = vsel %vm2710, %v2679, 0
    %v2744 = vsel %vm2710, %v2681, 0
    %v2747 = vsel %vm2710, %v2683, 0
    %v2750 = vsel %vm2710, %v2685, 0
    %v2753 = vsel %vm2710, %v2687, 0
    %v2756 = vsel %vm2710, %v2689, 0
    %v2759 = vsel %vm2710, %v2691, 0
    %v2762 = vsel %vm2710, %v2693, 0
    %v2765 = vsel %vm2710, %v2695, 0
    %v2768 = vsel %vm2710, %v2697, 0
    %v2771 = vsel %vm2710, %v2699, 0
    %v2774 = vsel %vm2710, %v2701, 0
    %v2777 = vsel %vm2710, %v2703, 0
    %v2780 = vsel %vm2710, %v2705, 0
    %v2783 = vsel %vm2710, %v2707, 0
    %v2786 = vsel %vm2710, %v2709, 0
    %vm2788 = vcmask 1043456
    %v2790 = vsel %vm2788, %v190, 0
    %v2793 = vsel %vm2788, %v191, 0
    %2795 = vmatprep.subr.mxu0 %v183
    %2796 = vmatpush1.msra.mxu0 %v182
    %2797 = vmatprep.subr.mxu0 %v181
    %2798 = vmatpush1.msra.mxu0 %v180
    %2799 = vmatprep.subr.mxu0 %v179
    %2800 = vmatpush1.msra.mxu0 %v178
    %2801 = vmatprep.subr.mxu0 %v177
    %2802 = vmatpush1.msra.mxu0 %v176
    %2803 = vmatprep.subr.mxu0 %v175
    %2804 = vmatpush1.msra.mxu0 %v174
    %2805 = vmatprep.subr.mxu0 %v173
    %2806 = vmatpush1.msra.mxu0 %v172
    %2807 = vmatprep.subr.mxu0 %v171
    %2808 = vmatpush1.msra.mxu0 %v170
    %2809 = vmatprep.subr.mxu0 %v169
    %2810 = vmatpush1.msra.mxu0 %v168
    %2811 = vmatprep.subr.mxu0 %v167
    %2812 = vmatpush1.msra.mxu0 %v166
    %2813 = vmatprep.subr.mxu0 %v165
    %2814 = vmatpush1.msra.mxu0 %v164
    %2815 = vmatprep.subr.mxu0 %v163
    %2816 = vmatpush1.msra.mxu0 %v162
    %2817 = vmatprep.subr.mxu0 %v161
    %2818 = vmatpush1.msra.mxu0 %v160
    %2819 = vmatprep.subr.mxu0 %v159
    %2820 = vmatpush1.msra.mxu0 %v158
    %2821 = vmatprep.subr.mxu0 %v157
    %2822 = vmatpush1.msra.mxu0 %v156
    %2823 = vmatprep.subr.mxu0 %v155
    %2824 = vmatpush1.msra.mxu0 %v154
    %2825 = vmatprep.subr.mxu0 %v153
    %2826 = vmatpush1.msra.mxu0 %v152
    %2827 = vmatprep.subr.mxu0 0.0
    %2828 = vmatpush2.msra.mxu0 0.0
    %2829 = vmatprep.subr.mxu0 0.0
    %2830 = vmatpush2.msra.mxu0 0.0
    %2831 = vmatprep.subr.mxu0 0.0
    %2832 = vmatpush2.msra.mxu0 0.0
    %2833 = vmatprep.subr.mxu0 0.0
    %2834 = vmatpush2.msra.mxu0 0.0
    %2835 = vmatprep.subr.mxu0 0.0
    %2836 = vmatpush2.msra.mxu0 0.0
    %2837 = vmatprep.subr.mxu0 0.0
    %2838 = vmatpush2.msra.mxu0 0.0
    %2839 = vmatprep.subr.mxu0 0.0
    %2840 = vmatpush2.msra.mxu0 0.0
    %2841 = vmatprep.subr.mxu0 0.0
    %2842 = vmatpush2.msra.mxu0 0.0
    %2843 = vmatprep.subr.mxu0 0.0
    %2844 = vmatpush2.msra.mxu0 0.0
    %2845 = vmatprep.subr.mxu0 0.0
    %2846 = vmatpush2.msra.mxu0 0.0
    %2847 = vmatprep.subr.mxu0 0.0
    %2848 = vmatpush2.msra.mxu0 0.0
    %2849 = vmatprep.subr.mxu0 0.0
    %2850 = vmatpush2.msra.mxu0 0.0
    %2851 = vmatprep.subr.mxu0 %v2793
    %2852 = vmatpush2.msra.mxu0 %v2790
    %2853 = vmatprep.subr.mxu0 %v189
    %2854 = vmatpush2.msra.mxu0 %v188
    %2855 = vmatprep.subr.mxu0 %v187
    %2856 = vmatpush2.msra.mxu0 %v186
    %2857 = vmatprep.subr.mxu0 %v185
    %2858 = vmatpush2.msra.mxu0 %v184
    %2859 = vmatprep.mubr.f32.mxu0 %v2711
    %2860 = vmatmul.mubr.f32.gmra.mxu0 %v2490
    %v2861 = vpop.f32.mrf.mxu0
    %v2862 = vadd.f32 0.0, %v2861
    %v2863 = vpop.f32.mrf.mxu0
    %v2864 = vadd.f32 0.0, %v2863
    %2865 = vmatprep.mubr.f32.mxu0 %v2713
    %2866 = vmatmul.mubr.f32.gmra.mxu0 %v2491
    %v2867 = vpop.f32.mrf.mxu0
    %v2868 = vadd.f32 0.0, %v2867
    %v2869 = vpop.f32.mrf.mxu0
    %v2870 = vadd.f32 0.0, %v2869
    %2871 = vmatprep.mubr.f32.mxu0 %v2715
    %2872 = vmatmul.mubr.f32.gmra.mxu0 %v2492
    %v2873 = vpop.f32.mrf.mxu0
    %v2874 = vadd.f32 0.0, %v2873
    %v2875 = vpop.f32.mrf.mxu0
    %v2876 = vadd.f32 0.0, %v2875
    %2877 = vmatprep.mubr.f32.mxu0 %v2717
    %2878 = vmatmul.mubr.f32.gmra.mxu0 %v2493
    %v2879 = vpop.f32.mrf.mxu0
    %v2880 = vadd.f32 0.0, %v2879
    %v2881 = vpop.f32.mrf.mxu0
    %v2882 = vadd.f32 0.0, %v2881
    %2883 = vmatprep.mubr.f32.mxu0 %v2719
    %2884 = vmatmul.mubr.f32.gmra.mxu0 %v2494
    %v2885 = vpop.f32.mrf.mxu0
    %v2886 = vadd.f32 0.0, %v2885
    %v2887 = vpop.f32.mrf.mxu0
    %v2888 = vadd.f32 0.0, %v2887
    %2889 = vmatprep.mubr.f32.mxu0 %v2721
    %2890 = vmatmul.mubr.f32.gmra.mxu0 %v2495
    %v2891 = vpop.f32.mrf.mxu0
    %v2892 = vadd.f32 0.0, %v2891
    %v2893 = vpop.f32.mrf.mxu0
    %v2894 = vadd.f32 0.0, %v2893
    %2895 = vmatprep.mubr.f32.mxu0 %v2723
    %2896 = vmatmul.mubr.f32.gmra.mxu0 %v2496
    %v2897 = vpop.f32.mrf.mxu0
    %v2898 = vadd.f32 0.0, %v2897
    %v2899 = vpop.f32.mrf.mxu0
    %v2900 = vadd.f32 0.0, %v2899
    %2901 = vmatprep.mubr.f32.mxu0 %v2726
    %2902 = vmatmul.mubr.f32.gmra.mxu0 %v2668
    %v2903 = vpop.f32.mrf.mxu0
    %v2904 = vadd.f32 0.0, %v2903
    %v2905 = vpop.f32.mrf.mxu0
    %v2906 = vadd.f32 0.0, %v2905
    %2907 = vmatprep.mubr.f32.mxu0 %v2729
    %2908 = vmatmul.mubr.f32.gmra.mxu0 %v2670
    %v2909 = vpop.f32.mrf.mxu0
    %v2910 = vadd.f32 0.0, %v2909
    %v2911 = vpop.f32.mrf.mxu0
    %v2912 = vadd.f32 0.0, %v2911
    %2913 = vmatprep.mubr.f32.mxu0 %v2732
    %2914 = vmatmul.mubr.f32.gmra.mxu0 %v2672
    %v2915 = vpop.f32.mrf.mxu0
    %v2916 = vadd.f32 0.0, %v2915
    %v2917 = vpop.f32.mrf.mxu0
    %v2918 = vadd.f32 0.0, %v2917
    %2919 = vmatprep.mubr.f32.mxu0 %v2735
    %2920 = vmatmul.mubr.f32.gmra.mxu0 %v2674
    %v2921 = vpop.f32.mrf.mxu0
    %v2922 = vadd.f32 0.0, %v2921
    %v2923 = vpop.f32.mrf.mxu0
    %v2924 = vadd.f32 0.0, %v2923
    %2925 = vmatprep.mubr.f32.mxu0 %v2738
    %2926 = vmatmul.mubr.f32.gmra.mxu0 %v2676
    %v2927 = vpop.f32.mrf.mxu0
    %v2928 = vadd.f32 0.0, %v2927
    %v2929 = vpop.f32.mrf.mxu0
    %v2930 = vadd.f32 0.0, %v2929
    %2931 = vmatprep.mubr.f32.mxu0 %v2741
    %2932 = vmatmul.mubr.f32.gmra.mxu0 %v2678
    %v2933 = vpop.f32.mrf.mxu0
    %v2934 = vadd.f32 0.0, %v2933
    %v2935 = vpop.f32.mrf.mxu0
    %v2936 = vadd.f32 0.0, %v2935
    %2937 = vmatprep.mubr.f32.mxu0 %v2744
    %2938 = vmatmul.mubr.f32.gmra.mxu0 %v2680
    %v2939 = vpop.f32.mrf.mxu0
    %v2940 = vadd.f32 0.0, %v2939
    %v2941 = vpop.f32.mrf.mxu0
    %v2942 = vadd.f32 0.0, %v2941
    %2943 = vmatprep.mubr.f32.mxu0 %v2747
    %2944 = vmatmul.mubr.f32.gmra.mxu0 %v2682
    %v2945 = vpop.f32.mrf.mxu0
    %v2946 = vadd.f32 0.0, %v2945
    %v2947 = vpop.f32.mrf.mxu0
    %v2948 = vadd.f32 0.0, %v2947
    %2949 = vmatprep.mubr.f32.mxu0 %v2750
    %2950 = vmatmul.mubr.f32.gmra.mxu0 %v2684
    %v2951 = vpop.f32.mrf.mxu0
    %v2952 = vadd.f32 0.0, %v2951
    %v2953 = vpop.f32.mrf.mxu0
    %v2954 = vadd.f32 0.0, %v2953
    %2955 = vmatprep.mubr.f32.mxu0 %v2753
    %2956 = vmatmul.mubr.f32.gmra.mxu0 %v2686
    %v2957 = vpop.f32.mrf.mxu0
    %v2958 = vadd.f32 0.0, %v2957
    %v2959 = vpop.f32.mrf.mxu0
    %v2960 = vadd.f32 0.0, %v2959
    %2961 = vmatprep.mubr.f32.mxu0 %v2756
    %2962 = vmatmul.mubr.f32.gmra.mxu0 %v2688
    %v2963 = vpop.f32.mrf.mxu0
    %v2964 = vadd.f32 0.0, %v2963
    %v2965 = vpop.f32.mrf.mxu0
    %v2966 = vadd.f32 0.0, %v2965
    %2967 = vmatprep.mubr.f32.mxu0 %v2759
    %2968 = vmatmul.mubr.f32.gmra.mxu0 %v2690
    %v2969 = vpop.f32.mrf.mxu0
    %v2970 = vadd.f32 0.0, %v2969
    %v2971 = vpop.f32.mrf.mxu0
    %v2972 = vadd.f32 0.0, %v2971
    %2973 = vmatprep.mubr.f32.mxu0 %v2762
    %2974 = vmatmul.mubr.f32.gmra.mxu0 %v2692
    %v2975 = vpop.f32.mrf.mxu0
    %v2976 = vadd.f32 0.0, %v2975
    %v2977 = vpop.f32.mrf.mxu0
    %v2978 = vadd.f32 0.0, %v2977
    %2979 = vmatprep.mubr.f32.mxu0 %v2765
    %2980 = vmatmul.mubr.f32.gmra.mxu0 %v2694
    %v2981 = vpop.f32.mrf.mxu0
    %v2982 = vadd.f32 0.0, %v2981
    %v2983 = vpop.f32.mrf.mxu0
    %v2984 = vadd.f32 0.0, %v2983
    %2985 = vmatprep.mubr.f32.mxu0 %v2768
    %2986 = vmatmul.mubr.f32.gmra.mxu0 %v2696
    %v2987 = vpop.f32.mrf.mxu0
    %v2988 = vadd.f32 0.0, %v2987
    %v2989 = vpop.f32.mrf.mxu0
    %v2990 = vadd.f32 0.0, %v2989
    %2991 = vmatprep.mubr.f32.mxu0 %v2771
    %2992 = vmatmul.mubr.f32.gmra.mxu0 %v2698
    %v2993 = vpop.f32.mrf.mxu0
    %v2994 = vadd.f32 0.0, %v2993
    %v2995 = vpop.f32.mrf.mxu0
    %v2996 = vadd.f32 0.0, %v2995
    %2997 = vmatprep.mubr.f32.mxu0 %v2774
    %2998 = vmatmul.mubr.f32.gmra.mxu0 %v2700
    %v2999 = vpop.f32.mrf.mxu0
    %v3000 = vadd.f32 0.0, %v2999
    %v3001 = vpop.f32.mrf.mxu0
    %v3002 = vadd.f32 0.0, %v3001
    %3003 = vmatprep.mubr.f32.mxu0 %v2777
    %3004 = vmatmul.mubr.f32.gmra.mxu0 %v2702
    %v3005 = vpop.f32.mrf.mxu0
    %v3006 = vadd.f32 0.0, %v3005
    %v3007 = vpop.f32.mrf.mxu0
    %v3008 = vadd.f32 0.0, %v3007
    %3009 = vmatprep.mubr.f32.mxu0 %v2780
    %3010 = vmatmul.mubr.f32.gmra.mxu0 %v2704
    %v3011 = vpop.f32.mrf.mxu0
    %v3012 = vadd.f32 0.0, %v3011
    %v3013 = vpop.f32.mrf.mxu0
    %v3014 = vadd.f32 0.0, %v3013
    %3015 = vmatprep.mubr.f32.mxu0 %v2783
    %3016 = vmatmul.mubr.f32.gmra.mxu0 %v2706
    %v3017 = vpop.f32.mrf.mxu0
    %v3018 = vadd.f32 0.0, %v3017
    %v3019 = vpop.f32.mrf.mxu0
    %v3020 = vadd.f32 0.0, %v3019
    %3021 = vmatprep.mubr.f32.mxu0 %v2786
    %3022 = vmatmul.mubr.f32.gmra.mxu0 %v2708
    %v3023 = vpop.f32.mrf.mxu0
    %v3024 = vadd.f32 0.0, %v3023
    %v3025 = vpop.f32.mrf.mxu0
    %v3026 = vadd.f32 0.0, %v3025
    %3027 = vdwg.mxu0
    %v3028 = vld [vmem:[#allocation6] sm:$0x3]
    %v3030 = vlaneseq
    %v3031 = vshrl.u32 %v3030, 7
    %v3032 = vsub.s32 0, %v3031
    %v3033 = vrot.slane %v3028, %v3032
    %v3034 = vlaneseq
    %v3035 = vshrl.u32 %v3034, 7
    %v3036 = vsub.s32 1, %v3035
    %v3037 = vrot.slane %v3028, %v3036
    %v3040 = vadd.f32 %v2862, %v3033
    %v3041 = vadd.f32 %v2864, %v3037
    %v3042 = vadd.f32 %v2868, %v3033
    %v3043 = vadd.f32 %v2870, %v3037
    %v3044 = vadd.f32 %v2874, %v3033
    %v3045 = vadd.f32 %v2876, %v3037
    %v3046 = vadd.f32 %v2880, %v3033
    %v3047 = vadd.f32 %v2882, %v3037
    %v3048 = vadd.f32 %v2886, %v3033
    %v3049 = vadd.f32 %v2888, %v3037
    %v3050 = vadd.f32 %v2892, %v3033
    %v3051 = vadd.f32 %v2894, %v3037
    %v3052 = vadd.f32 %v2898, %v3033
    %v3053 = vadd.f32 %v2900, %v3037
    %v3054 = vmul.f32 %v3040, 100.0
    %v3055 = vmul.f32 %v3041, 100.0
    %v3056 = vmul.f32 %v3042, 100.0
    %v3057 = vmul.f32 %v3043, 100.0
    %v3058 = vmul.f32 %v3044, 100.0
    %v3059 = vmul.f32 %v3045, 100.0
    %v3060 = vmul.f32 %v3046, 100.0
    %v3061 = vmul.f32 %v3047, 100.0
    %v3062 = vmul.f32 %v3048, 100.0
    %v3063 = vmul.f32 %v3049, 100.0
    %v3064 = vmul.f32 %v3050, 100.0
    %v3065 = vmul.f32 %v3051, 100.0
    %v3066 = vmul.f32 %v3052, 100.0
    %v3067 = vmul.f32 %v3053, 100.0
    %vm3068 = vcmp.gt.f32.partialorder %v3054, 20.0
    %vm3069 = vcmp.gt.f32.partialorder %v3055, 20.0
    %vm3070 = vcmp.gt.f32.partialorder %v3056, 20.0
    %vm3071 = vcmp.gt.f32.partialorder %v3057, 20.0
    %vm3072 = vcmp.gt.f32.partialorder %v3058, 20.0
    %vm3073 = vcmp.gt.f32.partialorder %v3059, 20.0
    %vm3074 = vcmp.gt.f32.partialorder %v3060, 20.0
    %vm3075 = vcmp.gt.f32.partialorder %v3061, 20.0
    %vm3076 = vcmp.gt.f32.partialorder %v3062, 20.0
    %vm3077 = vcmp.gt.f32.partialorder %v3063, 20.0
    %vm3078 = vcmp.gt.f32.partialorder %v3064, 20.0
    %vm3079 = vcmp.gt.f32.partialorder %v3065, 20.0
    %vm3080 = vcmp.gt.f32.partialorder %v3066, 20.0
    %vm3081 = vcmp.gt.f32.partialorder %v3067, 20.0
    %v3082 = vmin.f32 %v3054, 20.0
    %v3083 = vmin.f32 %v3055, 20.0
    %v3084 = vmin.f32 %v3056, 20.0
    %v3085 = vmin.f32 %v3057, 20.0
    %v3086 = vmin.f32 %v3058, 20.0
    %v3087 = vmin.f32 %v3059, 20.0
    %v3088 = vmin.f32 %v3060, 20.0
    %v3089 = vmin.f32 %v3061, 20.0
    %v3090 = vmin.f32 %v3062, 20.0
    %v3091 = vmin.f32 %v3063, 20.0
    %v3092 = vmin.f32 %v3064, 20.0
    %v3093 = vmin.f32 %v3065, 20.0
    %v3094 = vmin.f32 %v3066, 20.0
    %v3095 = vmin.f32 %v3067, 20.0
    %v3096 = vmul.f32 %v3082, 1.442695
    %v3097 = vpow.pop %v3096
    %v3098 = vmul.f32 %v3083, 1.442695
    %v3099 = vpow.pop %v3098
    %v3100 = vmul.f32 %v3084, 1.442695
    %v3101 = vpow.pop %v3100
    %v3102 = vmul.f32 %v3085, 1.442695
    %v3103 = vpow.pop %v3102
    %v3104 = vmul.f32 %v3086, 1.442695
    %v3105 = vpow.pop %v3104
    %v3106 = vmul.f32 %v3087, 1.442695
    %v3107 = vpow.pop %v3106
    %v3108 = vmul.f32 %v3088, 1.442695
    %v3109 = vpow.pop %v3108
    %v3110 = vmul.f32 %v3089, 1.442695
    %v3111 = vpow.pop %v3110
    %v3112 = vmul.f32 %v3090, 1.442695
    %v3113 = vpow.pop %v3112
    %v3114 = vmul.f32 %v3091, 1.442695
    %v3115 = vpow.pop %v3114
    %v3116 = vmul.f32 %v3092, 1.442695
    %v3117 = vpow.pop %v3116
    %v3118 = vmul.f32 %v3093, 1.442695
    %v3119 = vpow.pop %v3118
    %v3120 = vmul.f32 %v3094, 1.442695
    %v3121 = vpow.pop %v3120
    %v3122 = vmul.f32 %v3095, 1.442695
    %v3123 = vpow.pop %v3122
    %v3124 = vadd.f32 %v3097, 1.0
    %v3125 = vlog2.pop %v3124
    %v3126 = vmul.f32 %v3125, 0.6931472
    %v3127 = vmul.f32 -0.5, %v3097
    %v3128 = vadd.f32 %v3127, 1.0
    %v3129 = vmul.f32 %v3128, %v3097
    %v3130 = vand.u32 2147483647, %v3097
    %vm3131 = vcmp.lt.f32.partialorder %v3130, 0.0004427343
    %v3132 = vsel %vm3131, %v3129, %v3126
    %v3133 = vadd.f32 %v3099, 1.0
    %v3134 = vlog2.pop %v3133
    %v3135 = vmul.f32 %v3134, 0.6931472
    %v3136 = vmul.f32 -0.5, %v3099
    %v3137 = vadd.f32 %v3136, 1.0
    %v3138 = vmul.f32 %v3137, %v3099
    %v3139 = vand.u32 2147483647, %v3099
    %vm3140 = vcmp.lt.f32.partialorder %v3139, 0.0004427343
    %v3141 = vsel %vm3140, %v3138, %v3135
    %v3142 = vadd.f32 %v3101, 1.0
    %v3143 = vlog2.pop %v3142
    %v3144 = vmul.f32 %v3143, 0.6931472
    %v3145 = vmul.f32 -0.5, %v3101
    %v3146 = vadd.f32 %v3145, 1.0
    %v3147 = vmul.f32 %v3146, %v3101
    %v3148 = vand.u32 2147483647, %v3101
    %vm3149 = vcmp.lt.f32.partialorder %v3148, 0.0004427343
    %v3150 = vsel %vm3149, %v3147, %v3144
    %v3151 = vadd.f32 %v3103, 1.0
    %v3152 = vlog2.pop %v3151
    %v3153 = vmul.f32 %v3152, 0.6931472
    %v3154 = vmul.f32 -0.5, %v3103
    %v3155 = vadd.f32 %v3154, 1.0
    %v3156 = vmul.f32 %v3155, %v3103
    %v3157 = vand.u32 2147483647, %v3103
    %vm3158 = vcmp.lt.f32.partialorder %v3157, 0.0004427343
    %v3159 = vsel %vm3158, %v3156, %v3153
    %v3160 = vadd.f32 %v3105, 1.0
    %v3161 = vlog2.pop %v3160
    %v3162 = vmul.f32 %v3161, 0.6931472
    %v3163 = vmul.f32 -0.5, %v3105
    %v3164 = vadd.f32 %v3163, 1.0
    %v3165 = vmul.f32 %v3164, %v3105
    %v3166 = vand.u32 2147483647, %v3105
    %vm3167 = vcmp.lt.f32.partialorder %v3166, 0.0004427343
    %v3168 = vsel %vm3167, %v3165, %v3162
    %v3169 = vadd.f32 %v3107, 1.0
    %v3170 = vlog2.pop %v3169
    %v3171 = vmul.f32 %v3170, 0.6931472
    %v3172 = vmul.f32 -0.5, %v3107
    %v3173 = vadd.f32 %v3172, 1.0
    %v3174 = vmul.f32 %v3173, %v3107
    %v3175 = vand.u32 2147483647, %v3107
    %vm3176 = vcmp.lt.f32.partialorder %v3175, 0.0004427343
    %v3177 = vsel %vm3176, %v3174, %v3171
    %v3178 = vadd.f32 %v3109, 1.0
    %v3179 = vlog2.pop %v3178
    %v3180 = vmul.f32 %v3179, 0.6931472
    %v3181 = vmul.f32 -0.5, %v3109
    %v3182 = vadd.f32 %v3181, 1.0
    %v3183 = vmul.f32 %v3182, %v3109
    %v3184 = vand.u32 2147483647, %v3109
    %vm3185 = vcmp.lt.f32.partialorder %v3184, 0.0004427343
    %v3186 = vsel %vm3185, %v3183, %v3180
    %v3187 = vadd.f32 %v3111, 1.0
    %v3188 = vlog2.pop %v3187
    %v3189 = vmul.f32 %v3188, 0.6931472
    %v3190 = vmul.f32 -0.5, %v3111
    %v3191 = vadd.f32 %v3190, 1.0
    %v3192 = vmul.f32 %v3191, %v3111
    %v3193 = vand.u32 2147483647, %v3111
    %vm3194 = vcmp.lt.f32.partialorder %v3193, 0.0004427343
    %v3195 = vsel %vm3194, %v3192, %v3189
    %v3196 = vadd.f32 %v3113, 1.0
    %v3197 = vlog2.pop %v3196
    %v3198 = vmul.f32 %v3197, 0.6931472
    %v3199 = vmul.f32 -0.5, %v3113
    %v3200 = vadd.f32 %v3199, 1.0
    %v3201 = vmul.f32 %v3200, %v3113
    %v3202 = vand.u32 2147483647, %v3113
    %vm3203 = vcmp.lt.f32.partialorder %v3202, 0.0004427343
    %v3204 = vsel %vm3203, %v3201, %v3198
    %v3205 = vadd.f32 %v3115, 1.0
    %v3206 = vlog2.pop %v3205
    %v3207 = vmul.f32 %v3206, 0.6931472
    %v3208 = vmul.f32 -0.5, %v3115
    %v3209 = vadd.f32 %v3208, 1.0
    %v3210 = vmul.f32 %v3209, %v3115
    %v3211 = vand.u32 2147483647, %v3115
    %vm3212 = vcmp.lt.f32.partialorder %v3211, 0.0004427343
    %v3213 = vsel %vm3212, %v3210, %v3207
    %v3214 = vadd.f32 %v3117, 1.0
    %v3215 = vlog2.pop %v3214
    %v3216 = vmul.f32 %v3215, 0.6931472
    %v3217 = vmul.f32 -0.5, %v3117
    %v3218 = vadd.f32 %v3217, 1.0
    %v3219 = vmul.f32 %v3218, %v3117
    %v3220 = vand.u32 2147483647, %v3117
    %vm3221 = vcmp.lt.f32.partialorder %v3220, 0.0004427343
    %v3222 = vsel %vm3221, %v3219, %v3216
    %v3223 = vadd.f32 %v3119, 1.0
    %v3224 = vlog2.pop %v3223
    %v3225 = vmul.f32 %v3224, 0.6931472
    %v3226 = vmul.f32 -0.5, %v3119
    %v3227 = vadd.f32 %v3226, 1.0
    %v3228 = vmul.f32 %v3227, %v3119
    %v3229 = vand.u32 2147483647, %v3119
    %vm3230 = vcmp.lt.f32.partialorder %v3229, 0.0004427343
    %v3231 = vsel %vm3230, %v3228, %v3225
    %v3232 = vadd.f32 %v3121, 1.0
    %v3233 = vlog2.pop %v3232
    %v3234 = vmul.f32 %v3233, 0.6931472
    %v3235 = vmul.f32 -0.5, %v3121
    %v3236 = vadd.f32 %v3235, 1.0
    %v3237 = vmul.f32 %v3236, %v3121
    %v3238 = vand.u32 2147483647, %v3121
    %vm3239 = vcmp.lt.f32.partialorder %v3238, 0.0004427343
    %v3240 = vsel %vm3239, %v3237, %v3234
    %v3241 = vadd.f32 %v3123, 1.0
    %v3242 = vlog2.pop %v3241
    %v3243 = vmul.f32 %v3242, 0.6931472
    %v3244 = vmul.f32 -0.5, %v3123
    %v3245 = vadd.f32 %v3244, 1.0
    %v3246 = vmul.f32 %v3245, %v3123
    %v3247 = vand.u32 2147483647, %v3123
    %vm3248 = vcmp.lt.f32.partialorder %v3247, 0.0004427343
    %v3249 = vsel %vm3248, %v3246, %v3243
    %v3250 = vmul.f32 %v3132, 0.01
    %v3251 = vmul.f32 %v3141, 0.01
    %v3252 = vmul.f32 %v3150, 0.01
    %v3253 = vmul.f32 %v3159, 0.01
    %v3254 = vmul.f32 %v3168, 0.01
    %v3255 = vmul.f32 %v3177, 0.01
    %v3256 = vmul.f32 %v3186, 0.01
    %v3257 = vmul.f32 %v3195, 0.01
    %v3258 = vmul.f32 %v3204, 0.01
    %v3259 = vmul.f32 %v3213, 0.01
    %v3260 = vmul.f32 %v3222, 0.01
    %v3261 = vmul.f32 %v3231, 0.01
    %v3262 = vmul.f32 %v3240, 0.01
    %v3263 = vmul.f32 %v3249, 0.01
    %v3264 = vsel %vm3068, %v3040, %v3250
    %v3265 = vsel %vm3069, %v3041, %v3251
    %v3266 = vsel %vm3070, %v3042, %v3252
    %v3267 = vsel %vm3071, %v3043, %v3253
    %v3268 = vsel %vm3072, %v3044, %v3254
    %v3269 = vsel %vm3073, %v3045, %v3255
    %v3270 = vsel %vm3074, %v3046, %v3256
    %v3271 = vsel %vm3075, %v3047, %v3257
    %v3272 = vsel %vm3076, %v3048, %v3258
    %v3273 = vsel %vm3077, %v3049, %v3259
    %v3274 = vsel %vm3078, %v3050, %v3260
    %v3275 = vsel %vm3079, %v3051, %v3261
    %v3276 = vsel %vm3080, %v3052, %v3262
    %v3277 = vsel %vm3081, %v3053, %v3263
    %3278 = vst [vmem:[#allocation2] sm:$0xff] %v3264
    %3279 = vst [vmem:[#allocation2 + $0x8] sm:$0xff] %v3265
    %3280 = vst [vmem:[#allocation2 + $0x10] sm:$0xff] %v3266
    %3281 = vst [vmem:[#allocation2 + $0x18] sm:$0xff] %v3267
    %3282 = vst [vmem:[#allocation2 + $0x20] sm:$0xff] %v3268
    %3283 = vst [vmem:[#allocation2 + $0x28] sm:$0xff] %v3269
    %3284 = vst [vmem:[#allocation2 + $0x30] sm:$0xff] %v3270
    %3285 = vst [vmem:[#allocation2 + $0x38] sm:$0xff] %v3271
    %3286 = vst [vmem:[#allocation2 + $0x40] sm:$0xff] %v3272
    %3287 = vst [vmem:[#allocation2 + $0x48] sm:$0xff] %v3273
    %3288 = vst [vmem:[#allocation2 + $0x50] sm:$0xff] %v3274
    %3289 = vst [vmem:[#allocation2 + $0x58] sm:$0xff] %v3275
    %3290 = vst [vmem:[#allocation2 + $0x60] sm:$0xff] %v3276
    %3291 = vst [vmem:[#allocation2 + $0x68] sm:$0xff] %v3277
    %v3292 = vadd.f32 %v3097, 1.0
    %v3293 = vadd.f32 %v3099, 1.0
    %v3294 = vadd.f32 %v3101, 1.0
    %v3295 = vadd.f32 %v3103, 1.0
    %v3296 = vadd.f32 %v3105, 1.0
    %v3297 = vadd.f32 %v3107, 1.0
    %v3298 = vadd.f32 %v3109, 1.0
    %v3299 = vadd.f32 %v3111, 1.0
    %v3300 = vadd.f32 %v3113, 1.0
    %v3301 = vadd.f32 %v3115, 1.0
    %v3302 = vadd.f32 %v3117, 1.0
    %v3303 = vadd.f32 %v3119, 1.0
    %v3304 = vadd.f32 %v3121, 1.0
    %v3305 = vadd.f32 %v3123, 1.0
    %v3306 = vrcp.pop %v3292
    %v3307 = vmul.f32 %v3097, %v3306
    %v3308 = vrcp.pop %v3293
    %v3309 = vmul.f32 %v3099, %v3308
    %v3310 = vrcp.pop %v3294
    %v3311 = vmul.f32 %v3101, %v3310
    %v3312 = vrcp.pop %v3295
    %v3313 = vmul.f32 %v3103, %v3312
    %v3314 = vrcp.pop %v3296
    %v3315 = vmul.f32 %v3105, %v3314
    %v3316 = vrcp.pop %v3297
    %v3317 = vmul.f32 %v3107, %v3316
    %v3318 = vrcp.pop %v3298
    %v3319 = vmul.f32 %v3109, %v3318
    %v3320 = vrcp.pop %v3299
    %v3321 = vmul.f32 %v3111, %v3320
    %v3322 = vrcp.pop %v3300
    %v3323 = vmul.f32 %v3113, %v3322
    %v3324 = vrcp.pop %v3301
    %v3325 = vmul.f32 %v3115, %v3324
    %v3326 = vrcp.pop %v3302
    %v3327 = vmul.f32 %v3117, %v3326
    %v3328 = vrcp.pop %v3303
    %v3329 = vmul.f32 %v3119, %v3328
    %v3330 = vrcp.pop %v3304
    %v3331 = vmul.f32 %v3121, %v3330
    %v3332 = vrcp.pop %v3305
    %v3333 = vmul.f32 %v3123, %v3332
    %v3334 = vsel %vm3068, 1.0, %v3307
    %v3335 = vsel %vm3069, 1.0, %v3309
    %v3336 = vsel %vm3070, 1.0, %v3311
    %v3337 = vsel %vm3071, 1.0, %v3313
    %v3338 = vsel %vm3072, 1.0, %v3315
    %v3339 = vsel %vm3073, 1.0, %v3317
    %v3340 = vsel %vm3074, 1.0, %v3319
    %v3341 = vsel %vm3075, 1.0, %v3321
    %v3342 = vsel %vm3076, 1.0, %v3323
    %v3343 = vsel %vm3077, 1.0, %v3325
    %v3344 = vsel %vm3078, 1.0, %v3327
    %v3345 = vsel %vm3079, 1.0, %v3329
    %v3346 = vsel %vm3080, 1.0, %v3331
    %v3347 = vsel %vm3081, 1.0, %v3333
    %v3348 = vmul.f32 %v2904, %v3334
    %v3349 = vmul.f32 %v2906, %v3335
    %v3350 = vmul.f32 %v2910, %v3336
    %v3351 = vmul.f32 %v2912, %v3337
    %v3352 = vmul.f32 %v2916, %v3338
    %v3353 = vmul.f32 %v2918, %v3339
    %v3354 = vmul.f32 %v2922, %v3340
    %v3355 = vmul.f32 %v2924, %v3341
    %v3356 = vmul.f32 %v2928, %v3342
    %v3357 = vmul.f32 %v2930, %v3343
    %v3358 = vmul.f32 %v2934, %v3344
    %v3359 = vmul.f32 %v2936, %v3345
    %v3360 = vmul.f32 %v2940, %v3346
    %v3361 = vmul.f32 %v2942, %v3347
    %v3362 = vmul.f32 %v2946, %v3334
    %v3363 = vmul.f32 %v2948, %v3335
    %v3364 = vmul.f32 %v2952, %v3336
    %v3365 = vmul.f32 %v2954, %v3337
    %v3366 = vmul.f32 %v2958, %v3338
    %v3367 = vmul.f32 %v2960, %v3339
    %v3368 = vmul.f32 %v2964, %v3340
    %v3369 = vmul.f32 %v2966, %v3341
    %v3370 = vmul.f32 %v2970, %v3342
    %v3371 = vmul.f32 %v2972, %v3343
    %v3372 = vmul.f32 %v2976, %v3344
    %v3373 = vmul.f32 %v2978, %v3345
    %v3374 = vmul.f32 %v2982, %v3346
    %v3375 = vmul.f32 %v2984, %v3347
    %v3376 = vmul.f32 %v2988, %v3334
    %v3377 = vmul.f32 %v2990, %v3335
    %v3378 = vmul.f32 %v2994, %v3336
    %v3379 = vmul.f32 %v2996, %v3337
    %v3380 = vmul.f32 %v3000, %v3338
    %v3381 = vmul.f32 %v3002, %v3339
    %v3382 = vmul.f32 %v3006, %v3340
    %v3383 = vmul.f32 %v3008, %v3341
    %v3384 = vmul.f32 %v3012, %v3342
    %v3385 = vmul.f32 %v3014, %v3343
    %v3386 = vmul.f32 %v3018, %v3344
    %v3387 = vmul.f32 %v3020, %v3345
    %v3388 = vmul.f32 %v3024, %v3346
    %v3389 = vmul.f32 %v3026, %v3347
    %3390 = vst [vmem:[#allocation2 + $0x70] sm:$0xff] %v3348
    %3391 = vst [vmem:[#allocation2 + $0x78] sm:$0xff] %v3349
    %3392 = vst [vmem:[#allocation2 + $0x80] sm:$0xff] %v3350
    %3393 = vst [vmem:[#allocation2 + $0x88] sm:$0xff] %v3351
    %3394 = vst [vmem:[#allocation2 + $0x90] sm:$0xff] %v3352
    %3395 = vst [vmem:[#allocation2 + $0x98] sm:$0xff] %v3353
    %3396 = vst [vmem:[#allocation2 + $0xa0] sm:$0xff] %v3354
    %3397 = vst [vmem:[#allocation2 + $0xa8] sm:$0xff] %v3355
    %3398 = vst [vmem:[#allocation2 + $0xb0] sm:$0xff] %v3356
    %3399 = vst [vmem:[#allocation2 + $0xb8] sm:$0xff] %v3357
    %3400 = vst [vmem:[#allocation2 + $0xc0] sm:$0xff] %v3358
    %3401 = vst [vmem:[#allocation2 + $0xc8] sm:$0xff] %v3359
    %3402 = vst [vmem:[#allocation2 + $0xd0] sm:$0xff] %v3360
    %3403 = vst [vmem:[#allocation2 + $0xd8] sm:$0xff] %v3361
    %3404 = vst [vmem:[#allocation2 + $0xe0] sm:$0xff] %v3362
    %3405 = vst [vmem:[#allocation2 + $0xe8] sm:$0xff] %v3363
    %3406 = vst [vmem:[#allocation2 + $0xf0] sm:$0xff] %v3364
    %3407 = vst [vmem:[#allocation2 + $0xf8] sm:$0xff] %v3365
    %3408 = vst [vmem:[#allocation2 + $0x100] sm:$0xff] %v3366
    %3409 = vst [vmem:[#allocation2 + $0x108] sm:$0xff] %v3367
    %3410 = vst [vmem:[#allocation2 + $0x110] sm:$0xff] %v3368
    %3411 = vst [vmem:[#allocation2 + $0x118] sm:$0xff] %v3369
    %3412 = vst [vmem:[#allocation2 + $0x120] sm:$0xff] %v3370
    %3413 = vst [vmem:[#allocation2 + $0x128] sm:$0xff] %v3371
    %3414 = vst [vmem:[#allocation2 + $0x130] sm:$0xff] %v3372
    %3415 = vst [vmem:[#allocation2 + $0x138] sm:$0xff] %v3373
    %3416 = vst [vmem:[#allocation2 + $0x140] sm:$0xff] %v3374
    %3417 = vst [vmem:[#allocation2 + $0x148] sm:$0xff] %v3375
    %3418 = vst [vmem:[#allocation2 + $0x150] sm:$0xff] %v3376
    %3419 = vst [vmem:[#allocation2 + $0x158] sm:$0xff] %v3377
    %3420 = vst [vmem:[#allocation2 + $0x160] sm:$0xff] %v3378
    %3421 = vst [vmem:[#allocation2 + $0x168] sm:$0xff] %v3379
    %3422 = vst [vmem:[#allocation2 + $0x170] sm:$0xff] %v3380
    %3423 = vst [vmem:[#allocation2 + $0x178] sm:$0xff] %v3381
    %3424 = vst [vmem:[#allocation2 + $0x180] sm:$0xff] %v3382
    %3425 = vst [vmem:[#allocation2 + $0x188] sm:$0xff] %v3383
    %3426 = vst [vmem:[#allocation2 + $0x190] sm:$0xff] %v3384
    %3427 = vst [vmem:[#allocation2 + $0x198] sm:$0xff] %v3385
    %3428 = vst [vmem:[#allocation2 + $0x1a0] sm:$0xff] %v3386
    %3429 = vst [vmem:[#allocation2 + $0x1a8] sm:$0xff] %v3387
    %3430 = vst [vmem:[#allocation2 + $0x1b0] sm:$0xff] %v3388
    %3431 = vst [vmem:[#allocation2 + $0x1b8] sm:$0xff] %v3389
    %v3432 = vld [vmem:[#allocation2] sm:$0xff]
    %v3433 = vld [vmem:[#allocation2 + $0x8] sm:$0xff]
    %v3434 = vld [vmem:[#allocation2 + $0x10] sm:$0xff]
    %v3435 = vld [vmem:[#allocation2 + $0x18] sm:$0xff]
    %v3436 = vld [vmem:[#allocation2 + $0x20] sm:$0xff]
    %v3437 = vld [vmem:[#allocation2 + $0x28] sm:$0xff]
    %v3438 = vld [vmem:[#allocation2 + $0x30] sm:$0xff]
    %v3439 = vld [vmem:[#allocation2 + $0x38] sm:$0xff]
    %v3440 = vld [vmem:[#allocation2 + $0x40] sm:$0xff]
    %v3441 = vld [vmem:[#allocation2 + $0x48] sm:$0xff]
    %v3442 = vld [vmem:[#allocation2 + $0x50] sm:$0xff]
    %v3443 = vld [vmem:[#allocation2 + $0x58] sm:$0xff]
    %v3444 = vld [vmem:[#allocation2 + $0x60] sm:$0xff]
    %v3445 = vld [vmem:[#allocation2 + $0x68] sm:$0xff]
    %v3446 = vld [vmem:[#allocation2 + $0x70] sm:$0xff]
    %v3447 = vld [vmem:[#allocation2 + $0x78] sm:$0xff]
    %v3448 = vld [vmem:[#allocation2 + $0x80] sm:$0xff]
    %v3449 = vld [vmem:[#allocation2 + $0x88] sm:$0xff]
    %v3450 = vld [vmem:[#allocation2 + $0x90] sm:$0xff]
    %v3451 = vld [vmem:[#allocation2 + $0x98] sm:$0xff]
    %v3452 = vld [vmem:[#allocation2 + $0xa0] sm:$0xff]
    %v3453 = vld [vmem:[#allocation2 + $0xa8] sm:$0xff]
    %v3454 = vld [vmem:[#allocation2 + $0xb0] sm:$0xff]
    %v3455 = vld [vmem:[#allocation2 + $0xb8] sm:$0xff]
    %v3456 = vld [vmem:[#allocation2 + $0xc0] sm:$0xff]
    %v3457 = vld [vmem:[#allocation2 + $0xc8] sm:$0xff]
    %v3458 = vld [vmem:[#allocation2 + $0xd0] sm:$0xff]
    %v3459 = vld [vmem:[#allocation2 + $0xd8] sm:$0xff]
    %v3460 = vld [vmem:[#allocation2 + $0xe0] sm:$0xff]
    %v3461 = vld [vmem:[#allocation2 + $0xe8] sm:$0xff]
    %v3462 = vld [vmem:[#allocation2 + $0xf0] sm:$0xff]
    %v3463 = vld [vmem:[#allocation2 + $0xf8] sm:$0xff]
    %v3464 = vld [vmem:[#allocation2 + $0x100] sm:$0xff]
    %v3465 = vld [vmem:[#allocation2 + $0x108] sm:$0xff]
    %v3466 = vld [vmem:[#allocation2 + $0x110] sm:$0xff]
    %v3467 = vld [vmem:[#allocation2 + $0x118] sm:$0xff]
    %v3468 = vld [vmem:[#allocation2 + $0x120] sm:$0xff]
    %v3469 = vld [vmem:[#allocation2 + $0x128] sm:$0xff]
    %v3470 = vld [vmem:[#allocation2 + $0x130] sm:$0xff]
    %v3471 = vld [vmem:[#allocation2 + $0x138] sm:$0xff]
    %v3472 = vld [vmem:[#allocation2 + $0x140] sm:$0xff]
    %v3473 = vld [vmem:[#allocation2 + $0x148] sm:$0xff]
    %v3474 = vld [vmem:[#allocation2 + $0x150] sm:$0xff]
    %v3475 = vld [vmem:[#allocation2 + $0x158] sm:$0xff]
    %v3476 = vld [vmem:[#allocation2 + $0x160] sm:$0xff]
    %v3477 = vld [vmem:[#allocation2 + $0x168] sm:$0xff]
    %v3478 = vld [vmem:[#allocation2 + $0x170] sm:$0xff]
    %v3479 = vld [vmem:[#allocation2 + $0x178] sm:$0xff]
    %v3480 = vld [vmem:[#allocation2 + $0x180] sm:$0xff]
    %v3481 = vld [vmem:[#allocation2 + $0x188] sm:$0xff]
    %v3482 = vld [vmem:[#allocation2 + $0x190] sm:$0xff]
    %v3483 = vld [vmem:[#allocation2 + $0x198] sm:$0xff]
    %v3484 = vld [vmem:[#allocation2 + $0x1a0] sm:$0xff]
    %v3485 = vld [vmem:[#allocation2 + $0x1a8] sm:$0xff]
    %v3486 = vld [vmem:[#allocation2 + $0x1b0] sm:$0xff]
    %v3487 = vld [vmem:[#allocation2 + $0x1b8] sm:$0xff]
    %3488 = vmatprep.subr.mxu0 0.0
    %3489 = vmatpush1.msra.mxu0 %v207
    %3490 = vmatprep.subr.mxu0 0.0
    %3491 = vmatpush1.msra.mxu0 %v206
    %3492 = vmatprep.subr.mxu0 0.0
    %3493 = vmatpush1.msra.mxu0 %v205
    %3494 = vmatprep.subr.mxu0 0.0
    %3495 = vmatpush1.msra.mxu0 %v204
    %3496 = vmatprep.subr.mxu0 0.0
    %3497 = vmatpush1.msra.mxu0 %v203
    %3498 = vmatprep.subr.mxu0 0.0
    %3499 = vmatpush1.msra.mxu0 %v202
    %3500 = vmatprep.subr.mxu0 0.0
    %3501 = vmatpush1.msra.mxu0 %v201
    %3502 = vmatprep.subr.mxu0 0.0
    %3503 = vmatpush1.msra.mxu0 %v200
    %3504 = vmatprep.subr.mxu0 0.0
    %3505 = vmatpush1.msra.mxu0 %v199
    %3506 = vmatprep.subr.mxu0 0.0
    %3507 = vmatpush1.msra.mxu0 %v198
    %3508 = vmatprep.subr.mxu0 0.0
    %3509 = vmatpush1.msra.mxu0 %v197
    %3510 = vmatprep.subr.mxu0 0.0
    %3511 = vmatpush1.msra.mxu0 %v196
    %3512 = vmatprep.subr.mxu0 0.0
    %3513 = vmatpush1.msra.mxu0 %v195
    %3514 = vmatprep.subr.mxu0 0.0
    %3515 = vmatpush1.msra.mxu0 %v194
    %3516 = vmatprep.subr.mxu0 0.0
    %3517 = vmatpush1.msra.mxu0 %v193
    %3518 = vmatprep.subr.mxu0 0.0
    %3519 = vmatpush1.msra.mxu0 %v192
    %3520 = vmatprep.subr.mxu0 0.0
    %3521 = vmatpush2.msra.mxu0 %v223
    %3522 = vmatprep.subr.mxu0 0.0
    %3523 = vmatpush2.msra.mxu0 %v222
    %3524 = vmatprep.subr.mxu0 0.0
    %3525 = vmatpush2.msra.mxu0 %v221
    %3526 = vmatprep.subr.mxu0 0.0
    %3527 = vmatpush2.msra.mxu0 %v220
    %3528 = vmatprep.subr.mxu0 0.0
    %3529 = vmatpush2.msra.mxu0 %v219
    %3530 = vmatprep.subr.mxu0 0.0
    %3531 = vmatpush2.msra.mxu0 %v218
    %3532 = vmatprep.subr.mxu0 0.0
    %3533 = vmatpush2.msra.mxu0 %v217
    %3534 = vmatprep.subr.mxu0 0.0
    %3535 = vmatpush2.msra.mxu0 %v216
    %3536 = vmatprep.subr.mxu0 0.0
    %3537 = vmatpush2.msra.mxu0 %v215
    %3538 = vmatprep.subr.mxu0 0.0
    %3539 = vmatpush2.msra.mxu0 %v214
    %3540 = vmatprep.subr.mxu0 0.0
    %3541 = vmatpush2.msra.mxu0 %v213
    %3542 = vmatprep.subr.mxu0 0.0
    %3543 = vmatpush2.msra.mxu0 %v212
    %3544 = vmatprep.subr.mxu0 0.0
    %3545 = vmatpush2.msra.mxu0 %v211
    %3546 = vmatprep.subr.mxu0 0.0
    %3547 = vmatpush2.msra.mxu0 %v210
    %3548 = vmatprep.subr.mxu0 0.0
    %3549 = vmatpush2.msra.mxu0 %v209
    %3550 = vmatprep.subr.mxu0 0.0
    %3551 = vmatpush2.msra.mxu0 %v208
    %3552 = vmatprep.mubr.f32.mxu0 %v3433
    %3553 = vmatmul.mubr.f32.gmra.mxu0 %v3432
    %v3554 = vpop.f32.mrf.mxu0
    %v3555 = vadd.f32 0.0, %v3554
    %v3556 = vpop.f32.mrf.mxu0
    %3557 = vmatprep.mubr.f32.mxu0 %v3435
    %3558 = vmatmul.mubr.f32.gmra.mxu0 %v3434
    %v3559 = vpop.f32.mrf.mxu0
    %v3560 = vadd.f32 0.0, %v3559
    %v3561 = vpop.f32.mrf.mxu0
    %3562 = vmatprep.mubr.f32.mxu0 %v3437
    %3563 = vmatmul.mubr.f32.gmra.mxu0 %v3436
    %v3564 = vpop.f32.mrf.mxu0
    %v3565 = vadd.f32 0.0, %v3564
    %v3566 = vpop.f32.mrf.mxu0
    %3567 = vmatprep.mubr.f32.mxu0 %v3439
    %3568 = vmatmul.mubr.f32.gmra.mxu0 %v3438
    %v3569 = vpop.f32.mrf.mxu0
    %v3570 = vadd.f32 0.0, %v3569
    %v3571 = vpop.f32.mrf.mxu0
    %3572 = vmatprep.mubr.f32.mxu0 %v3441
    %3573 = vmatmul.mubr.f32.gmra.mxu0 %v3440
    %v3574 = vpop.f32.mrf.mxu0
    %v3575 = vadd.f32 0.0, %v3574
    %v3576 = vpop.f32.mrf.mxu0
    %3577 = vmatprep.mubr.f32.mxu0 %v3443
    %3578 = vmatmul.mubr.f32.gmra.mxu0 %v3442
    %v3579 = vpop.f32.mrf.mxu0
    %v3580 = vadd.f32 0.0, %v3579
    %v3581 = vpop.f32.mrf.mxu0
    %3582 = vmatprep.mubr.f32.mxu0 %v3445
    %3583 = vmatmul.mubr.f32.gmra.mxu0 %v3444
    %v3584 = vpop.f32.mrf.mxu0
    %v3585 = vadd.f32 0.0, %v3584
    %v3586 = vpop.f32.mrf.mxu0
    %3587 = vmatprep.mubr.f32.mxu0 %v3447
    %3588 = vmatmul.mubr.f32.gmra.mxu0 %v3446
    %v3589 = vpop.f32.mrf.mxu0
    %v3590 = vadd.f32 0.0, %v3589
    %v3591 = vpop.f32.mrf.mxu0
    %3592 = vmatprep.mubr.f32.mxu0 %v3449
    %3593 = vmatmul.mubr.f32.gmra.mxu0 %v3448
    %v3594 = vpop.f32.mrf.mxu0
    %v3595 = vadd.f32 0.0, %v3594
    %v3596 = vpop.f32.mrf.mxu0
    %3597 = vmatprep.mubr.f32.mxu0 %v3451
    %3598 = vmatmul.mubr.f32.gmra.mxu0 %v3450
    %v3599 = vpop.f32.mrf.mxu0
    %v3600 = vadd.f32 0.0, %v3599
    %v3601 = vpop.f32.mrf.mxu0
    %3602 = vmatprep.mubr.f32.mxu0 %v3453
    %3603 = vmatmul.mubr.f32.gmra.mxu0 %v3452
    %v3604 = vpop.f32.mrf.mxu0
    %v3605 = vadd.f32 0.0, %v3604
    %v3606 = vpop.f32.mrf.mxu0
    %3607 = vmatprep.mubr.f32.mxu0 %v3455
    %3608 = vmatmul.mubr.f32.gmra.mxu0 %v3454
    %v3609 = vpop.f32.mrf.mxu0
    %v3610 = vadd.f32 0.0, %v3609
    %v3611 = vpop.f32.mrf.mxu0
    %3612 = vmatprep.mubr.f32.mxu0 %v3457
    %3613 = vmatmul.mubr.f32.gmra.mxu0 %v3456
    %v3614 = vpop.f32.mrf.mxu0
    %v3615 = vadd.f32 0.0, %v3614
    %v3616 = vpop.f32.mrf.mxu0
    %3617 = vmatprep.mubr.f32.mxu0 %v3459
    %3618 = vmatmul.mubr.f32.gmra.mxu0 %v3458
    %v3619 = vpop.f32.mrf.mxu0
    %v3620 = vadd.f32 0.0, %v3619
    %v3621 = vpop.f32.mrf.mxu0
    %3622 = vmatprep.mubr.f32.mxu0 %v3461
    %3623 = vmatmul.mubr.f32.gmra.mxu0 %v3460
    %v3624 = vpop.f32.mrf.mxu0
    %v3625 = vadd.f32 0.0, %v3624
    %v3626 = vpop.f32.mrf.mxu0
    %3627 = vmatprep.mubr.f32.mxu0 %v3463
    %3628 = vmatmul.mubr.f32.gmra.mxu0 %v3462
    %v3629 = vpop.f32.mrf.mxu0
    %v3630 = vadd.f32 0.0, %v3629
    %v3631 = vpop.f32.mrf.mxu0
    %3632 = vmatprep.mubr.f32.mxu0 %v3465
    %3633 = vmatmul.mubr.f32.gmra.mxu0 %v3464
    %v3634 = vpop.f32.mrf.mxu0
    %v3635 = vadd.f32 0.0, %v3634
    %v3636 = vpop.f32.mrf.mxu0
    %3637 = vmatprep.mubr.f32.mxu0 %v3467
    %3638 = vmatmul.mubr.f32.gmra.mxu0 %v3466
    %v3639 = vpop.f32.mrf.mxu0
    %v3640 = vadd.f32 0.0, %v3639
    %v3641 = vpop.f32.mrf.mxu0
    %3642 = vmatprep.mubr.f32.mxu0 %v3469
    %3643 = vmatmul.mubr.f32.gmra.mxu0 %v3468
    %v3644 = vpop.f32.mrf.mxu0
    %v3645 = vadd.f32 0.0, %v3644
    %v3646 = vpop.f32.mrf.mxu0
    %3647 = vmatprep.mubr.f32.mxu0 %v3471
    %3648 = vmatmul.mubr.f32.gmra.mxu0 %v3470
    %v3649 = vpop.f32.mrf.mxu0
    %v3650 = vadd.f32 0.0, %v3649
    %v3651 = vpop.f32.mrf.mxu0
    %3652 = vmatprep.mubr.f32.mxu0 %v3473
    %3653 = vmatmul.mubr.f32.gmra.mxu0 %v3472
    %v3654 = vpop.f32.mrf.mxu0
    %v3655 = vadd.f32 0.0, %v3654
    %v3656 = vpop.f32.mrf.mxu0
    %3657 = vmatprep.mubr.f32.mxu0 %v3475
    %3658 = vmatmul.mubr.f32.gmra.mxu0 %v3474
    %v3659 = vpop.f32.mrf.mxu0
    %v3660 = vadd.f32 0.0, %v3659
    %v3661 = vpop.f32.mrf.mxu0
    %3662 = vmatprep.mubr.f32.mxu0 %v3477
    %3663 = vmatmul.mubr.f32.gmra.mxu0 %v3476
    %v3664 = vpop.f32.mrf.mxu0
    %v3665 = vadd.f32 0.0, %v3664
    %v3666 = vpop.f32.mrf.mxu0
    %3667 = vmatprep.mubr.f32.mxu0 %v3479
    %3668 = vmatmul.mubr.f32.gmra.mxu0 %v3478
    %v3669 = vpop.f32.mrf.mxu0
    %v3670 = vadd.f32 0.0, %v3669
    %v3671 = vpop.f32.mrf.mxu0
    %3672 = vmatprep.mubr.f32.mxu0 %v3481
    %3673 = vmatmul.mubr.f32.gmra.mxu0 %v3480
    %v3674 = vpop.f32.mrf.mxu0
    %v3675 = vadd.f32 0.0, %v3674
    %v3676 = vpop.f32.mrf.mxu0
    %3677 = vmatprep.mubr.f32.mxu0 %v3483
    %3678 = vmatmul.mubr.f32.gmra.mxu0 %v3482
    %v3679 = vpop.f32.mrf.mxu0
    %v3680 = vadd.f32 0.0, %v3679
    %v3681 = vpop.f32.mrf.mxu0
    %3682 = vmatprep.mubr.f32.mxu0 %v3485
    %3683 = vmatmul.mubr.f32.gmra.mxu0 %v3484
    %v3684 = vpop.f32.mrf.mxu0
    %v3685 = vadd.f32 0.0, %v3684
    %v3686 = vpop.f32.mrf.mxu0
    %3687 = vmatprep.mubr.f32.mxu0 %v3487
    %3688 = vmatmul.mubr.f32.gmra.mxu0 %v3486
    %v3689 = vpop.f32.mrf.mxu0
    %v3690 = vadd.f32 0.0, %v3689
    %v3691 = vpop.f32.mrf.mxu0
    %3692 = vdwg.mxu0
    %v3693 = vld [vmem:[#allocation6 + $0x2] sm:$0x1]
    %v3695 = vlaneseq
    %v3696 = vshrl.u32 %v3695, 7
    %v3697 = vsub.s32 0, %v3696
    %v3698 = vrot.slane %v3693, %v3697
    %v3700 = vadd.f32 %v3555, %v3698
    %v3701 = vadd.f32 %v3560, %v3698
    %v3702 = vadd.f32 %v3565, %v3698
    %v3703 = vadd.f32 %v3570, %v3698
    %v3704 = vadd.f32 %v3575, %v3698
    %v3705 = vadd.f32 %v3580, %v3698
    %v3706 = vadd.f32 %v3585, %v3698
    %v3707 = vmul.f32 %v3700, 100.0
    %v3708 = vmul.f32 %v3701, 100.0
    %v3709 = vmul.f32 %v3702, 100.0
    %v3710 = vmul.f32 %v3703, 100.0
    %v3711 = vmul.f32 %v3704, 100.0
    %v3712 = vmul.f32 %v3705, 100.0
    %v3713 = vmul.f32 %v3706, 100.0
    %vm3714 = vcmp.gt.f32.partialorder %v3707, 20.0
    %vm3715 = vcmp.gt.f32.partialorder %v3708, 20.0
    %vm3716 = vcmp.gt.f32.partialorder %v3709, 20.0
    %vm3717 = vcmp.gt.f32.partialorder %v3710, 20.0
    %vm3718 = vcmp.gt.f32.partialorder %v3711, 20.0
    %vm3719 = vcmp.gt.f32.partialorder %v3712, 20.0
    %vm3720 = vcmp.gt.f32.partialorder %v3713, 20.0
    %v3721 = vmin.f32 %v3707, 20.0
    %v3722 = vmin.f32 %v3708, 20.0
    %v3723 = vmin.f32 %v3709, 20.0
    %v3724 = vmin.f32 %v3710, 20.0
    %v3725 = vmin.f32 %v3711, 20.0
    %v3726 = vmin.f32 %v3712, 20.0
    %v3727 = vmin.f32 %v3713, 20.0
    %v3728 = vmul.f32 %v3721, 1.442695
    %v3729 = vpow.pop %v3728
    %v3730 = vmul.f32 %v3722, 1.442695
    %v3731 = vpow.pop %v3730
    %v3732 = vmul.f32 %v3723, 1.442695
    %v3733 = vpow.pop %v3732
    %v3734 = vmul.f32 %v3724, 1.442695
    %v3735 = vpow.pop %v3734
    %v3736 = vmul.f32 %v3725, 1.442695
    %v3737 = vpow.pop %v3736
    %v3738 = vmul.f32 %v3726, 1.442695
    %v3739 = vpow.pop %v3738
    %v3740 = vmul.f32 %v3727, 1.442695
    %v3741 = vpow.pop %v3740
    %v3742 = vadd.f32 %v3729, 1.0
    %v3743 = vlog2.pop %v3742
    %v3744 = vmul.f32 %v3743, 0.6931472
    %v3745 = vmul.f32 -0.5, %v3729
    %v3746 = vadd.f32 %v3745, 1.0
    %v3747 = vmul.f32 %v3746, %v3729
    %v3748 = vand.u32 2147483647, %v3729
    %vm3749 = vcmp.lt.f32.partialorder %v3748, 0.0004427343
    %v3750 = vsel %vm3749, %v3747, %v3744
    %v3751 = vadd.f32 %v3731, 1.0
    %v3752 = vlog2.pop %v3751
    %v3753 = vmul.f32 %v3752, 0.6931472
    %v3754 = vmul.f32 -0.5, %v3731
    %v3755 = vadd.f32 %v3754, 1.0
    %v3756 = vmul.f32 %v3755, %v3731
    %v3757 = vand.u32 2147483647, %v3731
    %vm3758 = vcmp.lt.f32.partialorder %v3757, 0.0004427343
    %v3759 = vsel %vm3758, %v3756, %v3753
    %v3760 = vadd.f32 %v3733, 1.0
    %v3761 = vlog2.pop %v3760
    %v3762 = vmul.f32 %v3761, 0.6931472
    %v3763 = vmul.f32 -0.5, %v3733
    %v3764 = vadd.f32 %v3763, 1.0
    %v3765 = vmul.f32 %v3764, %v3733
    %v3766 = vand.u32 2147483647, %v3733
    %vm3767 = vcmp.lt.f32.partialorder %v3766, 0.0004427343
    %v3768 = vsel %vm3767, %v3765, %v3762
    %v3769 = vadd.f32 %v3735, 1.0
    %v3770 = vlog2.pop %v3769
    %v3771 = vmul.f32 %v3770, 0.6931472
    %v3772 = vmul.f32 -0.5, %v3735
    %v3773 = vadd.f32 %v3772, 1.0
    %v3774 = vmul.f32 %v3773, %v3735
    %v3775 = vand.u32 2147483647, %v3735
    %vm3776 = vcmp.lt.f32.partialorder %v3775, 0.0004427343
    %v3777 = vsel %vm3776, %v3774, %v3771
    %v3778 = vadd.f32 %v3737, 1.0
    %v3779 = vlog2.pop %v3778
    %v3780 = vmul.f32 %v3779, 0.6931472
    %v3781 = vmul.f32 -0.5, %v3737
    %v3782 = vadd.f32 %v3781, 1.0
    %v3783 = vmul.f32 %v3782, %v3737
    %v3784 = vand.u32 2147483647, %v3737
    %vm3785 = vcmp.lt.f32.partialorder %v3784, 0.0004427343
    %v3786 = vsel %vm3785, %v3783, %v3780
    %v3787 = vadd.f32 %v3739, 1.0
    %v3788 = vlog2.pop %v3787
    %v3789 = vmul.f32 %v3788, 0.6931472
    %v3790 = vmul.f32 -0.5, %v3739
    %v3791 = vadd.f32 %v3790, 1.0
    %v3792 = vmul.f32 %v3791, %v3739
    %v3793 = vand.u32 2147483647, %v3739
    %vm3794 = vcmp.lt.f32.partialorder %v3793, 0.0004427343
    %v3795 = vsel %vm3794, %v3792, %v3789
    %v3796 = vadd.f32 %v3741, 1.0
    %v3797 = vlog2.pop %v3796
    %v3798 = vmul.f32 %v3797, 0.6931472
    %v3799 = vmul.f32 -0.5, %v3741
    %v3800 = vadd.f32 %v3799, 1.0
    %v3801 = vmul.f32 %v3800, %v3741
    %v3802 = vand.u32 2147483647, %v3741
    %vm3803 = vcmp.lt.f32.partialorder %v3802, 0.0004427343
    %v3804 = vsel %vm3803, %v3801, %v3798
    %v3805 = vmul.f32 %v3750, 0.01
    %v3806 = vmul.f32 %v3759, 0.01
    %v3807 = vmul.f32 %v3768, 0.01
    %v3808 = vmul.f32 %v3777, 0.01
    %v3809 = vmul.f32 %v3786, 0.01
    %v3810 = vmul.f32 %v3795, 0.01
    %v3811 = vmul.f32 %v3804, 0.01
    %v3812 = vsel %vm3714, %v3700, %v3805
    %v3813 = vsel %vm3715, %v3701, %v3806
    %v3814 = vsel %vm3716, %v3702, %v3807
    %v3815 = vsel %vm3717, %v3703, %v3808
    %v3816 = vsel %vm3718, %v3704, %v3809
    %v3817 = vsel %vm3719, %v3705, %v3810
    %v3818 = vsel %vm3720, %v3706, %v3811
    %vm3819 = vcmask 818176
    %3820 = vst.msk [vmem:[#allocation3] sm:$0xff] %vm3819, %v3812
    %3821 = vst.msk [vmem:[#allocation3 + $0x10] sm:$0xff] %vm3819, %v3813
    %3822 = vst.msk [vmem:[#allocation3 + $0x20] sm:$0xff] %vm3819, %v3814
    %3823 = vst.msk [vmem:[#allocation3 + $0x30] sm:$0xff] %vm3819, %v3815
    %3824 = vst.msk [vmem:[#allocation3 + $0x40] sm:$0xff] %vm3819, %v3816
    %3825 = vst.msk [vmem:[#allocation3 + $0x50] sm:$0xff] %vm3819, %v3817
    %3826 = vst.msk [vmem:[#allocation3 + $0x60] sm:$0xff] %vm3819, %v3818
    %v3827 = vadd.f32 %v3729, 1.0
    %v3828 = vadd.f32 %v3731, 1.0
    %v3829 = vadd.f32 %v3733, 1.0
    %v3830 = vadd.f32 %v3735, 1.0
    %v3831 = vadd.f32 %v3737, 1.0
    %v3832 = vadd.f32 %v3739, 1.0
    %v3833 = vadd.f32 %v3741, 1.0
    %v3834 = vrcp.pop %v3827
    %v3835 = vmul.f32 %v3729, %v3834
    %v3836 = vrcp.pop %v3828
    %v3837 = vmul.f32 %v3731, %v3836
    %v3838 = vrcp.pop %v3829
    %v3839 = vmul.f32 %v3733, %v3838
    %v3840 = vrcp.pop %v3830
    %v3841 = vmul.f32 %v3735, %v3840
    %v3842 = vrcp.pop %v3831
    %v3843 = vmul.f32 %v3737, %v3842
    %v3844 = vrcp.pop %v3832
    %v3845 = vmul.f32 %v3739, %v3844
    %v3846 = vrcp.pop %v3833
    %v3847 = vmul.f32 %v3741, %v3846
    %v3848 = vsel %vm3714, 1.0, %v3835
    %v3849 = vsel %vm3715, 1.0, %v3837
    %v3850 = vsel %vm3716, 1.0, %v3839
    %v3851 = vsel %vm3717, 1.0, %v3841
    %v3852 = vsel %vm3718, 1.0, %v3843
    %v3853 = vsel %vm3719, 1.0, %v3845
    %v3854 = vsel %vm3720, 1.0, %v3847
    %v3855 = vmul.f32 %v3590, %v3848
    %v3856 = vmul.f32 %v3595, %v3849
    %v3857 = vmul.f32 %v3600, %v3850
    %v3858 = vmul.f32 %v3605, %v3851
    %v3859 = vmul.f32 %v3610, %v3852
    %v3860 = vmul.f32 %v3615, %v3853
    %v3861 = vmul.f32 %v3620, %v3854
    %v3862 = vmul.f32 %v3625, %v3848
    %v3863 = vmul.f32 %v3630, %v3849
    %v3864 = vmul.f32 %v3635, %v3850
    %v3865 = vmul.f32 %v3640, %v3851
    %v3866 = vmul.f32 %v3645, %v3852
    %v3867 = vmul.f32 %v3650, %v3853
    %v3868 = vmul.f32 %v3655, %v3854
    %v3869 = vmul.f32 %v3660, %v3848
    %v3870 = vmul.f32 %v3665, %v3849
    %v3871 = vmul.f32 %v3670, %v3850
    %v3872 = vmul.f32 %v3675, %v3851
    %v3873 = vmul.f32 %v3680, %v3852
    %v3874 = vmul.f32 %v3685, %v3853
    %v3875 = vmul.f32 %v3690, %v3854
    %3876 = vst.msk [vmem:[#allocation3 + $0x70] sm:$0xff] %vm3819, %v3855
    %3877 = vst.msk [vmem:[#allocation3 + $0x80] sm:$0xff] %vm3819, %v3856
    %3878 = vst.msk [vmem:[#allocation3 + $0x90] sm:$0xff] %vm3819, %v3857
    %3879 = vst.msk [vmem:[#allocation3 + $0xa0] sm:$0xff] %vm3819, %v3858
    %3880 = vst.msk [vmem:[#allocation3 + $0xb0] sm:$0xff] %vm3819, %v3859
    %3881 = vst.msk [vmem:[#allocation3 + $0xc0] sm:$0xff] %vm3819, %v3860
    %3882 = vst.msk [vmem:[#allocation3 + $0xd0] sm:$0xff] %vm3819, %v3861
    %3883 = vst.msk [vmem:[#allocation3 + $0xe0] sm:$0xff] %vm3819, %v3862
    %3884 = vst.msk [vmem:[#allocation3 + $0xf0] sm:$0xff] %vm3819, %v3863
    %3885 = vst.msk [vmem:[#allocation3 + $0x100] sm:$0xff] %vm3819, %v3864
    %3886 = vst.msk [vmem:[#allocation3 + $0x110] sm:$0xff] %vm3819, %v3865
    %3887 = vst.msk [vmem:[#allocation3 + $0x120] sm:$0xff] %vm3819, %v3866
    %3888 = vst.msk [vmem:[#allocation3 + $0x130] sm:$0xff] %vm3819, %v3867
    %3889 = vst.msk [vmem:[#allocation3 + $0x140] sm:$0xff] %vm3819, %v3868
    %3890 = vst.msk [vmem:[#allocation3 + $0x150] sm:$0xff] %vm3819, %v3869
    %3891 = vst.msk [vmem:[#allocation3 + $0x160] sm:$0xff] %vm3819, %v3870
    %3892 = vst.msk [vmem:[#allocation3 + $0x170] sm:$0xff] %vm3819, %v3871
    %3893 = vst.msk [vmem:[#allocation3 + $0x180] sm:$0xff] %vm3819, %v3872
    %3894 = vst.msk [vmem:[#allocation3 + $0x190] sm:$0xff] %vm3819, %v3873
    %3895 = vst.msk [vmem:[#allocation3 + $0x1a0] sm:$0xff] %vm3819, %v3874
    %3896 = vst.msk [vmem:[#allocation3 + $0x1b0] sm:$0xff] %vm3819, %v3875
    %v3897 = vld [vmem:[#allocation3] sm:$0xff]
    %v3898 = vld [vmem:[#allocation3 + $0x10] sm:$0xff]
    %v3899 = vld [vmem:[#allocation3 + $0x20] sm:$0xff]
    %v3900 = vld [vmem:[#allocation3 + $0x30] sm:$0xff]
    %v3901 = vld [vmem:[#allocation3 + $0x40] sm:$0xff]
    %v3902 = vld [vmem:[#allocation3 + $0x50] sm:$0xff]
    %v3903 = vld [vmem:[#allocation3 + $0x60] sm:$0xff]
    %v3904 = vld [vmem:[#allocation3 + $0x70] sm:$0xff]
    %v3905 = vld [vmem:[#allocation3 + $0x80] sm:$0xff]
    %v3906 = vld [vmem:[#allocation3 + $0x90] sm:$0xff]
    %v3907 = vld [vmem:[#allocation3 + $0xa0] sm:$0xff]
    %v3908 = vld [vmem:[#allocation3 + $0xb0] sm:$0xff]
    %v3909 = vld [vmem:[#allocation3 + $0xc0] sm:$0xff]
    %v3910 = vld [vmem:[#allocation3 + $0xd0] sm:$0xff]
    %v3911 = vld [vmem:[#allocation3 + $0xe0] sm:$0xff]
    %v3912 = vld [vmem:[#allocation3 + $0xf0] sm:$0xff]
    %v3913 = vld [vmem:[#allocation3 + $0x100] sm:$0xff]
    %v3914 = vld [vmem:[#allocation3 + $0x110] sm:$0xff]
    %v3915 = vld [vmem:[#allocation3 + $0x120] sm:$0xff]
    %v3916 = vld [vmem:[#allocation3 + $0x130] sm:$0xff]
    %v3917 = vld [vmem:[#allocation3 + $0x140] sm:$0xff]
    %v3918 = vld [vmem:[#allocation3 + $0x150] sm:$0xff]
    %v3919 = vld [vmem:[#allocation3 + $0x160] sm:$0xff]
    %v3920 = vld [vmem:[#allocation3 + $0x170] sm:$0xff]
    %v3921 = vld [vmem:[#allocation3 + $0x180] sm:$0xff]
    %v3922 = vld [vmem:[#allocation3 + $0x190] sm:$0xff]
    %v3923 = vld [vmem:[#allocation3 + $0x1a0] sm:$0xff]
    %v3924 = vld [vmem:[#allocation3 + $0x1b0] sm:$0xff]
    %v3926 = vsel %vm2788, %v288, 0
    %v3929 = vsel %vm2788, %v289, 0
    %3931 = vmatprep.subr.mxu0 %v281
    %3932 = vmatpush1.msra.mxu0 %v280
    %3933 = vmatprep.subr.mxu0 %v279
    %3934 = vmatpush1.msra.mxu0 %v278
    %3935 = vmatprep.subr.mxu0 %v277
    %3936 = vmatpush1.msra.mxu0 %v276
    %3937 = vmatprep.subr.mxu0 %v275
    %3938 = vmatpush1.msra.mxu0 %v274
    %3939 = vmatprep.subr.mxu0 %v273
    %3940 = vmatpush1.msra.mxu0 %v272
    %3941 = vmatprep.subr.mxu0 %v271
    %3942 = vmatpush1.msra.mxu0 %v270
    %3943 = vmatprep.subr.mxu0 %v269
    %3944 = vmatpush1.msra.mxu0 %v268
    %3945 = vmatprep.subr.mxu0 %v267
    %3946 = vmatpush1.msra.mxu0 %v266
    %3947 = vmatprep.subr.mxu0 %v265
    %3948 = vmatpush1.msra.mxu0 %v264
    %3949 = vmatprep.subr.mxu0 %v263
    %3950 = vmatpush1.msra.mxu0 %v262
    %3951 = vmatprep.subr.mxu0 %v261
    %3952 = vmatpush1.msra.mxu0 %v260
    %3953 = vmatprep.subr.mxu0 %v259
    %3954 = vmatpush1.msra.mxu0 %v258
    %3955 = vmatprep.subr.mxu0 %v257
    %3956 = vmatpush1.msra.mxu0 %v256
    %3957 = vmatprep.subr.mxu0 %v255
    %3958 = vmatpush1.msra.mxu0 %v254
    %3959 = vmatprep.subr.mxu0 %v253
    %3960 = vmatpush1.msra.mxu0 %v252
    %3961 = vmatprep.subr.mxu0 %v251
    %3962 = vmatpush1.msra.mxu0 %v250
    %3963 = vmatprep.subr.mxu0 0.0
    %3964 = vmatpush2.msra.mxu0 0.0
    %3965 = vmatprep.subr.mxu0 0.0
    %3966 = vmatpush2.msra.mxu0 0.0
    %3967 = vmatprep.subr.mxu0 0.0
    %3968 = vmatpush2.msra.mxu0 0.0
    %3969 = vmatprep.subr.mxu0 0.0
    %3970 = vmatpush2.msra.mxu0 0.0
    %3971 = vmatprep.subr.mxu0 0.0
    %3972 = vmatpush2.msra.mxu0 0.0
    %3973 = vmatprep.subr.mxu0 0.0
    %3974 = vmatpush2.msra.mxu0 0.0
    %3975 = vmatprep.subr.mxu0 0.0
    %3976 = vmatpush2.msra.mxu0 0.0
    %3977 = vmatprep.subr.mxu0 0.0
    %3978 = vmatpush2.msra.mxu0 0.0
    %3979 = vmatprep.subr.mxu0 0.0
    %3980 = vmatpush2.msra.mxu0 0.0
    %3981 = vmatprep.subr.mxu0 0.0
    %3982 = vmatpush2.msra.mxu0 0.0
    %3983 = vmatprep.subr.mxu0 0.0
    %3984 = vmatpush2.msra.mxu0 0.0
    %3985 = vmatprep.subr.mxu0 0.0
    %3986 = vmatpush2.msra.mxu0 0.0
    %3987 = vmatprep.subr.mxu0 %v3929
    %3988 = vmatpush2.msra.mxu0 %v3926
    %3989 = vmatprep.subr.mxu0 %v287
    %3990 = vmatpush2.msra.mxu0 %v286
    %3991 = vmatprep.subr.mxu0 %v285
    %3992 = vmatpush2.msra.mxu0 %v284
    %3993 = vmatprep.subr.mxu0 %v283
    %3994 = vmatpush2.msra.mxu0 %v282
    %3995 = vmatprep.mubr.f32.mxu0 %v2711
    %3996 = vmatmul.mubr.f32.gmra.mxu0 %v2490
    %v3997 = vpop.f32.mrf.mxu0
    %v3998 = vadd.f32 0.0, %v3997
    %v3999 = vpop.f32.mrf.mxu0
    %v4000 = vadd.f32 0.0, %v3999
    %4001 = vmatprep.mubr.f32.mxu0 %v2713
    %4002 = vmatmul.mubr.f32.gmra.mxu0 %v2491
    %v4003 = vpop.f32.mrf.mxu0
    %v4004 = vadd.f32 0.0, %v4003
    %v4005 = vpop.f32.mrf.mxu0
    %v4006 = vadd.f32 0.0, %v4005
    %4007 = vmatprep.mubr.f32.mxu0 %v2715
    %4008 = vmatmul.mubr.f32.gmra.mxu0 %v2492
    %v4009 = vpop.f32.mrf.mxu0
    %v4010 = vadd.f32 0.0, %v4009
    %v4011 = vpop.f32.mrf.mxu0
    %v4012 = vadd.f32 0.0, %v4011
    %4013 = vmatprep.mubr.f32.mxu0 %v2717
    %4014 = vmatmul.mubr.f32.gmra.mxu0 %v2493
    %v4015 = vpop.f32.mrf.mxu0
    %v4016 = vadd.f32 0.0, %v4015
    %v4017 = vpop.f32.mrf.mxu0
    %v4018 = vadd.f32 0.0, %v4017
    %4019 = vmatprep.mubr.f32.mxu0 %v2719
    %4020 = vmatmul.mubr.f32.gmra.mxu0 %v2494
    %v4021 = vpop.f32.mrf.mxu0
    %v4022 = vadd.f32 0.0, %v4021
    %v4023 = vpop.f32.mrf.mxu0
    %v4024 = vadd.f32 0.0, %v4023
    %4025 = vmatprep.mubr.f32.mxu0 %v2721
    %4026 = vmatmul.mubr.f32.gmra.mxu0 %v2495
    %v4027 = vpop.f32.mrf.mxu0
    %v4028 = vadd.f32 0.0, %v4027
    %v4029 = vpop.f32.mrf.mxu0
    %v4030 = vadd.f32 0.0, %v4029
    %4031 = vmatprep.mubr.f32.mxu0 %v2723
    %4032 = vmatmul.mubr.f32.gmra.mxu0 %v2496
    %v4033 = vpop.f32.mrf.mxu0
    %v4034 = vadd.f32 0.0, %v4033
    %v4035 = vpop.f32.mrf.mxu0
    %v4036 = vadd.f32 0.0, %v4035
    %4037 = vmatprep.mubr.f32.mxu0 %v2726
    %4038 = vmatmul.mubr.f32.gmra.mxu0 %v2668
    %v4039 = vpop.f32.mrf.mxu0
    %v4040 = vadd.f32 0.0, %v4039
    %v4041 = vpop.f32.mrf.mxu0
    %v4042 = vadd.f32 0.0, %v4041
    %4043 = vmatprep.mubr.f32.mxu0 %v2729
    %4044 = vmatmul.mubr.f32.gmra.mxu0 %v2670
    %v4045 = vpop.f32.mrf.mxu0
    %v4046 = vadd.f32 0.0, %v4045
    %v4047 = vpop.f32.mrf.mxu0
    %v4048 = vadd.f32 0.0, %v4047
    %4049 = vmatprep.mubr.f32.mxu0 %v2732
    %4050 = vmatmul.mubr.f32.gmra.mxu0 %v2672
    %v4051 = vpop.f32.mrf.mxu0
    %v4052 = vadd.f32 0.0, %v4051
    %v4053 = vpop.f32.mrf.mxu0
    %v4054 = vadd.f32 0.0, %v4053
    %4055 = vmatprep.mubr.f32.mxu0 %v2735
    %4056 = vmatmul.mubr.f32.gmra.mxu0 %v2674
    %v4057 = vpop.f32.mrf.mxu0
    %v4058 = vadd.f32 0.0, %v4057
    %v4059 = vpop.f32.mrf.mxu0
    %v4060 = vadd.f32 0.0, %v4059
    %4061 = vmatprep.mubr.f32.mxu0 %v2738
    %4062 = vmatmul.mubr.f32.gmra.mxu0 %v2676
    %v4063 = vpop.f32.mrf.mxu0
    %v4064 = vadd.f32 0.0, %v4063
    %v4065 = vpop.f32.mrf.mxu0
    %v4066 = vadd.f32 0.0, %v4065
    %4067 = vmatprep.mubr.f32.mxu0 %v2741
    %4068 = vmatmul.mubr.f32.gmra.mxu0 %v2678
    %v4069 = vpop.f32.mrf.mxu0
    %v4070 = vadd.f32 0.0, %v4069
    %v4071 = vpop.f32.mrf.mxu0
    %v4072 = vadd.f32 0.0, %v4071
    %4073 = vmatprep.mubr.f32.mxu0 %v2744
    %4074 = vmatmul.mubr.f32.gmra.mxu0 %v2680
    %v4075 = vpop.f32.mrf.mxu0
    %v4076 = vadd.f32 0.0, %v4075
    %v4077 = vpop.f32.mrf.mxu0
    %v4078 = vadd.f32 0.0, %v4077
    %4079 = vmatprep.mubr.f32.mxu0 %v2747
    %4080 = vmatmul.mubr.f32.gmra.mxu0 %v2682
    %v4081 = vpop.f32.mrf.mxu0
    %v4082 = vadd.f32 0.0, %v4081
    %v4083 = vpop.f32.mrf.mxu0
    %v4084 = vadd.f32 0.0, %v4083
    %4085 = vmatprep.mubr.f32.mxu0 %v2750
    %4086 = vmatmul.mubr.f32.gmra.mxu0 %v2684
    %v4087 = vpop.f32.mrf.mxu0
    %v4088 = vadd.f32 0.0, %v4087
    %v4089 = vpop.f32.mrf.mxu0
    %v4090 = vadd.f32 0.0, %v4089
    %4091 = vmatprep.mubr.f32.mxu0 %v2753
    %4092 = vmatmul.mubr.f32.gmra.mxu0 %v2686
    %v4093 = vpop.f32.mrf.mxu0
    %v4094 = vadd.f32 0.0, %v4093
    %v4095 = vpop.f32.mrf.mxu0
    %v4096 = vadd.f32 0.0, %v4095
    %4097 = vmatprep.mubr.f32.mxu0 %v2756
    %4098 = vmatmul.mubr.f32.gmra.mxu0 %v2688
    %v4099 = vpop.f32.mrf.mxu0
    %v4100 = vadd.f32 0.0, %v4099
    %v4101 = vpop.f32.mrf.mxu0
    %v4102 = vadd.f32 0.0, %v4101
    %4103 = vmatprep.mubr.f32.mxu0 %v2759
    %4104 = vmatmul.mubr.f32.gmra.mxu0 %v2690
    %v4105 = vpop.f32.mrf.mxu0
    %v4106 = vadd.f32 0.0, %v4105
    %v4107 = vpop.f32.mrf.mxu0
    %v4108 = vadd.f32 0.0, %v4107
    %4109 = vmatprep.mubr.f32.mxu0 %v2762
    %4110 = vmatmul.mubr.f32.gmra.mxu0 %v2692
    %v4111 = vpop.f32.mrf.mxu0
    %v4112 = vadd.f32 0.0, %v4111
    %v4113 = vpop.f32.mrf.mxu0
    %v4114 = vadd.f32 0.0, %v4113
    %4115 = vmatprep.mubr.f32.mxu0 %v2765
    %4116 = vmatmul.mubr.f32.gmra.mxu0 %v2694
    %v4117 = vpop.f32.mrf.mxu0
    %v4118 = vadd.f32 0.0, %v4117
    %v4119 = vpop.f32.mrf.mxu0
    %v4120 = vadd.f32 0.0, %v4119
    %4121 = vmatprep.mubr.f32.mxu0 %v2768
    %4122 = vmatmul.mubr.f32.gmra.mxu0 %v2696
    %v4123 = vpop.f32.mrf.mxu0
    %v4124 = vadd.f32 0.0, %v4123
    %v4125 = vpop.f32.mrf.mxu0
    %v4126 = vadd.f32 0.0, %v4125
    %4127 = vmatprep.mubr.f32.mxu0 %v2771
    %4128 = vmatmul.mubr.f32.gmra.mxu0 %v2698
    %v4129 = vpop.f32.mrf.mxu0
    %v4130 = vadd.f32 0.0, %v4129
    %v4131 = vpop.f32.mrf.mxu0
    %v4132 = vadd.f32 0.0, %v4131
    %4133 = vmatprep.mubr.f32.mxu0 %v2774
    %4134 = vmatmul.mubr.f32.gmra.mxu0 %v2700
    %v4135 = vpop.f32.mrf.mxu0
    %v4136 = vadd.f32 0.0, %v4135
    %v4137 = vpop.f32.mrf.mxu0
    %v4138 = vadd.f32 0.0, %v4137
    %4139 = vmatprep.mubr.f32.mxu0 %v2777
    %4140 = vmatmul.mubr.f32.gmra.mxu0 %v2702
    %v4141 = vpop.f32.mrf.mxu0
    %v4142 = vadd.f32 0.0, %v4141
    %v4143 = vpop.f32.mrf.mxu0
    %v4144 = vadd.f32 0.0, %v4143
    %4145 = vmatprep.mubr.f32.mxu0 %v2780
    %4146 = vmatmul.mubr.f32.gmra.mxu0 %v2704
    %v4147 = vpop.f32.mrf.mxu0
    %v4148 = vadd.f32 0.0, %v4147
    %v4149 = vpop.f32.mrf.mxu0
    %v4150 = vadd.f32 0.0, %v4149
    %4151 = vmatprep.mubr.f32.mxu0 %v2783
    %4152 = vmatmul.mubr.f32.gmra.mxu0 %v2706
    %v4153 = vpop.f32.mrf.mxu0
    %v4154 = vadd.f32 0.0, %v4153
    %v4155 = vpop.f32.mrf.mxu0
    %v4156 = vadd.f32 0.0, %v4155
    %4157 = vmatprep.mubr.f32.mxu0 %v2786
    %4158 = vmatmul.mubr.f32.gmra.mxu0 %v2708
    %v4159 = vpop.f32.mrf.mxu0
    %v4160 = vadd.f32 0.0, %v4159
    %v4161 = vpop.f32.mrf.mxu0
    %v4162 = vadd.f32 0.0, %v4161
    %4163 = vdwg.mxu0
    %v4165 = vsel %vm3819, %v3897, 0
    %v4168 = vsel %vm3819, %v3898, 0
    %v4171 = vsel %vm3819, %v3899, 0
    %v4174 = vsel %vm3819, %v3900, 0
    %v4177 = vsel %vm3819, %v3901, 0
    %v4180 = vsel %vm3819, %v3902, 0
    %v4183 = vsel %vm3819, %v3903, 0
    %v4186 = vsel %vm3819, %v3904, 0
    %v4189 = vsel %vm3819, %v3905, 0
    %v4192 = vsel %vm3819, %v3906, 0
    %v4195 = vsel %vm3819, %v3907, 0
    %v4198 = vsel %vm3819, %v3908, 0
    %v4201 = vsel %vm3819, %v3909, 0
    %v4204 = vsel %vm3819, %v3910, 0
    %v4207 = vsel %vm3819, %v3911, 0
    %v4210 = vsel %vm3819, %v3912, 0
    %v4213 = vsel %vm3819, %v3913, 0
    %v4216 = vsel %vm3819, %v3914, 0
    %v4219 = vsel %vm3819, %v3915, 0
    %v4222 = vsel %vm3819, %v3916, 0
    %v4225 = vsel %vm3819, %v3917, 0
    %v4228 = vsel %vm3819, %v3918, 0
    %v4231 = vsel %vm3819, %v3919, 0
    %v4234 = vsel %vm3819, %v3920, 0
    %v4237 = vsel %vm3819, %v3921, 0
    %v4240 = vsel %vm3819, %v3922, 0
    %v4243 = vsel %vm3819, %v3923, 0
    %v4246 = vsel %vm3819, %v3924, 0
    %v4249 = vsel %vm2788, %v248, 0
    %v4252 = vsel %vm2788, %v249, 0
    %4254 = vmatprep.subr.mxu0 0.0
    %4255 = vmatpush1.msra.mxu0 0.0
    %4256 = vmatprep.subr.mxu0 0.0
    %4257 = vmatpush1.msra.mxu0 0.0
    %4258 = vmatprep.subr.mxu0 0.0
    %4259 = vmatpush1.msra.mxu0 0.0
    %4260 = vmatprep.subr.mxu0 %v4252
    %4261 = vmatpush1.msra.mxu0 %v4249
    %4262 = vmatprep.subr.mxu0 %v247
    %4263 = vmatpush1.msra.mxu0 %v246
    %4264 = vmatprep.subr.mxu0 %v245
    %4265 = vmatpush1.msra.mxu0 %v244
    %4266 = vmatprep.subr.mxu0 %v243
    %4267 = vmatpush1.msra.mxu0 %v242
    %4268 = vmatprep.subr.mxu0 %v241
    %4269 = vmatpush1.msra.mxu0 %v240
    %4270 = vmatprep.subr.mxu0 %v239
    %4271 = vmatpush1.msra.mxu0 %v238
    %4272 = vmatprep.subr.mxu0 %v237
    %4273 = vmatpush1.msra.mxu0 %v236
    %4274 = vmatprep.subr.mxu0 %v235
    %4275 = vmatpush1.msra.mxu0 %v234
    %4276 = vmatprep.subr.mxu0 %v233
    %4277 = vmatpush1.msra.mxu0 %v232
    %4278 = vmatprep.subr.mxu0 %v231
    %4279 = vmatpush1.msra.mxu0 %v230
    %4280 = vmatprep.subr.mxu0 %v229
    %4281 = vmatpush1.msra.mxu0 %v228
    %4282 = vmatprep.subr.mxu0 %v227
    %4283 = vmatpush1.msra.mxu0 %v226
    %4284 = vmatprep.subr.mxu0 %v225
    %4285 = vmatpush1.msra.mxu0 %v224
    %4286 = vmatprep.subr.mxu0 0.0
    %4287 = vmatpush2.msra.mxu0 0.0
    %4288 = vmatprep.subr.mxu0 0.0
    %4289 = vmatpush2.msra.mxu0 0.0
    %4290 = vmatprep.subr.mxu0 0.0
    %4291 = vmatpush2.msra.mxu0 0.0
    %4292 = vmatprep.subr.mxu0 0.0
    %4293 = vmatpush2.msra.mxu0 0.0
    %4294 = vmatprep.subr.mxu0 0.0
    %4295 = vmatpush2.msra.mxu0 0.0
    %4296 = vmatprep.subr.mxu0 0.0
    %4297 = vmatpush2.msra.mxu0 0.0
    %4298 = vmatprep.subr.mxu0 0.0
    %4299 = vmatpush2.msra.mxu0 0.0
    %4300 = vmatprep.subr.mxu0 0.0
    %4301 = vmatpush2.msra.mxu0 0.0
    %4302 = vmatprep.subr.mxu0 0.0
    %4303 = vmatpush2.msra.mxu0 0.0
    %4304 = vmatprep.subr.mxu0 0.0
    %4305 = vmatpush2.msra.mxu0 0.0
    %4306 = vmatprep.subr.mxu0 0.0
    %4307 = vmatpush2.msra.mxu0 0.0
    %4308 = vmatprep.subr.mxu0 0.0
    %4309 = vmatpush2.msra.mxu0 0.0
    %4310 = vmatprep.subr.mxu0 0.0
    %4311 = vmatpush2.msra.mxu0 0.0
    %4312 = vmatprep.subr.mxu0 0.0
    %4313 = vmatpush2.msra.mxu0 0.0
    %4314 = vmatprep.subr.mxu0 0.0
    %4315 = vmatpush2.msra.mxu0 0.0
    %4316 = vmatprep.subr.mxu0 0.0
    %4317 = vmatpush2.msra.mxu0 0.0
    %4318 = vmatprep.mubr.f32.mxu0 0.0
    %4319 = vmatmul.mubr.f32.gmra.mxu0 %v4165
    %v4320 = vpop.f32.mrf.mxu0
    %v4321 = vadd.f32 %v3998, %v4320
    %v4322 = vpop.f32.mrf.mxu0
    %v4323 = vadd.f32 %v4000, %v4322
    %4324 = vmatprep.mubr.f32.mxu0 0.0
    %4325 = vmatmul.mubr.f32.gmra.mxu0 %v4168
    %v4326 = vpop.f32.mrf.mxu0
    %v4327 = vadd.f32 %v4004, %v4326
    %v4328 = vpop.f32.mrf.mxu0
    %v4329 = vadd.f32 %v4006, %v4328
    %4330 = vmatprep.mubr.f32.mxu0 0.0
    %4331 = vmatmul.mubr.f32.gmra.mxu0 %v4171
    %v4332 = vpop.f32.mrf.mxu0
    %v4333 = vadd.f32 %v4010, %v4332
    %v4334 = vpop.f32.mrf.mxu0
    %v4335 = vadd.f32 %v4012, %v4334
    %4336 = vmatprep.mubr.f32.mxu0 0.0
    %4337 = vmatmul.mubr.f32.gmra.mxu0 %v4174
    %v4338 = vpop.f32.mrf.mxu0
    %v4339 = vadd.f32 %v4016, %v4338
    %v4340 = vpop.f32.mrf.mxu0
    %v4341 = vadd.f32 %v4018, %v4340
    %4342 = vmatprep.mubr.f32.mxu0 0.0
    %4343 = vmatmul.mubr.f32.gmra.mxu0 %v4177
    %v4344 = vpop.f32.mrf.mxu0
    %v4345 = vadd.f32 %v4022, %v4344
    %v4346 = vpop.f32.mrf.mxu0
    %v4347 = vadd.f32 %v4024, %v4346
    %4348 = vmatprep.mubr.f32.mxu0 0.0
    %4349 = vmatmul.mubr.f32.gmra.mxu0 %v4180
    %v4350 = vpop.f32.mrf.mxu0
    %v4351 = vadd.f32 %v4028, %v4350
    %v4352 = vpop.f32.mrf.mxu0
    %v4353 = vadd.f32 %v4030, %v4352
    %4354 = vmatprep.mubr.f32.mxu0 0.0
    %4355 = vmatmul.mubr.f32.gmra.mxu0 %v4183
    %v4356 = vpop.f32.mrf.mxu0
    %v4357 = vadd.f32 %v4034, %v4356
    %v4358 = vpop.f32.mrf.mxu0
    %v4359 = vadd.f32 %v4036, %v4358
    %4360 = vmatprep.mubr.f32.mxu0 0.0
    %4361 = vmatmul.mubr.f32.gmra.mxu0 %v4186
    %v4362 = vpop.f32.mrf.mxu0
    %v4363 = vadd.f32 %v4040, %v4362
    %v4364 = vpop.f32.mrf.mxu0
    %v4365 = vadd.f32 %v4042, %v4364
    %4366 = vmatprep.mubr.f32.mxu0 0.0
    %4367 = vmatmul.mubr.f32.gmra.mxu0 %v4189
    %v4368 = vpop.f32.mrf.mxu0
    %v4369 = vadd.f32 %v4046, %v4368
    %v4370 = vpop.f32.mrf.mxu0
    %v4371 = vadd.f32 %v4048, %v4370
    %4372 = vmatprep.mubr.f32.mxu0 0.0
    %4373 = vmatmul.mubr.f32.gmra.mxu0 %v4192
    %v4374 = vpop.f32.mrf.mxu0
    %v4375 = vadd.f32 %v4052, %v4374
    %v4376 = vpop.f32.mrf.mxu0
    %v4377 = vadd.f32 %v4054, %v4376
    %4378 = vmatprep.mubr.f32.mxu0 0.0
    %4379 = vmatmul.mubr.f32.gmra.mxu0 %v4195
    %v4380 = vpop.f32.mrf.mxu0
    %v4381 = vadd.f32 %v4058, %v4380
    %v4382 = vpop.f32.mrf.mxu0
    %v4383 = vadd.f32 %v4060, %v4382
    %4384 = vmatprep.mubr.f32.mxu0 0.0
    %4385 = vmatmul.mubr.f32.gmra.mxu0 %v4198
    %v4386 = vpop.f32.mrf.mxu0
    %v4387 = vadd.f32 %v4064, %v4386
    %v4388 = vpop.f32.mrf.mxu0
    %v4389 = vadd.f32 %v4066, %v4388
    %4390 = vmatprep.mubr.f32.mxu0 0.0
    %4391 = vmatmul.mubr.f32.gmra.mxu0 %v4201
    %v4392 = vpop.f32.mrf.mxu0
    %v4393 = vadd.f32 %v4070, %v4392
    %v4394 = vpop.f32.mrf.mxu0
    %v4395 = vadd.f32 %v4072, %v4394
    %4396 = vmatprep.mubr.f32.mxu0 0.0
    %4397 = vmatmul.mubr.f32.gmra.mxu0 %v4204
    %v4398 = vpop.f32.mrf.mxu0
    %v4399 = vadd.f32 %v4076, %v4398
    %v4400 = vpop.f32.mrf.mxu0
    %v4401 = vadd.f32 %v4078, %v4400
    %4402 = vmatprep.mubr.f32.mxu0 0.0
    %4403 = vmatmul.mubr.f32.gmra.mxu0 %v4207
    %v4404 = vpop.f32.mrf.mxu0
    %v4405 = vadd.f32 %v4082, %v4404
    %v4406 = vpop.f32.mrf.mxu0
    %v4407 = vadd.f32 %v4084, %v4406
    %4408 = vmatprep.mubr.f32.mxu0 0.0
    %4409 = vmatmul.mubr.f32.gmra.mxu0 %v4210
    %v4410 = vpop.f32.mrf.mxu0
    %v4411 = vadd.f32 %v4088, %v4410
    %v4412 = vpop.f32.mrf.mxu0
    %v4413 = vadd.f32 %v4090, %v4412
    %4414 = vmatprep.mubr.f32.mxu0 0.0
    %4415 = vmatmul.mubr.f32.gmra.mxu0 %v4213
    %v4416 = vpop.f32.mrf.mxu0
    %v4417 = vadd.f32 %v4094, %v4416
    %v4418 = vpop.f32.mrf.mxu0
    %v4419 = vadd.f32 %v4096, %v4418
    %4420 = vmatprep.mubr.f32.mxu0 0.0
    %4421 = vmatmul.mubr.f32.gmra.mxu0 %v4216
    %v4422 = vpop.f32.mrf.mxu0
    %v4423 = vadd.f32 %v4100, %v4422
    %v4424 = vpop.f32.mrf.mxu0
    %v4425 = vadd.f32 %v4102, %v4424
    %4426 = vmatprep.mubr.f32.mxu0 0.0
    %4427 = vmatmul.mubr.f32.gmra.mxu0 %v4219
    %v4428 = vpop.f32.mrf.mxu0
    %v4429 = vadd.f32 %v4106, %v4428
    %v4430 = vpop.f32.mrf.mxu0
    %v4431 = vadd.f32 %v4108, %v4430
    %4432 = vmatprep.mubr.f32.mxu0 0.0
    %4433 = vmatmul.mubr.f32.gmra.mxu0 %v4222
    %v4434 = vpop.f32.mrf.mxu0
    %v4435 = vadd.f32 %v4112, %v4434
    %v4436 = vpop.f32.mrf.mxu0
    %v4437 = vadd.f32 %v4114, %v4436
    %4438 = vmatprep.mubr.f32.mxu0 0.0
    %4439 = vmatmul.mubr.f32.gmra.mxu0 %v4225
    %v4440 = vpop.f32.mrf.mxu0
    %v4441 = vadd.f32 %v4118, %v4440
    %v4442 = vpop.f32.mrf.mxu0
    %v4443 = vadd.f32 %v4120, %v4442
    %4444 = vmatprep.mubr.f32.mxu0 0.0
    %4445 = vmatmul.mubr.f32.gmra.mxu0 %v4228
    %v4446 = vpop.f32.mrf.mxu0
    %v4447 = vadd.f32 %v4124, %v4446
    %v4448 = vpop.f32.mrf.mxu0
    %v4449 = vadd.f32 %v4126, %v4448
    %4450 = vmatprep.mubr.f32.mxu0 0.0
    %4451 = vmatmul.mubr.f32.gmra.mxu0 %v4231
    %v4452 = vpop.f32.mrf.mxu0
    %v4453 = vadd.f32 %v4130, %v4452
    %v4454 = vpop.f32.mrf.mxu0
    %v4455 = vadd.f32 %v4132, %v4454
    %4456 = vmatprep.mubr.f32.mxu0 0.0
    %4457 = vmatmul.mubr.f32.gmra.mxu0 %v4234
    %v4458 = vpop.f32.mrf.mxu0
    %v4459 = vadd.f32 %v4136, %v4458
    %v4460 = vpop.f32.mrf.mxu0
    %v4461 = vadd.f32 %v4138, %v4460
    %4462 = vmatprep.mubr.f32.mxu0 0.0
    %4463 = vmatmul.mubr.f32.gmra.mxu0 %v4237
    %v4464 = vpop.f32.mrf.mxu0
    %v4465 = vadd.f32 %v4142, %v4464
    %v4466 = vpop.f32.mrf.mxu0
    %v4467 = vadd.f32 %v4144, %v4466
    %4468 = vmatprep.mubr.f32.mxu0 0.0
    %4469 = vmatmul.mubr.f32.gmra.mxu0 %v4240
    %v4470 = vpop.f32.mrf.mxu0
    %v4471 = vadd.f32 %v4148, %v4470
    %v4472 = vpop.f32.mrf.mxu0
    %v4473 = vadd.f32 %v4150, %v4472
    %4474 = vmatprep.mubr.f32.mxu0 0.0
    %4475 = vmatmul.mubr.f32.gmra.mxu0 %v4243
    %v4476 = vpop.f32.mrf.mxu0
    %v4477 = vadd.f32 %v4154, %v4476
    %v4478 = vpop.f32.mrf.mxu0
    %v4479 = vadd.f32 %v4156, %v4478
    %4480 = vmatprep.mubr.f32.mxu0 0.0
    %4481 = vmatmul.mubr.f32.gmra.mxu0 %v4246
    %v4482 = vpop.f32.mrf.mxu0
    %v4483 = vadd.f32 %v4160, %v4482
    %v4484 = vpop.f32.mrf.mxu0
    %v4485 = vadd.f32 %v4162, %v4484
    %4486 = vdwg.mxu0
    %v4487 = vmul.f32 %v4321, 0.70710677
    %v4488 = vmul.f32 %v4323, 0.70710677
    %v4489 = vmul.f32 %v4327, 0.70710677
    %v4490 = vmul.f32 %v4329, 0.70710677
    %v4491 = vmul.f32 %v4333, 0.70710677
    %v4492 = vmul.f32 %v4335, 0.70710677
    %v4493 = vmul.f32 %v4339, 0.70710677
    %v4494 = vmul.f32 %v4341, 0.70710677
    %v4495 = vmul.f32 %v4345, 0.70710677
    %v4496 = vmul.f32 %v4347, 0.70710677
    %v4497 = vmul.f32 %v4351, 0.70710677
    %v4498 = vmul.f32 %v4353, 0.70710677
    %v4499 = vmul.f32 %v4357, 0.70710677
    %v4500 = vmul.f32 %v4359, 0.70710677
    %v4501 = vmul.f32 %v4363, 0.70710677
    %v4502 = vmul.f32 %v4365, 0.70710677
    %v4503 = vmul.f32 %v4369, 0.70710677
    %v4504 = vmul.f32 %v4371, 0.70710677
    %v4505 = vmul.f32 %v4375, 0.70710677
    %v4506 = vmul.f32 %v4377, 0.70710677
    %v4507 = vmul.f32 %v4381, 0.70710677
    %v4508 = vmul.f32 %v4383, 0.70710677
    %v4509 = vmul.f32 %v4387, 0.70710677
    %v4510 = vmul.f32 %v4389, 0.70710677
    %v4511 = vmul.f32 %v4393, 0.70710677
    %v4512 = vmul.f32 %v4395, 0.70710677
    %v4513 = vmul.f32 %v4399, 0.70710677
    %v4514 = vmul.f32 %v4401, 0.70710677
    %v4515 = vmul.f32 %v4405, 0.70710677
    %v4516 = vmul.f32 %v4407, 0.70710677
    %v4517 = vmul.f32 %v4411, 0.70710677
    %v4518 = vmul.f32 %v4413, 0.70710677
    %v4519 = vmul.f32 %v4417, 0.70710677
    %v4520 = vmul.f32 %v4419, 0.70710677
    %v4521 = vmul.f32 %v4423, 0.70710677
    %v4522 = vmul.f32 %v4425, 0.70710677
    %v4523 = vmul.f32 %v4429, 0.70710677
    %v4524 = vmul.f32 %v4431, 0.70710677
    %v4525 = vmul.f32 %v4435, 0.70710677
    %v4526 = vmul.f32 %v4437, 0.70710677
    %v4527 = vmul.f32 %v4441, 0.70710677
    %v4528 = vmul.f32 %v4443, 0.70710677
    %v4529 = vmul.f32 %v4447, 0.70710677
    %v4530 = vmul.f32 %v4449, 0.70710677
    %v4531 = vmul.f32 %v4453, 0.70710677
    %v4532 = vmul.f32 %v4455, 0.70710677
    %v4533 = vmul.f32 %v4459, 0.70710677
    %v4534 = vmul.f32 %v4461, 0.70710677
    %v4535 = vmul.f32 %v4465, 0.70710677
    %v4536 = vmul.f32 %v4467, 0.70710677
    %v4537 = vmul.f32 %v4471, 0.70710677
    %v4538 = vmul.f32 %v4473, 0.70710677
    %v4539 = vmul.f32 %v4477, 0.70710677
    %v4540 = vmul.f32 %v4479, 0.70710677
    %v4541 = vmul.f32 %v4483, 0.70710677
    %v4542 = vmul.f32 %v4485, 0.70710677
    %v4543 = vld [vmem:[#allocation6 + $0x2] sm:$0x7]
    %v4545 = vlaneseq
    %v4546 = vshrl.u32 %v4545, 7
    %v4547 = vsub.s32 0, %v4546
    %v4548 = vrot.slane %v4543, %v4547
    %v4549 = vlaneseq
    %v4550 = vshrl.u32 %v4549, 7
    %v4551 = vsub.s32 1, %v4550
    %v4552 = vrot.slane %v4543, %v4551
    %v4553 = vlaneseq
    %v4554 = vshrl.u32 %v4553, 7
    %v4555 = vsub.s32 2, %v4554
    %v4556 = vrot.slane %v4543, %v4555
    %4557 = vrot.lane.b32.xlu0 %v4548, 28
    %v4558 = vpop.permute.xlu0 %4557
    %4559 = vrot.lane.b32.xlu0 %v4552, 28
    %v4560 = vpop.permute.xlu0 %4559
    %4561 = vrot.lane.b32.xlu0 %v4556, 28
    %v4562 = vpop.permute.xlu0 %4561
    %v4563 = vsel %vm2710, %v4558, %v4560
    %v4564 = vsel %vm2710, %v4560, %v4562
    %v4567 = vadd.f32 %v4487, %v4563
    %v4568 = vadd.f32 %v4488, %v4564
    %v4569 = vadd.f32 %v4489, %v4563
    %v4570 = vadd.f32 %v4490, %v4564
    %v4571 = vadd.f32 %v4491, %v4563
    %v4572 = vadd.f32 %v4492, %v4564
    %v4573 = vadd.f32 %v4493, %v4563
    %v4574 = vadd.f32 %v4494, %v4564
    %v4575 = vadd.f32 %v4495, %v4563
    %v4576 = vadd.f32 %v4496, %v4564
    %v4577 = vadd.f32 %v4497, %v4563
    %v4578 = vadd.f32 %v4498, %v4564
    %v4579 = vadd.f32 %v4499, %v4563
    %v4580 = vadd.f32 %v4500, %v4564
    %v4581 = vmul.f32 %v4567, 100.0
    %v4582 = vmul.f32 %v4568, 100.0
    %v4583 = vmul.f32 %v4569, 100.0
    %v4584 = vmul.f32 %v4570, 100.0
    %v4585 = vmul.f32 %v4571, 100.0
    %v4586 = vmul.f32 %v4572, 100.0
    %v4587 = vmul.f32 %v4573, 100.0
    %v4588 = vmul.f32 %v4574, 100.0
    %v4589 = vmul.f32 %v4575, 100.0
    %v4590 = vmul.f32 %v4576, 100.0
    %v4591 = vmul.f32 %v4577, 100.0
    %v4592 = vmul.f32 %v4578, 100.0
    %v4593 = vmul.f32 %v4579, 100.0
    %v4594 = vmul.f32 %v4580, 100.0
    %vm4595 = vcmp.gt.f32.partialorder %v4581, 20.0
    %vm4596 = vcmp.gt.f32.partialorder %v4582, 20.0
    %vm4597 = vcmp.gt.f32.partialorder %v4583, 20.0
    %vm4598 = vcmp.gt.f32.partialorder %v4584, 20.0
    %vm4599 = vcmp.gt.f32.partialorder %v4585, 20.0
    %vm4600 = vcmp.gt.f32.partialorder %v4586, 20.0
    %vm4601 = vcmp.gt.f32.partialorder %v4587, 20.0
    %vm4602 = vcmp.gt.f32.partialorder %v4588, 20.0
    %vm4603 = vcmp.gt.f32.partialorder %v4589, 20.0
    %vm4604 = vcmp.gt.f32.partialorder %v4590, 20.0
    %vm4605 = vcmp.gt.f32.partialorder %v4591, 20.0
    %vm4606 = vcmp.gt.f32.partialorder %v4592, 20.0
    %vm4607 = vcmp.gt.f32.partialorder %v4593, 20.0
    %vm4608 = vcmp.gt.f32.partialorder %v4594, 20.0
    %v4609 = vmin.f32 %v4581, 20.0
    %v4610 = vmin.f32 %v4582, 20.0
    %v4611 = vmin.f32 %v4583, 20.0
    %v4612 = vmin.f32 %v4584, 20.0
    %v4613 = vmin.f32 %v4585, 20.0
    %v4614 = vmin.f32 %v4586, 20.0
    %v4615 = vmin.f32 %v4587, 20.0
    %v4616 = vmin.f32 %v4588, 20.0
    %v4617 = vmin.f32 %v4589, 20.0
    %v4618 = vmin.f32 %v4590, 20.0
    %v4619 = vmin.f32 %v4591, 20.0
    %v4620 = vmin.f32 %v4592, 20.0
    %v4621 = vmin.f32 %v4593, 20.0
    %v4622 = vmin.f32 %v4594, 20.0
    %v4623 = vmul.f32 %v4609, 1.442695
    %v4624 = vpow.pop %v4623
    %v4625 = vmul.f32 %v4610, 1.442695
    %v4626 = vpow.pop %v4625
    %v4627 = vmul.f32 %v4611, 1.442695
    %v4628 = vpow.pop %v4627
    %v4629 = vmul.f32 %v4612, 1.442695
    %v4630 = vpow.pop %v4629
    %v4631 = vmul.f32 %v4613, 1.442695
    %v4632 = vpow.pop %v4631
    %v4633 = vmul.f32 %v4614, 1.442695
    %v4634 = vpow.pop %v4633
    %v4635 = vmul.f32 %v4615, 1.442695
    %v4636 = vpow.pop %v4635
    %v4637 = vmul.f32 %v4616, 1.442695
    %v4638 = vpow.pop %v4637
    %v4639 = vmul.f32 %v4617, 1.442695
    %v4640 = vpow.pop %v4639
    %v4641 = vmul.f32 %v4618, 1.442695
    %v4642 = vpow.pop %v4641
    %v4643 = vmul.f32 %v4619, 1.442695
    %v4644 = vpow.pop %v4643
    %v4645 = vmul.f32 %v4620, 1.442695
    %v4646 = vpow.pop %v4645
    %v4647 = vmul.f32 %v4621, 1.442695
    %v4648 = vpow.pop %v4647
    %v4649 = vmul.f32 %v4622, 1.442695
    %v4650 = vpow.pop %v4649
    %v4651 = vadd.f32 %v4624, 1.0
    %v4652 = vlog2.pop %v4651
    %v4653 = vmul.f32 %v4652, 0.6931472
    %v4654 = vmul.f32 -0.5, %v4624
    %v4655 = vadd.f32 %v4654, 1.0
    %v4656 = vmul.f32 %v4655, %v4624
    %v4657 = vand.u32 2147483647, %v4624
    %vm4658 = vcmp.lt.f32.partialorder %v4657, 0.0004427343
    %v4659 = vsel %vm4658, %v4656, %v4653
    %v4660 = vadd.f32 %v4626, 1.0
    %v4661 = vlog2.pop %v4660
    %v4662 = vmul.f32 %v4661, 0.6931472
    %v4663 = vmul.f32 -0.5, %v4626
    %v4664 = vadd.f32 %v4663, 1.0
    %v4665 = vmul.f32 %v4664, %v4626
    %v4666 = vand.u32 2147483647, %v4626
    %vm4667 = vcmp.lt.f32.partialorder %v4666, 0.0004427343
    %v4668 = vsel %vm4667, %v4665, %v4662
    %v4669 = vadd.f32 %v4628, 1.0
    %v4670 = vlog2.pop %v4669
    %v4671 = vmul.f32 %v4670, 0.6931472
    %v4672 = vmul.f32 -0.5, %v4628
    %v4673 = vadd.f32 %v4672, 1.0
    %v4674 = vmul.f32 %v4673, %v4628
    %v4675 = vand.u32 2147483647, %v4628
    %vm4676 = vcmp.lt.f32.partialorder %v4675, 0.0004427343
    %v4677 = vsel %vm4676, %v4674, %v4671
    %v4678 = vadd.f32 %v4630, 1.0
    %v4679 = vlog2.pop %v4678
    %v4680 = vmul.f32 %v4679, 0.6931472
    %v4681 = vmul.f32 -0.5, %v4630
    %v4682 = vadd.f32 %v4681, 1.0
    %v4683 = vmul.f32 %v4682, %v4630
    %v4684 = vand.u32 2147483647, %v4630
    %vm4685 = vcmp.lt.f32.partialorder %v4684, 0.0004427343
    %v4686 = vsel %vm4685, %v4683, %v4680
    %v4687 = vadd.f32 %v4632, 1.0
    %v4688 = vlog2.pop %v4687
    %v4689 = vmul.f32 %v4688, 0.6931472
    %v4690 = vmul.f32 -0.5, %v4632
    %v4691 = vadd.f32 %v4690, 1.0
    %v4692 = vmul.f32 %v4691, %v4632
    %v4693 = vand.u32 2147483647, %v4632
    %vm4694 = vcmp.lt.f32.partialorder %v4693, 0.0004427343
    %v4695 = vsel %vm4694, %v4692, %v4689
    %v4696 = vadd.f32 %v4634, 1.0
    %v4697 = vlog2.pop %v4696
    %v4698 = vmul.f32 %v4697, 0.6931472
    %v4699 = vmul.f32 -0.5, %v4634
    %v4700 = vadd.f32 %v4699, 1.0
    %v4701 = vmul.f32 %v4700, %v4634
    %v4702 = vand.u32 2147483647, %v4634
    %vm4703 = vcmp.lt.f32.partialorder %v4702, 0.0004427343
    %v4704 = vsel %vm4703, %v4701, %v4698
    %v4705 = vadd.f32 %v4636, 1.0
    %v4706 = vlog2.pop %v4705
    %v4707 = vmul.f32 %v4706, 0.6931472
    %v4708 = vmul.f32 -0.5, %v4636
    %v4709 = vadd.f32 %v4708, 1.0
    %v4710 = vmul.f32 %v4709, %v4636
    %v4711 = vand.u32 2147483647, %v4636
    %vm4712 = vcmp.lt.f32.partialorder %v4711, 0.0004427343
    %v4713 = vsel %vm4712, %v4710, %v4707
    %v4714 = vadd.f32 %v4638, 1.0
    %v4715 = vlog2.pop %v4714
    %v4716 = vmul.f32 %v4715, 0.6931472
    %v4717 = vmul.f32 -0.5, %v4638
    %v4718 = vadd.f32 %v4717, 1.0
    %v4719 = vmul.f32 %v4718, %v4638
    %v4720 = vand.u32 2147483647, %v4638
    %vm4721 = vcmp.lt.f32.partialorder %v4720, 0.0004427343
    %v4722 = vsel %vm4721, %v4719, %v4716
    %v4723 = vadd.f32 %v4640, 1.0
    %v4724 = vlog2.pop %v4723
    %v4725 = vmul.f32 %v4724, 0.6931472
    %v4726 = vmul.f32 -0.5, %v4640
    %v4727 = vadd.f32 %v4726, 1.0
    %v4728 = vmul.f32 %v4727, %v4640
    %v4729 = vand.u32 2147483647, %v4640
    %vm4730 = vcmp.lt.f32.partialorder %v4729, 0.0004427343
    %v4731 = vsel %vm4730, %v4728, %v4725
    %v4732 = vadd.f32 %v4642, 1.0
    %v4733 = vlog2.pop %v4732
    %v4734 = vmul.f32 %v4733, 0.6931472
    %v4735 = vmul.f32 -0.5, %v4642
    %v4736 = vadd.f32 %v4735, 1.0
    %v4737 = vmul.f32 %v4736, %v4642
    %v4738 = vand.u32 2147483647, %v4642
    %vm4739 = vcmp.lt.f32.partialorder %v4738, 0.0004427343
    %v4740 = vsel %vm4739, %v4737, %v4734
    %v4741 = vadd.f32 %v4644, 1.0
    %v4742 = vlog2.pop %v4741
    %v4743 = vmul.f32 %v4742, 0.6931472
    %v4744 = vmul.f32 -0.5, %v4644
    %v4745 = vadd.f32 %v4744, 1.0
    %v4746 = vmul.f32 %v4745, %v4644
    %v4747 = vand.u32 2147483647, %v4644
    %vm4748 = vcmp.lt.f32.partialorder %v4747, 0.0004427343
    %v4749 = vsel %vm4748, %v4746, %v4743
    %v4750 = vadd.f32 %v4646, 1.0
    %v4751 = vlog2.pop %v4750
    %v4752 = vmul.f32 %v4751, 0.6931472
    %v4753 = vmul.f32 -0.5, %v4646
    %v4754 = vadd.f32 %v4753, 1.0
    %v4755 = vmul.f32 %v4754, %v4646
    %v4756 = vand.u32 2147483647, %v4646
    %vm4757 = vcmp.lt.f32.partialorder %v4756, 0.0004427343
    %v4758 = vsel %vm4757, %v4755, %v4752
    %v4759 = vadd.f32 %v4648, 1.0
    %v4760 = vlog2.pop %v4759
    %v4761 = vmul.f32 %v4760, 0.6931472
    %v4762 = vmul.f32 -0.5, %v4648
    %v4763 = vadd.f32 %v4762, 1.0
    %v4764 = vmul.f32 %v4763, %v4648
    %v4765 = vand.u32 2147483647, %v4648
    %vm4766 = vcmp.lt.f32.partialorder %v4765, 0.0004427343
    %v4767 = vsel %vm4766, %v4764, %v4761
    %v4768 = vadd.f32 %v4650, 1.0
    %v4769 = vlog2.pop %v4768
    %v4770 = vmul.f32 %v4769, 0.6931472
    %v4771 = vmul.f32 -0.5, %v4650
    %v4772 = vadd.f32 %v4771, 1.0
    %v4773 = vmul.f32 %v4772, %v4650
    %v4774 = vand.u32 2147483647, %v4650
    %vm4775 = vcmp.lt.f32.partialorder %v4774, 0.0004427343
    %v4776 = vsel %vm4775, %v4773, %v4770
    %v4777 = vmul.f32 %v4659, 0.01
    %v4778 = vmul.f32 %v4668, 0.01
    %v4779 = vmul.f32 %v4677, 0.01
    %v4780 = vmul.f32 %v4686, 0.01
    %v4781 = vmul.f32 %v4695, 0.01
    %v4782 = vmul.f32 %v4704, 0.01
    %v4783 = vmul.f32 %v4713, 0.01
    %v4784 = vmul.f32 %v4722, 0.01
    %v4785 = vmul.f32 %v4731, 0.01
    %v4786 = vmul.f32 %v4740, 0.01
    %v4787 = vmul.f32 %v4749, 0.01
    %v4788 = vmul.f32 %v4758, 0.01
    %v4789 = vmul.f32 %v4767, 0.01
    %v4790 = vmul.f32 %v4776, 0.01
    %v4791 = vsel %vm4595, %v4567, %v4777
    %v4792 = vsel %vm4596, %v4568, %v4778
    %v4793 = vsel %vm4597, %v4569, %v4779
    %v4794 = vsel %vm4598, %v4570, %v4780
    %v4795 = vsel %vm4599, %v4571, %v4781
    %v4796 = vsel %vm4600, %v4572, %v4782
    %v4797 = vsel %vm4601, %v4573, %v4783
    %v4798 = vsel %vm4602, %v4574, %v4784
    %v4799 = vsel %vm4603, %v4575, %v4785
    %v4800 = vsel %vm4604, %v4576, %v4786
    %v4801 = vsel %vm4605, %v4577, %v4787
    %v4802 = vsel %vm4606, %v4578, %v4788
    %v4803 = vsel %vm4607, %v4579, %v4789
    %v4804 = vsel %vm4608, %v4580, %v4790
    %4805 = vst [vmem:[#allocation2] sm:$0xff] %v4791
    %4806 = vst [vmem:[#allocation2 + $0x8] sm:$0xff] %v4792
    %4807 = vst [vmem:[#allocation2 + $0x10] sm:$0xff] %v4793
    %4808 = vst [vmem:[#allocation2 + $0x18] sm:$0xff] %v4794
    %4809 = vst [vmem:[#allocation2 + $0x20] sm:$0xff] %v4795
    %4810 = vst [vmem:[#allocation2 + $0x28] sm:$0xff] %v4796
    %4811 = vst [vmem:[#allocation2 + $0x30] sm:$0xff] %v4797
    %4812 = vst [vmem:[#allocation2 + $0x38] sm:$0xff] %v4798
    %4813 = vst [vmem:[#allocation2 + $0x40] sm:$0xff] %v4799
    %4814 = vst [vmem:[#allocation2 + $0x48] sm:$0xff] %v4800
    %4815 = vst [vmem:[#allocation2 + $0x50] sm:$0xff] %v4801
    %4816 = vst [vmem:[#allocation2 + $0x58] sm:$0xff] %v4802
    %4817 = vst [vmem:[#allocation2 + $0x60] sm:$0xff] %v4803
    %4818 = vst [vmem:[#allocation2 + $0x68] sm:$0xff] %v4804
    %v4819 = vadd.f32 %v4624, 1.0
    %v4820 = vadd.f32 %v4626, 1.0
    %v4821 = vadd.f32 %v4628, 1.0
    %v4822 = vadd.f32 %v4630, 1.0
    %v4823 = vadd.f32 %v4632, 1.0
    %v4824 = vadd.f32 %v4634, 1.0
    %v4825 = vadd.f32 %v4636, 1.0
    %v4826 = vadd.f32 %v4638, 1.0
    %v4827 = vadd.f32 %v4640, 1.0
    %v4828 = vadd.f32 %v4642, 1.0
    %v4829 = vadd.f32 %v4644, 1.0
    %v4830 = vadd.f32 %v4646, 1.0
    %v4831 = vadd.f32 %v4648, 1.0
    %v4832 = vadd.f32 %v4650, 1.0
    %v4833 = vrcp.pop %v4819
    %v4834 = vmul.f32 %v4624, %v4833
    %v4835 = vrcp.pop %v4820
    %v4836 = vmul.f32 %v4626, %v4835
    %v4837 = vrcp.pop %v4821
    %v4838 = vmul.f32 %v4628, %v4837
    %v4839 = vrcp.pop %v4822
    %v4840 = vmul.f32 %v4630, %v4839
    %v4841 = vrcp.pop %v4823
    %v4842 = vmul.f32 %v4632, %v4841
    %v4843 = vrcp.pop %v4824
    %v4844 = vmul.f32 %v4634, %v4843
    %v4845 = vrcp.pop %v4825
    %v4846 = vmul.f32 %v4636, %v4845
    %v4847 = vrcp.pop %v4826
    %v4848 = vmul.f32 %v4638, %v4847
    %v4849 = vrcp.pop %v4827
    %v4850 = vmul.f32 %v4640, %v4849
    %v4851 = vrcp.pop %v4828
    %v4852 = vmul.f32 %v4642, %v4851
    %v4853 = vrcp.pop %v4829
    %v4854 = vmul.f32 %v4644, %v4853
    %v4855 = vrcp.pop %v4830
    %v4856 = vmul.f32 %v4646, %v4855
    %v4857 = vrcp.pop %v4831
    %v4858 = vmul.f32 %v4648, %v4857
    %v4859 = vrcp.pop %v4832
    %v4860 = vmul.f32 %v4650, %v4859
    %v4861 = vsel %vm4595, 1.0, %v4834
    %v4862 = vsel %vm4596, 1.0, %v4836
    %v4863 = vsel %vm4597, 1.0, %v4838
    %v4864 = vsel %vm4598, 1.0, %v4840
    %v4865 = vsel %vm4599, 1.0, %v4842
    %v4866 = vsel %vm4600, 1.0, %v4844
    %v4867 = vsel %vm4601, 1.0, %v4846
    %v4868 = vsel %vm4602, 1.0, %v4848
    %v4869 = vsel %vm4603, 1.0, %v4850
    %v4870 = vsel %vm4604, 1.0, %v4852
    %v4871 = vsel %vm4605, 1.0, %v4854
    %v4872 = vsel %vm4606, 1.0, %v4856
    %v4873 = vsel %vm4607, 1.0, %v4858
    %v4874 = vsel %vm4608, 1.0, %v4860
    %v4875 = vmul.f32 %v4501, %v4861
    %v4876 = vmul.f32 %v4502, %v4862
    %v4877 = vmul.f32 %v4503, %v4863
    %v4878 = vmul.f32 %v4504, %v4864
    %v4879 = vmul.f32 %v4505, %v4865
    %v4880 = vmul.f32 %v4506, %v4866
    %v4881 = vmul.f32 %v4507, %v4867
    %v4882 = vmul.f32 %v4508, %v4868
    %v4883 = vmul.f32 %v4509, %v4869
    %v4884 = vmul.f32 %v4510, %v4870
    %v4885 = vmul.f32 %v4511, %v4871
    %v4886 = vmul.f32 %v4512, %v4872
    %v4887 = vmul.f32 %v4513, %v4873
    %v4888 = vmul.f32 %v4514, %v4874
    %v4889 = vmul.f32 %v4515, %v4861
    %v4890 = vmul.f32 %v4516, %v4862
    %v4891 = vmul.f32 %v4517, %v4863
    %v4892 = vmul.f32 %v4518, %v4864
    %v4893 = vmul.f32 %v4519, %v4865
    %v4894 = vmul.f32 %v4520, %v4866
    %v4895 = vmul.f32 %v4521, %v4867
    %v4896 = vmul.f32 %v4522, %v4868
    %v4897 = vmul.f32 %v4523, %v4869
    %v4898 = vmul.f32 %v4524, %v4870
    %v4899 = vmul.f32 %v4525, %v4871
    %v4900 = vmul.f32 %v4526, %v4872
    %v4901 = vmul.f32 %v4527, %v4873
    %v4902 = vmul.f32 %v4528, %v4874
    %v4903 = vmul.f32 %v4529, %v4861
    %v4904 = vmul.f32 %v4530, %v4862
    %v4905 = vmul.f32 %v4531, %v4863
    %v4906 = vmul.f32 %v4532, %v4864
    %v4907 = vmul.f32 %v4533, %v4865
    %v4908 = vmul.f32 %v4534, %v4866
    %v4909 = vmul.f32 %v4535, %v4867
    %v4910 = vmul.f32 %v4536, %v4868
    %v4911 = vmul.f32 %v4537, %v4869
    %v4912 = vmul.f32 %v4538, %v4870
    %v4913 = vmul.f32 %v4539, %v4871
    %v4914 = vmul.f32 %v4540, %v4872
    %v4915 = vmul.f32 %v4541, %v4873
    %v4916 = vmul.f32 %v4542, %v4874
    %4917 = vst [vmem:[#allocation2 + $0x70] sm:$0xff] %v4875
    %4918 = vst [vmem:[#allocation2 + $0x78] sm:$0xff] %v4876
    %4919 = vst [vmem:[#allocation2 + $0x80] sm:$0xff] %v4877
    %4920 = vst [vmem:[#allocation2 + $0x88] sm:$0xff] %v4878
    %4921 = vst [vmem:[#allocation2 + $0x90] sm:$0xff] %v4879
    %4922 = vst [vmem:[#allocation2 + $0x98] sm:$0xff] %v4880
    %4923 = vst [vmem:[#allocation2 + $0xa0] sm:$0xff] %v4881
    %4924 = vst [vmem:[#allocation2 + $0xa8] sm:$0xff] %v4882
    %4925 = vst [vmem:[#allocation2 + $0xb0] sm:$0xff] %v4883
    %4926 = vst [vmem:[#allocation2 + $0xb8] sm:$0xff] %v4884
    %4927 = vst [vmem:[#allocation2 + $0xc0] sm:$0xff] %v4885
    %4928 = vst [vmem:[#allocation2 + $0xc8] sm:$0xff] %v4886
    %4929 = vst [vmem:[#allocation2 + $0xd0] sm:$0xff] %v4887
    %4930 = vst [vmem:[#allocation2 + $0xd8] sm:$0xff] %v4888
    %4931 = vst [vmem:[#allocation2 + $0xe0] sm:$0xff] %v4889
    %4932 = vst [vmem:[#allocation2 + $0xe8] sm:$0xff] %v4890
    %4933 = vst [vmem:[#allocation2 + $0xf0] sm:$0xff] %v4891
    %4934 = vst [vmem:[#allocation2 + $0xf8] sm:$0xff] %v4892
    %4935 = vst [vmem:[#allocation2 + $0x100] sm:$0xff] %v4893
    %4936 = vst [vmem:[#allocation2 + $0x108] sm:$0xff] %v4894
    %4937 = vst [vmem:[#allocation2 + $0x110] sm:$0xff] %v4895
    %4938 = vst [vmem:[#allocation2 + $0x118] sm:$0xff] %v4896
    %4939 = vst [vmem:[#allocation2 + $0x120] sm:$0xff] %v4897
    %4940 = vst [vmem:[#allocation2 + $0x128] sm:$0xff] %v4898
    %4941 = vst [vmem:[#allocation2 + $0x130] sm:$0xff] %v4899
    %4942 = vst [vmem:[#allocation2 + $0x138] sm:$0xff] %v4900
    %4943 = vst [vmem:[#allocation2 + $0x140] sm:$0xff] %v4901
    %4944 = vst [vmem:[#allocation2 + $0x148] sm:$0xff] %v4902
    %4945 = vst [vmem:[#allocation2 + $0x150] sm:$0xff] %v4903
    %4946 = vst [vmem:[#allocation2 + $0x158] sm:$0xff] %v4904
    %4947 = vst [vmem:[#allocation2 + $0x160] sm:$0xff] %v4905
    %4948 = vst [vmem:[#allocation2 + $0x168] sm:$0xff] %v4906
    %4949 = vst [vmem:[#allocation2 + $0x170] sm:$0xff] %v4907
    %4950 = vst [vmem:[#allocation2 + $0x178] sm:$0xff] %v4908
    %4951 = vst [vmem:[#allocation2 + $0x180] sm:$0xff] %v4909
    %4952 = vst [vmem:[#allocation2 + $0x188] sm:$0xff] %v4910
    %4953 = vst [vmem:[#allocation2 + $0x190] sm:$0xff] %v4911
    %4954 = vst [vmem:[#allocation2 + $0x198] sm:$0xff] %v4912
    %4955 = vst [vmem:[#allocation2 + $0x1a0] sm:$0xff] %v4913
    %4956 = vst [vmem:[#allocation2 + $0x1a8] sm:$0xff] %v4914
    %4957 = vst [vmem:[#allocation2 + $0x1b0] sm:$0xff] %v4915
    %4958 = vst [vmem:[#allocation2 + $0x1b8] sm:$0xff] %v4916
    %v4959 = vld [vmem:[#allocation2] sm:$0xff]
    %v4960 = vld [vmem:[#allocation2 + $0x8] sm:$0xff]
    %v4961 = vld [vmem:[#allocation2 + $0x10] sm:$0xff]
    %v4962 = vld [vmem:[#allocation2 + $0x18] sm:$0xff]
    %v4963 = vld [vmem:[#allocation2 + $0x20] sm:$0xff]
    %v4964 = vld [vmem:[#allocation2 + $0x28] sm:$0xff]
    %v4965 = vld [vmem:[#allocation2 + $0x30] sm:$0xff]
    %v4966 = vld [vmem:[#allocation2 + $0x38] sm:$0xff]
    %v4967 = vld [vmem:[#allocation2 + $0x40] sm:$0xff]
    %v4968 = vld [vmem:[#allocation2 + $0x48] sm:$0xff]
    %v4969 = vld [vmem:[#allocation2 + $0x50] sm:$0xff]
    %v4970 = vld [vmem:[#allocation2 + $0x58] sm:$0xff]
    %v4971 = vld [vmem:[#allocation2 + $0x60] sm:$0xff]
    %v4972 = vld [vmem:[#allocation2 + $0x68] sm:$0xff]
    %v4973 = vld [vmem:[#allocation2 + $0x70] sm:$0xff]
    %v4974 = vld [vmem:[#allocation2 + $0x78] sm:$0xff]
    %v4975 = vld [vmem:[#allocation2 + $0x80] sm:$0xff]
    %v4976 = vld [vmem:[#allocation2 + $0x88] sm:$0xff]
    %v4977 = vld [vmem:[#allocation2 + $0x90] sm:$0xff]
    %v4978 = vld [vmem:[#allocation2 + $0x98] sm:$0xff]
    %v4979 = vld [vmem:[#allocation2 + $0xa0] sm:$0xff]
    %v4980 = vld [vmem:[#allocation2 + $0xa8] sm:$0xff]
    %v4981 = vld [vmem:[#allocation2 + $0xb0] sm:$0xff]
    %v4982 = vld [vmem:[#allocation2 + $0xb8] sm:$0xff]
    %v4983 = vld [vmem:[#allocation2 + $0xc0] sm:$0xff]
    %v4984 = vld [vmem:[#allocation2 + $0xc8] sm:$0xff]
    %v4985 = vld [vmem:[#allocation2 + $0xd0] sm:$0xff]
    %v4986 = vld [vmem:[#allocation2 + $0xd8] sm:$0xff]
    %v4987 = vld [vmem:[#allocation2 + $0xe0] sm:$0xff]
    %v4988 = vld [vmem:[#allocation2 + $0xe8] sm:$0xff]
    %v4989 = vld [vmem:[#allocation2 + $0xf0] sm:$0xff]
    %v4990 = vld [vmem:[#allocation2 + $0xf8] sm:$0xff]
    %v4991 = vld [vmem:[#allocation2 + $0x100] sm:$0xff]
    %v4992 = vld [vmem:[#allocation2 + $0x108] sm:$0xff]
    %v4993 = vld [vmem:[#allocation2 + $0x110] sm:$0xff]
    %v4994 = vld [vmem:[#allocation2 + $0x118] sm:$0xff]
    %v4995 = vld [vmem:[#allocation2 + $0x120] sm:$0xff]
    %v4996 = vld [vmem:[#allocation2 + $0x128] sm:$0xff]
    %v4997 = vld [vmem:[#allocation2 + $0x130] sm:$0xff]
    %v4998 = vld [vmem:[#allocation2 + $0x138] sm:$0xff]
    %v4999 = vld [vmem:[#allocation2 + $0x140] sm:$0xff]
    %v5000 = vld [vmem:[#allocation2 + $0x148] sm:$0xff]
    %v5001 = vld [vmem:[#allocation2 + $0x150] sm:$0xff]
    %v5002 = vld [vmem:[#allocation2 + $0x158] sm:$0xff]
    %v5003 = vld [vmem:[#allocation2 + $0x160] sm:$0xff]
    %v5004 = vld [vmem:[#allocation2 + $0x168] sm:$0xff]
    %v5005 = vld [vmem:[#allocation2 + $0x170] sm:$0xff]
    %v5006 = vld [vmem:[#allocation2 + $0x178] sm:$0xff]
    %v5007 = vld [vmem:[#allocation2 + $0x180] sm:$0xff]
    %v5008 = vld [vmem:[#allocation2 + $0x188] sm:$0xff]
    %v5009 = vld [vmem:[#allocation2 + $0x190] sm:$0xff]
    %v5010 = vld [vmem:[#allocation2 + $0x198] sm:$0xff]
    %v5011 = vld [vmem:[#allocation2 + $0x1a0] sm:$0xff]
    %v5012 = vld [vmem:[#allocation2 + $0x1a8] sm:$0xff]
    %v5013 = vld [vmem:[#allocation2 + $0x1b0] sm:$0xff]
    %v5014 = vld [vmem:[#allocation2 + $0x1b8] sm:$0xff]
    %5015 = vmatprep.subr.mxu0 %v321
    %5016 = vmatpush1.msra.mxu0 %v320
    %5017 = vmatprep.subr.mxu0 %v319
    %5018 = vmatpush1.msra.mxu0 %v318
    %5019 = vmatprep.subr.mxu0 %v317
    %5020 = vmatpush1.msra.mxu0 %v316
    %5021 = vmatprep.subr.mxu0 %v315
    %5022 = vmatpush1.msra.mxu0 %v314
    %5023 = vmatprep.subr.mxu0 %v313
    %5024 = vmatpush1.msra.mxu0 %v312
    %5025 = vmatprep.subr.mxu0 %v311
    %5026 = vmatpush1.msra.mxu0 %v310
    %5027 = vmatprep.subr.mxu0 %v309
    %5028 = vmatpush1.msra.mxu0 %v308
    %5029 = vmatprep.subr.mxu0 %v307
    %5030 = vmatpush1.msra.mxu0 %v306
    %5031 = vmatprep.subr.mxu0 %v305
    %5032 = vmatpush1.msra.mxu0 %v304
    %5033 = vmatprep.subr.mxu0 %v303
    %5034 = vmatpush1.msra.mxu0 %v302
    %5035 = vmatprep.subr.mxu0 %v301
    %5036 = vmatpush1.msra.mxu0 %v300
    %5037 = vmatprep.subr.mxu0 %v299
    %5038 = vmatpush1.msra.mxu0 %v298
    %5039 = vmatprep.subr.mxu0 %v297
    %5040 = vmatpush1.msra.mxu0 %v296
    %5041 = vmatprep.subr.mxu0 %v295
    %5042 = vmatpush1.msra.mxu0 %v294
    %5043 = vmatprep.subr.mxu0 %v293
    %5044 = vmatpush1.msra.mxu0 %v292
    %5045 = vmatprep.subr.mxu0 %v291
    %5046 = vmatpush1.msra.mxu0 %v290
    %5047 = vmatprep.subr.mxu0 %v353
    %5048 = vmatpush2.msra.mxu0 %v352
    %5049 = vmatprep.subr.mxu0 %v351
    %5050 = vmatpush2.msra.mxu0 %v350
    %5051 = vmatprep.subr.mxu0 %v349
    %5052 = vmatpush2.msra.mxu0 %v348
    %5053 = vmatprep.subr.mxu0 %v347
    %5054 = vmatpush2.msra.mxu0 %v346
    %5055 = vmatprep.subr.mxu0 %v345
    %5056 = vmatpush2.msra.mxu0 %v344
    %5057 = vmatprep.subr.mxu0 %v343
    %5058 = vmatpush2.msra.mxu0 %v342
    %5059 = vmatprep.subr.mxu0 %v341
    %5060 = vmatpush2.msra.mxu0 %v340
    %5061 = vmatprep.subr.mxu0 %v339
    %5062 = vmatpush2.msra.mxu0 %v338
    %5063 = vmatprep.subr.mxu0 %v337
    %5064 = vmatpush2.msra.mxu0 %v336
    %5065 = vmatprep.subr.mxu0 %v335
    %5066 = vmatpush2.msra.mxu0 %v334
    %5067 = vmatprep.subr.mxu0 %v333
    %5068 = vmatpush2.msra.mxu0 %v332
    %5069 = vmatprep.subr.mxu0 %v331
    %5070 = vmatpush2.msra.mxu0 %v330
    %5071 = vmatprep.subr.mxu0 %v329
    %5072 = vmatpush2.msra.mxu0 %v328
    %5073 = vmatprep.subr.mxu0 %v327
    %5074 = vmatpush2.msra.mxu0 %v326
    %5075 = vmatprep.subr.mxu0 %v325
    %5076 = vmatpush2.msra.mxu0 %v324
    %5077 = vmatprep.subr.mxu0 %v323
    %5078 = vmatpush2.msra.mxu0 %v322
    %5079 = vmatprep.mubr.f32.mxu0 %v4960
    %5080 = vmatmul.mubr.f32.gmra.mxu0 %v4959
    %v5081 = vpop.f32.mrf.mxu0
    %v5082 = vadd.f32 0.0, %v5081
    %v5083 = vpop.f32.mrf.mxu0
    %v5084 = vadd.f32 0.0, %v5083
    %5085 = vmatprep.mubr.f32.mxu0 %v4962
    %5086 = vmatmul.mubr.f32.gmra.mxu0 %v4961
    %v5087 = vpop.f32.mrf.mxu0
    %v5088 = vadd.f32 0.0, %v5087
    %v5089 = vpop.f32.mrf.mxu0
    %v5090 = vadd.f32 0.0, %v5089
    %5091 = vmatprep.mubr.f32.mxu0 %v4964
    %5092 = vmatmul.mubr.f32.gmra.mxu0 %v4963
    %v5093 = vpop.f32.mrf.mxu0
    %v5094 = vadd.f32 0.0, %v5093
    %v5095 = vpop.f32.mrf.mxu0
    %v5096 = vadd.f32 0.0, %v5095
    %5097 = vmatprep.mubr.f32.mxu0 %v4966
    %5098 = vmatmul.mubr.f32.gmra.mxu0 %v4965
    %v5099 = vpop.f32.mrf.mxu0
    %v5100 = vadd.f32 0.0, %v5099
    %v5101 = vpop.f32.mrf.mxu0
    %v5102 = vadd.f32 0.0, %v5101
    %5103 = vmatprep.mubr.f32.mxu0 %v4968
    %5104 = vmatmul.mubr.f32.gmra.mxu0 %v4967
    %v5105 = vpop.f32.mrf.mxu0
    %v5106 = vadd.f32 0.0, %v5105
    %v5107 = vpop.f32.mrf.mxu0
    %v5108 = vadd.f32 0.0, %v5107
    %5109 = vmatprep.mubr.f32.mxu0 %v4970
    %5110 = vmatmul.mubr.f32.gmra.mxu0 %v4969
    %v5111 = vpop.f32.mrf.mxu0
    %v5112 = vadd.f32 0.0, %v5111
    %v5113 = vpop.f32.mrf.mxu0
    %v5114 = vadd.f32 0.0, %v5113
    %5115 = vmatprep.mubr.f32.mxu0 %v4972
    %5116 = vmatmul.mubr.f32.gmra.mxu0 %v4971
    %v5117 = vpop.f32.mrf.mxu0
    %v5118 = vadd.f32 0.0, %v5117
    %v5119 = vpop.f32.mrf.mxu0
    %v5120 = vadd.f32 0.0, %v5119
    %5121 = vmatprep.mubr.f32.mxu0 %v4974
    %5122 = vmatmul.mubr.f32.gmra.mxu0 %v4973
    %v5123 = vpop.f32.mrf.mxu0
    %v5124 = vadd.f32 0.0, %v5123
    %v5125 = vpop.f32.mrf.mxu0
    %v5126 = vadd.f32 0.0, %v5125
    %5127 = vmatprep.mubr.f32.mxu0 %v4976
    %5128 = vmatmul.mubr.f32.gmra.mxu0 %v4975
    %v5129 = vpop.f32.mrf.mxu0
    %v5130 = vadd.f32 0.0, %v5129
    %v5131 = vpop.f32.mrf.mxu0
    %v5132 = vadd.f32 0.0, %v5131
    %5133 = vmatprep.mubr.f32.mxu0 %v4978
    %5134 = vmatmul.mubr.f32.gmra.mxu0 %v4977
    %v5135 = vpop.f32.mrf.mxu0
    %v5136 = vadd.f32 0.0, %v5135
    %v5137 = vpop.f32.mrf.mxu0
    %v5138 = vadd.f32 0.0, %v5137
    %5139 = vmatprep.mubr.f32.mxu0 %v4980
    %5140 = vmatmul.mubr.f32.gmra.mxu0 %v4979
    %v5141 = vpop.f32.mrf.mxu0
    %v5142 = vadd.f32 0.0, %v5141
    %v5143 = vpop.f32.mrf.mxu0
    %v5144 = vadd.f32 0.0, %v5143
    %5145 = vmatprep.mubr.f32.mxu0 %v4982
    %5146 = vmatmul.mubr.f32.gmra.mxu0 %v4981
    %v5147 = vpop.f32.mrf.mxu0
    %v5148 = vadd.f32 0.0, %v5147
    %v5149 = vpop.f32.mrf.mxu0
    %v5150 = vadd.f32 0.0, %v5149
    %5151 = vmatprep.mubr.f32.mxu0 %v4984
    %5152 = vmatmul.mubr.f32.gmra.mxu0 %v4983
    %v5153 = vpop.f32.mrf.mxu0
    %v5154 = vadd.f32 0.0, %v5153
    %v5155 = vpop.f32.mrf.mxu0
    %v5156 = vadd.f32 0.0, %v5155
    %5157 = vmatprep.mubr.f32.mxu0 %v4986
    %5158 = vmatmul.mubr.f32.gmra.mxu0 %v4985
    %v5159 = vpop.f32.mrf.mxu0
    %v5160 = vadd.f32 0.0, %v5159
    %v5161 = vpop.f32.mrf.mxu0
    %v5162 = vadd.f32 0.0, %v5161
    %5163 = vmatprep.mubr.f32.mxu0 %v4988
    %5164 = vmatmul.mubr.f32.gmra.mxu0 %v4987
    %v5165 = vpop.f32.mrf.mxu0
    %v5166 = vadd.f32 0.0, %v5165
    %v5167 = vpop.f32.mrf.mxu0
    %v5168 = vadd.f32 0.0, %v5167
    %5169 = vmatprep.mubr.f32.mxu0 %v4990
    %5170 = vmatmul.mubr.f32.gmra.mxu0 %v4989
    %v5171 = vpop.f32.mrf.mxu0
    %v5172 = vadd.f32 0.0, %v5171
    %v5173 = vpop.f32.mrf.mxu0
    %v5174 = vadd.f32 0.0, %v5173
    %5175 = vmatprep.mubr.f32.mxu0 %v4992
    %5176 = vmatmul.mubr.f32.gmra.mxu0 %v4991
    %v5177 = vpop.f32.mrf.mxu0
    %v5178 = vadd.f32 0.0, %v5177
    %v5179 = vpop.f32.mrf.mxu0
    %v5180 = vadd.f32 0.0, %v5179
    %5181 = vmatprep.mubr.f32.mxu0 %v4994
    %5182 = vmatmul.mubr.f32.gmra.mxu0 %v4993
    %v5183 = vpop.f32.mrf.mxu0
    %v5184 = vadd.f32 0.0, %v5183
    %v5185 = vpop.f32.mrf.mxu0
    %v5186 = vadd.f32 0.0, %v5185
    %5187 = vmatprep.mubr.f32.mxu0 %v4996
    %5188 = vmatmul.mubr.f32.gmra.mxu0 %v4995
    %v5189 = vpop.f32.mrf.mxu0
    %v5190 = vadd.f32 0.0, %v5189
    %v5191 = vpop.f32.mrf.mxu0
    %v5192 = vadd.f32 0.0, %v5191
    %5193 = vmatprep.mubr.f32.mxu0 %v4998
    %5194 = vmatmul.mubr.f32.gmra.mxu0 %v4997
    %v5195 = vpop.f32.mrf.mxu0
    %v5196 = vadd.f32 0.0, %v5195
    %v5197 = vpop.f32.mrf.mxu0
    %v5198 = vadd.f32 0.0, %v5197
    %5199 = vmatprep.mubr.f32.mxu0 %v5000
    %5200 = vmatmul.mubr.f32.gmra.mxu0 %v4999
    %v5201 = vpop.f32.mrf.mxu0
    %v5202 = vadd.f32 0.0, %v5201
    %v5203 = vpop.f32.mrf.mxu0
    %v5204 = vadd.f32 0.0, %v5203
    %5205 = vmatprep.mubr.f32.mxu0 %v5002
    %5206 = vmatmul.mubr.f32.gmra.mxu0 %v5001
    %v5207 = vpop.f32.mrf.mxu0
    %v5208 = vadd.f32 0.0, %v5207
    %v5209 = vpop.f32.mrf.mxu0
    %v5210 = vadd.f32 0.0, %v5209
    %5211 = vmatprep.mubr.f32.mxu0 %v5004
    %5212 = vmatmul.mubr.f32.gmra.mxu0 %v5003
    %v5213 = vpop.f32.mrf.mxu0
    %v5214 = vadd.f32 0.0, %v5213
    %v5215 = vpop.f32.mrf.mxu0
    %v5216 = vadd.f32 0.0, %v5215
    %5217 = vmatprep.mubr.f32.mxu0 %v5006
    %5218 = vmatmul.mubr.f32.gmra.mxu0 %v5005
    %v5219 = vpop.f32.mrf.mxu0
    %v5220 = vadd.f32 0.0, %v5219
    %v5221 = vpop.f32.mrf.mxu0
    %v5222 = vadd.f32 0.0, %v5221
    %5223 = vmatprep.mubr.f32.mxu0 %v5008
    %5224 = vmatmul.mubr.f32.gmra.mxu0 %v5007
    %v5225 = vpop.f32.mrf.mxu0
    %v5226 = vadd.f32 0.0, %v5225
    %v5227 = vpop.f32.mrf.mxu0
    %v5228 = vadd.f32 0.0, %v5227
    %5229 = vmatprep.mubr.f32.mxu0 %v5010
    %5230 = vmatmul.mubr.f32.gmra.mxu0 %v5009
    %v5231 = vpop.f32.mrf.mxu0
    %v5232 = vadd.f32 0.0, %v5231
    %v5233 = vpop.f32.mrf.mxu0
    %v5234 = vadd.f32 0.0, %v5233
    %5235 = vmatprep.mubr.f32.mxu0 %v5012
    %5236 = vmatmul.mubr.f32.gmra.mxu0 %v5011
    %v5237 = vpop.f32.mrf.mxu0
    %v5238 = vadd.f32 0.0, %v5237
    %v5239 = vpop.f32.mrf.mxu0
    %v5240 = vadd.f32 0.0, %v5239
    %5241 = vmatprep.mubr.f32.mxu0 %v5014
    %5242 = vmatmul.mubr.f32.gmra.mxu0 %v5013
    %v5243 = vpop.f32.mrf.mxu0
    %v5244 = vadd.f32 0.0, %v5243
    %v5245 = vpop.f32.mrf.mxu0
    %v5246 = vadd.f32 0.0, %v5245
    %5247 = vdwg.mxu0
    %v5248 = vld [vmem:[#allocation6 + $0x4] sm:$0x7]
    %v5250 = vlaneseq
    %v5251 = vshrl.u32 %v5250, 7
    %v5252 = vsub.s32 0, %v5251
    %v5253 = vrot.slane %v5248, %v5252
    %v5254 = vlaneseq
    %v5255 = vshrl.u32 %v5254, 7
    %v5256 = vsub.s32 1, %v5255
    %v5257 = vrot.slane %v5248, %v5256
    %v5258 = vlaneseq
    %v5259 = vshrl.u32 %v5258, 7
    %v5260 = vsub.s32 2, %v5259
    %v5261 = vrot.slane %v5248, %v5260
    %5262 = vrot.lane.b32.xlu0 %v5253, 28
    %v5263 = vpop.permute.xlu0 %5262
    %5264 = vrot.lane.b32.xlu0 %v5257, 28
    %v5265 = vpop.permute.xlu0 %5264
    %5266 = vrot.lane.b32.xlu0 %v5261, 28
    %v5267 = vpop.permute.xlu0 %5266
    %v5268 = vsel %vm2710, %v5263, %v5265
    %v5269 = vsel %vm2710, %v5265, %v5267
    %v5272 = vadd.f32 %v5082, %v5268
    %v5273 = vadd.f32 %v5084, %v5269
    %v5274 = vadd.f32 %v5088, %v5268
    %v5275 = vadd.f32 %v5090, %v5269
    %v5276 = vadd.f32 %v5094, %v5268
    %v5277 = vadd.f32 %v5096, %v5269
    %v5278 = vadd.f32 %v5100, %v5268
    %v5279 = vadd.f32 %v5102, %v5269
    %v5280 = vadd.f32 %v5106, %v5268
    %v5281 = vadd.f32 %v5108, %v5269
    %v5282 = vadd.f32 %v5112, %v5268
    %v5283 = vadd.f32 %v5114, %v5269
    %v5284 = vadd.f32 %v5118, %v5268
    %v5285 = vadd.f32 %v5120, %v5269
    %v5286 = vmul.f32 %v5272, 100.0
    %v5287 = vmul.f32 %v5273, 100.0
    %v5288 = vmul.f32 %v5274, 100.0
    %v5289 = vmul.f32 %v5275, 100.0
    %v5290 = vmul.f32 %v5276, 100.0
    %v5291 = vmul.f32 %v5277, 100.0
    %v5292 = vmul.f32 %v5278, 100.0
    %v5293 = vmul.f32 %v5279, 100.0
    %v5294 = vmul.f32 %v5280, 100.0
    %v5295 = vmul.f32 %v5281, 100.0
    %v5296 = vmul.f32 %v5282, 100.0
    %v5297 = vmul.f32 %v5283, 100.0
    %v5298 = vmul.f32 %v5284, 100.0
    %v5299 = vmul.f32 %v5285, 100.0
    %vm5300 = vcmp.gt.f32.partialorder %v5286, 20.0
    %vm5301 = vcmp.gt.f32.partialorder %v5287, 20.0
    %vm5302 = vcmp.gt.f32.partialorder %v5288, 20.0
    %vm5303 = vcmp.gt.f32.partialorder %v5289, 20.0
    %vm5304 = vcmp.gt.f32.partialorder %v5290, 20.0
    %vm5305 = vcmp.gt.f32.partialorder %v5291, 20.0
    %vm5306 = vcmp.gt.f32.partialorder %v5292, 20.0
    %vm5307 = vcmp.gt.f32.partialorder %v5293, 20.0
    %vm5308 = vcmp.gt.f32.partialorder %v5294, 20.0
    %vm5309 = vcmp.gt.f32.partialorder %v5295, 20.0
    %vm5310 = vcmp.gt.f32.partialorder %v5296, 20.0
    %vm5311 = vcmp.gt.f32.partialorder %v5297, 20.0
    %vm5312 = vcmp.gt.f32.partialorder %v5298, 20.0
    %vm5313 = vcmp.gt.f32.partialorder %v5299, 20.0
    %v5314 = vmin.f32 %v5286, 20.0
    %v5315 = vmin.f32 %v5287, 20.0
    %v5316 = vmin.f32 %v5288, 20.0
    %v5317 = vmin.f32 %v5289, 20.0
    %v5318 = vmin.f32 %v5290, 20.0
    %v5319 = vmin.f32 %v5291, 20.0
    %v5320 = vmin.f32 %v5292, 20.0
    %v5321 = vmin.f32 %v5293, 20.0
    %v5322 = vmin.f32 %v5294, 20.0
    %v5323 = vmin.f32 %v5295, 20.0
    %v5324 = vmin.f32 %v5296, 20.0
    %v5325 = vmin.f32 %v5297, 20.0
    %v5326 = vmin.f32 %v5298, 20.0
    %v5327 = vmin.f32 %v5299, 20.0
    %v5328 = vmul.f32 %v5314, 1.442695
    %v5329 = vpow.pop %v5328
    %v5330 = vmul.f32 %v5315, 1.442695
    %v5331 = vpow.pop %v5330
    %v5332 = vmul.f32 %v5316, 1.442695
    %v5333 = vpow.pop %v5332
    %v5334 = vmul.f32 %v5317, 1.442695
    %v5335 = vpow.pop %v5334
    %v5336 = vmul.f32 %v5318, 1.442695
    %v5337 = vpow.pop %v5336
    %v5338 = vmul.f32 %v5319, 1.442695
    %v5339 = vpow.pop %v5338
    %v5340 = vmul.f32 %v5320, 1.442695
    %v5341 = vpow.pop %v5340
    %v5342 = vmul.f32 %v5321, 1.442695
    %v5343 = vpow.pop %v5342
    %v5344 = vmul.f32 %v5322, 1.442695
    %v5345 = vpow.pop %v5344
    %v5346 = vmul.f32 %v5323, 1.442695
    %v5347 = vpow.pop %v5346
    %v5348 = vmul.f32 %v5324, 1.442695
    %v5349 = vpow.pop %v5348
    %v5350 = vmul.f32 %v5325, 1.442695
    %v5351 = vpow.pop %v5350
    %v5352 = vmul.f32 %v5326, 1.442695
    %v5353 = vpow.pop %v5352
    %v5354 = vmul.f32 %v5327, 1.442695
    %v5355 = vpow.pop %v5354
    %v5356 = vadd.f32 %v5329, 1.0
    %v5357 = vlog2.pop %v5356
    %v5358 = vmul.f32 %v5357, 0.6931472
    %v5359 = vmul.f32 -0.5, %v5329
    %v5360 = vadd.f32 %v5359, 1.0
    %v5361 = vmul.f32 %v5360, %v5329
    %v5362 = vand.u32 2147483647, %v5329
    %vm5363 = vcmp.lt.f32.partialorder %v5362, 0.0004427343
    %v5364 = vsel %vm5363, %v5361, %v5358
    %v5365 = vadd.f32 %v5331, 1.0
    %v5366 = vlog2.pop %v5365
    %v5367 = vmul.f32 %v5366, 0.6931472
    %v5368 = vmul.f32 -0.5, %v5331
    %v5369 = vadd.f32 %v5368, 1.0
    %v5370 = vmul.f32 %v5369, %v5331
    %v5371 = vand.u32 2147483647, %v5331
    %vm5372 = vcmp.lt.f32.partialorder %v5371, 0.0004427343
    %v5373 = vsel %vm5372, %v5370, %v5367
    %v5374 = vadd.f32 %v5333, 1.0
    %v5375 = vlog2.pop %v5374
    %v5376 = vmul.f32 %v5375, 0.6931472
    %v5377 = vmul.f32 -0.5, %v5333
    %v5378 = vadd.f32 %v5377, 1.0
    %v5379 = vmul.f32 %v5378, %v5333
    %v5380 = vand.u32 2147483647, %v5333
    %vm5381 = vcmp.lt.f32.partialorder %v5380, 0.0004427343
    %v5382 = vsel %vm5381, %v5379, %v5376
    %v5383 = vadd.f32 %v5335, 1.0
    %v5384 = vlog2.pop %v5383
    %v5385 = vmul.f32 %v5384, 0.6931472
    %v5386 = vmul.f32 -0.5, %v5335
    %v5387 = vadd.f32 %v5386, 1.0
    %v5388 = vmul.f32 %v5387, %v5335
    %v5389 = vand.u32 2147483647, %v5335
    %vm5390 = vcmp.lt.f32.partialorder %v5389, 0.0004427343
    %v5391 = vsel %vm5390, %v5388, %v5385
    %v5392 = vadd.f32 %v5337, 1.0
    %v5393 = vlog2.pop %v5392
    %v5394 = vmul.f32 %v5393, 0.6931472
    %v5395 = vmul.f32 -0.5, %v5337
    %v5396 = vadd.f32 %v5395, 1.0
    %v5397 = vmul.f32 %v5396, %v5337
    %v5398 = vand.u32 2147483647, %v5337
    %vm5399 = vcmp.lt.f32.partialorder %v5398, 0.0004427343
    %v5400 = vsel %vm5399, %v5397, %v5394
    %v5401 = vadd.f32 %v5339, 1.0
    %v5402 = vlog2.pop %v5401
    %v5403 = vmul.f32 %v5402, 0.6931472
    %v5404 = vmul.f32 -0.5, %v5339
    %v5405 = vadd.f32 %v5404, 1.0
    %v5406 = vmul.f32 %v5405, %v5339
    %v5407 = vand.u32 2147483647, %v5339
    %vm5408 = vcmp.lt.f32.partialorder %v5407, 0.0004427343
    %v5409 = vsel %vm5408, %v5406, %v5403
    %v5410 = vadd.f32 %v5341, 1.0
    %v5411 = vlog2.pop %v5410
    %v5412 = vmul.f32 %v5411, 0.6931472
    %v5413 = vmul.f32 -0.5, %v5341
    %v5414 = vadd.f32 %v5413, 1.0
    %v5415 = vmul.f32 %v5414, %v5341
    %v5416 = vand.u32 2147483647, %v5341
    %vm5417 = vcmp.lt.f32.partialorder %v5416, 0.0004427343
    %v5418 = vsel %vm5417, %v5415, %v5412
    %v5419 = vadd.f32 %v5343, 1.0
    %v5420 = vlog2.pop %v5419
    %v5421 = vmul.f32 %v5420, 0.6931472
    %v5422 = vmul.f32 -0.5, %v5343
    %v5423 = vadd.f32 %v5422, 1.0
    %v5424 = vmul.f32 %v5423, %v5343
    %v5425 = vand.u32 2147483647, %v5343
    %vm5426 = vcmp.lt.f32.partialorder %v5425, 0.0004427343
    %v5427 = vsel %vm5426, %v5424, %v5421
    %v5428 = vadd.f32 %v5345, 1.0
    %v5429 = vlog2.pop %v5428
    %v5430 = vmul.f32 %v5429, 0.6931472
    %v5431 = vmul.f32 -0.5, %v5345
    %v5432 = vadd.f32 %v5431, 1.0
    %v5433 = vmul.f32 %v5432, %v5345
    %v5434 = vand.u32 2147483647, %v5345
    %vm5435 = vcmp.lt.f32.partialorder %v5434, 0.0004427343
    %v5436 = vsel %vm5435, %v5433, %v5430
    %v5437 = vadd.f32 %v5347, 1.0
    %v5438 = vlog2.pop %v5437
    %v5439 = vmul.f32 %v5438, 0.6931472
    %v5440 = vmul.f32 -0.5, %v5347
    %v5441 = vadd.f32 %v5440, 1.0
    %v5442 = vmul.f32 %v5441, %v5347
    %v5443 = vand.u32 2147483647, %v5347
    %vm5444 = vcmp.lt.f32.partialorder %v5443, 0.0004427343
    %v5445 = vsel %vm5444, %v5442, %v5439
    %v5446 = vadd.f32 %v5349, 1.0
    %v5447 = vlog2.pop %v5446
    %v5448 = vmul.f32 %v5447, 0.6931472
    %v5449 = vmul.f32 -0.5, %v5349
    %v5450 = vadd.f32 %v5449, 1.0
    %v5451 = vmul.f32 %v5450, %v5349
    %v5452 = vand.u32 2147483647, %v5349
    %vm5453 = vcmp.lt.f32.partialorder %v5452, 0.0004427343
    %v5454 = vsel %vm5453, %v5451, %v5448
    %v5455 = vadd.f32 %v5351, 1.0
    %v5456 = vlog2.pop %v5455
    %v5457 = vmul.f32 %v5456, 0.6931472
    %v5458 = vmul.f32 -0.5, %v5351
    %v5459 = vadd.f32 %v5458, 1.0
    %v5460 = vmul.f32 %v5459, %v5351
    %v5461 = vand.u32 2147483647, %v5351
    %vm5462 = vcmp.lt.f32.partialorder %v5461, 0.0004427343
    %v5463 = vsel %vm5462, %v5460, %v5457
    %v5464 = vadd.f32 %v5353, 1.0
    %v5465 = vlog2.pop %v5464
    %v5466 = vmul.f32 %v5465, 0.6931472
    %v5467 = vmul.f32 -0.5, %v5353
    %v5468 = vadd.f32 %v5467, 1.0
    %v5469 = vmul.f32 %v5468, %v5353
    %v5470 = vand.u32 2147483647, %v5353
    %vm5471 = vcmp.lt.f32.partialorder %v5470, 0.0004427343
    %v5472 = vsel %vm5471, %v5469, %v5466
    %v5473 = vadd.f32 %v5355, 1.0
    %v5474 = vlog2.pop %v5473
    %v5475 = vmul.f32 %v5474, 0.6931472
    %v5476 = vmul.f32 -0.5, %v5355
    %v5477 = vadd.f32 %v5476, 1.0
    %v5478 = vmul.f32 %v5477, %v5355
    %v5479 = vand.u32 2147483647, %v5355
    %vm5480 = vcmp.lt.f32.partialorder %v5479, 0.0004427343
    %v5481 = vsel %vm5480, %v5478, %v5475
    %v5482 = vmul.f32 %v5364, 0.01
    %v5483 = vmul.f32 %v5373, 0.01
    %v5484 = vmul.f32 %v5382, 0.01
    %v5485 = vmul.f32 %v5391, 0.01
    %v5486 = vmul.f32 %v5400, 0.01
    %v5487 = vmul.f32 %v5409, 0.01
    %v5488 = vmul.f32 %v5418, 0.01
    %v5489 = vmul.f32 %v5427, 0.01
    %v5490 = vmul.f32 %v5436, 0.01
    %v5491 = vmul.f32 %v5445, 0.01
    %v5492 = vmul.f32 %v5454, 0.01
    %v5493 = vmul.f32 %v5463, 0.01
    %v5494 = vmul.f32 %v5472, 0.01
    %v5495 = vmul.f32 %v5481, 0.01
    %v5496 = vsel %vm5300, %v5272, %v5482
    %v5497 = vsel %vm5301, %v5273, %v5483
    %v5498 = vsel %vm5302, %v5274, %v5484
    %v5499 = vsel %vm5303, %v5275, %v5485
    %v5500 = vsel %vm5304, %v5276, %v5486
    %v5501 = vsel %vm5305, %v5277, %v5487
    %v5502 = vsel %vm5306, %v5278, %v5488
    %v5503 = vsel %vm5307, %v5279, %v5489
    %v5504 = vsel %vm5308, %v5280, %v5490
    %v5505 = vsel %vm5309, %v5281, %v5491
    %v5506 = vsel %vm5310, %v5282, %v5492
    %v5507 = vsel %vm5311, %v5283, %v5493
    %v5508 = vsel %vm5312, %v5284, %v5494
    %v5509 = vsel %vm5313, %v5285, %v5495
    %5510 = vst [vmem:[#allocation3] sm:$0xff] %v5496
    %5511 = vst [vmem:[#allocation3 + $0x8] sm:$0xff] %v5497
    %5512 = vst [vmem:[#allocation3 + $0x10] sm:$0xff] %v5498
    %5513 = vst [vmem:[#allocation3 + $0x18] sm:$0xff] %v5499
    %5514 = vst [vmem:[#allocation3 + $0x20] sm:$0xff] %v5500
    %5515 = vst [vmem:[#allocation3 + $0x28] sm:$0xff] %v5501
    %5516 = vst [vmem:[#allocation3 + $0x30] sm:$0xff] %v5502
    %5517 = vst [vmem:[#allocation3 + $0x38] sm:$0xff] %v5503
    %5518 = vst [vmem:[#allocation3 + $0x40] sm:$0xff] %v5504
    %5519 = vst [vmem:[#allocation3 + $0x48] sm:$0xff] %v5505
    %5520 = vst [vmem:[#allocation3 + $0x50] sm:$0xff] %v5506
    %5521 = vst [vmem:[#allocation3 + $0x58] sm:$0xff] %v5507
    %5522 = vst [vmem:[#allocation3 + $0x60] sm:$0xff] %v5508
    %5523 = vst [vmem:[#allocation3 + $0x68] sm:$0xff] %v5509
    %v5524 = vadd.f32 %v5329, 1.0
    %v5525 = vadd.f32 %v5331, 1.0
    %v5526 = vadd.f32 %v5333, 1.0
    %v5527 = vadd.f32 %v5335, 1.0
    %v5528 = vadd.f32 %v5337, 1.0
    %v5529 = vadd.f32 %v5339, 1.0
    %v5530 = vadd.f32 %v5341, 1.0
    %v5531 = vadd.f32 %v5343, 1.0
    %v5532 = vadd.f32 %v5345, 1.0
    %v5533 = vadd.f32 %v5347, 1.0
    %v5534 = vadd.f32 %v5349, 1.0
    %v5535 = vadd.f32 %v5351, 1.0
    %v5536 = vadd.f32 %v5353, 1.0
    %v5537 = vadd.f32 %v5355, 1.0
    %v5538 = vrcp.pop %v5524
    %v5539 = vmul.f32 %v5329, %v5538
    %v5540 = vrcp.pop %v5525
    %v5541 = vmul.f32 %v5331, %v5540
    %v5542 = vrcp.pop %v5526
    %v5543 = vmul.f32 %v5333, %v5542
    %v5544 = vrcp.pop %v5527
    %v5545 = vmul.f32 %v5335, %v5544
    %v5546 = vrcp.pop %v5528
    %v5547 = vmul.f32 %v5337, %v5546
    %v5548 = vrcp.pop %v5529
    %v5549 = vmul.f32 %v5339, %v5548
    %v5550 = vrcp.pop %v5530
    %v5551 = vmul.f32 %v5341, %v5550
    %v5552 = vrcp.pop %v5531
    %v5553 = vmul.f32 %v5343, %v5552
    %v5554 = vrcp.pop %v5532
    %v5555 = vmul.f32 %v5345, %v5554
    %v5556 = vrcp.pop %v5533
    %v5557 = vmul.f32 %v5347, %v5556
    %v5558 = vrcp.pop %v5534
    %v5559 = vmul.f32 %v5349, %v5558
    %v5560 = vrcp.pop %v5535
    %v5561 = vmul.f32 %v5351, %v5560
    %v5562 = vrcp.pop %v5536
    %v5563 = vmul.f32 %v5353, %v5562
    %v5564 = vrcp.pop %v5537
    %v5565 = vmul.f32 %v5355, %v5564
    %v5566 = vsel %vm5300, 1.0, %v5539
    %v5567 = vsel %vm5301, 1.0, %v5541
    %v5568 = vsel %vm5302, 1.0, %v5543
    %v5569 = vsel %vm5303, 1.0, %v5545
    %v5570 = vsel %vm5304, 1.0, %v5547
    %v5571 = vsel %vm5305, 1.0, %v5549
    %v5572 = vsel %vm5306, 1.0, %v5551
    %v5573 = vsel %vm5307, 1.0, %v5553
    %v5574 = vsel %vm5308, 1.0, %v5555
    %v5575 = vsel %vm5309, 1.0, %v5557
    %v5576 = vsel %vm5310, 1.0, %v5559
    %v5577 = vsel %vm5311, 1.0, %v5561
    %v5578 = vsel %vm5312, 1.0, %v5563
    %v5579 = vsel %vm5313, 1.0, %v5565
    %v5580 = vmul.f32 %v5124, %v5566
    %v5581 = vmul.f32 %v5126, %v5567
    %v5582 = vmul.f32 %v5130, %v5568
    %v5583 = vmul.f32 %v5132, %v5569
    %v5584 = vmul.f32 %v5136, %v5570
    %v5585 = vmul.f32 %v5138, %v5571
    %v5586 = vmul.f32 %v5142, %v5572
    %v5587 = vmul.f32 %v5144, %v5573
    %v5588 = vmul.f32 %v5148, %v5574
    %v5589 = vmul.f32 %v5150, %v5575
    %v5590 = vmul.f32 %v5154, %v5576
    %v5591 = vmul.f32 %v5156, %v5577
    %v5592 = vmul.f32 %v5160, %v5578
    %v5593 = vmul.f32 %v5162, %v5579
    %v5594 = vmul.f32 %v5166, %v5566
    %v5595 = vmul.f32 %v5168, %v5567
    %v5596 = vmul.f32 %v5172, %v5568
    %v5597 = vmul.f32 %v5174, %v5569
    %v5598 = vmul.f32 %v5178, %v5570
    %v5599 = vmul.f32 %v5180, %v5571
    %v5600 = vmul.f32 %v5184, %v5572
    %v5601 = vmul.f32 %v5186, %v5573
    %v5602 = vmul.f32 %v5190, %v5574
    %v5603 = vmul.f32 %v5192, %v5575
    %v5604 = vmul.f32 %v5196, %v5576
    %v5605 = vmul.f32 %v5198, %v5577
    %v5606 = vmul.f32 %v5202, %v5578
    %v5607 = vmul.f32 %v5204, %v5579
    %v5608 = vmul.f32 %v5208, %v5566
    %v5609 = vmul.f32 %v5210, %v5567
    %v5610 = vmul.f32 %v5214, %v5568
    %v5611 = vmul.f32 %v5216, %v5569
    %v5612 = vmul.f32 %v5220, %v5570
    %v5613 = vmul.f32 %v5222, %v5571
    %v5614 = vmul.f32 %v5226, %v5572
    %v5615 = vmul.f32 %v5228, %v5573
    %v5616 = vmul.f32 %v5232, %v5574
    %v5617 = vmul.f32 %v5234, %v5575
    %v5618 = vmul.f32 %v5238, %v5576
    %v5619 = vmul.f32 %v5240, %v5577
    %v5620 = vmul.f32 %v5244, %v5578
    %v5621 = vmul.f32 %v5246, %v5579
    %5622 = vst [vmem:[#allocation3 + $0x70] sm:$0xff] %v5580
    %5623 = vst [vmem:[#allocation3 + $0x78] sm:$0xff] %v5581
    %5624 = vst [vmem:[#allocation3 + $0x80] sm:$0xff] %v5582
    %5625 = vst [vmem:[#allocation3 + $0x88] sm:$0xff] %v5583
    %5626 = vst [vmem:[#allocation3 + $0x90] sm:$0xff] %v5584
    %5627 = vst [vmem:[#allocation3 + $0x98] sm:$0xff] %v5585
    %5628 = vst [vmem:[#allocation3 + $0xa0] sm:$0xff] %v5586
    %5629 = vst [vmem:[#allocation3 + $0xa8] sm:$0xff] %v5587
    %5630 = vst [vmem:[#allocation3 + $0xb0] sm:$0xff] %v5588
    %5631 = vst [vmem:[#allocation3 + $0xb8] sm:$0xff] %v5589
    %5632 = vst [vmem:[#allocation3 + $0xc0] sm:$0xff] %v5590
    %5633 = vst [vmem:[#allocation3 + $0xc8] sm:$0xff] %v5591
    %5634 = vst [vmem:[#allocation3 + $0xd0] sm:$0xff] %v5592
    %5635 = vst [vmem:[#allocation3 + $0xd8] sm:$0xff] %v5593
    %5636 = vst [vmem:[#allocation3 + $0xe0] sm:$0xff] %v5594
    %5637 = vst [vmem:[#allocation3 + $0xe8] sm:$0xff] %v5595
    %5638 = vst [vmem:[#allocation3 + $0xf0] sm:$0xff] %v5596
    %5639 = vst [vmem:[#allocation3 + $0xf8] sm:$0xff] %v5597
    %5640 = vst [vmem:[#allocation3 + $0x100] sm:$0xff] %v5598
    %5641 = vst [vmem:[#allocation3 + $0x108] sm:$0xff] %v5599
    %5642 = vst [vmem:[#allocation3 + $0x110] sm:$0xff] %v5600
    %5643 = vst [vmem:[#allocation3 + $0x118] sm:$0xff] %v5601
    %5644 = vst [vmem:[#allocation3 + $0x120] sm:$0xff] %v5602
    %5645 = vst [vmem:[#allocation3 + $0x128] sm:$0xff] %v5603
    %5646 = vst [vmem:[#allocation3 + $0x130] sm:$0xff] %v5604
    %5647 = vst [vmem:[#allocation3 + $0x138] sm:$0xff] %v5605
    %5648 = vst [vmem:[#allocation3 + $0x140] sm:$0xff] %v5606
    %5649 = vst [vmem:[#allocation3 + $0x148] sm:$0xff] %v5607
    %5650 = vst [vmem:[#allocation3 + $0x150] sm:$0xff] %v5608
    %5651 = vst [vmem:[#allocation3 + $0x158] sm:$0xff] %v5609
    %5652 = vst [vmem:[#allocation3 + $0x160] sm:$0xff] %v5610
    %5653 = vst [vmem:[#allocation3 + $0x168] sm:$0xff] %v5611
    %5654 = vst [vmem:[#allocation3 + $0x170] sm:$0xff] %v5612
    %5655 = vst [vmem:[#allocation3 + $0x178] sm:$0xff] %v5613
    %5656 = vst [vmem:[#allocation3 + $0x180] sm:$0xff] %v5614
    %5657 = vst [vmem:[#allocation3 + $0x188] sm:$0xff] %v5615
    %5658 = vst [vmem:[#allocation3 + $0x190] sm:$0xff] %v5616
    %5659 = vst [vmem:[#allocation3 + $0x198] sm:$0xff] %v5617
    %5660 = vst [vmem:[#allocation3 + $0x1a0] sm:$0xff] %v5618
    %5661 = vst [vmem:[#allocation3 + $0x1a8] sm:$0xff] %v5619
    %5662 = vst [vmem:[#allocation3 + $0x1b0] sm:$0xff] %v5620
    %5663 = vst [vmem:[#allocation3 + $0x1b8] sm:$0xff] %v5621
    %v5664 = vld [vmem:[#allocation3] sm:$0xff]
    %v5665 = vld [vmem:[#allocation3 + $0x8] sm:$0xff]
    %v5666 = vld [vmem:[#allocation3 + $0x10] sm:$0xff]
    %v5667 = vld [vmem:[#allocation3 + $0x18] sm:$0xff]
    %v5668 = vld [vmem:[#allocation3 + $0x20] sm:$0xff]
    %v5669 = vld [vmem:[#allocation3 + $0x28] sm:$0xff]
    %v5670 = vld [vmem:[#allocation3 + $0x30] sm:$0xff]
    %v5671 = vld [vmem:[#allocation3 + $0x38] sm:$0xff]
    %v5672 = vld [vmem:[#allocation3 + $0x40] sm:$0xff]
    %v5673 = vld [vmem:[#allocation3 + $0x48] sm:$0xff]
    %v5674 = vld [vmem:[#allocation3 + $0x50] sm:$0xff]
    %v5675 = vld [vmem:[#allocation3 + $0x58] sm:$0xff]
    %v5676 = vld [vmem:[#allocation3 + $0x60] sm:$0xff]
    %v5677 = vld [vmem:[#allocation3 + $0x68] sm:$0xff]
    %v5678 = vld [vmem:[#allocation3 + $0x70] sm:$0xff]
    %v5679 = vld [vmem:[#allocation3 + $0x78] sm:$0xff]
    %v5680 = vld [vmem:[#allocation3 + $0x80] sm:$0xff]
    %v5681 = vld [vmem:[#allocation3 + $0x88] sm:$0xff]
    %v5682 = vld [vmem:[#allocation3 + $0x90] sm:$0xff]
    %v5683 = vld [vmem:[#allocation3 + $0x98] sm:$0xff]
    %v5684 = vld [vmem:[#allocation3 + $0xa0] sm:$0xff]
    %v5685 = vld [vmem:[#allocation3 + $0xa8] sm:$0xff]
    %v5686 = vld [vmem:[#allocation3 + $0xb0] sm:$0xff]
    %v5687 = vld [vmem:[#allocation3 + $0xb8] sm:$0xff]
    %v5688 = vld [vmem:[#allocation3 + $0xc0] sm:$0xff]
    %v5689 = vld [vmem:[#allocation3 + $0xc8] sm:$0xff]
    %v5690 = vld [vmem:[#allocation3 + $0xd0] sm:$0xff]
    %v5691 = vld [vmem:[#allocation3 + $0xd8] sm:$0xff]
    %v5692 = vld [vmem:[#allocation3 + $0xe0] sm:$0xff]
    %v5693 = vld [vmem:[#allocation3 + $0xe8] sm:$0xff]
    %v5694 = vld [vmem:[#allocation3 + $0xf0] sm:$0xff]
    %v5695 = vld [vmem:[#allocation3 + $0xf8] sm:$0xff]
    %v5696 = vld [vmem:[#allocation3 + $0x100] sm:$0xff]
    %v5697 = vld [vmem:[#allocation3 + $0x108] sm:$0xff]
    %v5698 = vld [vmem:[#allocation3 + $0x110] sm:$0xff]
    %v5699 = vld [vmem:[#allocation3 + $0x118] sm:$0xff]
    %v5700 = vld [vmem:[#allocation3 + $0x120] sm:$0xff]
    %v5701 = vld [vmem:[#allocation3 + $0x128] sm:$0xff]
    %v5702 = vld [vmem:[#allocation3 + $0x130] sm:$0xff]
    %v5703 = vld [vmem:[#allocation3 + $0x138] sm:$0xff]
    %v5704 = vld [vmem:[#allocation3 + $0x140] sm:$0xff]
    %v5705 = vld [vmem:[#allocation3 + $0x148] sm:$0xff]
    %v5706 = vld [vmem:[#allocation3 + $0x150] sm:$0xff]
    %v5707 = vld [vmem:[#allocation3 + $0x158] sm:$0xff]
    %v5708 = vld [vmem:[#allocation3 + $0x160] sm:$0xff]
    %v5709 = vld [vmem:[#allocation3 + $0x168] sm:$0xff]
    %v5710 = vld [vmem:[#allocation3 + $0x170] sm:$0xff]
    %v5711 = vld [vmem:[#allocation3 + $0x178] sm:$0xff]
    %v5712 = vld [vmem:[#allocation3 + $0x180] sm:$0xff]
    %v5713 = vld [vmem:[#allocation3 + $0x188] sm:$0xff]
    %v5714 = vld [vmem:[#allocation3 + $0x190] sm:$0xff]
    %v5715 = vld [vmem:[#allocation3 + $0x198] sm:$0xff]
    %v5716 = vld [vmem:[#allocation3 + $0x1a0] sm:$0xff]
    %v5717 = vld [vmem:[#allocation3 + $0x1a8] sm:$0xff]
    %v5718 = vld [vmem:[#allocation3 + $0x1b0] sm:$0xff]
    %v5719 = vld [vmem:[#allocation3 + $0x1b8] sm:$0xff]
    %5720 = vmatprep.subr.mxu0 %v385
    %5721 = vmatpush1.msra.mxu0 %v384
    %5722 = vmatprep.subr.mxu0 %v383
    %5723 = vmatpush1.msra.mxu0 %v382
    %5724 = vmatprep.subr.mxu0 %v381
    %5725 = vmatpush1.msra.mxu0 %v380
    %5726 = vmatprep.subr.mxu0 %v379
    %5727 = vmatpush1.msra.mxu0 %v378
    %5728 = vmatprep.subr.mxu0 %v377
    %5729 = vmatpush1.msra.mxu0 %v376
    %5730 = vmatprep.subr.mxu0 %v375
    %5731 = vmatpush1.msra.mxu0 %v374
    %5732 = vmatprep.subr.mxu0 %v373
    %5733 = vmatpush1.msra.mxu0 %v372
    %5734 = vmatprep.subr.mxu0 %v371
    %5735 = vmatpush1.msra.mxu0 %v370
    %5736 = vmatprep.subr.mxu0 %v369
    %5737 = vmatpush1.msra.mxu0 %v368
    %5738 = vmatprep.subr.mxu0 %v367
    %5739 = vmatpush1.msra.mxu0 %v366
    %5740 = vmatprep.subr.mxu0 %v365
    %5741 = vmatpush1.msra.mxu0 %v364
    %5742 = vmatprep.subr.mxu0 %v363
    %5743 = vmatpush1.msra.mxu0 %v362
    %5744 = vmatprep.subr.mxu0 %v361
    %5745 = vmatpush1.msra.mxu0 %v360
    %5746 = vmatprep.subr.mxu0 %v359
    %5747 = vmatpush1.msra.mxu0 %v358
    %5748 = vmatprep.subr.mxu0 %v357
    %5749 = vmatpush1.msra.mxu0 %v356
    %5750 = vmatprep.subr.mxu0 %v355
    %5751 = vmatpush1.msra.mxu0 %v354
    %5752 = vmatprep.subr.mxu0 %v417
    %5753 = vmatpush2.msra.mxu0 %v416
    %5754 = vmatprep.subr.mxu0 %v415
    %5755 = vmatpush2.msra.mxu0 %v414
    %5756 = vmatprep.subr.mxu0 %v413
    %5757 = vmatpush2.msra.mxu0 %v412
    %5758 = vmatprep.subr.mxu0 %v411
    %5759 = vmatpush2.msra.mxu0 %v410
    %5760 = vmatprep.subr.mxu0 %v409
    %5761 = vmatpush2.msra.mxu0 %v408
    %5762 = vmatprep.subr.mxu0 %v407
    %5763 = vmatpush2.msra.mxu0 %v406
    %5764 = vmatprep.subr.mxu0 %v405
    %5765 = vmatpush2.msra.mxu0 %v404
    %5766 = vmatprep.subr.mxu0 %v403
    %5767 = vmatpush2.msra.mxu0 %v402
    %5768 = vmatprep.subr.mxu0 %v401
    %5769 = vmatpush2.msra.mxu0 %v400
    %5770 = vmatprep.subr.mxu0 %v399
    %5771 = vmatpush2.msra.mxu0 %v398
    %5772 = vmatprep.subr.mxu0 %v397
    %5773 = vmatpush2.msra.mxu0 %v396
    %5774 = vmatprep.subr.mxu0 %v395
    %5775 = vmatpush2.msra.mxu0 %v394
    %5776 = vmatprep.subr.mxu0 %v393
    %5777 = vmatpush2.msra.mxu0 %v392
    %5778 = vmatprep.subr.mxu0 %v391
    %5779 = vmatpush2.msra.mxu0 %v390
    %5780 = vmatprep.subr.mxu0 %v389
    %5781 = vmatpush2.msra.mxu0 %v388
    %5782 = vmatprep.subr.mxu0 %v387
    %5783 = vmatpush2.msra.mxu0 %v386
    %5784 = vmatprep.mubr.f32.mxu0 %v5665
    %5785 = vmatmul.mubr.f32.gmra.mxu0 %v5664
    %v5786 = vpop.f32.mrf.mxu0
    %v5787 = vadd.f32 0.0, %v5786
    %v5788 = vpop.f32.mrf.mxu0
    %v5789 = vadd.f32 0.0, %v5788
    %5790 = vmatprep.mubr.f32.mxu0 %v5667
    %5791 = vmatmul.mubr.f32.gmra.mxu0 %v5666
    %v5792 = vpop.f32.mrf.mxu0
    %v5793 = vadd.f32 0.0, %v5792
    %v5794 = vpop.f32.mrf.mxu0
    %v5795 = vadd.f32 0.0, %v5794
    %5796 = vmatprep.mubr.f32.mxu0 %v5669
    %5797 = vmatmul.mubr.f32.gmra.mxu0 %v5668
    %v5798 = vpop.f32.mrf.mxu0
    %v5799 = vadd.f32 0.0, %v5798
    %v5800 = vpop.f32.mrf.mxu0
    %v5801 = vadd.f32 0.0, %v5800
    %5802 = vmatprep.mubr.f32.mxu0 %v5671
    %5803 = vmatmul.mubr.f32.gmra.mxu0 %v5670
    %v5804 = vpop.f32.mrf.mxu0
    %v5805 = vadd.f32 0.0, %v5804
    %v5806 = vpop.f32.mrf.mxu0
    %v5807 = vadd.f32 0.0, %v5806
    %5808 = vmatprep.mubr.f32.mxu0 %v5673
    %5809 = vmatmul.mubr.f32.gmra.mxu0 %v5672
    %v5810 = vpop.f32.mrf.mxu0
    %v5811 = vadd.f32 0.0, %v5810
    %v5812 = vpop.f32.mrf.mxu0
    %v5813 = vadd.f32 0.0, %v5812
    %5814 = vmatprep.mubr.f32.mxu0 %v5675
    %5815 = vmatmul.mubr.f32.gmra.mxu0 %v5674
    %v5816 = vpop.f32.mrf.mxu0
    %v5817 = vadd.f32 0.0, %v5816
    %v5818 = vpop.f32.mrf.mxu0
    %v5819 = vadd.f32 0.0, %v5818
    %5820 = vmatprep.mubr.f32.mxu0 %v5677
    %5821 = vmatmul.mubr.f32.gmra.mxu0 %v5676
    %v5822 = vpop.f32.mrf.mxu0
    %v5823 = vadd.f32 0.0, %v5822
    %v5824 = vpop.f32.mrf.mxu0
    %v5825 = vadd.f32 0.0, %v5824
    %5826 = vmatprep.mubr.f32.mxu0 %v5679
    %5827 = vmatmul.mubr.f32.gmra.mxu0 %v5678
    %v5828 = vpop.f32.mrf.mxu0
    %v5829 = vadd.f32 0.0, %v5828
    %v5830 = vpop.f32.mrf.mxu0
    %5831 = vmatprep.mubr.f32.mxu0 %v5681
    %5832 = vmatmul.mubr.f32.gmra.mxu0 %v5680
    %v5833 = vpop.f32.mrf.mxu0
    %v5834 = vadd.f32 0.0, %v5833
    %v5835 = vpop.f32.mrf.mxu0
    %5836 = vmatprep.mubr.f32.mxu0 %v5683
    %5837 = vmatmul.mubr.f32.gmra.mxu0 %v5682
    %v5838 = vpop.f32.mrf.mxu0
    %v5839 = vadd.f32 0.0, %v5838
    %v5840 = vpop.f32.mrf.mxu0
    %5841 = vmatprep.mubr.f32.mxu0 %v5685
    %5842 = vmatmul.mubr.f32.gmra.mxu0 %v5684
    %v5843 = vpop.f32.mrf.mxu0
    %v5844 = vadd.f32 0.0, %v5843
    %v5845 = vpop.f32.mrf.mxu0
    %5846 = vmatprep.mubr.f32.mxu0 %v5687
    %5847 = vmatmul.mubr.f32.gmra.mxu0 %v5686
    %v5848 = vpop.f32.mrf.mxu0
    %v5849 = vadd.f32 0.0, %v5848
    %v5850 = vpop.f32.mrf.mxu0
    %5851 = vmatprep.mubr.f32.mxu0 %v5689
    %5852 = vmatmul.mubr.f32.gmra.mxu0 %v5688
    %v5853 = vpop.f32.mrf.mxu0
    %v5854 = vadd.f32 0.0, %v5853
    %v5855 = vpop.f32.mrf.mxu0
    %5856 = vmatprep.mubr.f32.mxu0 %v5691
    %5857 = vmatmul.mubr.f32.gmra.mxu0 %v5690
    %v5858 = vpop.f32.mrf.mxu0
    %v5859 = vadd.f32 0.0, %v5858
    %v5860 = vpop.f32.mrf.mxu0
    %5861 = vmatprep.mubr.f32.mxu0 %v5693
    %5862 = vmatmul.mubr.f32.gmra.mxu0 %v5692
    %v5863 = vpop.f32.mrf.mxu0
    %v5864 = vadd.f32 0.0, %v5863
    %v5865 = vpop.f32.mrf.mxu0
    %5866 = vmatprep.mubr.f32.mxu0 %v5695
    %5867 = vmatmul.mubr.f32.gmra.mxu0 %v5694
    %v5868 = vpop.f32.mrf.mxu0
    %v5869 = vadd.f32 0.0, %v5868
    %v5870 = vpop.f32.mrf.mxu0
    %5871 = vmatprep.mubr.f32.mxu0 %v5697
    %5872 = vmatmul.mubr.f32.gmra.mxu0 %v5696
    %v5873 = vpop.f32.mrf.mxu0
    %v5874 = vadd.f32 0.0, %v5873
    %v5875 = vpop.f32.mrf.mxu0
    %5876 = vmatprep.mubr.f32.mxu0 %v5699
    %5877 = vmatmul.mubr.f32.gmra.mxu0 %v5698
    %v5878 = vpop.f32.mrf.mxu0
    %v5879 = vadd.f32 0.0, %v5878
    %v5880 = vpop.f32.mrf.mxu0
    %5881 = vmatprep.mubr.f32.mxu0 %v5701
    %5882 = vmatmul.mubr.f32.gmra.mxu0 %v5700
    %v5883 = vpop.f32.mrf.mxu0
    %v5884 = vadd.f32 0.0, %v5883
    %v5885 = vpop.f32.mrf.mxu0
    %5886 = vmatprep.mubr.f32.mxu0 %v5703
    %5887 = vmatmul.mubr.f32.gmra.mxu0 %v5702
    %v5888 = vpop.f32.mrf.mxu0
    %v5889 = vadd.f32 0.0, %v5888
    %v5890 = vpop.f32.mrf.mxu0
    %5891 = vmatprep.mubr.f32.mxu0 %v5705
    %5892 = vmatmul.mubr.f32.gmra.mxu0 %v5704
    %v5893 = vpop.f32.mrf.mxu0
    %v5894 = vadd.f32 0.0, %v5893
    %v5895 = vpop.f32.mrf.mxu0
    %5896 = vmatprep.mubr.f32.mxu0 %v5707
    %5897 = vmatmul.mubr.f32.gmra.mxu0 %v5706
    %v5898 = vpop.f32.mrf.mxu0
    %v5899 = vadd.f32 0.0, %v5898
    %v5900 = vpop.f32.mrf.mxu0
    %5901 = vmatprep.mubr.f32.mxu0 %v5709
    %5902 = vmatmul.mubr.f32.gmra.mxu0 %v5708
    %v5903 = vpop.f32.mrf.mxu0
    %v5904 = vadd.f32 0.0, %v5903
    %v5905 = vpop.f32.mrf.mxu0
    %5906 = vmatprep.mubr.f32.mxu0 %v5711
    %5907 = vmatmul.mubr.f32.gmra.mxu0 %v5710
    %v5908 = vpop.f32.mrf.mxu0
    %v5909 = vadd.f32 0.0, %v5908
    %v5910 = vpop.f32.mrf.mxu0
    %5911 = vmatprep.mubr.f32.mxu0 %v5713
    %5912 = vmatmul.mubr.f32.gmra.mxu0 %v5712
    %v5913 = vpop.f32.mrf.mxu0
    %v5914 = vadd.f32 0.0, %v5913
    %v5915 = vpop.f32.mrf.mxu0
    %5916 = vmatprep.mubr.f32.mxu0 %v5715
    %5917 = vmatmul.mubr.f32.gmra.mxu0 %v5714
    %v5918 = vpop.f32.mrf.mxu0
    %v5919 = vadd.f32 0.0, %v5918
    %v5920 = vpop.f32.mrf.mxu0
    %5921 = vmatprep.mubr.f32.mxu0 %v5717
    %5922 = vmatmul.mubr.f32.gmra.mxu0 %v5716
    %v5923 = vpop.f32.mrf.mxu0
    %v5924 = vadd.f32 0.0, %v5923
    %v5925 = vpop.f32.mrf.mxu0
    %5926 = vmatprep.mubr.f32.mxu0 %v5719
    %5927 = vmatmul.mubr.f32.gmra.mxu0 %v5718
    %v5928 = vpop.f32.mrf.mxu0
    %v5929 = vadd.f32 0.0, %v5928
    %v5930 = vpop.f32.mrf.mxu0
    %5931 = vdwg.mxu0
    %v5932 = vld [vmem:[#allocation6 + $0x6] sm:$0x3]
    %v5934 = vlaneseq
    %v5935 = vshrl.u32 %v5934, 7
    %v5936 = vsub.s32 0, %v5935
    %v5937 = vrot.slane %v5932, %v5936
    %v5938 = vlaneseq
    %v5939 = vshrl.u32 %v5938, 7
    %v5940 = vsub.s32 1, %v5939
    %v5941 = vrot.slane %v5932, %v5940
    %5942 = vrot.lane.b32.xlu0 %v5937, 28
    %v5943 = vpop.permute.xlu0 %5942
    %5944 = vrot.lane.b32.xlu0 %v5941, 28
    %v5945 = vpop.permute.xlu0 %5944
    %v5946 = vsel %vm2710, %v5943, %v5945
    %v5949 = vadd.f32 %v5787, %v5946
    %v5950 = vadd.f32 %v5789, %v5945
    %v5951 = vadd.f32 %v5793, %v5946
    %v5952 = vadd.f32 %v5795, %v5945
    %v5953 = vadd.f32 %v5799, %v5946
    %v5954 = vadd.f32 %v5801, %v5945
    %v5955 = vadd.f32 %v5805, %v5946
    %v5956 = vadd.f32 %v5807, %v5945
    %v5957 = vadd.f32 %v5811, %v5946
    %v5958 = vadd.f32 %v5813, %v5945
    %v5959 = vadd.f32 %v5817, %v5946
    %v5960 = vadd.f32 %v5819, %v5945
    %v5961 = vadd.f32 %v5823, %v5946
    %v5962 = vadd.f32 %v5825, %v5945
    %v5963 = vsub.f32 0.0, %v5949
    %v5964 = vsub.f32 0.0, %v5951
    %v5965 = vsub.f32 0.0, %v5953
    %v5966 = vsub.f32 0.0, %v5955
    %v5967 = vsub.f32 0.0, %v5957
    %v5968 = vsub.f32 0.0, %v5959
    %v5969 = vsub.f32 0.0, %v5961
    %v5970 = vsub.f32 0.0, %v5829
    %v5971 = vsub.f32 0.0, %v5834
    %v5972 = vsub.f32 0.0, %v5839
    %v5973 = vsub.f32 0.0, %v5844
    %v5974 = vsub.f32 0.0, %v5849
    %v5975 = vsub.f32 0.0, %v5854
    %v5976 = vsub.f32 0.0, %v5859
    %v5977 = vsub.f32 0.0, %v5864
    %v5978 = vsub.f32 0.0, %v5869
    %v5979 = vsub.f32 0.0, %v5874
    %v5980 = vsub.f32 0.0, %v5879
    %v5981 = vsub.f32 0.0, %v5884
    %v5982 = vsub.f32 0.0, %v5889
    %v5983 = vsub.f32 0.0, %v5894
    %v5984 = vsub.f32 0.0, %v5899
    %v5985 = vsub.f32 0.0, %v5904
    %v5986 = vsub.f32 0.0, %v5909
    %v5987 = vsub.f32 0.0, %v5914
    %v5988 = vsub.f32 0.0, %v5919
    %v5989 = vsub.f32 0.0, %v5924
    %v5990 = vsub.f32 0.0, %v5929
    %5998 = vrot.lane.b32.xlu0 %v5963, 96
    %v5999 = vpop.permute.xlu0 %5998
    %6000 = vrot.lane.b32.xlu0 %v5964, 96
    %v6001 = vpop.permute.xlu0 %6000
    %6002 = vrot.lane.b32.xlu0 %v5965, 96
    %v6003 = vpop.permute.xlu0 %6002
    %6004 = vrot.lane.b32.xlu0 %v5966, 96
    %v6005 = vpop.permute.xlu0 %6004
    %6006 = vrot.lane.b32.xlu0 %v5967, 96
    %v6007 = vpop.permute.xlu0 %6006
    %6008 = vrot.lane.b32.xlu0 %v5968, 96
    %v6009 = vpop.permute.xlu0 %6008
    %6010 = vrot.lane.b32.xlu0 %v5969, 96
    %v6011 = vpop.permute.xlu0 %6010
    %6019 = vrot.lane.b32.xlu0 %v5963, 64
    %v6020 = vpop.permute.xlu0 %6019
    %6021 = vrot.lane.b32.xlu0 %v5964, 64
    %v6022 = vpop.permute.xlu0 %6021
    %6023 = vrot.lane.b32.xlu0 %v5965, 64
    %v6024 = vpop.permute.xlu0 %6023
    %6025 = vrot.lane.b32.xlu0 %v5966, 64
    %v6026 = vpop.permute.xlu0 %6025
    %6027 = vrot.lane.b32.xlu0 %v5967, 64
    %v6028 = vpop.permute.xlu0 %6027
    %6029 = vrot.lane.b32.xlu0 %v5968, 64
    %v6030 = vpop.permute.xlu0 %6029
    %6031 = vrot.lane.b32.xlu0 %v5969, 64
    %v6032 = vpop.permute.xlu0 %6031
    %6040 = vrot.lane.b32.xlu0 %v5963, 32
    %v6041 = vpop.permute.xlu0 %6040
    %6042 = vrot.lane.b32.xlu0 %v5964, 32
    %v6043 = vpop.permute.xlu0 %6042
    %6044 = vrot.lane.b32.xlu0 %v5965, 32
    %v6045 = vpop.permute.xlu0 %6044
    %6046 = vrot.lane.b32.xlu0 %v5966, 32
    %v6047 = vpop.permute.xlu0 %6046
    %6048 = vrot.lane.b32.xlu0 %v5967, 32
    %v6049 = vpop.permute.xlu0 %6048
    %6050 = vrot.lane.b32.xlu0 %v5968, 32
    %v6051 = vpop.permute.xlu0 %6050
    %6052 = vrot.lane.b32.xlu0 %v5969, 32
    %v6053 = vpop.permute.xlu0 %6052
    %vm6061 = vcmask 7168
    %v6062 = vsel %vm6061, %v5963, %v5999
    %v6063 = vsel %vm6061, %v5964, %v6001
    %v6064 = vsel %vm6061, %v5965, %v6003
    %v6065 = vsel %vm6061, %v5966, %v6005
    %v6066 = vsel %vm6061, %v5967, %v6007
    %v6067 = vsel %vm6061, %v5968, %v6009
    %v6068 = vsel %vm6061, %v5969, %v6011
    %vm6069 = vcmask 15360
    %v6070 = vsel %vm6069, %v6062, %v6020
    %v6071 = vsel %vm6069, %v6063, %v6022
    %v6072 = vsel %vm6069, %v6064, %v6024
    %v6073 = vsel %vm6069, %v6065, %v6026
    %v6074 = vsel %vm6069, %v6066, %v6028
    %v6075 = vsel %vm6069, %v6067, %v6030
    %v6076 = vsel %vm6069, %v6068, %v6032
    %vm6077 = vcmask 23552
    %v6078 = vsel %vm6077, %v6070, %v6041
    %v6079 = vsel %vm6077, %v6071, %v6043
    %v6080 = vsel %vm6077, %v6072, %v6045
    %v6081 = vsel %vm6077, %v6073, %v6047
    %v6082 = vsel %vm6077, %v6074, %v6049
    %v6083 = vsel %vm6077, %v6075, %v6051
    %v6084 = vsel %vm6077, %v6076, %v6053
    %6092 = vrot.lane.b32.xlu0 %v5977, 1
    %v6093 = vpop.permute.xlu0 %6092
    %6094 = vrot.lane.b32.xlu0 %v5978, 1
    %v6095 = vpop.permute.xlu0 %6094
    %6096 = vrot.lane.b32.xlu0 %v5979, 1
    %v6097 = vpop.permute.xlu0 %6096
    %6098 = vrot.lane.b32.xlu0 %v5980, 1
    %v6099 = vpop.permute.xlu0 %6098
    %6100 = vrot.lane.b32.xlu0 %v5981, 1
    %v6101 = vpop.permute.xlu0 %6100
    %6102 = vrot.lane.b32.xlu0 %v5982, 1
    %v6103 = vpop.permute.xlu0 %6102
    %6104 = vrot.lane.b32.xlu0 %v5983, 1
    %v6105 = vpop.permute.xlu0 %6104
    %6120 = vrot.lane.b32.xlu0 %v5984, 2
    %v6121 = vpop.permute.xlu0 %6120
    %6122 = vrot.lane.b32.xlu0 %v5985, 2
    %v6123 = vpop.permute.xlu0 %6122
    %6124 = vrot.lane.b32.xlu0 %v5986, 2
    %v6125 = vpop.permute.xlu0 %6124
    %6126 = vrot.lane.b32.xlu0 %v5987, 2
    %v6127 = vpop.permute.xlu0 %6126
    %6128 = vrot.lane.b32.xlu0 %v5988, 2
    %v6129 = vpop.permute.xlu0 %6128
    %6130 = vrot.lane.b32.xlu0 %v5989, 2
    %v6131 = vpop.permute.xlu0 %6130
    %6132 = vrot.lane.b32.xlu0 %v5990, 2
    %v6133 = vpop.permute.xlu0 %6132
    %6148 = vrot.lane.b32.xlu0 %v5970, 98
    %v6149 = vpop.permute.xlu0 %6148
    %6150 = vrot.lane.b32.xlu0 %v5971, 98
    %v6151 = vpop.permute.xlu0 %6150
    %6152 = vrot.lane.b32.xlu0 %v5972, 98
    %v6153 = vpop.permute.xlu0 %6152
    %6154 = vrot.lane.b32.xlu0 %v5973, 98
    %v6155 = vpop.permute.xlu0 %6154
    %6156 = vrot.lane.b32.xlu0 %v5974, 98
    %v6157 = vpop.permute.xlu0 %6156
    %6158 = vrot.lane.b32.xlu0 %v5975, 98
    %v6159 = vpop.permute.xlu0 %6158
    %6160 = vrot.lane.b32.xlu0 %v5976, 98
    %v6161 = vpop.permute.xlu0 %6160
    %6169 = vrot.lane.b32.xlu0 %v5977, 99
    %v6170 = vpop.permute.xlu0 %6169
    %6171 = vrot.lane.b32.xlu0 %v5978, 99
    %v6172 = vpop.permute.xlu0 %6171
    %6173 = vrot.lane.b32.xlu0 %v5979, 99
    %v6174 = vpop.permute.xlu0 %6173
    %6175 = vrot.lane.b32.xlu0 %v5980, 99
    %v6176 = vpop.permute.xlu0 %6175
    %6177 = vrot.lane.b32.xlu0 %v5981, 99
    %v6178 = vpop.permute.xlu0 %6177
    %6179 = vrot.lane.b32.xlu0 %v5982, 99
    %v6180 = vpop.permute.xlu0 %6179
    %6181 = vrot.lane.b32.xlu0 %v5983, 99
    %v6182 = vpop.permute.xlu0 %6181
    %6190 = vrot.lane.b32.xlu0 %v5984, 100
    %v6191 = vpop.permute.xlu0 %6190
    %6192 = vrot.lane.b32.xlu0 %v5985, 100
    %v6193 = vpop.permute.xlu0 %6192
    %6194 = vrot.lane.b32.xlu0 %v5986, 100
    %v6195 = vpop.permute.xlu0 %6194
    %6196 = vrot.lane.b32.xlu0 %v5987, 100
    %v6197 = vpop.permute.xlu0 %6196
    %6198 = vrot.lane.b32.xlu0 %v5988, 100
    %v6199 = vpop.permute.xlu0 %6198
    %6200 = vrot.lane.b32.xlu0 %v5989, 100
    %v6201 = vpop.permute.xlu0 %6200
    %6202 = vrot.lane.b32.xlu0 %v5990, 100
    %v6203 = vpop.permute.xlu0 %6202
    %6211 = vrot.lane.b32.xlu0 %v5970, 68
    %v6212 = vpop.permute.xlu0 %6211
    %6213 = vrot.lane.b32.xlu0 %v5971, 68
    %v6214 = vpop.permute.xlu0 %6213
    %6215 = vrot.lane.b32.xlu0 %v5972, 68
    %v6216 = vpop.permute.xlu0 %6215
    %6217 = vrot.lane.b32.xlu0 %v5973, 68
    %v6218 = vpop.permute.xlu0 %6217
    %6219 = vrot.lane.b32.xlu0 %v5974, 68
    %v6220 = vpop.permute.xlu0 %6219
    %6221 = vrot.lane.b32.xlu0 %v5975, 68
    %v6222 = vpop.permute.xlu0 %6221
    %6223 = vrot.lane.b32.xlu0 %v5976, 68
    %v6224 = vpop.permute.xlu0 %6223
    %6232 = vrot.lane.b32.xlu0 %v5977, 69
    %v6233 = vpop.permute.xlu0 %6232
    %6234 = vrot.lane.b32.xlu0 %v5978, 69
    %v6235 = vpop.permute.xlu0 %6234
    %6236 = vrot.lane.b32.xlu0 %v5979, 69
    %v6237 = vpop.permute.xlu0 %6236
    %6238 = vrot.lane.b32.xlu0 %v5980, 69
    %v6239 = vpop.permute.xlu0 %6238
    %6240 = vrot.lane.b32.xlu0 %v5981, 69
    %v6241 = vpop.permute.xlu0 %6240
    %6242 = vrot.lane.b32.xlu0 %v5982, 69
    %v6243 = vpop.permute.xlu0 %6242
    %6244 = vrot.lane.b32.xlu0 %v5983, 69
    %v6245 = vpop.permute.xlu0 %6244
    %6253 = vrot.lane.b32.xlu0 %v5984, 70
    %v6254 = vpop.permute.xlu0 %6253
    %6255 = vrot.lane.b32.xlu0 %v5985, 70
    %v6256 = vpop.permute.xlu0 %6255
    %6257 = vrot.lane.b32.xlu0 %v5986, 70
    %v6258 = vpop.permute.xlu0 %6257
    %6259 = vrot.lane.b32.xlu0 %v5987, 70
    %v6260 = vpop.permute.xlu0 %6259
    %6261 = vrot.lane.b32.xlu0 %v5988, 70
    %v6262 = vpop.permute.xlu0 %6261
    %6263 = vrot.lane.b32.xlu0 %v5989, 70
    %v6264 = vpop.permute.xlu0 %6263
    %6265 = vrot.lane.b32.xlu0 %v5990, 70
    %v6266 = vpop.permute.xlu0 %6265
    %6274 = vrot.lane.b32.xlu0 %v5970, 38
    %v6275 = vpop.permute.xlu0 %6274
    %6276 = vrot.lane.b32.xlu0 %v5971, 38
    %v6277 = vpop.permute.xlu0 %6276
    %6278 = vrot.lane.b32.xlu0 %v5972, 38
    %v6279 = vpop.permute.xlu0 %6278
    %6280 = vrot.lane.b32.xlu0 %v5973, 38
    %v6281 = vpop.permute.xlu0 %6280
    %6282 = vrot.lane.b32.xlu0 %v5974, 38
    %v6283 = vpop.permute.xlu0 %6282
    %6284 = vrot.lane.b32.xlu0 %v5975, 38
    %v6285 = vpop.permute.xlu0 %6284
    %6286 = vrot.lane.b32.xlu0 %v5976, 38
    %v6287 = vpop.permute.xlu0 %6286
    %6295 = vrot.lane.b32.xlu0 %v5977, 39
    %v6296 = vpop.permute.xlu0 %6295
    %6297 = vrot.lane.b32.xlu0 %v5978, 39
    %v6298 = vpop.permute.xlu0 %6297
    %6299 = vrot.lane.b32.xlu0 %v5979, 39
    %v6300 = vpop.permute.xlu0 %6299
    %6301 = vrot.lane.b32.xlu0 %v5980, 39
    %v6302 = vpop.permute.xlu0 %6301
    %6303 = vrot.lane.b32.xlu0 %v5981, 39
    %v6304 = vpop.permute.xlu0 %6303
    %6305 = vrot.lane.b32.xlu0 %v5982, 39
    %v6306 = vpop.permute.xlu0 %6305
    %6307 = vrot.lane.b32.xlu0 %v5983, 39
    %v6308 = vpop.permute.xlu0 %6307
    %6316 = vrot.lane.b32.xlu0 %v5984, 40
    %v6317 = vpop.permute.xlu0 %6316
    %6318 = vrot.lane.b32.xlu0 %v5985, 40
    %v6319 = vpop.permute.xlu0 %6318
    %6320 = vrot.lane.b32.xlu0 %v5986, 40
    %v6321 = vpop.permute.xlu0 %6320
    %6322 = vrot.lane.b32.xlu0 %v5987, 40
    %v6323 = vpop.permute.xlu0 %6322
    %6324 = vrot.lane.b32.xlu0 %v5988, 40
    %v6325 = vpop.permute.xlu0 %6324
    %6326 = vrot.lane.b32.xlu0 %v5989, 40
    %v6327 = vpop.permute.xlu0 %6326
    %6328 = vrot.lane.b32.xlu0 %v5990, 40
    %v6329 = vpop.permute.xlu0 %6328
    %v6337 = vsel %vm6061, %v5970, %v6093
    %v6338 = vsel %vm6061, %v5971, %v6095
    %v6339 = vsel %vm6061, %v5972, %v6097
    %v6340 = vsel %vm6061, %v5973, %v6099
    %v6341 = vsel %vm6061, %v5974, %v6101
    %v6342 = vsel %vm6061, %v5975, %v6103
    %v6343 = vsel %vm6061, %v5976, %v6105
    %v6344 = vsel %vm6069, %v6337, %v6121
    %v6345 = vsel %vm6069, %v6338, %v6123
    %v6346 = vsel %vm6069, %v6339, %v6125
    %v6347 = vsel %vm6069, %v6340, %v6127
    %v6348 = vsel %vm6069, %v6341, %v6129
    %v6349 = vsel %vm6069, %v6342, %v6131
    %v6350 = vsel %vm6069, %v6343, %v6133
    %v6351 = vsel %vm6077, %v6344, %v6149
    %v6352 = vsel %vm6077, %v6345, %v6151
    %v6353 = vsel %vm6077, %v6346, %v6153
    %v6354 = vsel %vm6077, %v6347, %v6155
    %v6355 = vsel %vm6077, %v6348, %v6157
    %v6356 = vsel %vm6077, %v6349, %v6159
    %v6357 = vsel %vm6077, %v6350, %v6161
    %vm6358 = vcmask 31744
    %v6359 = vsel %vm6358, %v6351, %v6170
    %v6360 = vsel %vm6358, %v6352, %v6172
    %v6361 = vsel %vm6358, %v6353, %v6174
    %v6362 = vsel %vm6358, %v6354, %v6176
    %v6363 = vsel %vm6358, %v6355, %v6178
    %v6364 = vsel %vm6358, %v6356, %v6180
    %v6365 = vsel %vm6358, %v6357, %v6182
    %vm6366 = vcmask 39936
    %v6367 = vsel %vm6366, %v6359, %v6191
    %v6368 = vsel %vm6366, %v6360, %v6193
    %v6369 = vsel %vm6366, %v6361, %v6195
    %v6370 = vsel %vm6366, %v6362, %v6197
    %v6371 = vsel %vm6366, %v6363, %v6199
    %v6372 = vsel %vm6366, %v6364, %v6201
    %v6373 = vsel %vm6366, %v6365, %v6203
    %vm6374 = vcmask 48128
    %v6375 = vsel %vm6374, %v6367, %v6212
    %v6376 = vsel %vm6374, %v6368, %v6214
    %v6377 = vsel %vm6374, %v6369, %v6216
    %v6378 = vsel %vm6374, %v6370, %v6218
    %v6379 = vsel %vm6374, %v6371, %v6220
    %v6380 = vsel %vm6374, %v6372, %v6222
    %v6381 = vsel %vm6374, %v6373, %v6224
    %vm6382 = vcmask 56320
    %v6383 = vsel %vm6382, %v6375, %v6233
    %v6384 = vsel %vm6382, %v6376, %v6235
    %v6385 = vsel %vm6382, %v6377, %v6237
    %v6386 = vsel %vm6382, %v6378, %v6239
    %v6387 = vsel %vm6382, %v6379, %v6241
    %v6388 = vsel %vm6382, %v6380, %v6243
    %v6389 = vsel %vm6382, %v6381, %v6245
    %vm6390 = vcmask 64512
    %v6391 = vsel %vm6390, %v6383, %v6254
    %v6392 = vsel %vm6390, %v6384, %v6256
    %v6393 = vsel %vm6390, %v6385, %v6258
    %v6394 = vsel %vm6390, %v6386, %v6260
    %v6395 = vsel %vm6390, %v6387, %v6262
    %v6396 = vsel %vm6390, %v6388, %v6264
    %v6397 = vsel %vm6390, %v6389, %v6266
    %vm6398 = vcmask 72704
    %v6399 = vsel %vm6398, %v6391, %v6275
    %v6400 = vsel %vm6398, %v6392, %v6277
    %v6401 = vsel %vm6398, %v6393, %v6279
    %v6402 = vsel %vm6398, %v6394, %v6281
    %v6403 = vsel %vm6398, %v6395, %v6283
    %v6404 = vsel %vm6398, %v6396, %v6285
    %v6405 = vsel %vm6398, %v6397, %v6287
    %vm6406 = vcmask 80896
    %v6407 = vsel %vm6406, %v6399, %v6296
    %v6408 = vsel %vm6406, %v6400, %v6298
    %v6409 = vsel %vm6406, %v6401, %v6300
    %v6410 = vsel %vm6406, %v6402, %v6302
    %v6411 = vsel %vm6406, %v6403, %v6304
    %v6412 = vsel %vm6406, %v6404, %v6306
    %v6413 = vsel %vm6406, %v6405, %v6308
    %vm6414 = vcmask 89088
    %v6415 = vsel %vm6414, %v6407, %v6317
    %v6416 = vsel %vm6414, %v6408, %v6319
    %v6417 = vsel %vm6414, %v6409, %v6321
    %v6418 = vsel %vm6414, %v6410, %v6323
    %v6419 = vsel %vm6414, %v6411, %v6325
    %v6420 = vsel %vm6414, %v6412, %v6327
    %v6421 = vsel %vm6414, %v6413, %v6329
    %vm6422 = vcmask 916480
    %v6423 = vsel %vm6422, %v1175, 0
    %v6425 = vsel %vm6422, %v1383, 0
    %v6427 = vsel %vm6422, %v1591, 0
    %v6429 = vsel %vm6422, %v1799, 0
    %v6431 = vsel %vm6422, %v2007, 0
    %v6433 = vsel %vm6422, %v2215, 0
    %v6435 = vsel %vm6422, %v2423, 0
    %6437 = vmatprep.subr.mxu0 %v455
    %6438 = vmatpush1.msra.mxu0 %v454
    %6439 = vmatprep.subr.mxu0 %v453
    %6440 = vmatpush1.msra.mxu0 %v452
    %6441 = vmatprep.subr.mxu0 %v451
    %6442 = vmatpush1.msra.mxu0 %v450
    %6443 = vmatprep.subr.mxu0 %v449
    %6444 = vmatpush1.msra.mxu0 %v448
    %6445 = vmatprep.subr.mxu0 %v447
    %6446 = vmatpush1.msra.mxu0 %v446
    %6447 = vmatprep.subr.mxu0 %v445
    %6448 = vmatpush1.msra.mxu0 %v444
    %6449 = vmatprep.subr.mxu0 %v443
    %6450 = vmatpush1.msra.mxu0 %v442
    %6451 = vmatprep.subr.mxu0 %v441
    %6452 = vmatpush1.msra.mxu0 %v440
    %6453 = vmatprep.subr.mxu0 %v439
    %6454 = vmatpush1.msra.mxu0 %v438
    %6455 = vmatprep.subr.mxu0 %v437
    %6456 = vmatpush1.msra.mxu0 %v436
    %6457 = vmatprep.subr.mxu0 %v435
    %6458 = vmatpush1.msra.mxu0 %v434
    %6459 = vmatprep.subr.mxu0 %v433
    %6460 = vmatpush1.msra.mxu0 %v432
    %6461 = vmatprep.subr.mxu0 %v431
    %6462 = vmatpush1.msra.mxu0 %v430
    %6463 = vmatprep.subr.mxu0 %v429
    %6464 = vmatpush1.msra.mxu0 %v428
    %6465 = vmatprep.subr.mxu0 %v427
    %6466 = vmatpush1.msra.mxu0 %v426
    %6467 = vmatprep.subr.mxu0 %v425
    %6468 = vmatpush1.msra.mxu0 %v424
    %6469 = vmatprep.subr.mxu0 0.0
    %6470 = vmatpush2.msra.mxu0 0.0
    %6471 = vmatprep.subr.mxu0 0.0
    %6472 = vmatpush2.msra.mxu0 0.0
    %6473 = vmatprep.subr.mxu0 %v483
    %6474 = vmatpush2.msra.mxu0 %v482
    %6475 = vmatprep.subr.mxu0 %v481
    %6476 = vmatpush2.msra.mxu0 %v480
    %6477 = vmatprep.subr.mxu0 %v479
    %6478 = vmatpush2.msra.mxu0 %v478
    %6479 = vmatprep.subr.mxu0 %v477
    %6480 = vmatpush2.msra.mxu0 %v476
    %6481 = vmatprep.subr.mxu0 %v475
    %6482 = vmatpush2.msra.mxu0 %v474
    %6483 = vmatprep.subr.mxu0 %v473
    %6484 = vmatpush2.msra.mxu0 %v472
    %6485 = vmatprep.subr.mxu0 %v471
    %6486 = vmatpush2.msra.mxu0 %v470
    %6487 = vmatprep.subr.mxu0 %v469
    %6488 = vmatpush2.msra.mxu0 %v468
    %6489 = vmatprep.subr.mxu0 %v467
    %6490 = vmatpush2.msra.mxu0 %v466
    %6491 = vmatprep.subr.mxu0 %v465
    %6492 = vmatpush2.msra.mxu0 %v464
    %6493 = vmatprep.subr.mxu0 %v463
    %6494 = vmatpush2.msra.mxu0 %v462
    %6495 = vmatprep.subr.mxu0 %v461
    %6496 = vmatpush2.msra.mxu0 %v460
    %6497 = vmatprep.subr.mxu0 %v459
    %6498 = vmatpush2.msra.mxu0 %v458
    %6499 = vmatprep.subr.mxu0 %v457
    %6500 = vmatpush2.msra.mxu0 %v456
    %6501 = vmatprep.mubr.f32.mxu0 %v6423
    %6502 = vmatmul.mubr.f32.gmra.mxu0 %v1071
    %v6503 = vpop.f32.mrf.mxu0
    %v6504 = vadd.f32 0.0, %v6503
    %v6505 = vpop.f32.mrf.mxu0
    %v6506 = vadd.f32 0.0, %v6505
    %6507 = vmatprep.mubr.f32.mxu0 %v6425
    %6508 = vmatmul.mubr.f32.gmra.mxu0 %v1279
    %v6509 = vpop.f32.mrf.mxu0
    %v6510 = vadd.f32 0.0, %v6509
    %v6511 = vpop.f32.mrf.mxu0
    %v6512 = vadd.f32 0.0, %v6511
    %6513 = vmatprep.mubr.f32.mxu0 %v6427
    %6514 = vmatmul.mubr.f32.gmra.mxu0 %v1487
    %v6515 = vpop.f32.mrf.mxu0
    %v6516 = vadd.f32 0.0, %v6515
    %v6517 = vpop.f32.mrf.mxu0
    %v6518 = vadd.f32 0.0, %v6517
    %6519 = vmatprep.mubr.f32.mxu0 %v6429
    %6520 = vmatmul.mubr.f32.gmra.mxu0 %v1695
    %v6521 = vpop.f32.mrf.mxu0
    %v6522 = vadd.f32 0.0, %v6521
    %v6523 = vpop.f32.mrf.mxu0
    %v6524 = vadd.f32 0.0, %v6523
    %6525 = vmatprep.mubr.f32.mxu0 %v6431
    %6526 = vmatmul.mubr.f32.gmra.mxu0 %v1903
    %v6527 = vpop.f32.mrf.mxu0
    %v6528 = vadd.f32 0.0, %v6527
    %v6529 = vpop.f32.mrf.mxu0
    %v6530 = vadd.f32 0.0, %v6529
    %6531 = vmatprep.mubr.f32.mxu0 %v6433
    %6532 = vmatmul.mubr.f32.gmra.mxu0 %v2111
    %v6533 = vpop.f32.mrf.mxu0
    %v6534 = vadd.f32 0.0, %v6533
    %v6535 = vpop.f32.mrf.mxu0
    %v6536 = vadd.f32 0.0, %v6535
    %6537 = vmatprep.mubr.f32.mxu0 %v6435
    %6538 = vmatmul.mubr.f32.gmra.mxu0 %v2319
    %v6539 = vpop.f32.mrf.mxu0
    %v6540 = vadd.f32 0.0, %v6539
    %v6541 = vpop.f32.mrf.mxu0
    %v6542 = vadd.f32 0.0, %v6541
    %6543 = vdwg.mxu0
    %6544 = vmatprep.subr.mxu0 0.0
    %6545 = vmatpush1.msra.mxu0 0.0
    %6546 = vmatprep.subr.mxu0 0.0
    %6547 = vmatpush1.msra.mxu0 0.0
    %6548 = vmatprep.subr.mxu0 0.0
    %6549 = vmatpush1.msra.mxu0 0.0
    %6550 = vmatprep.subr.mxu0 0.0
    %6551 = vmatpush1.msra.mxu0 0.0
    %6552 = vmatprep.subr.mxu0 0.0
    %6553 = vmatpush1.msra.mxu0 0.0
    %6554 = vmatprep.subr.mxu0 0.0
    %6555 = vmatpush1.msra.mxu0 0.0
    %6556 = vmatprep.subr.mxu0 0.0
    %6557 = vmatpush1.msra.mxu0 0.0
    %6558 = vmatprep.subr.mxu0 0.0
    %6559 = vmatpush1.msra.mxu0 0.0
    %6560 = vmatprep.subr.mxu0 0.0
    %6561 = vmatpush1.msra.mxu0 0.0
    %6562 = vmatprep.subr.mxu0 0.0
    %6563 = vmatpush1.msra.mxu0 0.0
    %6564 = vmatprep.subr.mxu0 0.0
    %6565 = vmatpush1.msra.mxu0 0.0
    %6566 = vmatprep.subr.mxu0 0.0
    %6567 = vmatpush1.msra.mxu0 0.0
    %6568 = vmatprep.subr.mxu0 0.0
    %6569 = vmatpush1.msra.mxu0 0.0
    %6570 = vmatprep.subr.mxu0 %v423
    %6571 = vmatpush1.msra.mxu0 %v422
    %6572 = vmatprep.subr.mxu0 %v421
    %6573 = vmatpush1.msra.mxu0 %v420
    %6574 = vmatprep.subr.mxu0 %v419
    %6575 = vmatpush1.msra.mxu0 %v418
    %6576 = vmatprep.subr.mxu0 0.0
    %6577 = vmatpush2.msra.mxu0 0.0
    %6578 = vmatprep.subr.mxu0 0.0
    %6579 = vmatpush2.msra.mxu0 0.0
    %6580 = vmatprep.subr.mxu0 0.0
    %6581 = vmatpush2.msra.mxu0 0.0
    %6582 = vmatprep.subr.mxu0 0.0
    %6583 = vmatpush2.msra.mxu0 0.0
    %6584 = vmatprep.subr.mxu0 0.0
    %6585 = vmatpush2.msra.mxu0 0.0
    %6586 = vmatprep.subr.mxu0 0.0
    %6587 = vmatpush2.msra.mxu0 0.0
    %6588 = vmatprep.subr.mxu0 0.0
    %6589 = vmatpush2.msra.mxu0 0.0
    %6590 = vmatprep.subr.mxu0 0.0
    %6591 = vmatpush2.msra.mxu0 0.0
    %6592 = vmatprep.subr.mxu0 0.0
    %6593 = vmatpush2.msra.mxu0 0.0
    %6594 = vmatprep.subr.mxu0 0.0
    %6595 = vmatpush2.msra.mxu0 0.0
    %6596 = vmatprep.subr.mxu0 0.0
    %6597 = vmatpush2.msra.mxu0 0.0
    %6598 = vmatprep.subr.mxu0 0.0
    %6599 = vmatpush2.msra.mxu0 0.0
    %6600 = vmatprep.subr.mxu0 0.0
    %6601 = vmatpush2.msra.mxu0 0.0
    %6602 = vmatprep.subr.mxu0 0.0
    %6603 = vmatpush2.msra.mxu0 0.0
    %6604 = vmatprep.subr.mxu0 0.0
    %6605 = vmatpush2.msra.mxu0 0.0
    %6606 = vmatprep.subr.mxu0 0.0
    %6607 = vmatpush2.msra.mxu0 0.0
    %6608 = vmatprep.mubr.f32.mxu0 0.0
    %6609 = vmatmul.mubr.f32.gmra.mxu0 %v841
    %v6610 = vpop.f32.mrf.mxu0
    %v6611 = vadd.f32 %v6504, %v6610
    %v6612 = vpop.f32.mrf.mxu0
    %v6613 = vadd.f32 %v6506, %v6612
    %6614 = vmatprep.mubr.f32.mxu0 0.0
    %6615 = vmatmul.mubr.f32.gmra.mxu0 %v844
    %v6616 = vpop.f32.mrf.mxu0
    %v6617 = vadd.f32 %v6510, %v6616
    %v6618 = vpop.f32.mrf.mxu0
    %v6619 = vadd.f32 %v6512, %v6618
    %6620 = vmatprep.mubr.f32.mxu0 0.0
    %6621 = vmatmul.mubr.f32.gmra.mxu0 %v847
    %v6622 = vpop.f32.mrf.mxu0
    %v6623 = vadd.f32 %v6516, %v6622
    %v6624 = vpop.f32.mrf.mxu0
    %v6625 = vadd.f32 %v6518, %v6624
    %6626 = vmatprep.mubr.f32.mxu0 0.0
    %6627 = vmatmul.mubr.f32.gmra.mxu0 %v850
    %v6628 = vpop.f32.mrf.mxu0
    %v6629 = vadd.f32 %v6522, %v6628
    %v6630 = vpop.f32.mrf.mxu0
    %v6631 = vadd.f32 %v6524, %v6630
    %6632 = vmatprep.mubr.f32.mxu0 0.0
    %6633 = vmatmul.mubr.f32.gmra.mxu0 %v853
    %v6634 = vpop.f32.mrf.mxu0
    %v6635 = vadd.f32 %v6528, %v6634
    %v6636 = vpop.f32.mrf.mxu0
    %v6637 = vadd.f32 %v6530, %v6636
    %6638 = vmatprep.mubr.f32.mxu0 0.0
    %6639 = vmatmul.mubr.f32.gmra.mxu0 %v856
    %v6640 = vpop.f32.mrf.mxu0
    %v6641 = vadd.f32 %v6534, %v6640
    %v6642 = vpop.f32.mrf.mxu0
    %v6643 = vadd.f32 %v6536, %v6642
    %6644 = vmatprep.mubr.f32.mxu0 0.0
    %6645 = vmatmul.mubr.f32.gmra.mxu0 %v859
    %v6646 = vpop.f32.mrf.mxu0
    %v6647 = vadd.f32 %v6540, %v6646
    %v6648 = vpop.f32.mrf.mxu0
    %v6649 = vadd.f32 %v6542, %v6648
    %6650 = vdwg.mxu0
    %v6652 = vsel %vm6358, %v5950, 0
    %v6655 = vsel %vm6358, %v5952, 0
    %v6658 = vsel %vm6358, %v5954, 0
    %v6661 = vsel %vm6358, %v5956, 0
    %v6664 = vsel %vm6358, %v5958, 0
    %v6667 = vsel %vm6358, %v5960, 0
    %v6670 = vsel %vm6358, %v5962, 0
    %v6673 = vsel %vm2788, %v516, 0
    %v6676 = vsel %vm2788, %v517, 0
    %6678 = vmatprep.subr.mxu0 %v515
    %6679 = vmatpush1.msra.mxu0 %v514
    %6680 = vmatprep.subr.mxu0 %v513
    %6681 = vmatpush1.msra.mxu0 %v512
    %6682 = vmatprep.subr.mxu0 %v511
    %6683 = vmatpush1.msra.mxu0 %v510
    %6684 = vmatprep.subr.mxu0 %v509
    %6685 = vmatpush1.msra.mxu0 %v508
    %6686 = vmatprep.subr.mxu0 %v507
    %6687 = vmatpush1.msra.mxu0 %v506
    %6688 = vmatprep.subr.mxu0 %v505
    %6689 = vmatpush1.msra.mxu0 %v504
    %6690 = vmatprep.subr.mxu0 %v503
    %6691 = vmatpush1.msra.mxu0 %v502
    %6692 = vmatprep.subr.mxu0 %v501
    %6693 = vmatpush1.msra.mxu0 %v500
    %6694 = vmatprep.subr.mxu0 %v499
    %6695 = vmatpush1.msra.mxu0 %v498
    %6696 = vmatprep.subr.mxu0 %v497
    %6697 = vmatpush1.msra.mxu0 %v496
    %6698 = vmatprep.subr.mxu0 %v495
    %6699 = vmatpush1.msra.mxu0 %v494
    %6700 = vmatprep.subr.mxu0 %v493
    %6701 = vmatpush1.msra.mxu0 %v492
    %6702 = vmatprep.subr.mxu0 %v491
    %6703 = vmatpush1.msra.mxu0 %v490
    %6704 = vmatprep.subr.mxu0 %v489
    %6705 = vmatpush1.msra.mxu0 %v488
    %6706 = vmatprep.subr.mxu0 %v487
    %6707 = vmatpush1.msra.mxu0 %v486
    %6708 = vmatprep.subr.mxu0 %v485
    %6709 = vmatpush1.msra.mxu0 %v484
    %6710 = vmatprep.subr.mxu0 0.0
    %6711 = vmatpush2.msra.mxu0 0.0
    %6712 = vmatprep.subr.mxu0 0.0
    %6713 = vmatpush2.msra.mxu0 0.0
    %6714 = vmatprep.subr.mxu0 0.0
    %6715 = vmatpush2.msra.mxu0 0.0
    %6716 = vmatprep.subr.mxu0 0.0
    %6717 = vmatpush2.msra.mxu0 0.0
    %6718 = vmatprep.subr.mxu0 0.0
    %6719 = vmatpush2.msra.mxu0 0.0
    %6720 = vmatprep.subr.mxu0 0.0
    %6721 = vmatpush2.msra.mxu0 0.0
    %6722 = vmatprep.subr.mxu0 0.0
    %6723 = vmatpush2.msra.mxu0 0.0
    %6724 = vmatprep.subr.mxu0 0.0
    %6725 = vmatpush2.msra.mxu0 0.0
    %6726 = vmatprep.subr.mxu0 0.0
    %6727 = vmatpush2.msra.mxu0 0.0
    %6728 = vmatprep.subr.mxu0 0.0
    %6729 = vmatpush2.msra.mxu0 0.0
    %6730 = vmatprep.subr.mxu0 0.0
    %6731 = vmatpush2.msra.mxu0 0.0
    %6732 = vmatprep.subr.mxu0 0.0
    %6733 = vmatpush2.msra.mxu0 0.0
    %6734 = vmatprep.subr.mxu0 0.0
    %6735 = vmatpush2.msra.mxu0 0.0
    %6736 = vmatprep.subr.mxu0 0.0
    %6737 = vmatpush2.msra.mxu0 0.0
    %6738 = vmatprep.subr.mxu0 0.0
    %6739 = vmatpush2.msra.mxu0 0.0
    %6740 = vmatprep.subr.mxu0 %v6676
    %6741 = vmatpush2.msra.mxu0 %v6673
    %6742 = vmatprep.mubr.f32.mxu0 %v6652
    %6743 = vmatmul.mubr.f32.gmra.mxu0 %v5949
    %v6744 = vpop.f32.mrf.mxu0
    %v6745 = vadd.f32 0.0, %v6744
    %v6746 = vpop.f32.mrf.mxu0
    %v6747 = vadd.f32 0.0, %v6746
    %6748 = vmatprep.mubr.f32.mxu0 %v6655
    %6749 = vmatmul.mubr.f32.gmra.mxu0 %v5951
    %v6750 = vpop.f32.mrf.mxu0
    %v6751 = vadd.f32 0.0, %v6750
    %v6752 = vpop.f32.mrf.mxu0
    %v6753 = vadd.f32 0.0, %v6752
    %6754 = vmatprep.mubr.f32.mxu0 %v6658
    %6755 = vmatmul.mubr.f32.gmra.mxu0 %v5953
    %v6756 = vpop.f32.mrf.mxu0
    %v6757 = vadd.f32 0.0, %v6756
    %v6758 = vpop.f32.mrf.mxu0
    %v6759 = vadd.f32 0.0, %v6758
    %6760 = vmatprep.mubr.f32.mxu0 %v6661
    %6761 = vmatmul.mubr.f32.gmra.mxu0 %v5955
    %v6762 = vpop.f32.mrf.mxu0
    %v6763 = vadd.f32 0.0, %v6762
    %v6764 = vpop.f32.mrf.mxu0
    %v6765 = vadd.f32 0.0, %v6764
    %6766 = vmatprep.mubr.f32.mxu0 %v6664
    %6767 = vmatmul.mubr.f32.gmra.mxu0 %v5957
    %v6768 = vpop.f32.mrf.mxu0
    %v6769 = vadd.f32 0.0, %v6768
    %v6770 = vpop.f32.mrf.mxu0
    %v6771 = vadd.f32 0.0, %v6770
    %6772 = vmatprep.mubr.f32.mxu0 %v6667
    %6773 = vmatmul.mubr.f32.gmra.mxu0 %v5959
    %v6774 = vpop.f32.mrf.mxu0
    %v6775 = vadd.f32 0.0, %v6774
    %v6776 = vpop.f32.mrf.mxu0
    %v6777 = vadd.f32 0.0, %v6776
    %6778 = vmatprep.mubr.f32.mxu0 %v6670
    %6779 = vmatmul.mubr.f32.gmra.mxu0 %v5961
    %v6780 = vpop.f32.mrf.mxu0
    %v6781 = vadd.f32 0.0, %v6780
    %v6782 = vpop.f32.mrf.mxu0
    %v6783 = vadd.f32 0.0, %v6782
    %6784 = vdwg.mxu0
    %v6785 = vadd.f32 %v6611, %v6745
    %v6786 = vadd.f32 %v6613, %v6747
    %v6787 = vadd.f32 %v6617, %v6751
    %v6788 = vadd.f32 %v6619, %v6753
    %v6789 = vadd.f32 %v6623, %v6757
    %v6790 = vadd.f32 %v6625, %v6759
    %v6791 = vadd.f32 %v6629, %v6763
    %v6792 = vadd.f32 %v6631, %v6765
    %v6793 = vadd.f32 %v6635, %v6769
    %v6794 = vadd.f32 %v6637, %v6771
    %v6795 = vadd.f32 %v6641, %v6775
    %v6796 = vadd.f32 %v6643, %v6777
    %v6797 = vadd.f32 %v6647, %v6781
    %v6798 = vadd.f32 %v6649, %v6783
    %v6800 = vsel %vm2474, %v6415, 0
    %v6803 = vsel %vm2474, %v6416, 0
    %v6806 = vsel %vm2474, %v6417, 0
    %v6809 = vsel %vm2474, %v6418, 0
    %v6812 = vsel %vm2474, %v6419, 0
    %v6815 = vsel %vm2474, %v6420, 0
    %v6818 = vsel %vm2474, %v6421, 0
    %v6821 = vsel %vm2788, %v520, 0
    %v6824 = vsel %vm2788, %v521, 0
    %6826 = vmatprep.subr.mxu0 0.0
    %6827 = vmatpush1.msra.mxu0 0.0
    %6828 = vmatprep.subr.mxu0 0.0
    %6829 = vmatpush1.msra.mxu0 0.0
    %6830 = vmatprep.subr.mxu0 0.0
    %6831 = vmatpush1.msra.mxu0 0.0
    %6832 = vmatprep.subr.mxu0 0.0
    %6833 = vmatpush1.msra.mxu0 0.0
    %6834 = vmatprep.subr.mxu0 0.0
    %6835 = vmatpush1.msra.mxu0 0.0
    %6836 = vmatprep.subr.mxu0 0.0
    %6837 = vmatpush1.msra.mxu0 0.0
    %6838 = vmatprep.subr.mxu0 0.0
    %6839 = vmatpush1.msra.mxu0 0.0
    %6840 = vmatprep.subr.mxu0 0.0
    %6841 = vmatpush1.msra.mxu0 0.0
    %6842 = vmatprep.subr.mxu0 0.0
    %6843 = vmatpush1.msra.mxu0 0.0
    %6844 = vmatprep.subr.mxu0 0.0
    %6845 = vmatpush1.msra.mxu0 0.0
    %6846 = vmatprep.subr.mxu0 0.0
    %6847 = vmatpush1.msra.mxu0 0.0
    %6848 = vmatprep.subr.mxu0 0.0
    %6849 = vmatpush1.msra.mxu0 0.0
    %6850 = vmatprep.subr.mxu0 0.0
    %6851 = vmatpush1.msra.mxu0 0.0
    %6852 = vmatprep.subr.mxu0 0.0
    %6853 = vmatpush1.msra.mxu0 0.0
    %6854 = vmatprep.subr.mxu0 %v6824
    %6855 = vmatpush1.msra.mxu0 %v6821
    %6856 = vmatprep.subr.mxu0 %v519
    %6857 = vmatpush1.msra.mxu0 %v518
    %6858 = vmatprep.subr.mxu0 0.0
    %6859 = vmatpush2.msra.mxu0 0.0
    %6860 = vmatprep.subr.mxu0 0.0
    %6861 = vmatpush2.msra.mxu0 0.0
    %6862 = vmatprep.subr.mxu0 0.0
    %6863 = vmatpush2.msra.mxu0 0.0
    %6864 = vmatprep.subr.mxu0 0.0
    %6865 = vmatpush2.msra.mxu0 0.0
    %6866 = vmatprep.subr.mxu0 0.0
    %6867 = vmatpush2.msra.mxu0 0.0
    %6868 = vmatprep.subr.mxu0 0.0
    %6869 = vmatpush2.msra.mxu0 0.0
    %6870 = vmatprep.subr.mxu0 0.0
    %6871 = vmatpush2.msra.mxu0 0.0
    %6872 = vmatprep.subr.mxu0 0.0
    %6873 = vmatpush2.msra.mxu0 0.0
    %6874 = vmatprep.subr.mxu0 0.0
    %6875 = vmatpush2.msra.mxu0 0.0
    %6876 = vmatprep.subr.mxu0 0.0
    %6877 = vmatpush2.msra.mxu0 0.0
    %6878 = vmatprep.subr.mxu0 0.0
    %6879 = vmatpush2.msra.mxu0 0.0
    %6880 = vmatprep.subr.mxu0 0.0
    %6881 = vmatpush2.msra.mxu0 0.0
    %6882 = vmatprep.subr.mxu0 0.0
    %6883 = vmatpush2.msra.mxu0 0.0
    %6884 = vmatprep.subr.mxu0 0.0
    %6885 = vmatpush2.msra.mxu0 0.0
    %6886 = vmatprep.subr.mxu0 0.0
    %6887 = vmatpush2.msra.mxu0 0.0
    %6888 = vmatprep.subr.mxu0 0.0
    %6889 = vmatpush2.msra.mxu0 0.0
    %6890 = vmatprep.mubr.f32.mxu0 0.0
    %6891 = vmatmul.mubr.f32.gmra.mxu0 %v6800
    %v6892 = vpop.f32.mrf.mxu0
    %v6893 = vadd.f32 0.0, %v6892
    %v6894 = vpop.f32.mrf.mxu0
    %v6895 = vadd.f32 0.0, %v6894
    %6896 = vmatprep.mubr.f32.mxu0 0.0
    %6897 = vmatmul.mubr.f32.gmra.mxu0 %v6803
    %v6898 = vpop.f32.mrf.mxu0
    %v6899 = vadd.f32 0.0, %v6898
    %v6900 = vpop.f32.mrf.mxu0
    %v6901 = vadd.f32 0.0, %v6900
    %6902 = vmatprep.mubr.f32.mxu0 0.0
    %6903 = vmatmul.mubr.f32.gmra.mxu0 %v6806
    %v6904 = vpop.f32.mrf.mxu0
    %v6905 = vadd.f32 0.0, %v6904
    %v6906 = vpop.f32.mrf.mxu0
    %v6907 = vadd.f32 0.0, %v6906
    %6908 = vmatprep.mubr.f32.mxu0 0.0
    %6909 = vmatmul.mubr.f32.gmra.mxu0 %v6809
    %v6910 = vpop.f32.mrf.mxu0
    %v6911 = vadd.f32 0.0, %v6910
    %v6912 = vpop.f32.mrf.mxu0
    %v6913 = vadd.f32 0.0, %v6912
    %6914 = vmatprep.mubr.f32.mxu0 0.0
    %6915 = vmatmul.mubr.f32.gmra.mxu0 %v6812
    %v6916 = vpop.f32.mrf.mxu0
    %v6917 = vadd.f32 0.0, %v6916
    %v6918 = vpop.f32.mrf.mxu0
    %v6919 = vadd.f32 0.0, %v6918
    %6920 = vmatprep.mubr.f32.mxu0 0.0
    %6921 = vmatmul.mubr.f32.gmra.mxu0 %v6815
    %v6922 = vpop.f32.mrf.mxu0
    %v6923 = vadd.f32 0.0, %v6922
    %v6924 = vpop.f32.mrf.mxu0
    %v6925 = vadd.f32 0.0, %v6924
    %6926 = vmatprep.mubr.f32.mxu0 0.0
    %6927 = vmatmul.mubr.f32.gmra.mxu0 %v6818
    %v6928 = vpop.f32.mrf.mxu0
    %v6929 = vadd.f32 0.0, %v6928
    %v6930 = vpop.f32.mrf.mxu0
    %v6931 = vadd.f32 0.0, %v6930
    %6932 = vdwg.mxu0
    %v6933 = vadd.f32 %v6785, %v6893
    %v6934 = vadd.f32 %v6786, %v6895
    %v6935 = vadd.f32 %v6787, %v6899
    %v6936 = vadd.f32 %v6788, %v6901
    %v6937 = vadd.f32 %v6789, %v6905
    %v6938 = vadd.f32 %v6790, %v6907
    %v6939 = vadd.f32 %v6791, %v6911
    %v6940 = vadd.f32 %v6792, %v6913
    %v6941 = vadd.f32 %v6793, %v6917
    %v6942 = vadd.f32 %v6794, %v6919
    %v6943 = vadd.f32 %v6795, %v6923
    %v6944 = vadd.f32 %v6796, %v6925
    %v6945 = vadd.f32 %v6797, %v6929
    %v6946 = vadd.f32 %v6798, %v6931
    %v6947 = vld [vmem:[#allocation6 + $0x7] sm:$0x7]
    %v6949 = vlaneseq
    %v6950 = vshrl.u32 %v6949, 7
    %v6951 = vsub.s32 0, %v6950
    %v6952 = vrot.slane %v6947, %v6951
    %v6953 = vlaneseq
    %v6954 = vshrl.u32 %v6953, 7
    %v6955 = vsub.s32 1, %v6954
    %v6956 = vrot.slane %v6947, %v6955
    %v6957 = vlaneseq
    %v6958 = vshrl.u32 %v6957, 7
    %v6959 = vsub.s32 2, %v6958
    %v6960 = vrot.slane %v6947, %v6959
    %6961 = vrot.lane.b32.xlu0 %v6952, 24
    %v6962 = vpop.permute.xlu0 %6961
    %6963 = vrot.lane.b32.xlu0 %v6956, 24
    %v6964 = vpop.permute.xlu0 %6963
    %6965 = vrot.lane.b32.xlu0 %v6960, 24
    %v6966 = vpop.permute.xlu0 %6965
    %v6967 = vsel %vm839, %v6962, %v6964
    %v6968 = vsel %vm839, %v6964, %v6966
    %v6971 = vadd.f32 %v6933, %v6967
    %v6972 = vadd.f32 %v6934, %v6968
    %v6973 = vadd.f32 %v6935, %v6967
    %v6974 = vadd.f32 %v6936, %v6968
    %v6975 = vadd.f32 %v6937, %v6967
    %v6976 = vadd.f32 %v6938, %v6968
    %v6977 = vadd.f32 %v6939, %v6967
    %v6978 = vadd.f32 %v6940, %v6968
    %v6979 = vadd.f32 %v6941, %v6967
    %v6980 = vadd.f32 %v6942, %v6968
    %v6981 = vadd.f32 %v6943, %v6967
    %v6982 = vadd.f32 %v6944, %v6968
    %v6983 = vadd.f32 %v6945, %v6967
    %v6984 = vadd.f32 %v6946, %v6968
    %v6985 = vmax.f32 %v6971, 0.0
    %v6986 = vmax.f32 %v6972, 0.0
    %v6987 = vmax.f32 %v6973, 0.0
    %v6988 = vmax.f32 %v6974, 0.0
    %v6989 = vmax.f32 %v6975, 0.0
    %v6990 = vmax.f32 %v6976, 0.0
    %v6991 = vmax.f32 %v6977, 0.0
    %v6992 = vmax.f32 %v6978, 0.0
    %v6993 = vmax.f32 %v6979, 0.0
    %v6994 = vmax.f32 %v6980, 0.0
    %v6995 = vmax.f32 %v6981, 0.0
    %v6996 = vmax.f32 %v6982, 0.0
    %v6997 = vmax.f32 %v6983, 0.0
    %v6998 = vmax.f32 %v6984, 0.0
    %v6999 = vld [vmem:[#allocation6 + $0x9] sm:$0x7]
    %v7001 = vlaneseq
    %v7002 = vshrl.u32 %v7001, 7
    %v7003 = vsub.s32 0, %v7002
    %v7004 = vrot.slane %v6999, %v7003
    %v7005 = vlaneseq
    %v7006 = vshrl.u32 %v7005, 7
    %v7007 = vsub.s32 1, %v7006
    %v7008 = vrot.slane %v6999, %v7007
    %v7009 = vlaneseq
    %v7010 = vshrl.u32 %v7009, 7
    %v7011 = vsub.s32 2, %v7010
    %v7012 = vrot.slane %v6999, %v7011
    %7013 = vrot.lane.b32.xlu0 %v7004, 24
    %v7014 = vpop.permute.xlu0 %7013
    %7015 = vrot.lane.b32.xlu0 %v7008, 24
    %v7016 = vpop.permute.xlu0 %7015
    %7017 = vrot.lane.b32.xlu0 %v7012, 24
    %v7018 = vpop.permute.xlu0 %7017
    %v7019 = vsel %vm839, %v7014, %v7016
    %v7020 = vsel %vm839, %v7016, %v7018
    %7023 = vmatprep.subr.mxu0 %v553
    %7024 = vmatpush1.msra.mxu0 %v552
    %7025 = vmatprep.subr.mxu0 %v551
    %7026 = vmatpush1.msra.mxu0 %v550
    %7027 = vmatprep.subr.mxu0 %v549
    %7028 = vmatpush1.msra.mxu0 %v548
    %7029 = vmatprep.subr.mxu0 %v547
    %7030 = vmatpush1.msra.mxu0 %v546
    %7031 = vmatprep.subr.mxu0 %v545
    %7032 = vmatpush1.msra.mxu0 %v544
    %7033 = vmatprep.subr.mxu0 %v543
    %7034 = vmatpush1.msra.mxu0 %v542
    %7035 = vmatprep.subr.mxu0 %v541
    %7036 = vmatpush1.msra.mxu0 %v540
    %7037 = vmatprep.subr.mxu0 %v539
    %7038 = vmatpush1.msra.mxu0 %v538
    %7039 = vmatprep.subr.mxu0 %v537
    %7040 = vmatpush1.msra.mxu0 %v536
    %7041 = vmatprep.subr.mxu0 %v535
    %7042 = vmatpush1.msra.mxu0 %v534
    %7043 = vmatprep.subr.mxu0 %v533
    %7044 = vmatpush1.msra.mxu0 %v532
    %7045 = vmatprep.subr.mxu0 %v531
    %7046 = vmatpush1.msra.mxu0 %v530
    %7047 = vmatprep.subr.mxu0 %v529
    %7048 = vmatpush1.msra.mxu0 %v528
    %7049 = vmatprep.subr.mxu0 %v527
    %7050 = vmatpush1.msra.mxu0 %v526
    %7051 = vmatprep.subr.mxu0 %v525
    %7052 = vmatpush1.msra.mxu0 %v524
    %7053 = vmatprep.subr.mxu0 %v523
    %7054 = vmatpush1.msra.mxu0 %v522
    %7055 = vmatprep.subr.mxu0 %v585
    %7056 = vmatpush2.msra.mxu0 %v584
    %7057 = vmatprep.subr.mxu0 %v583
    %7058 = vmatpush2.msra.mxu0 %v582
    %7059 = vmatprep.subr.mxu0 %v581
    %7060 = vmatpush2.msra.mxu0 %v580
    %7061 = vmatprep.subr.mxu0 %v579
    %7062 = vmatpush2.msra.mxu0 %v578
    %7063 = vmatprep.subr.mxu0 %v577
    %7064 = vmatpush2.msra.mxu0 %v576
    %7065 = vmatprep.subr.mxu0 %v575
    %7066 = vmatpush2.msra.mxu0 %v574
    %7067 = vmatprep.subr.mxu0 %v573
    %7068 = vmatpush2.msra.mxu0 %v572
    %7069 = vmatprep.subr.mxu0 %v571
    %7070 = vmatpush2.msra.mxu0 %v570
    %7071 = vmatprep.subr.mxu0 %v569
    %7072 = vmatpush2.msra.mxu0 %v568
    %7073 = vmatprep.subr.mxu0 %v567
    %7074 = vmatpush2.msra.mxu0 %v566
    %7075 = vmatprep.subr.mxu0 %v565
    %7076 = vmatpush2.msra.mxu0 %v564
    %7077 = vmatprep.subr.mxu0 %v563
    %7078 = vmatpush2.msra.mxu0 %v562
    %7079 = vmatprep.subr.mxu0 %v561
    %7080 = vmatpush2.msra.mxu0 %v560
    %7081 = vmatprep.subr.mxu0 %v559
    %7082 = vmatpush2.msra.mxu0 %v558
    %7083 = vmatprep.subr.mxu0 %v557
    %7084 = vmatpush2.msra.mxu0 %v556
    %7085 = vmatprep.subr.mxu0 %v555
    %7086 = vmatpush2.msra.mxu0 %v554
    %7087 = vmatprep.mubr.f32.mxu0 %v6986
    %7088 = vmatmul.mubr.f32.gmra.mxu0 %v6985
    %v7089 = vpop.f32.mrf.mxu0
    %v7090 = vadd.f32 %v7019, %v7089
    %v7091 = vpop.f32.mrf.mxu0
    %v7092 = vadd.f32 %v7020, %v7091
    %7093 = vmatprep.mubr.f32.mxu0 %v6988
    %7094 = vmatmul.mubr.f32.gmra.mxu0 %v6987
    %v7095 = vpop.f32.mrf.mxu0
    %v7096 = vadd.f32 %v7019, %v7095
    %v7097 = vpop.f32.mrf.mxu0
    %v7098 = vadd.f32 %v7020, %v7097
    %7099 = vmatprep.mubr.f32.mxu0 %v6990
    %7100 = vmatmul.mubr.f32.gmra.mxu0 %v6989
    %v7101 = vpop.f32.mrf.mxu0
    %v7102 = vadd.f32 %v7019, %v7101
    %v7103 = vpop.f32.mrf.mxu0
    %v7104 = vadd.f32 %v7020, %v7103
    %7105 = vmatprep.mubr.f32.mxu0 %v6992
    %7106 = vmatmul.mubr.f32.gmra.mxu0 %v6991
    %v7107 = vpop.f32.mrf.mxu0
    %v7108 = vadd.f32 %v7019, %v7107
    %v7109 = vpop.f32.mrf.mxu0
    %v7110 = vadd.f32 %v7020, %v7109
    %7111 = vmatprep.mubr.f32.mxu0 %v6994
    %7112 = vmatmul.mubr.f32.gmra.mxu0 %v6993
    %v7113 = vpop.f32.mrf.mxu0
    %v7114 = vadd.f32 %v7019, %v7113
    %v7115 = vpop.f32.mrf.mxu0
    %v7116 = vadd.f32 %v7020, %v7115
    %7117 = vmatprep.mubr.f32.mxu0 %v6996
    %7118 = vmatmul.mubr.f32.gmra.mxu0 %v6995
    %v7119 = vpop.f32.mrf.mxu0
    %v7120 = vadd.f32 %v7019, %v7119
    %v7121 = vpop.f32.mrf.mxu0
    %v7122 = vadd.f32 %v7020, %v7121
    %7123 = vmatprep.mubr.f32.mxu0 %v6998
    %7124 = vmatmul.mubr.f32.gmra.mxu0 %v6997
    %v7125 = vpop.f32.mrf.mxu0
    %v7126 = vadd.f32 %v7019, %v7125
    %v7127 = vpop.f32.mrf.mxu0
    %v7128 = vadd.f32 %v7020, %v7127
    %7129 = vdwg.mxu0
    %v7130 = vmax.f32 %v7090, 0.0
    %v7131 = vmax.f32 %v7092, 0.0
    %v7132 = vmax.f32 %v7096, 0.0
    %v7133 = vmax.f32 %v7098, 0.0
    %v7134 = vmax.f32 %v7102, 0.0
    %v7135 = vmax.f32 %v7104, 0.0
    %v7136 = vmax.f32 %v7108, 0.0
    %v7137 = vmax.f32 %v7110, 0.0
    %v7138 = vmax.f32 %v7114, 0.0
    %v7139 = vmax.f32 %v7116, 0.0
    %v7140 = vmax.f32 %v7120, 0.0
    %v7141 = vmax.f32 %v7122, 0.0
    %v7142 = vmax.f32 %v7126, 0.0
    %v7143 = vmax.f32 %v7128, 0.0
    %v7144 = vld [vmem:[#allocation6 + $0xb] sm:$0x1]
    %v7146 = vlaneseq
    %v7147 = vshrl.u32 %v7146, 7
    %v7148 = vsub.s32 0, %v7147
    %v7149 = vrot.slane %v7144, %v7148
    %7150 = vrot.lane.b32.xlu0 %v7149, 24
    %v7151 = vpop.permute.xlu0 %7150
    %7153 = vmatprep.subr.mxu0 0.0
    %7154 = vmatpush1.msra.mxu0 %v601
    %7155 = vmatprep.subr.mxu0 0.0
    %7156 = vmatpush1.msra.mxu0 %v600
    %7157 = vmatprep.subr.mxu0 0.0
    %7158 = vmatpush1.msra.mxu0 %v599
    %7159 = vmatprep.subr.mxu0 0.0
    %7160 = vmatpush1.msra.mxu0 %v598
    %7161 = vmatprep.subr.mxu0 0.0
    %7162 = vmatpush1.msra.mxu0 %v597
    %7163 = vmatprep.subr.mxu0 0.0
    %7164 = vmatpush1.msra.mxu0 %v596
    %7165 = vmatprep.subr.mxu0 0.0
    %7166 = vmatpush1.msra.mxu0 %v595
    %7167 = vmatprep.subr.mxu0 0.0
    %7168 = vmatpush1.msra.mxu0 %v594
    %7169 = vmatprep.subr.mxu0 0.0
    %7170 = vmatpush1.msra.mxu0 %v593
    %7171 = vmatprep.subr.mxu0 0.0
    %7172 = vmatpush1.msra.mxu0 %v592
    %7173 = vmatprep.subr.mxu0 0.0
    %7174 = vmatpush1.msra.mxu0 %v591
    %7175 = vmatprep.subr.mxu0 0.0
    %7176 = vmatpush1.msra.mxu0 %v590
    %7177 = vmatprep.subr.mxu0 0.0
    %7178 = vmatpush1.msra.mxu0 %v589
    %7179 = vmatprep.subr.mxu0 0.0
    %7180 = vmatpush1.msra.mxu0 %v588
    %7181 = vmatprep.subr.mxu0 0.0
    %7182 = vmatpush1.msra.mxu0 %v587
    %7183 = vmatprep.subr.mxu0 0.0
    %7184 = vmatpush1.msra.mxu0 %v586
    %7185 = vmatprep.subr.mxu0 0.0
    %7186 = vmatpush2.msra.mxu0 %v617
    %7187 = vmatprep.subr.mxu0 0.0
    %7188 = vmatpush2.msra.mxu0 %v616
    %7189 = vmatprep.subr.mxu0 0.0
    %7190 = vmatpush2.msra.mxu0 %v615
    %7191 = vmatprep.subr.mxu0 0.0
    %7192 = vmatpush2.msra.mxu0 %v614
    %7193 = vmatprep.subr.mxu0 0.0
    %7194 = vmatpush2.msra.mxu0 %v613
    %7195 = vmatprep.subr.mxu0 0.0
    %7196 = vmatpush2.msra.mxu0 %v612
    %7197 = vmatprep.subr.mxu0 0.0
    %7198 = vmatpush2.msra.mxu0 %v611
    %7199 = vmatprep.subr.mxu0 0.0
    %7200 = vmatpush2.msra.mxu0 %v610
    %7201 = vmatprep.subr.mxu0 0.0
    %7202 = vmatpush2.msra.mxu0 %v609
    %7203 = vmatprep.subr.mxu0 0.0
    %7204 = vmatpush2.msra.mxu0 %v608
    %7205 = vmatprep.subr.mxu0 0.0
    %7206 = vmatpush2.msra.mxu0 %v607
    %7207 = vmatprep.subr.mxu0 0.0
    %7208 = vmatpush2.msra.mxu0 %v606
    %7209 = vmatprep.subr.mxu0 0.0
    %7210 = vmatpush2.msra.mxu0 %v605
    %7211 = vmatprep.subr.mxu0 0.0
    %7212 = vmatpush2.msra.mxu0 %v604
    %7213 = vmatprep.subr.mxu0 0.0
    %7214 = vmatpush2.msra.mxu0 %v603
    %7215 = vmatprep.subr.mxu0 0.0
    %7216 = vmatpush2.msra.mxu0 %v602
    %7217 = vmatprep.mubr.f32.mxu0 %v7131
    %7218 = vmatmul.mubr.f32.gmra.mxu0 %v7130
    %v7219 = vpop.f32.mrf.mxu0
    %v7220 = vadd.f32 %v7151, %v7219
    %v7221 = vpop.f32.mrf.mxu0
    %7222 = vmatprep.mubr.f32.mxu0 %v7133
    %7223 = vmatmul.mubr.f32.gmra.mxu0 %v7132
    %v7224 = vpop.f32.mrf.mxu0
    %v7225 = vadd.f32 %v7151, %v7224
    %v7226 = vpop.f32.mrf.mxu0
    %7227 = vmatprep.mubr.f32.mxu0 %v7135
    %7228 = vmatmul.mubr.f32.gmra.mxu0 %v7134
    %v7229 = vpop.f32.mrf.mxu0
    %v7230 = vadd.f32 %v7151, %v7229
    %v7231 = vpop.f32.mrf.mxu0
    %7232 = vmatprep.mubr.f32.mxu0 %v7137
    %7233 = vmatmul.mubr.f32.gmra.mxu0 %v7136
    %v7234 = vpop.f32.mrf.mxu0
    %v7235 = vadd.f32 %v7151, %v7234
    %v7236 = vpop.f32.mrf.mxu0
    %7237 = vmatprep.mubr.f32.mxu0 %v7139
    %7238 = vmatmul.mubr.f32.gmra.mxu0 %v7138
    %v7239 = vpop.f32.mrf.mxu0
    %v7240 = vadd.f32 %v7151, %v7239
    %v7241 = vpop.f32.mrf.mxu0
    %7242 = vmatprep.mubr.f32.mxu0 %v7141
    %7243 = vmatmul.mubr.f32.gmra.mxu0 %v7140
    %v7244 = vpop.f32.mrf.mxu0
    %v7245 = vadd.f32 %v7151, %v7244
    %v7246 = vpop.f32.mrf.mxu0
    %7247 = vmatprep.mubr.f32.mxu0 %v7143
    %7248 = vmatmul.mubr.f32.gmra.mxu0 %v7142
    %v7249 = vpop.f32.mrf.mxu0
    %v7250 = vadd.f32 %v7151, %v7249
    %v7251 = vpop.f32.mrf.mxu0
    %7252 = vdwg.mxu0
    %v7253 = vsub.f32 0.0, %v7220
    %v7254 = vsub.f32 0.0, %v7225
    %v7255 = vsub.f32 0.0, %v7230
    %v7256 = vsub.f32 0.0, %v7235
    %v7257 = vsub.f32 0.0, %v7240
    %v7258 = vsub.f32 0.0, %v7245
    %v7259 = vsub.f32 0.0, %v7250
    %v7260 = vmul.f32 %v7253, 1.442695
    %v7261 = vpow.pop %v7260
    %v7262 = vmul.f32 %v7254, 1.442695
    %v7263 = vpow.pop %v7262
    %v7264 = vmul.f32 %v7255, 1.442695
    %v7265 = vpow.pop %v7264
    %v7266 = vmul.f32 %v7256, 1.442695
    %v7267 = vpow.pop %v7266
    %v7268 = vmul.f32 %v7257, 1.442695
    %v7269 = vpow.pop %v7268
    %v7270 = vmul.f32 %v7258, 1.442695
    %v7271 = vpow.pop %v7270
    %v7272 = vmul.f32 %v7259, 1.442695
    %v7273 = vpow.pop %v7272
    %v7274 = vadd.f32 %v7261, 1.0
    %v7275 = vadd.f32 %v7263, 1.0
    %v7276 = vadd.f32 %v7265, 1.0
    %v7277 = vadd.f32 %v7267, 1.0
    %v7278 = vadd.f32 %v7269, 1.0
    %v7279 = vadd.f32 %v7271, 1.0
    %v7280 = vadd.f32 %v7273, 1.0
    %v7281 = vrcp.pop %v7274
    %v7282 = vmul.f32 1.0, %v7281
    %v7283 = vrcp.pop %v7275
    %v7284 = vmul.f32 1.0, %v7283
    %v7285 = vrcp.pop %v7276
    %v7286 = vmul.f32 1.0, %v7285
    %v7287 = vrcp.pop %v7277
    %v7288 = vmul.f32 1.0, %v7287
    %v7289 = vrcp.pop %v7278
    %v7290 = vmul.f32 1.0, %v7289
    %v7291 = vrcp.pop %v7279
    %v7292 = vmul.f32 1.0, %v7291
    %v7293 = vrcp.pop %v7280
    %v7294 = vmul.f32 1.0, %v7293
    %7295 = vmatprep.subr.mxu0 %v655
    %7296 = vmatpush1.msra.mxu0 %v654
    %7297 = vmatprep.subr.mxu0 %v653
    %7298 = vmatpush1.msra.mxu0 %v652
    %7299 = vmatprep.subr.mxu0 %v651
    %7300 = vmatpush1.msra.mxu0 %v650
    %7301 = vmatprep.subr.mxu0 %v649
    %7302 = vmatpush1.msra.mxu0 %v648
    %7303 = vmatprep.subr.mxu0 %v647
    %7304 = vmatpush1.msra.mxu0 %v646
    %7305 = vmatprep.subr.mxu0 %v645
    %7306 = vmatpush1.msra.mxu0 %v644
    %7307 = vmatprep.subr.mxu0 %v643
    %7308 = vmatpush1.msra.mxu0 %v642
    %7309 = vmatprep.subr.mxu0 %v641
    %7310 = vmatpush1.msra.mxu0 %v640
    %7311 = vmatprep.subr.mxu0 %v639
    %7312 = vmatpush1.msra.mxu0 %v638
    %7313 = vmatprep.subr.mxu0 %v637
    %7314 = vmatpush1.msra.mxu0 %v636
    %7315 = vmatprep.subr.mxu0 %v635
    %7316 = vmatpush1.msra.mxu0 %v634
    %7317 = vmatprep.subr.mxu0 %v633
    %7318 = vmatpush1.msra.mxu0 %v632
    %7319 = vmatprep.subr.mxu0 %v631
    %7320 = vmatpush1.msra.mxu0 %v630
    %7321 = vmatprep.subr.mxu0 %v629
    %7322 = vmatpush1.msra.mxu0 %v628
    %7323 = vmatprep.subr.mxu0 %v627
    %7324 = vmatpush1.msra.mxu0 %v626
    %7325 = vmatprep.subr.mxu0 %v625
    %7326 = vmatpush1.msra.mxu0 %v624
    %7327 = vmatprep.subr.mxu0 0.0
    %7328 = vmatpush2.msra.mxu0 0.0
    %7329 = vmatprep.subr.mxu0 0.0
    %7330 = vmatpush2.msra.mxu0 0.0
    %7331 = vmatprep.subr.mxu0 %v683
    %7332 = vmatpush2.msra.mxu0 %v682
    %7333 = vmatprep.subr.mxu0 %v681
    %7334 = vmatpush2.msra.mxu0 %v680
    %7335 = vmatprep.subr.mxu0 %v679
    %7336 = vmatpush2.msra.mxu0 %v678
    %7337 = vmatprep.subr.mxu0 %v677
    %7338 = vmatpush2.msra.mxu0 %v676
    %7339 = vmatprep.subr.mxu0 %v675
    %7340 = vmatpush2.msra.mxu0 %v674
    %7341 = vmatprep.subr.mxu0 %v673
    %7342 = vmatpush2.msra.mxu0 %v672
    %7343 = vmatprep.subr.mxu0 %v671
    %7344 = vmatpush2.msra.mxu0 %v670
    %7345 = vmatprep.subr.mxu0 %v669
    %7346 = vmatpush2.msra.mxu0 %v668
    %7347 = vmatprep.subr.mxu0 %v667
    %7348 = vmatpush2.msra.mxu0 %v666
    %7349 = vmatprep.subr.mxu0 %v665
    %7350 = vmatpush2.msra.mxu0 %v664
    %7351 = vmatprep.subr.mxu0 %v663
    %7352 = vmatpush2.msra.mxu0 %v662
    %7353 = vmatprep.subr.mxu0 %v661
    %7354 = vmatpush2.msra.mxu0 %v660
    %7355 = vmatprep.subr.mxu0 %v659
    %7356 = vmatpush2.msra.mxu0 %v658
    %7357 = vmatprep.subr.mxu0 %v657
    %7358 = vmatpush2.msra.mxu0 %v656
    %7359 = vmatprep.mubr.f32.mxu0 %v6423
    %7360 = vmatmul.mubr.f32.gmra.mxu0 %v1071
    %v7361 = vpop.f32.mrf.mxu0
    %v7362 = vadd.f32 0.0, %v7361
    %v7363 = vpop.f32.mrf.mxu0
    %v7364 = vadd.f32 0.0, %v7363
    %7365 = vmatprep.mubr.f32.mxu0 %v6425
    %7366 = vmatmul.mubr.f32.gmra.mxu0 %v1279
    %v7367 = vpop.f32.mrf.mxu0
    %v7368 = vadd.f32 0.0, %v7367
    %v7369 = vpop.f32.mrf.mxu0
    %v7370 = vadd.f32 0.0, %v7369
    %7371 = vmatprep.mubr.f32.mxu0 %v6427
    %7372 = vmatmul.mubr.f32.gmra.mxu0 %v1487
    %v7373 = vpop.f32.mrf.mxu0
    %v7374 = vadd.f32 0.0, %v7373
    %v7375 = vpop.f32.mrf.mxu0
    %v7376 = vadd.f32 0.0, %v7375
    %7377 = vmatprep.mubr.f32.mxu0 %v6429
    %7378 = vmatmul.mubr.f32.gmra.mxu0 %v1695
    %v7379 = vpop.f32.mrf.mxu0
    %v7380 = vadd.f32 0.0, %v7379
    %v7381 = vpop.f32.mrf.mxu0
    %v7382 = vadd.f32 0.0, %v7381
    %7383 = vmatprep.mubr.f32.mxu0 %v6431
    %7384 = vmatmul.mubr.f32.gmra.mxu0 %v1903
    %v7385 = vpop.f32.mrf.mxu0
    %v7386 = vadd.f32 0.0, %v7385
    %v7387 = vpop.f32.mrf.mxu0
    %v7388 = vadd.f32 0.0, %v7387
    %7389 = vmatprep.mubr.f32.mxu0 %v6433
    %7390 = vmatmul.mubr.f32.gmra.mxu0 %v2111
    %v7391 = vpop.f32.mrf.mxu0
    %v7392 = vadd.f32 0.0, %v7391
    %v7393 = vpop.f32.mrf.mxu0
    %v7394 = vadd.f32 0.0, %v7393
    %7395 = vmatprep.mubr.f32.mxu0 %v6435
    %7396 = vmatmul.mubr.f32.gmra.mxu0 %v2319
    %v7397 = vpop.f32.mrf.mxu0
    %v7398 = vadd.f32 0.0, %v7397
    %v7399 = vpop.f32.mrf.mxu0
    %v7400 = vadd.f32 0.0, %v7399
    %7401 = vdwg.mxu0
    %7402 = vmatprep.subr.mxu0 0.0
    %7403 = vmatpush1.msra.mxu0 0.0
    %7404 = vmatprep.subr.mxu0 0.0
    %7405 = vmatpush1.msra.mxu0 0.0
    %7406 = vmatprep.subr.mxu0 0.0
    %7407 = vmatpush1.msra.mxu0 0.0
    %7408 = vmatprep.subr.mxu0 0.0
    %7409 = vmatpush1.msra.mxu0 0.0
    %7410 = vmatprep.subr.mxu0 0.0
    %7411 = vmatpush1.msra.mxu0 0.0
    %7412 = vmatprep.subr.mxu0 0.0
    %7413 = vmatpush1.msra.mxu0 0.0
    %7414 = vmatprep.subr.mxu0 0.0
    %7415 = vmatpush1.msra.mxu0 0.0
    %7416 = vmatprep.subr.mxu0 0.0
    %7417 = vmatpush1.msra.mxu0 0.0
    %7418 = vmatprep.subr.mxu0 0.0
    %7419 = vmatpush1.msra.mxu0 0.0
    %7420 = vmatprep.subr.mxu0 0.0
    %7421 = vmatpush1.msra.mxu0 0.0
    %7422 = vmatprep.subr.mxu0 0.0
    %7423 = vmatpush1.msra.mxu0 0.0
    %7424 = vmatprep.subr.mxu0 0.0
    %7425 = vmatpush1.msra.mxu0 0.0
    %7426 = vmatprep.subr.mxu0 0.0
    %7427 = vmatpush1.msra.mxu0 0.0
    %7428 = vmatprep.subr.mxu0 %v623
    %7429 = vmatpush1.msra.mxu0 %v622
    %7430 = vmatprep.subr.mxu0 %v621
    %7431 = vmatpush1.msra.mxu0 %v620
    %7432 = vmatprep.subr.mxu0 %v619
    %7433 = vmatpush1.msra.mxu0 %v618
    %7434 = vmatprep.subr.mxu0 0.0
    %7435 = vmatpush2.msra.mxu0 0.0
    %7436 = vmatprep.subr.mxu0 0.0
    %7437 = vmatpush2.msra.mxu0 0.0
    %7438 = vmatprep.subr.mxu0 0.0
    %7439 = vmatpush2.msra.mxu0 0.0
    %7440 = vmatprep.subr.mxu0 0.0
    %7441 = vmatpush2.msra.mxu0 0.0
    %7442 = vmatprep.subr.mxu0 0.0
    %7443 = vmatpush2.msra.mxu0 0.0
    %7444 = vmatprep.subr.mxu0 0.0
    %7445 = vmatpush2.msra.mxu0 0.0
    %7446 = vmatprep.subr.mxu0 0.0
    %7447 = vmatpush2.msra.mxu0 0.0
    %7448 = vmatprep.subr.mxu0 0.0
    %7449 = vmatpush2.msra.mxu0 0.0
    %7450 = vmatprep.subr.mxu0 0.0
    %7451 = vmatpush2.msra.mxu0 0.0
    %7452 = vmatprep.subr.mxu0 0.0
    %7453 = vmatpush2.msra.mxu0 0.0
    %7454 = vmatprep.subr.mxu0 0.0
    %7455 = vmatpush2.msra.mxu0 0.0
    %7456 = vmatprep.subr.mxu0 0.0
    %7457 = vmatpush2.msra.mxu0 0.0
    %7458 = vmatprep.subr.mxu0 0.0
    %7459 = vmatpush2.msra.mxu0 0.0
    %7460 = vmatprep.subr.mxu0 0.0
    %7461 = vmatpush2.msra.mxu0 0.0
    %7462 = vmatprep.subr.mxu0 0.0
    %7463 = vmatpush2.msra.mxu0 0.0
    %7464 = vmatprep.subr.mxu0 0.0
    %7465 = vmatpush2.msra.mxu0 0.0
    %7466 = vmatprep.mubr.f32.mxu0 0.0
    %7467 = vmatmul.mubr.f32.gmra.mxu0 %v841
    %v7468 = vpop.f32.mrf.mxu0
    %v7469 = vadd.f32 %v7362, %v7468
    %v7470 = vpop.f32.mrf.mxu0
    %v7471 = vadd.f32 %v7364, %v7470
    %7472 = vmatprep.mubr.f32.mxu0 0.0
    %7473 = vmatmul.mubr.f32.gmra.mxu0 %v844
    %v7474 = vpop.f32.mrf.mxu0
    %v7475 = vadd.f32 %v7368, %v7474
    %v7476 = vpop.f32.mrf.mxu0
    %v7477 = vadd.f32 %v7370, %v7476
    %7478 = vmatprep.mubr.f32.mxu0 0.0
    %7479 = vmatmul.mubr.f32.gmra.mxu0 %v847
    %v7480 = vpop.f32.mrf.mxu0
    %v7481 = vadd.f32 %v7374, %v7480
    %v7482 = vpop.f32.mrf.mxu0
    %v7483 = vadd.f32 %v7376, %v7482
    %7484 = vmatprep.mubr.f32.mxu0 0.0
    %7485 = vmatmul.mubr.f32.gmra.mxu0 %v850
    %v7486 = vpop.f32.mrf.mxu0
    %v7487 = vadd.f32 %v7380, %v7486
    %v7488 = vpop.f32.mrf.mxu0
    %v7489 = vadd.f32 %v7382, %v7488
    %7490 = vmatprep.mubr.f32.mxu0 0.0
    %7491 = vmatmul.mubr.f32.gmra.mxu0 %v853
    %v7492 = vpop.f32.mrf.mxu0
    %v7493 = vadd.f32 %v7386, %v7492
    %v7494 = vpop.f32.mrf.mxu0
    %v7495 = vadd.f32 %v7388, %v7494
    %7496 = vmatprep.mubr.f32.mxu0 0.0
    %7497 = vmatmul.mubr.f32.gmra.mxu0 %v856
    %v7498 = vpop.f32.mrf.mxu0
    %v7499 = vadd.f32 %v7392, %v7498
    %v7500 = vpop.f32.mrf.mxu0
    %v7501 = vadd.f32 %v7394, %v7500
    %7502 = vmatprep.mubr.f32.mxu0 0.0
    %7503 = vmatmul.mubr.f32.gmra.mxu0 %v859
    %v7504 = vpop.f32.mrf.mxu0
    %v7505 = vadd.f32 %v7398, %v7504
    %v7506 = vpop.f32.mrf.mxu0
    %v7507 = vadd.f32 %v7400, %v7506
    %7508 = vdwg.mxu0
    %v7510 = vsel %vm2788, %v716, 0
    %v7513 = vsel %vm2788, %v717, 0
    %7515 = vmatprep.subr.mxu0 %v715
    %7516 = vmatpush1.msra.mxu0 %v714
    %7517 = vmatprep.subr.mxu0 %v713
    %7518 = vmatpush1.msra.mxu0 %v712
    %7519 = vmatprep.subr.mxu0 %v711
    %7520 = vmatpush1.msra.mxu0 %v710
    %7521 = vmatprep.subr.mxu0 %v709
    %7522 = vmatpush1.msra.mxu0 %v708
    %7523 = vmatprep.subr.mxu0 %v707
    %7524 = vmatpush1.msra.mxu0 %v706
    %7525 = vmatprep.subr.mxu0 %v705
    %7526 = vmatpush1.msra.mxu0 %v704
    %7527 = vmatprep.subr.mxu0 %v703
    %7528 = vmatpush1.msra.mxu0 %v702
    %7529 = vmatprep.subr.mxu0 %v701
    %7530 = vmatpush1.msra.mxu0 %v700
    %7531 = vmatprep.subr.mxu0 %v699
    %7532 = vmatpush1.msra.mxu0 %v698
    %7533 = vmatprep.subr.mxu0 %v697
    %7534 = vmatpush1.msra.mxu0 %v696
    %7535 = vmatprep.subr.mxu0 %v695
    %7536 = vmatpush1.msra.mxu0 %v694
    %7537 = vmatprep.subr.mxu0 %v693
    %7538 = vmatpush1.msra.mxu0 %v692
    %7539 = vmatprep.subr.mxu0 %v691
    %7540 = vmatpush1.msra.mxu0 %v690
    %7541 = vmatprep.subr.mxu0 %v689
    %7542 = vmatpush1.msra.mxu0 %v688
    %7543 = vmatprep.subr.mxu0 %v687
    %7544 = vmatpush1.msra.mxu0 %v686
    %7545 = vmatprep.subr.mxu0 %v685
    %7546 = vmatpush1.msra.mxu0 %v684
    %7547 = vmatprep.subr.mxu0 0.0
    %7548 = vmatpush2.msra.mxu0 0.0
    %7549 = vmatprep.subr.mxu0 0.0
    %7550 = vmatpush2.msra.mxu0 0.0
    %7551 = vmatprep.subr.mxu0 0.0
    %7552 = vmatpush2.msra.mxu0 0.0
    %7553 = vmatprep.subr.mxu0 0.0
    %7554 = vmatpush2.msra.mxu0 0.0
    %7555 = vmatprep.subr.mxu0 0.0
    %7556 = vmatpush2.msra.mxu0 0.0
    %7557 = vmatprep.subr.mxu0 0.0
    %7558 = vmatpush2.msra.mxu0 0.0
    %7559 = vmatprep.subr.mxu0 0.0
    %7560 = vmatpush2.msra.mxu0 0.0
    %7561 = vmatprep.subr.mxu0 0.0
    %7562 = vmatpush2.msra.mxu0 0.0
    %7563 = vmatprep.subr.mxu0 0.0
    %7564 = vmatpush2.msra.mxu0 0.0
    %7565 = vmatprep.subr.mxu0 0.0
    %7566 = vmatpush2.msra.mxu0 0.0
    %7567 = vmatprep.subr.mxu0 0.0
    %7568 = vmatpush2.msra.mxu0 0.0
    %7569 = vmatprep.subr.mxu0 0.0
    %7570 = vmatpush2.msra.mxu0 0.0
    %7571 = vmatprep.subr.mxu0 0.0
    %7572 = vmatpush2.msra.mxu0 0.0
    %7573 = vmatprep.subr.mxu0 0.0
    %7574 = vmatpush2.msra.mxu0 0.0
    %7575 = vmatprep.subr.mxu0 0.0
    %7576 = vmatpush2.msra.mxu0 0.0
    %7577 = vmatprep.subr.mxu0 %v7513
    %7578 = vmatpush2.msra.mxu0 %v7510
    %7579 = vmatprep.mubr.f32.mxu0 %v6652
    %7580 = vmatmul.mubr.f32.gmra.mxu0 %v5949
    %v7581 = vpop.f32.mrf.mxu0
    %v7582 = vadd.f32 0.0, %v7581
    %v7583 = vpop.f32.mrf.mxu0
    %v7584 = vadd.f32 0.0, %v7583
    %7585 = vmatprep.mubr.f32.mxu0 %v6655
    %7586 = vmatmul.mubr.f32.gmra.mxu0 %v5951
    %v7587 = vpop.f32.mrf.mxu0
    %v7588 = vadd.f32 0.0, %v7587
    %v7589 = vpop.f32.mrf.mxu0
    %v7590 = vadd.f32 0.0, %v7589
    %7591 = vmatprep.mubr.f32.mxu0 %v6658
    %7592 = vmatmul.mubr.f32.gmra.mxu0 %v5953
    %v7593 = vpop.f32.mrf.mxu0
    %v7594 = vadd.f32 0.0, %v7593
    %v7595 = vpop.f32.mrf.mxu0
    %v7596 = vadd.f32 0.0, %v7595
    %7597 = vmatprep.mubr.f32.mxu0 %v6661
    %7598 = vmatmul.mubr.f32.gmra.mxu0 %v5955
    %v7599 = vpop.f32.mrf.mxu0
    %v7600 = vadd.f32 0.0, %v7599
    %v7601 = vpop.f32.mrf.mxu0
    %v7602 = vadd.f32 0.0, %v7601
    %7603 = vmatprep.mubr.f32.mxu0 %v6664
    %7604 = vmatmul.mubr.f32.gmra.mxu0 %v5957
    %v7605 = vpop.f32.mrf.mxu0
    %v7606 = vadd.f32 0.0, %v7605
    %v7607 = vpop.f32.mrf.mxu0
    %v7608 = vadd.f32 0.0, %v7607
    %7609 = vmatprep.mubr.f32.mxu0 %v6667
    %7610 = vmatmul.mubr.f32.gmra.mxu0 %v5959
    %v7611 = vpop.f32.mrf.mxu0
    %v7612 = vadd.f32 0.0, %v7611
    %v7613 = vpop.f32.mrf.mxu0
    %v7614 = vadd.f32 0.0, %v7613
    %7615 = vmatprep.mubr.f32.mxu0 %v6670
    %7616 = vmatmul.mubr.f32.gmra.mxu0 %v5961
    %v7617 = vpop.f32.mrf.mxu0
    %v7618 = vadd.f32 0.0, %v7617
    %v7619 = vpop.f32.mrf.mxu0
    %v7620 = vadd.f32 0.0, %v7619
    %7621 = vdwg.mxu0
    %v7622 = vadd.f32 %v7469, %v7582
    %v7623 = vadd.f32 %v7471, %v7584
    %v7624 = vadd.f32 %v7475, %v7588
    %v7625 = vadd.f32 %v7477, %v7590
    %v7626 = vadd.f32 %v7481, %v7594
    %v7627 = vadd.f32 %v7483, %v7596
    %v7628 = vadd.f32 %v7487, %v7600
    %v7629 = vadd.f32 %v7489, %v7602
    %v7630 = vadd.f32 %v7493, %v7606
    %v7631 = vadd.f32 %v7495, %v7608
    %v7632 = vadd.f32 %v7499, %v7612
    %v7633 = vadd.f32 %v7501, %v7614
    %v7634 = vadd.f32 %v7505, %v7618
    %v7635 = vadd.f32 %v7507, %v7620
    %v7636 = vld [vmem:[#allocation6 + $0xb] sm:$0x7]
    %v7638 = vlaneseq
    %v7639 = vshrl.u32 %v7638, 7
    %v7640 = vsub.s32 0, %v7639
    %v7641 = vrot.slane %v7636, %v7640
    %v7642 = vlaneseq
    %v7643 = vshrl.u32 %v7642, 7
    %v7644 = vsub.s32 1, %v7643
    %v7645 = vrot.slane %v7636, %v7644
    %v7646 = vlaneseq
    %v7647 = vshrl.u32 %v7646, 7
    %v7648 = vsub.s32 2, %v7647
    %v7649 = vrot.slane %v7636, %v7648
    %7650 = vrot.lane.b32.xlu0 %v7641, 12
    %v7651 = vpop.permute.xlu0 %7650
    %7652 = vrot.lane.b32.xlu0 %v7645, 12
    %v7653 = vpop.permute.xlu0 %7652
    %7654 = vrot.lane.b32.xlu0 %v7649, 12
    %v7655 = vpop.permute.xlu0 %7654
    %v7656 = vsel %vm2474, %v7651, %v7653
    %v7657 = vsel %vm2474, %v7653, %v7655
    %v7660 = vadd.f32 %v7622, %v7656
    %v7661 = vadd.f32 %v7623, %v7657
    %v7662 = vadd.f32 %v7624, %v7656
    %v7663 = vadd.f32 %v7625, %v7657
    %v7664 = vadd.f32 %v7626, %v7656
    %v7665 = vadd.f32 %v7627, %v7657
    %v7666 = vadd.f32 %v7628, %v7656
    %v7667 = vadd.f32 %v7629, %v7657
    %v7668 = vadd.f32 %v7630, %v7656
    %v7669 = vadd.f32 %v7631, %v7657
    %v7670 = vadd.f32 %v7632, %v7656
    %v7671 = vadd.f32 %v7633, %v7657
    %v7672 = vadd.f32 %v7634, %v7656
    %v7673 = vadd.f32 %v7635, %v7657
    %v7674 = vmax.f32 %v7660, 0.0
    %v7675 = vmax.f32 %v7661, 0.0
    %v7676 = vmax.f32 %v7662, 0.0
    %v7677 = vmax.f32 %v7663, 0.0
    %v7678 = vmax.f32 %v7664, 0.0
    %v7679 = vmax.f32 %v7665, 0.0
    %v7680 = vmax.f32 %v7666, 0.0
    %v7681 = vmax.f32 %v7667, 0.0
    %v7682 = vmax.f32 %v7668, 0.0
    %v7683 = vmax.f32 %v7669, 0.0
    %v7684 = vmax.f32 %v7670, 0.0
    %v7685 = vmax.f32 %v7671, 0.0
    %v7686 = vmax.f32 %v7672, 0.0
    %v7687 = vmax.f32 %v7673, 0.0
    %v7688 = vld [vmem:[#allocation6 + $0xd] sm:$0x7]
    %v7690 = vlaneseq
    %v7691 = vshrl.u32 %v7690, 7
    %v7692 = vsub.s32 0, %v7691
    %v7693 = vrot.slane %v7688, %v7692
    %v7694 = vlaneseq
    %v7695 = vshrl.u32 %v7694, 7
    %v7696 = vsub.s32 1, %v7695
    %v7697 = vrot.slane %v7688, %v7696
    %v7698 = vlaneseq
    %v7699 = vshrl.u32 %v7698, 7
    %v7700 = vsub.s32 2, %v7699
    %v7701 = vrot.slane %v7688, %v7700
    %7702 = vrot.lane.b32.xlu0 %v7693, 12
    %v7703 = vpop.permute.xlu0 %7702
    %7704 = vrot.lane.b32.xlu0 %v7697, 12
    %v7705 = vpop.permute.xlu0 %7704
    %7706 = vrot.lane.b32.xlu0 %v7701, 12
    %v7707 = vpop.permute.xlu0 %7706
    %v7708 = vsel %vm2474, %v7703, %v7705
    %v7709 = vsel %vm2474, %v7705, %v7707
    %7712 = vmatprep.subr.mxu0 %v749
    %7713 = vmatpush1.msra.mxu0 %v748
    %7714 = vmatprep.subr.mxu0 %v747
    %7715 = vmatpush1.msra.mxu0 %v746
    %7716 = vmatprep.subr.mxu0 %v745
    %7717 = vmatpush1.msra.mxu0 %v744
    %7718 = vmatprep.subr.mxu0 %v743
    %7719 = vmatpush1.msra.mxu0 %v742
    %7720 = vmatprep.subr.mxu0 %v741
    %7721 = vmatpush1.msra.mxu0 %v740
    %7722 = vmatprep.subr.mxu0 %v739
    %7723 = vmatpush1.msra.mxu0 %v738
    %7724 = vmatprep.subr.mxu0 %v737
    %7725 = vmatpush1.msra.mxu0 %v736
    %7726 = vmatprep.subr.mxu0 %v735
    %7727 = vmatpush1.msra.mxu0 %v734
    %7728 = vmatprep.subr.mxu0 %v733
    %7729 = vmatpush1.msra.mxu0 %v732
    %7730 = vmatprep.subr.mxu0 %v731
    %7731 = vmatpush1.msra.mxu0 %v730
    %7732 = vmatprep.subr.mxu0 %v729
    %7733 = vmatpush1.msra.mxu0 %v728
    %7734 = vmatprep.subr.mxu0 %v727
    %7735 = vmatpush1.msra.mxu0 %v726
    %7736 = vmatprep.subr.mxu0 %v725
    %7737 = vmatpush1.msra.mxu0 %v724
    %7738 = vmatprep.subr.mxu0 %v723
    %7739 = vmatpush1.msra.mxu0 %v722
    %7740 = vmatprep.subr.mxu0 %v721
    %7741 = vmatpush1.msra.mxu0 %v720
    %7742 = vmatprep.subr.mxu0 %v719
    %7743 = vmatpush1.msra.mxu0 %v718
    %7744 = vmatprep.subr.mxu0 %v781
    %7745 = vmatpush2.msra.mxu0 %v780
    %7746 = vmatprep.subr.mxu0 %v779
    %7747 = vmatpush2.msra.mxu0 %v778
    %7748 = vmatprep.subr.mxu0 %v777
    %7749 = vmatpush2.msra.mxu0 %v776
    %7750 = vmatprep.subr.mxu0 %v775
    %7751 = vmatpush2.msra.mxu0 %v774
    %7752 = vmatprep.subr.mxu0 %v773
    %7753 = vmatpush2.msra.mxu0 %v772
    %7754 = vmatprep.subr.mxu0 %v771
    %7755 = vmatpush2.msra.mxu0 %v770
    %7756 = vmatprep.subr.mxu0 %v769
    %7757 = vmatpush2.msra.mxu0 %v768
    %7758 = vmatprep.subr.mxu0 %v767
    %7759 = vmatpush2.msra.mxu0 %v766
    %7760 = vmatprep.subr.mxu0 %v765
    %7761 = vmatpush2.msra.mxu0 %v764
    %7762 = vmatprep.subr.mxu0 %v763
    %7763 = vmatpush2.msra.mxu0 %v762
    %7764 = vmatprep.subr.mxu0 %v761
    %7765 = vmatpush2.msra.mxu0 %v760
    %7766 = vmatprep.subr.mxu0 %v759
    %7767 = vmatpush2.msra.mxu0 %v758
    %7768 = vmatprep.subr.mxu0 %v757
    %7769 = vmatpush2.msra.mxu0 %v756
    %7770 = vmatprep.subr.mxu0 %v755
    %7771 = vmatpush2.msra.mxu0 %v754
    %7772 = vmatprep.subr.mxu0 %v753
    %7773 = vmatpush2.msra.mxu0 %v752
    %7774 = vmatprep.subr.mxu0 %v751
    %7775 = vmatpush2.msra.mxu0 %v750
    %7776 = vmatprep.mubr.f32.mxu0 %v7675
    %7777 = vmatmul.mubr.f32.gmra.mxu0 %v7674
    %v7778 = vpop.f32.mrf.mxu0
    %v7779 = vadd.f32 %v7708, %v7778
    %v7780 = vpop.f32.mrf.mxu0
    %v7781 = vadd.f32 %v7709, %v7780
    %7782 = vmatprep.mubr.f32.mxu0 %v7677
    %7783 = vmatmul.mubr.f32.gmra.mxu0 %v7676
    %v7784 = vpop.f32.mrf.mxu0
    %v7785 = vadd.f32 %v7708, %v7784
    %v7786 = vpop.f32.mrf.mxu0
    %v7787 = vadd.f32 %v7709, %v7786
    %7788 = vmatprep.mubr.f32.mxu0 %v7679
    %7789 = vmatmul.mubr.f32.gmra.mxu0 %v7678
    %v7790 = vpop.f32.mrf.mxu0
    %v7791 = vadd.f32 %v7708, %v7790
    %v7792 = vpop.f32.mrf.mxu0
    %v7793 = vadd.f32 %v7709, %v7792
    %7794 = vmatprep.mubr.f32.mxu0 %v7681
    %7795 = vmatmul.mubr.f32.gmra.mxu0 %v7680
    %v7796 = vpop.f32.mrf.mxu0
    %v7797 = vadd.f32 %v7708, %v7796
    %v7798 = vpop.f32.mrf.mxu0
    %v7799 = vadd.f32 %v7709, %v7798
    %7800 = vmatprep.mubr.f32.mxu0 %v7683
    %7801 = vmatmul.mubr.f32.gmra.mxu0 %v7682
    %v7802 = vpop.f32.mrf.mxu0
    %v7803 = vadd.f32 %v7708, %v7802
    %v7804 = vpop.f32.mrf.mxu0
    %v7805 = vadd.f32 %v7709, %v7804
    %7806 = vmatprep.mubr.f32.mxu0 %v7685
    %7807 = vmatmul.mubr.f32.gmra.mxu0 %v7684
    %v7808 = vpop.f32.mrf.mxu0
    %v7809 = vadd.f32 %v7708, %v7808
    %v7810 = vpop.f32.mrf.mxu0
    %v7811 = vadd.f32 %v7709, %v7810
    %7812 = vmatprep.mubr.f32.mxu0 %v7687
    %7813 = vmatmul.mubr.f32.gmra.mxu0 %v7686
    %v7814 = vpop.f32.mrf.mxu0
    %v7815 = vadd.f32 %v7708, %v7814
    %v7816 = vpop.f32.mrf.mxu0
    %v7817 = vadd.f32 %v7709, %v7816
    %7818 = vdwg.mxu0
    %v7819 = vmax.f32 %v7779, 0.0
    %v7820 = vmax.f32 %v7781, 0.0
    %v7821 = vmax.f32 %v7785, 0.0
    %v7822 = vmax.f32 %v7787, 0.0
    %v7823 = vmax.f32 %v7791, 0.0
    %v7824 = vmax.f32 %v7793, 0.0
    %v7825 = vmax.f32 %v7797, 0.0
    %v7826 = vmax.f32 %v7799, 0.0
    %v7827 = vmax.f32 %v7803, 0.0
    %v7828 = vmax.f32 %v7805, 0.0
    %v7829 = vmax.f32 %v7809, 0.0
    %v7830 = vmax.f32 %v7811, 0.0
    %v7831 = vmax.f32 %v7815, 0.0
    %v7832 = vmax.f32 %v7817, 0.0
    %v7833 = vld [vmem:[#allocation6 + $0xf] sm:$0x1]
    %v7835 = vlaneseq
    %v7836 = vshrl.u32 %v7835, 7
    %v7837 = vsub.s32 0, %v7836
    %v7838 = vrot.slane %v7833, %v7837
    %7839 = vrot.lane.b32.xlu0 %v7838, 12
    %v7840 = vpop.permute.xlu0 %7839
    %7842 = vmatprep.subr.mxu0 0.0
    %7843 = vmatpush1.msra.mxu0 %v797
    %7844 = vmatprep.subr.mxu0 0.0
    %7845 = vmatpush1.msra.mxu0 %v796
    %7846 = vmatprep.subr.mxu0 0.0
    %7847 = vmatpush1.msra.mxu0 %v795
    %7848 = vmatprep.subr.mxu0 0.0
    %7849 = vmatpush1.msra.mxu0 %v794
    %7850 = vmatprep.subr.mxu0 0.0
    %7851 = vmatpush1.msra.mxu0 %v793
    %7852 = vmatprep.subr.mxu0 0.0
    %7853 = vmatpush1.msra.mxu0 %v792
    %7854 = vmatprep.subr.mxu0 0.0
    %7855 = vmatpush1.msra.mxu0 %v791
    %7856 = vmatprep.subr.mxu0 0.0
    %7857 = vmatpush1.msra.mxu0 %v790
    %7858 = vmatprep.subr.mxu0 0.0
    %7859 = vmatpush1.msra.mxu0 %v789
    %7860 = vmatprep.subr.mxu0 0.0
    %7861 = vmatpush1.msra.mxu0 %v788
    %7862 = vmatprep.subr.mxu0 0.0
    %7863 = vmatpush1.msra.mxu0 %v787
    %7864 = vmatprep.subr.mxu0 0.0
    %7865 = vmatpush1.msra.mxu0 %v786
    %7866 = vmatprep.subr.mxu0 0.0
    %7867 = vmatpush1.msra.mxu0 %v785
    %7868 = vmatprep.subr.mxu0 0.0
    %7869 = vmatpush1.msra.mxu0 %v784
    %7870 = vmatprep.subr.mxu0 0.0
    %7871 = vmatpush1.msra.mxu0 %v783
    %7872 = vmatprep.subr.mxu0 0.0
    %7873 = vmatpush1.msra.mxu0 %v782
    %7874 = vmatprep.subr.mxu0 0.0
    %7875 = vmatpush2.msra.mxu0 %v813
    %7876 = vmatprep.subr.mxu0 0.0
    %7877 = vmatpush2.msra.mxu0 %v812
    %7878 = vmatprep.subr.mxu0 0.0
    %7879 = vmatpush2.msra.mxu0 %v811
    %7880 = vmatprep.subr.mxu0 0.0
    %7881 = vmatpush2.msra.mxu0 %v810
    %7882 = vmatprep.subr.mxu0 0.0
    %7883 = vmatpush2.msra.mxu0 %v809
    %7884 = vmatprep.subr.mxu0 0.0
    %7885 = vmatpush2.msra.mxu0 %v808
    %7886 = vmatprep.subr.mxu0 0.0
    %7887 = vmatpush2.msra.mxu0 %v807
    %7888 = vmatprep.subr.mxu0 0.0
    %7889 = vmatpush2.msra.mxu0 %v806
    %7890 = vmatprep.subr.mxu0 0.0
    %7891 = vmatpush2.msra.mxu0 %v805
    %7892 = vmatprep.subr.mxu0 0.0
    %7893 = vmatpush2.msra.mxu0 %v804
    %7894 = vmatprep.subr.mxu0 0.0
    %7895 = vmatpush2.msra.mxu0 %v803
    %7896 = vmatprep.subr.mxu0 0.0
    %7897 = vmatpush2.msra.mxu0 %v802
    %7898 = vmatprep.subr.mxu0 0.0
    %7899 = vmatpush2.msra.mxu0 %v801
    %7900 = vmatprep.subr.mxu0 0.0
    %7901 = vmatpush2.msra.mxu0 %v800
    %7902 = vmatprep.subr.mxu0 0.0
    %7903 = vmatpush2.msra.mxu0 %v799
    %7904 = vmatprep.subr.mxu0 0.0
    %7905 = vmatpush2.msra.mxu0 %v798
    %7906 = vmatprep.mubr.f32.mxu0 %v7820
    %7907 = vmatmul.mubr.f32.gmra.mxu0 %v7819
    %v7908 = vpop.f32.mrf.mxu0
    %v7909 = vadd.f32 %v7840, %v7908
    %v7910 = vpop.f32.mrf.mxu0
    %7911 = vmatprep.mubr.f32.mxu0 %v7822
    %7912 = vmatmul.mubr.f32.gmra.mxu0 %v7821
    %v7913 = vpop.f32.mrf.mxu0
    %v7914 = vadd.f32 %v7840, %v7913
    %v7915 = vpop.f32.mrf.mxu0
    %7916 = vmatprep.mubr.f32.mxu0 %v7824
    %7917 = vmatmul.mubr.f32.gmra.mxu0 %v7823
    %v7918 = vpop.f32.mrf.mxu0
    %v7919 = vadd.f32 %v7840, %v7918
    %v7920 = vpop.f32.mrf.mxu0
    %7921 = vmatprep.mubr.f32.mxu0 %v7826
    %7922 = vmatmul.mubr.f32.gmra.mxu0 %v7825
    %v7923 = vpop.f32.mrf.mxu0
    %v7924 = vadd.f32 %v7840, %v7923
    %v7925 = vpop.f32.mrf.mxu0
    %7926 = vmatprep.mubr.f32.mxu0 %v7828
    %7927 = vmatmul.mubr.f32.gmra.mxu0 %v7827
    %v7928 = vpop.f32.mrf.mxu0
    %v7929 = vadd.f32 %v7840, %v7928
    %v7930 = vpop.f32.mrf.mxu0
    %7931 = vmatprep.mubr.f32.mxu0 %v7830
    %7932 = vmatmul.mubr.f32.gmra.mxu0 %v7829
    %v7933 = vpop.f32.mrf.mxu0
    %v7934 = vadd.f32 %v7840, %v7933
    %v7935 = vpop.f32.mrf.mxu0
    %7936 = vmatprep.mubr.f32.mxu0 %v7832
    %7937 = vmatmul.mubr.f32.gmra.mxu0 %v7831
    %v7938 = vpop.f32.mrf.mxu0
    %v7939 = vadd.f32 %v7840, %v7938
    %v7940 = vpop.f32.mrf.mxu0
    %7941 = vdwg.mxu0
    %v7942 = vsub.f32 0.0, %v7909
    %v7943 = vsub.f32 0.0, %v7914
    %v7944 = vsub.f32 0.0, %v7919
    %v7945 = vsub.f32 0.0, %v7924
    %v7946 = vsub.f32 0.0, %v7929
    %v7947 = vsub.f32 0.0, %v7934
    %v7948 = vsub.f32 0.0, %v7939
    %v7949 = vmul.f32 %v7942, 1.442695
    %v7950 = vpow.pop %v7949
    %v7951 = vmul.f32 %v7943, 1.442695
    %v7952 = vpow.pop %v7951
    %v7953 = vmul.f32 %v7944, 1.442695
    %v7954 = vpow.pop %v7953
    %v7955 = vmul.f32 %v7945, 1.442695
    %v7956 = vpow.pop %v7955
    %v7957 = vmul.f32 %v7946, 1.442695
    %v7958 = vpow.pop %v7957
    %v7959 = vmul.f32 %v7947, 1.442695
    %v7960 = vpow.pop %v7959
    %v7961 = vmul.f32 %v7948, 1.442695
    %v7962 = vpow.pop %v7961
    %v7963 = vadd.f32 %v7950, 1.0
    %v7964 = vadd.f32 %v7952, 1.0
    %v7965 = vadd.f32 %v7954, 1.0
    %v7966 = vadd.f32 %v7956, 1.0
    %v7967 = vadd.f32 %v7958, 1.0
    %v7968 = vadd.f32 %v7960, 1.0
    %v7969 = vadd.f32 %v7962, 1.0
    %v7970 = vrcp.pop %v7963
    %v7971 = vmul.f32 1.0, %v7970
    %v7972 = vrcp.pop %v7964
    %v7973 = vmul.f32 1.0, %v7972
    %v7974 = vrcp.pop %v7965
    %v7975 = vmul.f32 1.0, %v7974
    %v7976 = vrcp.pop %v7966
    %v7977 = vmul.f32 1.0, %v7976
    %v7978 = vrcp.pop %v7967
    %v7979 = vmul.f32 1.0, %v7978
    %v7980 = vrcp.pop %v7968
    %v7981 = vmul.f32 1.0, %v7980
    %v7982 = vrcp.pop %v7969
    %v7983 = vmul.f32 1.0, %v7982
    %7991 = vrot.lane.b32.xlu0 %v7971, 12
    %v7992 = vpop.permute.xlu0 %7991
    %7993 = vrot.lane.b32.xlu0 %v7973, 12
    %v7994 = vpop.permute.xlu0 %7993
    %7995 = vrot.lane.b32.xlu0 %v7975, 12
    %v7996 = vpop.permute.xlu0 %7995
    %7997 = vrot.lane.b32.xlu0 %v7977, 12
    %v7998 = vpop.permute.xlu0 %7997
    %7999 = vrot.lane.b32.xlu0 %v7979, 12
    %v8000 = vpop.permute.xlu0 %7999
    %8001 = vrot.lane.b32.xlu0 %v7981, 12
    %v8002 = vpop.permute.xlu0 %8001
    %8003 = vrot.lane.b32.xlu0 %v7983, 12
    %v8004 = vpop.permute.xlu0 %8003
    %8019 = vrot.lane.b32.xlu0 %v6078, 24
    %v8020 = vpop.permute.xlu0 %8019
    %8021 = vrot.lane.b32.xlu0 %v6079, 24
    %v8022 = vpop.permute.xlu0 %8021
    %8023 = vrot.lane.b32.xlu0 %v6080, 24
    %v8024 = vpop.permute.xlu0 %8023
    %8025 = vrot.lane.b32.xlu0 %v6081, 24
    %v8026 = vpop.permute.xlu0 %8025
    %8027 = vrot.lane.b32.xlu0 %v6082, 24
    %v8028 = vpop.permute.xlu0 %8027
    %8029 = vrot.lane.b32.xlu0 %v6083, 24
    %v8030 = vpop.permute.xlu0 %8029
    %8031 = vrot.lane.b32.xlu0 %v6084, 24
    %v8032 = vpop.permute.xlu0 %8031
    %8040 = vrot.lane.b32.xlu0 %v6415, 28
    %v8041 = vpop.permute.xlu0 %8040
    %8042 = vrot.lane.b32.xlu0 %v6416, 28
    %v8043 = vpop.permute.xlu0 %8042
    %8044 = vrot.lane.b32.xlu0 %v6417, 28
    %v8045 = vpop.permute.xlu0 %8044
    %8046 = vrot.lane.b32.xlu0 %v6418, 28
    %v8047 = vpop.permute.xlu0 %8046
    %8048 = vrot.lane.b32.xlu0 %v6419, 28
    %v8049 = vpop.permute.xlu0 %8048
    %8050 = vrot.lane.b32.xlu0 %v6420, 28
    %v8051 = vpop.permute.xlu0 %8050
    %8052 = vrot.lane.b32.xlu0 %v6421, 28
    %v8053 = vpop.permute.xlu0 %8052
    %v8061 = vsel %vm2474, %v7282, %v7992
    %v8062 = vsel %vm2474, %v7284, %v7994
    %v8063 = vsel %vm2474, %v7286, %v7996
    %v8064 = vsel %vm2474, %v7288, %v7998
    %v8065 = vsel %vm2474, %v7290, %v8000
    %v8066 = vsel %vm2474, %v7292, %v8002
    %v8067 = vsel %vm2474, %v7294, %v8004
    %v8068 = vsel %vm839, %v8061, %v8020
    %v8069 = vsel %vm839, %v8062, %v8022
    %v8070 = vsel %vm839, %v8063, %v8024
    %v8071 = vsel %vm839, %v8064, %v8026
    %v8072 = vsel %vm839, %v8065, %v8028
    %v8073 = vsel %vm839, %v8066, %v8030
    %v8074 = vsel %vm839, %v8067, %v8032
    %v8075 = vsel %vm2710, %v8068, %v8041
    %v8076 = vsel %vm2710, %v8069, %v8043
    %v8077 = vsel %vm2710, %v8070, %v8045
    %v8078 = vsel %vm2710, %v8071, %v8047
    %v8079 = vsel %vm2710, %v8072, %v8049
    %v8080 = vsel %vm2710, %v8073, %v8051
    %v8081 = vsel %vm2710, %v8074, %v8053
    %vm8082 = vcmask 326656
    %8083 = vst.msk [vmem:[%s23] sm:$0xff] %vm8082, %v8075
    %8084 = vst.msk [vmem:[%s23 + $0x8] sm:$0xff] %vm8082, %v8076
    %8085 = vst.msk [vmem:[%s23 + $0x10] sm:$0xff] %vm8082, %v8077
    %8086 = vst.msk [vmem:[%s23 + $0x18] sm:$0xff] %vm8082, %v8078
    %8087 = vst.msk [vmem:[%s23 + $0x20] sm:$0xff] %vm8082, %v8079
    %8088 = vst.msk [vmem:[%s23 + $0x28] sm:$0xff] %vm8082, %v8080
    %8089 = vst.msk [vmem:[%s23 + $0x30] sm:$0xff] %vm8082, %v8081
    // Predicated region
    $region118: #{_mlp_forward_impl.1} parent=1 // pred_check
      _
    $region119: #{_mlp_forward_impl.1} parent=1 // pred_check_branch
      %8091 = sbr.rel (0) target = $region121
    $region120: #{_mlp_forward_impl.1} parent=1 // pred_region
      _
    $region121: #{_mlp_forward_impl.1} parent=1 // pred_fallthru
      _
    // Predicated region
    $region122: #{_mlp_forward_impl.1} parent=1 // pred_check
      _
    $region123: #{_mlp_forward_impl.1} parent=1 // pred_check_branch
      %8093 = sbr.rel (0) target = $region125
    $region124: #{_mlp_forward_impl.1} parent=1 // pred_region
      _
    $region125: #{_mlp_forward_impl.1} parent=1 // pred_fallthru
      _
    %8094 = vsyncpa [#allocation5], 1
    %8095 = vsyncpa [#allocation7], 1
    %8096 = vsyncpa [#allocation10], 1
    %8097 = vsyncpa [#allocation13], 1

</llo_original>
